<compile_context>
chip_gen: v7x
topology: tpu7x:2x2x1
jax: 0.10.0
libtpu: 0.0.40
codegen_flags: <defaults>
</compile_context>

<pallas_src>
import jax
import jax.numpy as jnp
from jax import lax
from jax.experimental import pallas as pl
from jax.experimental.pallas import tpu as pltpu


# ---------------------------------------------------------------------------
# Kernel helpers (traced inside kernels)
# ---------------------------------------------------------------------------
def _conv3x3_taps(xp, w_ref, acc):
    """Accumulate 9 shifted (tH*W, Cin) x (Cin, Cout) MXU matmuls.

    xp: (tH+2, W+2, Cin) bf16 value (already zero-padded in VMEM)
    w_ref: (3, 3, Cin, Cout) bf16 ref
    acc: (tH*W, Cout) f32 value
    """
    tHp, Wp, _ = xp.shape
    tH, W = tHp - 2, Wp - 2
    for dy in range(3):
        for dx in range(3):
            patch = xp[dy:dy + tH, dx:dx + W, :].reshape(tH * W, xp.shape[-1])
            acc = acc + jnp.dot(patch, w_ref[dy, dx],
                                preferred_element_type=jnp.float32)
    return acc
    # TODO(synk): for real UNet channel counts, im2col (K=9*Cin) + Cout tiling
    # would fill the 256-wide MXU much better than 9 small pushes.


def _assemble_padded(body, top, bot):
    """Stack halo rows around the body tile and zero-pad W by 1 on each side.

    body: (tH, W, C) f32; top/bot: (1, W, C) f32 (already zeroed at image edges).
    Returns (tH+2, W+2, C) f32 — the zero padding only ever lives in VMEM.
    """
    rows = jnp.concatenate([top, body, bot], axis=0)              # (tH+2, W, C)
    zc = jnp.zeros((rows.shape[0], 1, rows.shape[2]), jnp.float32)
    return jnp.concatenate([zc, rows, zc], axis=1)                # (tH+2, W+2, C)


def _emit_stats(stats_ref, acc):
    """Write per-tile channel sum and sum-of-squares (for BN batch statistics)."""
    s = acc.sum(axis=0, keepdims=True)
    ss = (acc * acc).sum(axis=0, keepdims=True)
    stats_ref[0, 0] = jnp.concatenate([s, ss], axis=0)            # (2, Cout)


# ---------------------------------------------------------------------------
# Pallas kernels
# ---------------------------------------------------------------------------
def _conv1_kernel(xa_ref, xat_ref, xab_ref, xb_ref, xbt_ref, xbb_ref,
                  wa_ref, wb_ref, y_ref, stats_ref):
    # First conv of DoubleConv. The torch.cat([x2, x1], dim=1) is never
    # materialized: the two sources are read separately and accumulated with
    # split weight slabs. Row halos arrive as 1-row blocks of the same array.
    i = pl.program_id(1)
    nt = pl.num_programs(1)
    tH, W = xa_ref.shape[1], xa_ref.shape[2]
    Cout = y_ref.shape[-1]

    def padded(b_ref, t_ref, bt_ref):
        body = b_ref[0].astype(jnp.float32)
        top = jnp.where(i > 0, t_ref[0].astype(jnp.float32), 0.0)
        bot = jnp.where(i + 1 < nt, bt_ref[0].astype(jnp.float32), 0.0)
        return _assemble_padded(body, top, bot).astype(jnp.bfloat16)

    acc = jnp.zeros((tH * W, Cout), jnp.float32)
    acc = _conv3x3_taps(padded(xa_ref, xat_ref, xab_ref), wa_ref, acc)
    acc = _conv3x3_taps(padded(xb_ref, xbt_ref, xbb_ref), wb_ref, acc)

    y_ref[0] = acc.reshape(tH, W, Cout).astype(y_ref.dtype)
    _emit_stats(stats_ref, acc)


def _conv2_kernel(x_ref, xt_ref, xb_ref, scale_ref, shift_ref, w_ref,
                  y_ref, stats_ref):
    # Second conv. The BatchNorm-affine + ReLU of conv1's output is fused into
    # the prologue (applied in f32 before the bf16 cast), so the normalized
    # activation never touches HBM. Halo rows get the same affine+ReLU; halos
    # outside the image are zero (matching zero padding of the activation).
    i = pl.program_id(1)
    nt = pl.num_programs(1)
    tH, W = x_ref.shape[1], x_ref.shape[2]
    Cout = y_ref.shape[-1]
    scale = scale_ref[0].astype(jnp.float32)[None, None, :]
    shift = shift_ref[0].astype(jnp.float32)[None, None, :]

    def act(v):
        return jnp.maximum(v.astype(jnp.float32) * scale + shift, 0.0)

    body = act(x_ref[0])
    top = jnp.where(i > 0, act(xt_ref[0]), 0.0)
    bot = jnp.where(i + 1 < nt, act(xb_ref[0]), 0.0)
    xp = _assemble_padded(body, top, bot).astype(jnp.bfloat16)

    acc = jnp.zeros((tH * W, Cout), jnp.float32)
    acc = _conv3x3_taps(xp, w_ref, acc)

    y_ref[0] = acc.reshape(tH, W, Cout).astype(y_ref.dtype)
    _emit_stats(stats_ref, acc)


def _bn_relu_kernel(x_ref, scale_ref, shift_ref, o_ref):
    # Final BN-affine + ReLU (nothing follows it to fuse into).
    x = x_ref[...].astype(jnp.float32)
    scale = scale_ref[0].astype(jnp.float32)[None, None, None, :]
    shift = shift_ref[0].astype(jnp.float32)[None, None, None, :]
    o_ref[...] = jnp.maximum(x * scale + shift, 0.0).astype(o_ref.dtype)


# ---------------------------------------------------------------------------
# Pallas wrappers
# ---------------------------------------------------------------------------
def _pick_tile_h(H, target):
    """Largest divisor of H that is <= target (so blocks tile H exactly)."""
    t = max(1, min(int(target), H))
    while H % t != 0:
        t -= 1
    return t


def _halo_specs(H, tH, W, C):
    """Body block + clamped 1-row top/bottom halo blocks over the same array."""
    body = pl.BlockSpec((1, tH, W, C), lambda n, i: (n, i, 0, 0))
    top = pl.BlockSpec((1, 1, W, C),
                       lambda n, i: (n, jnp.maximum(i * tH - 1, 0), 0, 0))
    bot = pl.BlockSpec((1, 1, W, C),
                       lambda n, i: (n, jnp.minimum((i + 1) * tH, H - 1), 0, 0))
    return body, top, bot


def conv1_pallas(xa, xb, wa, wb, tile_h):
    """First 3x3 conv (stride 1, pad 1) over the implicit concat [xa, xb].

    Returns (raw conv output f32, per-tile [sum, sum_sq] stats (N, nt, 2, Cout)).
    """
    N, H, W, Ca = xa.shape
    Cb = xb.shape[-1]
    Cout = wa.shape[-1]
    tH = _pick_tile_h(H, tile_h)
    nt = H // tH

    a_body, a_top, a_bot = _halo_specs(H, tH, W, Ca)
    b_body, b_top, b_bot = _halo_specs(H, tH, W, Cb)

    return pl.pallas_call(
        _conv1_kernel,
        out_shape=(jax.ShapeDtypeStruct((N, H, W, Cout), jnp.float32),
                   jax.ShapeDtypeStruct((N, nt, 2, Cout), jnp.float32)),
        grid=(N, nt),
        in_specs=[a_body, a_top, a_bot, b_body, b_top, b_bot,
                  pl.BlockSpec((3, 3, Ca, Cout), lambda n, i: (0, 0, 0, 0)),
                  pl.BlockSpec((3, 3, Cb, Cout), lambda n, i: (0, 0, 0, 0))],
        out_specs=(pl.BlockSpec((1, tH, W, Cout), lambda n, i: (n, i, 0, 0)),
                   pl.BlockSpec((1, 1, 2, Cout), lambda n, i: (n, i, 0, 0))),
        compiler_params=pltpu.CompilerParams(
            dimension_semantics=("parallel", "parallel")),
    )(xa, xa, xa, xb, xb, xb,
      wa.astype(jnp.bfloat16), wb.astype(jnp.bfloat16))


def conv2_pallas(x, scale_in, shift_in, w, tile_h):
    """Second 3x3 conv with fused BN-affine + ReLU prologue on its input."""
    N, H, W, Cin = x.shape
    Cout = w.shape[-1]
    tH = _pick_tile_h(H, tile_h)
    nt = H // tH
    body, top, bot = _halo_specs(H, tH, W, Cin)

    return pl.pallas_call(
        _conv2_kernel,
        out_shape=(jax.ShapeDtypeStruct((N, H, W, Cout), jnp.float32),
                   jax.ShapeDtypeStruct((N, nt, 2, Cout), jnp.float32)),
        grid=(N, nt),
        in_specs=[body, top, bot,
                  pl.BlockSpec((1, Cin), lambda n, i: (0, 0)),
                  pl.BlockSpec((1, Cin), lambda n, i: (0, 0)),
                  pl.BlockSpec((3, 3, Cin, Cout), lambda n, i: (0, 0, 0, 0))],
        out_specs=(pl.BlockSpec((1, tH, W, Cout), lambda n, i: (n, i, 0, 0)),
                   pl.BlockSpec((1, 1, 2, Cout), lambda n, i: (n, i, 0, 0))),
        compiler_params=pltpu.CompilerParams(
            dimension_semantics=("parallel", "parallel")),
    )(x, x, x, scale_in.reshape(1, Cin), shift_in.reshape(1, Cin),
      w.astype(jnp.bfloat16))


def bn_relu_pallas(x, scale, shift, tile_h):
    """y = relu(x * scale + shift) with per-channel scale/shift, row-tiled."""
    N, H, W, C = x.shape
    tH = _pick_tile_h(H, tile_h)
    return pl.pallas_call(
        _bn_relu_kernel,
        out_shape=jax.ShapeDtypeStruct((N, H, W, C), jnp.float32),
        grid=(N, H // tH),
        in_specs=[pl.BlockSpec((1, tH, W, C), lambda n, i: (n, i, 0, 0)),
                  pl.BlockSpec((1, C), lambda n, i: (0, 0)),
                  pl.BlockSpec((1, C), lambda n, i: (0, 0))],
        out_specs=pl.BlockSpec((1, tH, W, C), lambda n, i: (n, i, 0, 0)),
        compiler_params=pltpu.CompilerParams(
            dimension_semantics=("parallel", "parallel")),
    )(x, scale.reshape(1, C), shift.reshape(1, C))


# ---------------------------------------------------------------------------
# BN finalize (tiny per-channel vectors) + DoubleConv composition
# ---------------------------------------------------------------------------
def _bn_scale_shift(stats, count, gamma, beta, eps=1e-5):
    # Training-mode BatchNorm2d: batch stats over (N, H, W), biased variance.
    s = stats[:, :, 0, :].sum(axis=(0, 1))
    ss = stats[:, :, 1, :].sum(axis=(0, 1))
    mean = s / count
    var = jnp.maximum(ss / count - mean * mean, 0.0)
    scale = gamma / jnp.sqrt(var + eps)
    shift = beta - mean * scale
    return scale, shift


def double_conv(x2_nhwc, x1_nhwc, params, tile_h=8):
    # tile_h should be sized per generation against the scoped-VMEM budget
    # (v5e/v6e: 16/32 MiB default scoped; v7x: 64 MiB physical, 2 TCs).
    N, H, W, _ = x2_nhwc.shape
    count = float(N * H * W)

    y1, st1 = conv1_pallas(x2_nhwc, x1_nhwc, params["w1a"], params["w1b"], tile_h)
    scale1, shift1 = _bn_scale_shift(st1, count, params["g1"], params["be1"])

    y2, st2 = conv2_pallas(y1, scale1, shift1, params["w2"], tile_h)
    scale2, shift2 = _bn_scale_shift(st2, count, params["g2"], params["be2"])

    return bn_relu_pallas(y2, scale2, shift2, tile_h)


# ---------------------------------------------------------------------------
# Glue: bilinear upsample (align_corners=True) in NHWC, spatial pad/crop
# ---------------------------------------------------------------------------
# TODO(synk): the align_corners bilinear upsample is gather-based; it stays in
# plain JAX (it is small relative to the convs) rather than a Pallas kernel.
def bilinear_up2_align_corners_nhwc(x):
    N, H, W, C = x.shape
    Ho, Wo = 2 * H, 2 * W

    def coords(n_in, n_out):
        if n_in == 1:
            z = jnp.zeros((n_out,), jnp.int32)
            return jnp.zeros((n_out,), jnp.float32), z, z
        src = jnp.arange(n_out, dtype=jnp.float32) * (n_in - 1) / (n_out - 1)
        lo = jnp.floor(src).astype(jnp.int32)
        hi = jnp.minimum(lo + 1, n_in - 1)
        return src - lo.astype(jnp.float32), lo, hi

    fy, y0, y1 = coords(H, Ho)
    fx, x0, x1 = coords(W, Wo)
    rows = (x[:, y0, :, :] * (1.0 - fy)[None, :, None, None]
            + x[:, y1, :, :] * fy[None, :, None, None])
    out = (rows[:, :, x0, :] * (1.0 - fx)[None, None, :, None]
           + rows[:, :, x1, :] * fx[None, None, :, None])
    return out


@jax.jit
def up_forward(x1_nchw, x2_nchw, params):
    # NCHW at the module boundary (PyTorch parity); NHWC end-to-end inside.
    x1 = jnp.transpose(x1_nchw, (0, 2, 3, 1))
    x2 = jnp.transpose(x2_nchw, (0, 2, 3, 1))
    # 1) bilinear upsample x1 by 2 (align_corners=True)
    x1 = bilinear_up2_align_corners_nhwc(x1)
    # 2) pad (or crop, like F.pad with negative pads) x1 to match x2 spatially
    diffY = x2.shape[1] - x1.shape[1]
    diffX = x2.shape[2] - x1.shape[2]
    x1 = lax.pad(x1, jnp.zeros((), x1.dtype),
                 ((0, 0, 0),
                  (diffY // 2, diffY - diffY // 2, 0),
                  (diffX // 2, diffX - diffX // 2, 0),
                  (0, 0, 0)))
    # 3+4) implicit concat [x2, x1] + DoubleConv via split-weight conv kernels
    out = double_conv(x2, x1, params)
    return jnp.transpose(out, (0, 3, 1, 2))  # back to NCHW


# ---------------------------------------------------------------------------
# Deterministic parameter init + demo
# ---------------------------------------------------------------------------
def init_params(key, in_channels, out_channels):
    k1, k2 = jax.random.split(key, 2)
    scale1 = 1.0 / jnp.sqrt(in_channels * 9.0)
    scale2 = 1.0 / jnp.sqrt(out_channels * 9.0)
    c2 = in_channels // 2  # skip-connection (x2) channels come first in the concat
    w1 = jax.random.uniform(k1, (3, 3, in_channels, out_channels),
                            jnp.float32, -scale1, scale1)
    w2 = jax.random.uniform(k2, (3, 3, out_channels, out_channels),
                            jnp.float32, -scale2, scale2)
    return {
        # conv1 weight split along Cin to match the implicit concat [x2, x1]
        "w1a": w1[:, :, :c2, :],
        "w1b": w1[:, :, c2:, :],
        "g1": jnp.ones((out_channels,), jnp.float32),
        "be1": jnp.zeros((out_channels,), jnp.float32),
        "w2": w2,
        "g2": jnp.ones((out_channels,), jnp.float32),
        "be2": jnp.zeros((out_channels,), jnp.float32),
        # NOTE: Conv2d biases are omitted — a per-channel bias immediately
        # followed by training-mode BatchNorm (batch-mean subtraction) cancels
        # exactly, so forward semantics are unchanged.
    }


if __name__ == "__main__":
    in_channels, out_channels = 8, 4
    key = jax.random.PRNGKey(0)
    kx1, kx2, kp = jax.random.split(key, 3)

    # x1: low-res feature map (in_channels//2 channels), x2: skip connection
    x1 = jax.random.normal(kx1, (2, in_channels // 2, 8, 8), jnp.float32)
    x2 = jax.random.normal(kx2, (2, in_channels // 2, 16, 16), jnp.float32)
    params = init_params(kp, in_channels, out_channels)

    out = up_forward(x1, x2, params)
    jax.block_until_ready(out)
    assert out.shape == (2, out_channels, 16, 16)
    print("KERNEL_OK")
</pallas_src>

<mosaic_0001>
module attributes {stable_mosaic.version = 11 : i64} {
  func.func @_bn_relu_kernel(%arg0: i32, %arg1: i32, %arg2: memref<1x8x16x4xf32, #tpu.memory_space<vmem>>, %arg3: memref<1x4xf32, #tpu.memory_space<vmem>>, %arg4: memref<1x4xf32, #tpu.memory_space<vmem>>, %arg5: memref<1x8x16x4xf32, #tpu.memory_space<vmem>>) attributes {dimension_semantics = [#tpu.dimension_semantics<parallel>, #tpu.dimension_semantics<parallel>], iteration_bounds = array<i64: 2, 2>, scalar_prefetch = 0 : i64, scratch_operands = 0 : i64, tpu.core_type = #tpu.core_type<tc>, window_params = [{transform_indices = @transform_0, window_bounds = array<i64: 1, 8, 16, 4>}, {pipeline_mode = #tpu.pipeline_mode<synchronous>, transform_indices = @transform_1, window_bounds = array<i64: 1, 4>}, {pipeline_mode = #tpu.pipeline_mode<synchronous>, transform_indices = @transform_2, window_bounds = array<i64: 1, 4>}, {transform_indices = @transform_3, window_bounds = array<i64: 1, 8, 16, 4>}]} {
    %c0 = arith.constant 0 : index
    %c0_0 = arith.constant 0 : index
    %c0_1 = arith.constant 0 : index
    %c0_2 = arith.constant 0 : index
    %0 = vector.load %arg2[%c0, %c0_0, %c0_1, %c0_2] : memref<1x8x16x4xf32, #tpu.memory_space<vmem>>, vector<1x8x16x4xf32>
    %c0_3 = arith.constant 0 : index
    %c0_4 = arith.constant 0 : index
    %1 = vector.load %arg3[%c0_3, %c0_4] : memref<1x4xf32, #tpu.memory_space<vmem>>, vector<1x4xf32>
    %2 = vector.shape_cast %1 : vector<1x4xf32> to vector<4xf32>
    %3 = vector.shape_cast %2 : vector<4xf32> to vector<1x1x1x4xf32>
    %c0_5 = arith.constant 0 : index
    %c0_6 = arith.constant 0 : index
    %4 = vector.load %arg4[%c0_5, %c0_6] : memref<1x4xf32, #tpu.memory_space<vmem>>, vector<1x4xf32>
    %5 = vector.shape_cast %4 : vector<1x4xf32> to vector<4xf32>
    %6 = vector.shape_cast %5 : vector<4xf32> to vector<1x1x1x4xf32>
    %7 = vector.broadcast %3 : vector<1x1x1x4xf32> to vector<1x8x16x4xf32>
    %8 = arith.mulf %0, %7 : vector<1x8x16x4xf32>
    %9 = vector.broadcast %6 : vector<1x1x1x4xf32> to vector<1x8x16x4xf32>
    %10 = arith.addf %8, %9 : vector<1x8x16x4xf32>
    %cst = arith.constant 0.000000e+00 : f32
    %11 = vector.broadcast %cst : f32 to vector<1x8x16x4xf32>
    %12 = arith.maximumf %10, %11 : vector<1x8x16x4xf32>
    %c0_7 = arith.constant 0 : index
    %c0_8 = arith.constant 0 : index
    %c0_9 = arith.constant 0 : index
    %c0_10 = arith.constant 0 : index
    %13 = vector.load %arg5[%c0_7, %c0_8, %c0_9, %c0_10] : memref<1x8x16x4xf32, #tpu.memory_space<vmem>>, vector<1x8x16x4xf32>
    tpu.vector_store %arg5[%c0_7, %c0_8, %c0_9, %c0_10], %12 {strides = array<i32>} : memref<1x8x16x4xf32, #tpu.memory_space<vmem>>, vector<1x8x16x4xf32>,
    return
  }
  func.func @transform_0(%arg0: i32, %arg1: i32) -> (i32, i32, i32, i32) {
    %c0_i32 = arith.constant 0 : i32
    %c0_i32_0 = arith.constant 0 : i32
    %c0_i32_1 = arith.constant 0 : i32
    return %arg0, %arg1, %c0_i32, %c0_i32_0 : i32, i32, i32, i32
  }
  func.func @transform_1(%arg0: i32, %arg1: i32) -> (i32, i32) {
    %c0_i32 = arith.constant 0 : i32
    %c0_i32_0 = arith.constant 0 : i32
    %c0_i32_1 = arith.constant 0 : i32
    return %c0_i32, %c0_i32_0 : i32, i32
  }
  func.func @transform_2(%arg0: i32, %arg1: i32) -> (i32, i32) {
    %c0_i32 = arith.constant 0 : i32
    %c0_i32_0 = arith.constant 0 : i32
    %c0_i32_1 = arith.constant 0 : i32
    return %c0_i32, %c0_i32_0 : i32, i32
  }
  func.func @transform_3(%arg0: i32, %arg1: i32) -> (i32, i32, i32, i32) {
    %c0_i32 = arith.constant 0 : i32
    %c0_i32_0 = arith.constant 0 : i32
    %c0_i32_1 = arith.constant 0 : i32
    return %arg0, %arg1, %c0_i32, %c0_i32_0 : i32, i32, i32, i32
  }
}

module attributes {stable_mosaic.version = 11 : i64} {
  func.func @_conv2_kernel(%arg0: i32, %arg1: i32, %arg2: memref<1x8x16x4xf32, #tpu.memory_space<vmem>>, %arg3: memref<1x1x16x4xf32, #tpu.memory_space<vmem>>, %arg4: memref<1x1x16x4xf32, #tpu.memory_space<vmem>>, %arg5: memref<1x4xf32, #tpu.memory_space<vmem>>, %arg6: memref<1x4xf32, #tpu.memory_space<vmem>>, %arg7: memref<3x3x4x4xbf16, #tpu.memory_space<vmem>>, %arg8: memref<1x8x16x4xf32, #tpu.memory_space<vmem>>, %arg9: memref<1x1x2x4xf32, #tpu.memory_space<vmem>>) attributes {dimension_semantics = [#tpu.dimension_semantics<parallel>, #tpu.dimension_semantics<parallel>], iteration_bounds = array<i64: 2, 2>, scalar_prefetch = 0 : i64, scratch_operands = 0 : i64, tpu.core_type = #tpu.core_type<tc>, window_params = [{transform_indices = @transform_0, window_bounds = array<i64: 1, 8, 16, 4>}, {transform_indices = @transform_1, window_bounds = array<i64: 1, 1, 16, 4>}, {transform_indices = @transform_2, window_bounds = array<i64: 1, 1, 16, 4>}, {pipeline_mode = #tpu.pipeline_mode<synchronous>, transform_indices = @transform_3, window_bounds = array<i64: 1, 4>}, {pipeline_mode = #tpu.pipeline_mode<synchronous>, transform_indices = @transform_4, window_bounds = array<i64: 1, 4>}, {pipeline_mode = #tpu.pipeline_mode<synchronous>, transform_indices = @transform_5, window_bounds = array<i64: 3, 3, 4, 4>}, {transform_indices = @transform_6, window_bounds = array<i64: 1, 8, 16, 4>}, {transform_indices = @transform_7, window_bounds = array<i64: 1, 1, 2, 4>}]} {
    %c0 = arith.constant 0 : index
    %c0_0 = arith.constant 0 : index
    %0 = vector.load %arg5[%c0, %c0_0] : memref<1x4xf32, #tpu.memory_space<vmem>>, vector<1x4xf32>
    %1 = vector.shape_cast %0 : vector<1x4xf32> to vector<4xf32>
    %2 = vector.shape_cast %1 : vector<4xf32> to vector<1x1x4xf32>
    %c0_1 = arith.constant 0 : index
    %c0_2 = arith.constant 0 : index
    %3 = vector.load %arg6[%c0_1, %c0_2] : memref<1x4xf32, #tpu.memory_space<vmem>>, vector<1x4xf32>
    %4 = vector.shape_cast %3 : vector<1x4xf32> to vector<4xf32>
    %5 = vector.shape_cast %4 : vector<4xf32> to vector<1x1x4xf32>
    %c0_3 = arith.constant 0 : index
    %c0_4 = arith.constant 0 : index
    %c0_5 = arith.constant 0 : index
    %c0_6 = arith.constant 0 : index
    %6 = vector.load %arg2[%c0_3, %c0_4, %c0_5, %c0_6] : memref<1x8x16x4xf32, #tpu.memory_space<vmem>>, vector<1x8x16x4xf32>
    %7 = vector.shape_cast %6 : vector<1x8x16x4xf32> to vector<8x16x4xf32>
    %8 = vector.broadcast %2 : vector<1x1x4xf32> to vector<8x16x4xf32>
    %9 = arith.mulf %7, %8 : vector<8x16x4xf32>
    %10 = vector.broadcast %5 : vector<1x1x4xf32> to vector<8x16x4xf32>
    %11 = arith.addf %9, %10 : vector<8x16x4xf32>
    %cst = arith.constant 0.000000e+00 : f32
    %12 = vector.broadcast %cst : f32 to vector<8x16x4xf32>
    %13 = arith.maximumf %11, %12 : vector<8x16x4xf32>
    %c0_i32 = arith.constant 0 : i32
    %14 = arith.cmpi sgt, %arg1, %c0_i32 : i32
    %c0_7 = arith.constant 0 : index
    %c0_8 = arith.constant 0 : index
    %c0_9 = arith.constant 0 : index
    %c0_10 = arith.constant 0 : index
    %15 = vector.load %arg3[%c0_7, %c0_8, %c0_9, %c0_10] : memref<1x1x16x4xf32, #tpu.memory_space<vmem>>, vector<1x1x16x4xf32>
    %16 = vector.shape_cast %15 : vector<1x1x16x4xf32> to vector<1x16x4xf32>
    %17 = vector.broadcast %2 : vector<1x1x4xf32> to vector<1x16x4xf32>
    %18 = arith.mulf %16, %17 : vector<1x16x4xf32>
    %19 = vector.broadcast %5 : vector<1x1x4xf32> to vector<1x16x4xf32>
    %20 = arith.addf %18, %19 : vector<1x16x4xf32>
    %cst_11 = arith.constant 0.000000e+00 : f32
    %21 = vector.broadcast %cst_11 : f32 to vector<1x16x4xf32>
    %22 = arith.maximumf %20, %21 : vector<1x16x4xf32>
    %cst_12 = arith.constant 0.000000e+00 : f32
    %23 = vector.broadcast %cst_12 : f32 to vector<1x16x4xf32>
    %24 = arith.select %14, %22, %23 : vector<1x16x4xf32>
    %c1_i32 = arith.constant 1 : i32
    %25 = arith.addi %arg1, %c1_i32 : i32
    %c2_i32 = arith.constant 2 : i32
    %26 = arith.cmpi slt, %25, %c2_i32 : i32
    %c0_13 = arith.constant 0 : index
    %c0_14 = arith.constant 0 : index
    %c0_15 = arith.constant 0 : index
    %c0_16 = arith.constant 0 : index
    %27 = vector.load %arg4[%c0_13, %c0_14, %c0_15, %c0_16] : memref<1x1x16x4xf32, #tpu.memory_space<vmem>>, vector<1x1x16x4xf32>
    %28 = vector.shape_cast %27 : vector<1x1x16x4xf32> to vector<1x16x4xf32>
    %29 = vector.broadcast %2 : vector<1x1x4xf32> to vector<1x16x4xf32>
    %30 = arith.mulf %28, %29 : vector<1x16x4xf32>
    %31 = vector.broadcast %5 : vector<1x1x4xf32> to vector<1x16x4xf32>
    %32 = arith.addf %30, %31 : vector<1x16x4xf32>
    %cst_17 = arith.constant 0.000000e+00 : f32
    %33 = vector.broadcast %cst_17 : f32 to vector<1x16x4xf32>
    %34 = arith.maximumf %32, %33 : vector<1x16x4xf32>
    %cst_18 = arith.constant 0.000000e+00 : f32
    %35 = vector.broadcast %cst_18 : f32 to vector<1x16x4xf32>
    %36 = arith.select %26, %34, %35 : vector<1x16x4xf32>
    %37 = tpu.concatenate %24, %13, %36 in 0 : vector<1x16x4xf32>, vector<8x16x4xf32>, vector<1x16x4xf32> -> vector<10x16x4xf32>
    %cst_19 = arith.constant 0.000000e+00 : f32
    %38 = vector.broadcast %cst_19 : f32 to vector<10x1x4xf32>
    %39 = tpu.concatenate %38, %37, %38 in 1 : vector<10x1x4xf32>, vector<10x16x4xf32>, vector<10x1x4xf32> -> vector<10x18x4xf32>
    %40 = arith.truncf %39 : vector<10x18x4xf32> to vector<10x18x4xbf16>
    %cst_20 = arith.constant 0.000000e+00 : f32
    %41 = vector.broadcast %cst_20 : f32 to vector<128x4xf32>
    %42 = vector.extract_strided_slice %40 {offsets = [0, 0, 0], sizes = [8, 16, 4], strides = [1, 1, 1]} : vector<10x18x4xbf16> to vector<8x16x4xbf16>
    %43 = vector.shape_cast %42 : vector<8x16x4xbf16> to vector<128x4xbf16>
    %c0_21 = arith.constant 0 : index
    %c0_22 = arith.constant 0 : index
    %c0_23 = arith.constant 0 : index
    %c0_24 = arith.constant 0 : index
    %44 = vector.load %arg7[%c0_21, %c0_22, %c0_23, %c0_24] : memref<3x3x4x4xbf16, #tpu.memory_space<vmem>>, vector<1x1x4x4xbf16>
    %45 = vector.shape_cast %44 : vector<1x1x4x4xbf16> to vector<4x4xbf16>
    %cst_25 = arith.constant dense<0.000000e+00> : vector<128x4xf32>
    %46 = tpu.matmul %43, %45, %cst_25 {dimension_numbers = #tpu.dot_dimension_numbers<[1], [0], [0], [1], [0, 0, 1, 1], [], []>} : vector<128x4xbf16>, vector<4x4xbf16>, vector<128x4xf32> -> vector<128x4xf32>
    %47 = arith.addf %41, %46 : vector<128x4xf32>
    %48 = vector.extract_strided_slice %40 {offsets = [0, 1, 0], sizes = [8, 16, 4], strides = [1, 1, 1]} : vector<10x18x4xbf16> to vector<8x16x4xbf16>
    %49 = vector.shape_cast %48 : vector<8x16x4xbf16> to vector<128x4xbf16>
    %c0_26 = arith.constant 0 : index
    %c1 = arith.constant 1 : index
    %c0_27 = arith.constant 0 : index
    %c0_28 = arith.constant 0 : index
    %50 = vector.load %arg7[%c0_26, %c1, %c0_27, %c0_28] : memref<3x3x4x4xbf16, #tpu.memory_space<vmem>>, vector<1x1x4x4xbf16>
    %51 = vector.shape_cast %50 : vector<1x1x4x4xbf16> to vector<4x4xbf16>
    %cst_29 = arith.constant dense<0.000000e+00> : vector<128x4xf32>
    %52 = tpu.matmul %49, %51, %cst_29 {dimension_numbers = #tpu.dot_dimension_numbers<[1], [0], [0], [1], [0, 0, 1, 1], [], []>} : vector<128x4xbf16>, vector<4x4xbf16>, vector<128x4xf32> -> vector<128x4xf32>
    %53 = arith.addf %47, %52 : vector<128x4xf32>
    %54 = vector.extract_strided_slice %40 {offsets = [0, 2, 0], sizes = [8, 16, 4], strides = [1, 1, 1]} : vector<10x18x4xbf16> to vector<8x16x4xbf16>
    %55 = vector.shape_cast %54 : vector<8x16x4xbf16> to vector<128x4xbf16>
    %c0_30 = arith.constant 0 : index
    %c2 = arith.constant 2 : index
    %c0_31 = arith.constant 0 : index
    %c0_32 = arith.constant 0 : index
    %56 = vector.load %arg7[%c0_30, %c2, %c0_31, %c0_32] : memref<3x3x4x4xbf16, #tpu.memory_space<vmem>>, vector<1x1x4x4xbf16>
    %57 = vector.shape_cast %56 : vector<1x1x4x4xbf16> to vector<4x4xbf16>
    %cst_33 = arith.constant dense<0.000000e+00> : vector<128x4xf32>
    %58 = tpu.matmul %55, %57, %cst_33 {dimension_numbers = #tpu.dot_dimension_numbers<[1], [0], [0], [1], [0, 0, 1, 1], [], []>} : vector<128x4xbf16>, vector<4x4xbf16>, vector<128x4xf32> -> vector<128x4xf32>
    %59 = arith.addf %53, %58 : vector<128x4xf32>
    %60 = vector.extract_strided_slice %40 {offsets = [1, 0, 0], sizes = [8, 16, 4], strides = [1, 1, 1]} : vector<10x18x4xbf16> to vector<8x16x4xbf16>
    %61 = vector.shape_cast %60 : vector<8x16x4xbf16> to vector<128x4xbf16>
    %c1_34 = arith.constant 1 : index
    %c0_35 = arith.constant 0 : index
    %c0_36 = arith.constant 0 : index
    %c0_37 = arith.constant 0 : index
    %62 = vector.load %arg7[%c1_34, %c0_35, %c0_36, %c0_37] : memref<3x3x4x4xbf16, #tpu.memory_space<vmem>>, vector<1x1x4x4xbf16>
    %63 = vector.shape_cast %62 : vector<1x1x4x4xbf16> to vector<4x4xbf16>
    %cst_38 = arith.constant dense<0.000000e+00> : vector<128x4xf32>
    %64 = tpu.matmul %61, %63, %cst_38 {dimension_numbers = #tpu.dot_dimension_numbers<[1], [0], [0], [1], [0, 0, 1, 1], [], []>} : vector<128x4xbf16>, vector<4x4xbf16>, vector<128x4xf32> -> vector<128x4xf32>
    %65 = arith.addf %59, %64 : vector<128x4xf32>
    %66 = vector.extract_strided_slice %40 {offsets = [1, 1, 0], sizes = [8, 16, 4], strides = [1, 1, 1]} : vector<10x18x4xbf16> to vector<8x16x4xbf16>
    %67 = vector.shape_cast %66 : vector<8x16x4xbf16> to vector<128x4xbf16>
    %c1_39 = arith.constant 1 : index
    %c1_40 = arith.constant 1 : index
    %c0_41 = arith.constant 0 : index
    %c0_42 = arith.constant 0 : index
    %68 = vector.load %arg7[%c1_39, %c1_40, %c0_41, %c0_42] : memref<3x3x4x4xbf16, #tpu.memory_space<vmem>>, vector<1x1x4x4xbf16>
    %69 = vector.shape_cast %68 : vector<1x1x4x4xbf16> to vector<4x4xbf16>
    %cst_43 = arith.constant dense<0.000000e+00> : vector<128x4xf32>
    %70 = tpu.matmul %67, %69, %cst_43 {dimension_numbers = #tpu.dot_dimension_numbers<[1], [0], [0], [1], [0, 0, 1, 1], [], []>} : vector<128x4xbf16>, vector<4x4xbf16>, vector<128x4xf32> -> vector<128x4xf32>
    %71 = arith.addf %65, %70 : vector<128x4xf32>
    %72 = vector.extract_strided_slice %40 {offsets = [1, 2, 0], sizes = [8, 16, 4], strides = [1, 1, 1]} : vector<10x18x4xbf16> to vector<8x16x4xbf16>
    %73 = vector.shape_cast %72 : vector<8x16x4xbf16> to vector<128x4xbf16>
    %c1_44 = arith.constant 1 : index
    %c2_45 = arith.constant 2 : index
    %c0_46 = arith.constant 0 : index
    %c0_47 = arith.constant 0 : index
    %74 = vector.load %arg7[%c1_44, %c2_45, %c0_46, %c0_47] : memref<3x3x4x4xbf16, #tpu.memory_space<vmem>>, vector<1x1x4x4xbf16>
    %75 = vector.shape_cast %74 : vector<1x1x4x4xbf16> to vector<4x4xbf16>
    %cst_48 = arith.constant dense<0.000000e+00> : vector<128x4xf32>
    %76 = tpu.matmul %73, %75, %cst_48 {dimension_numbers = #tpu.dot_dimension_numbers<[1], [0], [0], [1], [0, 0, 1, 1], [], []>} : vector<128x4xbf16>, vector<4x4xbf16>, vector<128x4xf32> -> vector<128x4xf32>
    %77 = arith.addf %71, %76 : vector<128x4xf32>
    %78 = vector.extract_strided_slice %40 {offsets = [2, 0, 0], sizes = [8, 16, 4], strides = [1, 1, 1]} : vector<10x18x4xbf16> to vector<8x16x4xbf16>
    %79 = vector.shape_cast %78 : vector<8x16x4xbf16> to vector<128x4xbf16>
    %c2_49 = arith.constant 2 : index
    %c0_50 = arith.constant 0 : index
    %c0_51 = arith.constant 0 : index
    %c0_52 = arith.constant 0 : index
    %80 = vector.load %arg7[%c2_49, %c0_50, %c0_51, %c0_52] : memref<3x3x4x4xbf16, #tpu.memory_space<vmem>>, vector<1x1x4x4xbf16>
    %81 = vector.shape_cast %80 : vector<1x1x4x4xbf16> to vector<4x4xbf16>
    %cst_53 = arith.constant dense<0.000000e+00> : vector<128x4xf32>
    %82 = tpu.matmul %79, %81, %cst_53 {dimension_numbers = #tpu.dot_dimension_numbers<[1], [0], [0], [1], [0, 0, 1, 1], [], []>} : vector<128x4xbf16>, vector<4x4xbf16>, vector<128x4xf32> -> vector<128x4xf32>
    %83 = arith.addf %77, %82 : vector<128x4xf32>
    %84 = vector.extract_strided_slice %40 {offsets = [2, 1, 0], sizes = [8, 16, 4], strides = [1, 1, 1]} : vector<10x18x4xbf16> to vector<8x16x4xbf16>
    %85 = vector.shape_cast %84 : vector<8x16x4xbf16> to vector<128x4xbf16>
    %c2_54 = arith.constant 2 : index
    %c1_55 = arith.constant 1 : index
    %c0_56 = arith.constant 0 : index
    %c0_57 = arith.constant 0 : index
    %86 = vector.load %arg7[%c2_54, %c1_55, %c0_56, %c0_57] : memref<3x3x4x4xbf16, #tpu.memory_space<vmem>>, vector<1x1x4x4xbf16>
    %87 = vector.shape_cast %86 : vector<1x1x4x4xbf16> to vector<4x4xbf16>
    %cst_58 = arith.constant dense<0.000000e+00> : vector<128x4xf32>
    %88 = tpu.matmul %85, %87, %cst_58 {dimension_numbers = #tpu.dot_dimension_numbers<[1], [0], [0], [1], [0, 0, 1, 1], [], []>} : vector<128x4xbf16>, vector<4x4xbf16>, vector<128x4xf32> -> vector<128x4xf32>
    %89 = arith.addf %83, %88 : vector<128x4xf32>
    %90 = vector.extract_strided_slice %40 {offsets = [2, 2, 0], sizes = [8, 16, 4], strides = [1, 1, 1]} : vector<10x18x4xbf16> to vector<8x16x4xbf16>
    %91 = vector.shape_cast %90 : vector<8x16x4xbf16> to vector<128x4xbf16>
    %c2_59 = arith.constant 2 : index
    %c2_60 = arith.constant 2 : index
    %c0_61 = arith.constant 0 : index
    %c0_62 = arith.constant 0 : index
    %92 = vector.load %arg7[%c2_59, %c2_60, %c0_61, %c0_62] : memref<3x3x4x4xbf16, #tpu.memory_space<vmem>>, vector<1x1x4x4xbf16>
    %93 = vector.shape_cast %92 : vector<1x1x4x4xbf16> to vector<4x4xbf16>
    %cst_63 = arith.constant dense<0.000000e+00> : vector<128x4xf32>
    %94 = tpu.matmul %91, %93, %cst_63 {dimension_numbers = #tpu.dot_dimension_numbers<[1], [0], [0], [1], [0, 0, 1, 1], [], []>} : vector<128x4xbf16>, vector<4x4xbf16>, vector<128x4xf32> -> vector<128x4xf32>
    %95 = arith.addf %89, %94 : vector<128x4xf32>
    %96 = vector.shape_cast %95 : vector<128x4xf32> to vector<8x16x4xf32>
    %c0_64 = arith.constant 0 : index
    %c0_65 = arith.constant 0 : index
    %c0_66 = arith.constant 0 : index
    %c0_67 = arith.constant 0 : index
    %97 = vector.load %arg8[%c0_64, %c0_65, %c0_66, %c0_67] : memref<1x8x16x4xf32, #tpu.memory_space<vmem>>, vector<1x8x16x4xf32>
    %98 = vector.shape_cast %97 : vector<1x8x16x4xf32> to vector<8x16x4xf32>
    %99 = vector.shape_cast %96 : vector<8x16x4xf32> to vector<1x8x16x4xf32>
    tpu.vector_store %arg8[%c0_64, %c0_65, %c0_66, %c0_67], %99 {strides = array<i32>} : memref<1x8x16x4xf32, #tpu.memory_space<vmem>>, vector<1x8x16x4xf32>,
    %cst_68 = arith.constant dense<0.000000e+00> : vector<4xf32>
    %100 = vector.multi_reduction <add>, %95, %cst_68 [0] : vector<128x4xf32> to vector<4xf32>
    %101 = vector.shape_cast %100 : vector<4xf32> to vector<1x4xf32>
    %102 = arith.mulf %95, %95 : vector<128x4xf32>
    %cst_69 = arith.constant dense<0.000000e+00> : vector<4xf32>
    %103 = vector.multi_reduction <add>, %102, %cst_69 [0] : vector<128x4xf32> to vector<4xf32>
    %104 = vector.shape_cast %103 : vector<4xf32> to vector<1x4xf32>
    %105 = tpu.concatenate %101, %104 in 0 : vector<1x4xf32>, vector<1x4xf32> -> vector<2x4xf32>
    %c0_70 = arith.constant 0 : index
    %c0_71 = arith.constant 0 : index
    %c0_72 = arith.constant 0 : index
    %c0_73 = arith.constant 0 : index
    %106 = vector.load %arg9[%c0_70, %c0_71, %c0_72, %c0_73] : memref<1x1x2x4xf32, #tpu.memory_space<vmem>>, vector<1x1x2x4xf32>
    %107 = vector.shape_cast %106 : vector<1x1x2x4xf32> to vector<2x4xf32>
    %108 = vector.shape_cast %105 : vector<2x4xf32> to vector<1x1x2x4xf32>
    tpu.vector_store %arg9[%c0_70, %c0_71, %c0_72, %c0_73], %108 {strides = array<i32>} : memref<1x1x2x4xf32, #tpu.memory_space<vmem>>, vector<1x1x2x4xf32>,
    return
  }
  func.func @transform_0(%arg0: i32, %arg1: i32) -> (i32, i32, i32, i32) {
    %c0_i32 = arith.constant 0 : i32
    %c0_i32_0 = arith.constant 0 : i32
    %c0_i32_1 = arith.constant 0 : i32
    return %arg0, %arg1, %c0_i32, %c0_i32_0 : i32, i32, i32, i32
  }
  func.func @transform_1(%arg0: i32, %arg1: i32) -> (i32, i32, i32, i32) {
    %c8_i32 = arith.constant 8 : i32
    %0 = arith.muli %arg1, %c8_i32 : i32
    %c1_i32 = arith.constant 1 : i32
    %1 = arith.subi %0, %c1_i32 : i32
    %c0_i32 = arith.constant 0 : i32
    %2 = arith.maxsi %1, %c0_i32 : i32
    %c0_i32_0 = arith.constant 0 : i32
    %c0_i32_1 = arith.constant 0 : i32
    %c0_i32_2 = arith.constant 0 : i32
    return %arg0, %2, %c0_i32_0, %c0_i32_1 : i32, i32, i32, i32
  }
  func.func @transform_2(%arg0: i32, %arg1: i32) -> (i32, i32, i32, i32) {
    %c1_i32 = arith.constant 1 : i32
    %0 = arith.addi %arg1, %c1_i32 : i32
    %c8_i32 = arith.constant 8 : i32
    %1 = arith.muli %0, %c8_i32 : i32
    %c15_i32 = arith.constant 15 : i32
    %2 = arith.minsi %1, %c15_i32 : i32
    %c0_i32 = arith.constant 0 : i32
    %c0_i32_0 = arith.constant 0 : i32
    %c0_i32_1 = arith.constant 0 : i32
    return %arg0, %2, %c0_i32, %c0_i32_0 : i32, i32, i32, i32
  }
  func.func @transform_3(%arg0: i32, %arg1: i32) -> (i32, i32) {
    %c0_i32 = arith.constant 0 : i32
    %c0_i32_0 = arith.constant 0 : i32
    %c0_i32_1 = arith.constant 0 : i32
    return %c0_i32, %c0_i32_0 : i32, i32
  }
  func.func @transform_4(%arg0: i32, %arg1: i32) -> (i32, i32) {
    %c0_i32 = arith.constant 0 : i32
    %c0_i32_0 = arith.constant 0 : i32
    %c0_i32_1 = arith.constant 0 : i32
    return %c0_i32, %c0_i32_0 : i32, i32
  }
  func.func @transform_5(%arg0: i32, %arg1: i32) -> (i32, i32, i32, i32) {
    %c0_i32 = arith.constant 0 : i32
    %c0_i32_0 = arith.constant 0 : i32
    %c0_i32_1 = arith.constant 0 : i32
    %c0_i32_2 = arith.constant 0 : i32
    %c0_i32_3 = arith.constant 0 : i32
    return %c0_i32, %c0_i32_0, %c0_i32_1, %c0_i32_2 : i32, i32, i32, i32
  }
  func.func @transform_6(%arg0: i32, %arg1: i32) -> (i32, i32, i32, i32) {
    %c0_i32 = arith.constant 0 : i32
    %c0_i32_0 = arith.constant 0 : i32
    %c0_i32_1 = arith.constant 0 : i32
    return %arg0, %arg1, %c0_i32, %c0_i32_0 : i32, i32, i32, i32
  }
  func.func @transform_7(%arg0: i32, %arg1: i32) -> (i32, i32, i32, i32) {
    %c0_i32 = arith.constant 0 : i32
    %c0_i32_0 = arith.constant 0 : i32
    %c0_i32_1 = arith.constant 0 : i32
    return %arg0, %arg1, %c0_i32, %c0_i32_0 : i32, i32, i32, i32
  }
}

module attributes {stable_mosaic.version = 11 : i64} {
  func.func @_conv1_kernel(%arg0: i32, %arg1: i32, %arg2: memref<1x8x16x4xf32, #tpu.memory_space<vmem>>, %arg3: memref<1x1x16x4xf32, #tpu.memory_space<vmem>>, %arg4: memref<1x1x16x4xf32, #tpu.memory_space<vmem>>, %arg5: memref<1x8x16x4xf32, #tpu.memory_space<vmem>>, %arg6: memref<1x1x16x4xf32, #tpu.memory_space<vmem>>, %arg7: memref<1x1x16x4xf32, #tpu.memory_space<vmem>>, %arg8: memref<3x3x4x4xbf16, #tpu.memory_space<vmem>>, %arg9: memref<3x3x4x4xbf16, #tpu.memory_space<vmem>>, %arg10: memref<1x8x16x4xf32, #tpu.memory_space<vmem>>, %arg11: memref<1x1x2x4xf32, #tpu.memory_space<vmem>>) attributes {dimension_semantics = [#tpu.dimension_semantics<parallel>, #tpu.dimension_semantics<parallel>], iteration_bounds = array<i64: 2, 2>, scalar_prefetch = 0 : i64, scratch_operands = 0 : i64, tpu.core_type = #tpu.core_type<tc>, window_params = [{transform_indices = @transform_0, window_bounds = array<i64: 1, 8, 16, 4>}, {transform_indices = @transform_1, window_bounds = array<i64: 1, 1, 16, 4>}, {transform_indices = @transform_2, window_bounds = array<i64: 1, 1, 16, 4>}, {transform_indices = @transform_3, window_bounds = array<i64: 1, 8, 16, 4>}, {transform_indices = @transform_4, window_bounds = array<i64: 1, 1, 16, 4>}, {transform_indices = @transform_5, window_bounds = array<i64: 1, 1, 16, 4>}, {pipeline_mode = #tpu.pipeline_mode<synchronous>, transform_indices = @transform_6, window_bounds = array<i64: 3, 3, 4, 4>}, {pipeline_mode = #tpu.pipeline_mode<synchronous>, transform_indices = @transform_7, window_bounds = array<i64: 3, 3, 4, 4>}, {transform_indices = @transform_8, window_bounds = array<i64: 1, 8, 16, 4>}, {transform_indices = @transform_9, window_bounds = array<i64: 1, 1, 2, 4>}]} {
    %cst = arith.constant 0.000000e+00 : f32
    %0 = vector.broadcast %cst : f32 to vector<128x4xf32>
    %c0 = arith.constant 0 : index
    %c0_0 = arith.constant 0 : index
    %c0_1 = arith.constant 0 : index
    %c0_2 = arith.constant 0 : index
    %1 = vector.load %arg2[%c0, %c0_0, %c0_1, %c0_2] : memref<1x8x16x4xf32, #tpu.memory_space<vmem>>, vector<1x8x16x4xf32>
    %2 = vector.shape_cast %1 : vector<1x8x16x4xf32> to vector<8x16x4xf32>
    %c0_i32 = arith.constant 0 : i32
    %3 = arith.cmpi sgt, %arg1, %c0_i32 : i32
    %c0_3 = arith.constant 0 : index
    %c0_4 = arith.constant 0 : index
    %c0_5 = arith.constant 0 : index
    %c0_6 = arith.constant 0 : index
    %4 = vector.load %arg3[%c0_3, %c0_4, %c0_5, %c0_6] : memref<1x1x16x4xf32, #tpu.memory_space<vmem>>, vector<1x1x16x4xf32>
    %5 = vector.shape_cast %4 : vector<1x1x16x4xf32> to vector<1x16x4xf32>
    %cst_7 = arith.constant 0.000000e+00 : f32
    %6 = vector.broadcast %cst_7 : f32 to vector<1x16x4xf32>
    %7 = arith.select %3, %5, %6 : vector<1x16x4xf32>
    %c1_i32 = arith.constant 1 : i32
    %8 = arith.addi %arg1, %c1_i32 : i32
    %c2_i32 = arith.constant 2 : i32
    %9 = arith.cmpi slt, %8, %c2_i32 : i32
    %c0_8 = arith.constant 0 : index
    %c0_9 = arith.constant 0 : index
    %c0_10 = arith.constant 0 : index
    %c0_11 = arith.constant 0 : index
    %10 = vector.load %arg4[%c0_8, %c0_9, %c0_10, %c0_11] : memref<1x1x16x4xf32, #tpu.memory_space<vmem>>, vector<1x1x16x4xf32>
    %11 = vector.shape_cast %10 : vector<1x1x16x4xf32> to vector<1x16x4xf32>
    %cst_12 = arith.constant 0.000000e+00 : f32
    %12 = vector.broadcast %cst_12 : f32 to vector<1x16x4xf32>
    %13 = arith.select %9, %11, %12 : vector<1x16x4xf32>
    %14 = tpu.concatenate %7, %2, %13 in 0 : vector<1x16x4xf32>, vector<8x16x4xf32>, vector<1x16x4xf32> -> vector<10x16x4xf32>
    %cst_13 = arith.constant 0.000000e+00 : f32
    %15 = vector.broadcast %cst_13 : f32 to vector<10x1x4xf32>
    %16 = tpu.concatenate %15, %14, %15 in 1 : vector<10x1x4xf32>, vector<10x16x4xf32>, vector<10x1x4xf32> -> vector<10x18x4xf32>
    %17 = arith.truncf %16 : vector<10x18x4xf32> to vector<10x18x4xbf16>
    %18 = vector.extract_strided_slice %17 {offsets = [0, 0, 0], sizes = [8, 16, 4], strides = [1, 1, 1]} : vector<10x18x4xbf16> to vector<8x16x4xbf16>
    %19 = vector.shape_cast %18 : vector<8x16x4xbf16> to vector<128x4xbf16>
    %c0_14 = arith.constant 0 : index
    %c0_15 = arith.constant 0 : index
    %c0_16 = arith.constant 0 : index
    %c0_17 = arith.constant 0 : index
    %20 = vector.load %arg8[%c0_14, %c0_15, %c0_16, %c0_17] : memref<3x3x4x4xbf16, #tpu.memory_space<vmem>>, vector<1x1x4x4xbf16>
    %21 = vector.shape_cast %20 : vector<1x1x4x4xbf16> to vector<4x4xbf16>
    %cst_18 = arith.constant dense<0.000000e+00> : vector<128x4xf32>
    %22 = tpu.matmul %19, %21, %cst_18 {dimension_numbers = #tpu.dot_dimension_numbers<[1], [0], [0], [1], [0, 0, 1, 1], [], []>} : vector<128x4xbf16>, vector<4x4xbf16>, vector<128x4xf32> -> vector<128x4xf32>
    %23 = arith.addf %0, %22 : vector<128x4xf32>
    %24 = vector.extract_strided_slice %17 {offsets = [0, 1, 0], sizes = [8, 16, 4], strides = [1, 1, 1]} : vector<10x18x4xbf16> to vector<8x16x4xbf16>
    %25 = vector.shape_cast %24 : vector<8x16x4xbf16> to vector<128x4xbf16>
    %c0_19 = arith.constant 0 : index
    %c1 = arith.constant 1 : index
    %c0_20 = arith.constant 0 : index
    %c0_21 = arith.constant 0 : index
    %26 = vector.load %arg8[%c0_19, %c1, %c0_20, %c0_21] : memref<3x3x4x4xbf16, #tpu.memory_space<vmem>>, vector<1x1x4x4xbf16>
    %27 = vector.shape_cast %26 : vector<1x1x4x4xbf16> to vector<4x4xbf16>
    %cst_22 = arith.constant dense<0.000000e+00> : vector<128x4xf32>
    %28 = tpu.matmul %25, %27, %cst_22 {dimension_numbers = #tpu.dot_dimension_numbers<[1], [0], [0], [1], [0, 0, 1, 1], [], []>} : vector<128x4xbf16>, vector<4x4xbf16>, vector<128x4xf32> -> vector<128x4xf32>
    %29 = arith.addf %23, %28 : vector<128x4xf32>
    %30 = vector.extract_strided_slice %17 {offsets = [0, 2, 0], sizes = [8, 16, 4], strides = [1, 1, 1]} : vector<10x18x4xbf16> to vector<8x16x4xbf16>
    %31 = vector.shape_cast %30 : vector<8x16x4xbf16> to vector<128x4xbf16>
    %c0_23 = arith.constant 0 : index
    %c2 = arith.constant 2 : index
    %c0_24 = arith.constant 0 : index
    %c0_25 = arith.constant 0 : index
    %32 = vector.load %arg8[%c0_23, %c2, %c0_24, %c0_25] : memref<3x3x4x4xbf16, #tpu.memory_space<vmem>>, vector<1x1x4x4xbf16>
    %33 = vector.shape_cast %32 : vector<1x1x4x4xbf16> to vector<4x4xbf16>
    %cst_26 = arith.constant dense<0.000000e+00> : vector<128x4xf32>
    %34 = tpu.matmul %31, %33, %cst_26 {dimension_numbers = #tpu.dot_dimension_numbers<[1], [0], [0], [1], [0, 0, 1, 1], [], []>} : vector<128x4xbf16>, vector<4x4xbf16>, vector<128x4xf32> -> vector<128x4xf32>
    %35 = arith.addf %29, %34 : vector<128x4xf32>
    %36 = vector.extract_strided_slice %17 {offsets = [1, 0, 0], sizes = [8, 16, 4], strides = [1, 1, 1]} : vector<10x18x4xbf16> to vector<8x16x4xbf16>
    %37 = vector.shape_cast %36 : vector<8x16x4xbf16> to vector<128x4xbf16>
    %c1_27 = arith.constant 1 : index
    %c0_28 = arith.constant 0 : index
    %c0_29 = arith.constant 0 : index
    %c0_30 = arith.constant 0 : index
    %38 = vector.load %arg8[%c1_27, %c0_28, %c0_29, %c0_30] : memref<3x3x4x4xbf16, #tpu.memory_space<vmem>>, vector<1x1x4x4xbf16>
    %39 = vector.shape_cast %38 : vector<1x1x4x4xbf16> to vector<4x4xbf16>
    %cst_31 = arith.constant dense<0.000000e+00> : vector<128x4xf32>
    %40 = tpu.matmul %37, %39, %cst_31 {dimension_numbers = #tpu.dot_dimension_numbers<[1], [0], [0], [1], [0, 0, 1, 1], [], []>} : vector<128x4xbf16>, vector<4x4xbf16>, vector<128x4xf32> -> vector<128x4xf32>
    %41 = arith.addf %35, %40 : vector<128x4xf32>
    %42 = vector.extract_strided_slice %17 {offsets = [1, 1, 0], sizes = [8, 16, 4], strides = [1, 1, 1]} : vector<10x18x4xbf16> to vector<8x16x4xbf16>
    %43 = vector.shape_cast %42 : vector<8x16x4xbf16> to vector<128x4xbf16>
    %c1_32 = arith.constant 1 : index
    %c1_33 = arith.constant 1 : index
    %c0_34 = arith.constant 0 : index
    %c0_35 = arith.constant 0 : index
    %44 = vector.load %arg8[%c1_32, %c1_33, %c0_34, %c0_35] : memref<3x3x4x4xbf16, #tpu.memory_space<vmem>>, vector<1x1x4x4xbf16>
    %45 = vector.shape_cast %44 : vector<1x1x4x4xbf16> to vector<4x4xbf16>
    %cst_36 = arith.constant dense<0.000000e+00> : vector<128x4xf32>
    %46 = tpu.matmul %43, %45, %cst_36 {dimension_numbers = #tpu.dot_dimension_numbers<[1], [0], [0], [1], [0, 0, 1, 1], [], []>} : vector<128x4xbf16>, vector<4x4xbf16>, vector<128x4xf32> -> vector<128x4xf32>
    %47 = arith.addf %41, %46 : vector<128x4xf32>
    %48 = vector.extract_strided_slice %17 {offsets = [1, 2, 0], sizes = [8, 16, 4], strides = [1, 1, 1]} : vector<10x18x4xbf16> to vector<8x16x4xbf16>
    %49 = vector.shape_cast %48 : vector<8x16x4xbf16> to vector<128x4xbf16>
    %c1_37 = arith.constant 1 : index
    %c2_38 = arith.constant 2 : index
    %c0_39 = arith.constant 0 : index
    %c0_40 = arith.constant 0 : index
    %50 = vector.load %arg8[%c1_37, %c2_38, %c0_39, %c0_40] : memref<3x3x4x4xbf16, #tpu.memory_space<vmem>>, vector<1x1x4x4xbf16>
    %51 = vector.shape_cast %50 : vector<1x1x4x4xbf16> to vector<4x4xbf16>
    %cst_41 = arith.constant dense<0.000000e+00> : vector<128x4xf32>
    %52 = tpu.matmul %49, %51, %cst_41 {dimension_numbers = #tpu.dot_dimension_numbers<[1], [0], [0], [1], [0, 0, 1, 1], [], []>} : vector<128x4xbf16>, vector<4x4xbf16>, vector<128x4xf32> -> vector<128x4xf32>
    %53 = arith.addf %47, %52 : vector<128x4xf32>
    %54 = vector.extract_strided_slice %17 {offsets = [2, 0, 0], sizes = [8, 16, 4], strides = [1, 1, 1]} : vector<10x18x4xbf16> to vector<8x16x4xbf16>
    %55 = vector.shape_cast %54 : vector<8x16x4xbf16> to vector<128x4xbf16>
    %c2_42 = arith.constant 2 : index
    %c0_43 = arith.constant 0 : index
    %c0_44 = arith.constant 0 : index
    %c0_45 = arith.constant 0 : index
    %56 = vector.load %arg8[%c2_42, %c0_43, %c0_44, %c0_45] : memref<3x3x4x4xbf16, #tpu.memory_space<vmem>>, vector<1x1x4x4xbf16>
    %57 = vector.shape_cast %56 : vector<1x1x4x4xbf16> to vector<4x4xbf16>
    %cst_46 = arith.constant dense<0.000000e+00> : vector<128x4xf32>
    %58 = tpu.matmul %55, %57, %cst_46 {dimension_numbers = #tpu.dot_dimension_numbers<[1], [0], [0], [1], [0, 0, 1, 1], [], []>} : vector<128x4xbf16>, vector<4x4xbf16>, vector<128x4xf32> -> vector<128x4xf32>
    %59 = arith.addf %53, %58 : vector<128x4xf32>
    %60 = vector.extract_strided_slice %17 {offsets = [2, 1, 0], sizes = [8, 16, 4], strides = [1, 1, 1]} : vector<10x18x4xbf16> to vector<8x16x4xbf16>
    %61 = vector.shape_cast %60 : vector<8x16x4xbf16> to vector<128x4xbf16>
    %c2_47 = arith.constant 2 : index
    %c1_48 = arith.constant 1 : index
    %c0_49 = arith.constant 0 : index
    %c0_50 = arith.constant 0 : index
    %62 = vector.load %arg8[%c2_47, %c1_48, %c0_49, %c0_50] : memref<3x3x4x4xbf16, #tpu.memory_space<vmem>>, vector<1x1x4x4xbf16>
    %63 = vector.shape_cast %62 : vector<1x1x4x4xbf16> to vector<4x4xbf16>
    %cst_51 = arith.constant dense<0.000000e+00> : vector<128x4xf32>
    %64 = tpu.matmul %61, %63, %cst_51 {dimension_numbers = #tpu.dot_dimension_numbers<[1], [0], [0], [1], [0, 0, 1, 1], [], []>} : vector<128x4xbf16>, vector<4x4xbf16>, vector<128x4xf32> -> vector<128x4xf32>
    %65 = arith.addf %59, %64 : vector<128x4xf32>
    %66 = vector.extract_strided_slice %17 {offsets = [2, 2, 0], sizes = [8, 16, 4], strides = [1, 1, 1]} : vector<10x18x4xbf16> to vector<8x16x4xbf16>
    %67 = vector.shape_cast %66 : vector<8x16x4xbf16> to vector<128x4xbf16>
    %c2_52 = arith.constant 2 : index
    %c2_53 = arith.constant 2 : index
    %c0_54 = arith.constant 0 : index
    %c0_55 = arith.constant 0 : index
    %68 = vector.load %arg8[%c2_52, %c2_53, %c0_54, %c0_55] : memref<3x3x4x4xbf16, #tpu.memory_space<vmem>>, vector<1x1x4x4xbf16>
    %69 = vector.shape_cast %68 : vector<1x1x4x4xbf16> to vector<4x4xbf16>
    %cst_56 = arith.constant dense<0.000000e+00> : vector<128x4xf32>
    %70 = tpu.matmul %67, %69, %cst_56 {dimension_numbers = #tpu.dot_dimension_numbers<[1], [0], [0], [1], [0, 0, 1, 1], [], []>} : vector<128x4xbf16>, vector<4x4xbf16>, vector<128x4xf32> -> vector<128x4xf32>
    %71 = arith.addf %65, %70 : vector<128x4xf32>
    %c0_57 = arith.constant 0 : index
    %c0_58 = arith.constant 0 : index
    %c0_59 = arith.constant 0 : index
    %c0_60 = arith.constant 0 : index
    %72 = vector.load %arg5[%c0_57, %c0_58, %c0_59, %c0_60] : memref<1x8x16x4xf32, #tpu.memory_space<vmem>>, vector<1x8x16x4xf32>
    %73 = vector.shape_cast %72 : vector<1x8x16x4xf32> to vector<8x16x4xf32>
    %c0_i32_61 = arith.constant 0 : i32
    %74 = arith.cmpi sgt, %arg1, %c0_i32_61 : i32
    %c0_62 = arith.constant 0 : index
    %c0_63 = arith.constant 0 : index
    %c0_64 = arith.constant 0 : index
    %c0_65 = arith.constant 0 : index
    %75 = vector.load %arg6[%c0_62, %c0_63, %c0_64, %c0_65] : memref<1x1x16x4xf32, #tpu.memory_space<vmem>>, vector<1x1x16x4xf32>
    %76 = vector.shape_cast %75 : vector<1x1x16x4xf32> to vector<1x16x4xf32>
    %cst_66 = arith.constant 0.000000e+00 : f32
    %77 = vector.broadcast %cst_66 : f32 to vector<1x16x4xf32>
    %78 = arith.select %74, %76, %77 : vector<1x16x4xf32>
    %c1_i32_67 = arith.constant 1 : i32
    %79 = arith.addi %arg1, %c1_i32_67 : i32
    %c2_i32_68 = arith.constant 2 : i32
    %80 = arith.cmpi slt, %79, %c2_i32_68 : i32
    %c0_69 = arith.constant 0 : index
    %c0_70 = arith.constant 0 : index
    %c0_71 = arith.constant 0 : index
    %c0_72 = arith.constant 0 : index
    %81 = vector.load %arg7[%c0_69, %c0_70, %c0_71, %c0_72] : memref<1x1x16x4xf32, #tpu.memory_space<vmem>>, vector<1x1x16x4xf32>
    %82 = vector.shape_cast %81 : vector<1x1x16x4xf32> to vector<1x16x4xf32>
    %cst_73 = arith.constant 0.000000e+00 : f32
    %83 = vector.broadcast %cst_73 : f32 to vector<1x16x4xf32>
    %84 = arith.select %80, %82, %83 : vector<1x16x4xf32>
    %85 = tpu.concatenate %78, %73, %84 in 0 : vector<1x16x4xf32>, vector<8x16x4xf32>, vector<1x16x4xf32> -> vector<10x16x4xf32>
    %cst_74 = arith.constant 0.000000e+00 : f32
    %86 = vector.broadcast %cst_74 : f32 to vector<10x1x4xf32>
    %87 = tpu.concatenate %86, %85, %86 in 1 : vector<10x1x4xf32>, vector<10x16x4xf32>, vector<10x1x4xf32> -> vector<10x18x4xf32>
    %88 = arith.truncf %87 : vector<10x18x4xf32> to vector<10x18x4xbf16>
    %89 = vector.extract_strided_slice %88 {offsets = [0, 0, 0], sizes = [8, 16, 4], strides = [1, 1, 1]} : vector<10x18x4xbf16> to vector<8x16x4xbf16>
    %90 = vector.shape_cast %89 : vector<8x16x4xbf16> to vector<128x4xbf16>
    %c0_75 = arith.constant 0 : index
    %c0_76 = arith.constant 0 : index
    %c0_77 = arith.constant 0 : index
    %c0_78 = arith.constant 0 : index
    %91 = vector.load %arg9[%c0_75, %c0_76, %c0_77, %c0_78] : memref<3x3x4x4xbf16, #tpu.memory_space<vmem>>, vector<1x1x4x4xbf16>
    %92 = vector.shape_cast %91 : vector<1x1x4x4xbf16> to vector<4x4xbf16>
    %cst_79 = arith.constant dense<0.000000e+00> : vector<128x4xf32>
    %93 = tpu.matmul %90, %92, %cst_79 {dimension_numbers = #tpu.dot_dimension_numbers<[1], [0], [0], [1], [0, 0, 1, 1], [], []>} : vector<128x4xbf16>, vector<4x4xbf16>, vector<128x4xf32> -> vector<128x4xf32>
    %94 = arith.addf %71, %93 : vector<128x4xf32>
    %95 = vector.extract_strided_slice %88 {offsets = [0, 1, 0], sizes = [8, 16, 4], strides = [1, 1, 1]} : vector<10x18x4xbf16> to vector<8x16x4xbf16>
    %96 = vector.shape_cast %95 : vector<8x16x4xbf16> to vector<128x4xbf16>
    %c0_80 = arith.constant 0 : index
    %c1_81 = arith.constant 1 : index
    %c0_82 = arith.constant 0 : index
    %c0_83 = arith.constant 0 : index
    %97 = vector.load %arg9[%c0_80, %c1_81, %c0_82, %c0_83] : memref<3x3x4x4xbf16, #tpu.memory_space<vmem>>, vector<1x1x4x4xbf16>
    %98 = vector.shape_cast %97 : vector<1x1x4x4xbf16> to vector<4x4xbf16>
    %cst_84 = arith.constant dense<0.000000e+00> : vector<128x4xf32>
    %99 = tpu.matmul %96, %98, %cst_84 {dimension_numbers = #tpu.dot_dimension_numbers<[1], [0], [0], [1], [0, 0, 1, 1], [], []>} : vector<128x4xbf16>, vector<4x4xbf16>, vector<128x4xf32> -> vector<128x4xf32>
    %100 = arith.addf %94, %99 : vector<128x4xf32>
    %101 = vector.extract_strided_slice %88 {offsets = [0, 2, 0], sizes = [8, 16, 4], strides = [1, 1, 1]} : vector<10x18x4xbf16> to vector<8x16x4xbf16>
    %102 = vector.shape_cast %101 : vector<8x16x4xbf16> to vector<128x4xbf16>
    %c0_85 = arith.constant 0 : index
    %c2_86 = arith.constant 2 : index
    %c0_87 = arith.constant 0 : index
    %c0_88 = arith.constant 0 : index
    %103 = vector.load %arg9[%c0_85, %c2_86, %c0_87, %c0_88] : memref<3x3x4x4xbf16, #tpu.memory_space<vmem>>, vector<1x1x4x4xbf16>
    %104 = vector.shape_cast %103 : vector<1x1x4x4xbf16> to vector<4x4xbf16>
    %cst_89 = arith.constant dense<0.000000e+00> : vector<128x4xf32>
    %105 = tpu.matmul %102, %104, %cst_89 {dimension_numbers = #tpu.dot_dimension_numbers<[1], [0], [0], [1], [0, 0, 1, 1], [], []>} : vector<128x4xbf16>, vector<4x4xbf16>, vector<128x4xf32> -> vector<128x4xf32>
    %106 = arith.addf %100, %105 : vector<128x4xf32>
    %107 = vector.extract_strided_slice %88 {offsets = [1, 0, 0], sizes = [8, 16, 4], strides = [1, 1, 1]} : vector<10x18x4xbf16> to vector<8x16x4xbf16>
    %108 = vector.shape_cast %107 : vector<8x16x4xbf16> to vector<128x4xbf16>
    %c1_90 = arith.constant 1 : index
    %c0_91 = arith.constant 0 : index
    %c0_92 = arith.constant 0 : index
    %c0_93 = arith.constant 0 : index
    %109 = vector.load %arg9[%c1_90, %c0_91, %c0_92, %c0_93] : memref<3x3x4x4xbf16, #tpu.memory_space<vmem>>, vector<1x1x4x4xbf16>
    %110 = vector.shape_cast %109 : vector<1x1x4x4xbf16> to vector<4x4xbf16>
    %cst_94 = arith.constant dense<0.000000e+00> : vector<128x4xf32>
    %111 = tpu.matmul %108, %110, %cst_94 {dimension_numbers = #tpu.dot_dimension_numbers<[1], [0], [0], [1], [0, 0, 1, 1], [], []>} : vector<128x4xbf16>, vector<4x4xbf16>, vector<128x4xf32> -> vector<128x4xf32>
    %112 = arith.addf %106, %111 : vector<128x4xf32>
    %113 = vector.extract_strided_slice %88 {offsets = [1, 1, 0], sizes = [8, 16, 4], strides = [1, 1, 1]} : vector<10x18x4xbf16> to vector<8x16x4xbf16>
    %114 = vector.shape_cast %113 : vector<8x16x4xbf16> to vector<128x4xbf16>
    %c1_95 = arith.constant 1 : index
    %c1_96 = arith.constant 1 : index
    %c0_97 = arith.constant 0 : index
    %c0_98 = arith.constant 0 : index
    %115 = vector.load %arg9[%c1_95, %c1_96, %c0_97, %c0_98] : memref<3x3x4x4xbf16, #tpu.memory_space<vmem>>, vector<1x1x4x4xbf16>
    %116 = vector.shape_cast %115 : vector<1x1x4x4xbf16> to vector<4x4xbf16>
    %cst_99 = arith.constant dense<0.000000e+00> : vector<128x4xf32>
    %117 = tpu.matmul %114, %116, %cst_99 {dimension_numbers = #tpu.dot_dimension_numbers<[1], [0], [0], [1], [0, 0, 1, 1], [], []>} : vector<128x4xbf16>, vector<4x4xbf16>, vector<128x4xf32> -> vector<128x4xf32>
    %118 = arith.addf %112, %117 : vector<128x4xf32>
    %119 = vector.extract_strided_slice %88 {offsets = [1, 2, 0], sizes = [8, 16, 4], strides = [1, 1, 1]} : vector<10x18x4xbf16> to vector<8x16x4xbf16>
    %120 = vector.shape_cast %119 : vector<8x16x4xbf16> to vector<128x4xbf16>
    %c1_100 = arith.constant 1 : index
    %c2_101 = arith.constant 2 : index
    %c0_102 = arith.constant 0 : index
    %c0_103 = arith.constant 0 : index
    %121 = vector.load %arg9[%c1_100, %c2_101, %c0_102, %c0_103] : memref<3x3x4x4xbf16, #tpu.memory_space<vmem>>, vector<1x1x4x4xbf16>
    %122 = vector.shape_cast %121 : vector<1x1x4x4xbf16> to vector<4x4xbf16>
    %cst_104 = arith.constant dense<0.000000e+00> : vector<128x4xf32>
    %123 = tpu.matmul %120, %122, %cst_104 {dimension_numbers = #tpu.dot_dimension_numbers<[1], [0], [0], [1], [0, 0, 1, 1], [], []>} : vector<128x4xbf16>, vector<4x4xbf16>, vector<128x4xf32> -> vector<128x4xf32>
    %124 = arith.addf %118, %123 : vector<128x4xf32>
    %125 = vector.extract_strided_slice %88 {offsets = [2, 0, 0], sizes = [8, 16, 4], strides = [1, 1, 1]} : vector<10x18x4xbf16> to vector<8x16x4xbf16>
    %126 = vector.shape_cast %125 : vector<8x16x4xbf16> to vector<128x4xbf16>
    %c2_105 = arith.constant 2 : index
    %c0_106 = arith.constant 0 : index
    %c0_107 = arith.constant 0 : index
    %c0_108 = arith.constant 0 : index
    %127 = vector.load %arg9[%c2_105, %c0_106, %c0_107, %c0_108] : memref<3x3x4x4xbf16, #tpu.memory_space<vmem>>, vector<1x1x4x4xbf16>
    %128 = vector.shape_cast %127 : vector<1x1x4x4xbf16> to vector<4x4xbf16>
    %cst_109 = arith.constant dense<0.000000e+00> : vector<128x4xf32>
    %129 = tpu.matmul %126, %128, %cst_109 {dimension_numbers = #tpu.dot_dimension_numbers<[1], [0], [0], [1], [0, 0, 1, 1], [], []>} : vector<128x4xbf16>, vector<4x4xbf16>, vector<128x4xf32> -> vector<128x4xf32>
    %130 = arith.addf %124, %129 : vector<128x4xf32>
    %131 = vector.extract_strided_slice %88 {offsets = [2, 1, 0], sizes = [8, 16, 4], strides = [1, 1, 1]} : vector<10x18x4xbf16> to vector<8x16x4xbf16>
    %132 = vector.shape_cast %131 : vector<8x16x4xbf16> to vector<128x4xbf16>
    %c2_110 = arith.constant 2 : index
    %c1_111 = arith.constant 1 : index
    %c0_112 = arith.constant 0 : index
    %c0_113 = arith.constant 0 : index
    %133 = vector.load %arg9[%c2_110, %c1_111, %c0_112, %c0_113] : memref<3x3x4x4xbf16, #tpu.memory_space<vmem>>, vector<1x1x4x4xbf16>
    %134 = vector.shape_cast %133 : vector<1x1x4x4xbf16> to vector<4x4xbf16>
    %cst_114 = arith.constant dense<0.000000e+00> : vector<128x4xf32>
    %135 = tpu.matmul %132, %134, %cst_114 {dimension_numbers = #tpu.dot_dimension_numbers<[1], [0], [0], [1], [0, 0, 1, 1], [], []>} : vector<128x4xbf16>, vector<4x4xbf16>, vector<128x4xf32> -> vector<128x4xf32>
    %136 = arith.addf %130, %135 : vector<128x4xf32>
    %137 = vector.extract_strided_slice %88 {offsets = [2, 2, 0], sizes = [8, 16, 4], strides = [1, 1, 1]} : vector<10x18x4xbf16> to vector<8x16x4xbf16>
    %138 = vector.shape_cast %137 : vector<8x16x4xbf16> to vector<128x4xbf16>
    %c2_115 = arith.constant 2 : index
    %c2_116 = arith.constant 2 : index
    %c0_117 = arith.constant 0 : index
    %c0_118 = arith.constant 0 : index
    %139 = vector.load %arg9[%c2_115, %c2_116, %c0_117, %c0_118] : memref<3x3x4x4xbf16, #tpu.memory_space<vmem>>, vector<1x1x4x4xbf16>
    %140 = vector.shape_cast %139 : vector<1x1x4x4xbf16> to vector<4x4xbf16>
    %cst_119 = arith.constant dense<0.000000e+00> : vector<128x4xf32>
    %141 = tpu.matmul %138, %140, %cst_119 {dimension_numbers = #tpu.dot_dimension_numbers<[1], [0], [0], [1], [0, 0, 1, 1], [], []>} : vector<128x4xbf16>, vector<4x4xbf16>, vector<128x4xf32> -> vector<128x4xf32>
    %142 = arith.addf %136, %141 : vector<128x4xf32>
    %143 = vector.shape_cast %142 : vector<128x4xf32> to vector<8x16x4xf32>
    %c0_120 = arith.constant 0 : index
    %c0_121 = arith.constant 0 : index
    %c0_122 = arith.constant 0 : index
    %c0_123 = arith.constant 0 : index
    %144 = vector.load %arg10[%c0_120, %c0_121, %c0_122, %c0_123] : memref<1x8x16x4xf32, #tpu.memory_space<vmem>>, vector<1x8x16x4xf32>
    %145 = vector.shape_cast %144 : vector<1x8x16x4xf32> to vector<8x16x4xf32>
    %146 = vector.shape_cast %143 : vector<8x16x4xf32> to vector<1x8x16x4xf32>
    tpu.vector_store %arg10[%c0_120, %c0_121, %c0_122, %c0_123], %146 {strides = array<i32>} : memref<1x8x16x4xf32, #tpu.memory_space<vmem>>, vector<1x8x16x4xf32>,
    %cst_124 = arith.constant dense<0.000000e+00> : vector<4xf32>
    %147 = vector.multi_reduction <add>, %142, %cst_124 [0] : vector<128x4xf32> to vector<4xf32>
    %148 = vector.shape_cast %147 : vector<4xf32> to vector<1x4xf32>
    %149 = arith.mulf %142, %142 : vector<128x4xf32>
    %cst_125 = arith.constant dense<0.000000e+00> : vector<4xf32>
    %150 = vector.multi_reduction <add>, %149, %cst_125 [0] : vector<128x4xf32> to vector<4xf32>
    %151 = vector.shape_cast %150 : vector<4xf32> to vector<1x4xf32>
    %152 = tpu.concatenate %148, %151 in 0 : vector<1x4xf32>, vector<1x4xf32> -> vector<2x4xf32>
    %c0_126 = arith.constant 0 : index
    %c0_127 = arith.constant 0 : index
    %c0_128 = arith.constant 0 : index
    %c0_129 = arith.constant 0 : index
    %153 = vector.load %arg11[%c0_126, %c0_127, %c0_128, %c0_129] : memref<1x1x2x4xf32, #tpu.memory_space<vmem>>, vector<1x1x2x4xf32>
    %154 = vector.shape_cast %153 : vector<1x1x2x4xf32> to vector<2x4xf32>
    %155 = vector.shape_cast %152 : vector<2x4xf32> to vector<1x1x2x4xf32>
    tpu.vector_store %arg11[%c0_126, %c0_127, %c0_128, %c0_129], %155 {strides = array<i32>} : memref<1x1x2x4xf32, #tpu.memory_space<vmem>>, vector<1x1x2x4xf32>,
    return
  }
  func.func @transform_0(%arg0: i32, %arg1: i32) -> (i32, i32, i32, i32) {
    %c0_i32 = arith.constant 0 : i32
    %c0_i32_0 = arith.constant 0 : i32
    %c0_i32_1 = arith.constant 0 : i32
    return %arg0, %arg1, %c0_i32, %c0_i32_0 : i32, i32, i32, i32
  }
  func.func @transform_1(%arg0: i32, %arg1: i32) -> (i32, i32, i32, i32) {
    %c8_i32 = arith.constant 8 : i32
    %0 = arith.muli %arg1, %c8_i32 : i32
    %c1_i32 = arith.constant 1 : i32
    %1 = arith.subi %0, %c1_i32 : i32
    %c0_i32 = arith.constant 0 : i32
    %2 = arith.maxsi %1, %c0_i32 : i32
    %c0_i32_0 = arith.constant 0 : i32
    %c0_i32_1 = arith.constant 0 : i32
    %c0_i32_2 = arith.constant 0 : i32
    return %arg0, %2, %c0_i32_0, %c0_i32_1 : i32, i32, i32, i32
  }
  func.func @transform_2(%arg0: i32, %arg1: i32) -> (i32, i32, i32, i32) {
    %c1_i32 = arith.constant 1 : i32
    %0 = arith.addi %arg1, %c1_i32 : i32
    %c8_i32 = arith.constant 8 : i32
    %1 = arith.muli %0, %c8_i32 : i32
    %c15_i32 = arith.constant 15 : i32
    %2 = arith.minsi %1, %c15_i32 : i32
    %c0_i32 = arith.constant 0 : i32
    %c0_i32_0 = arith.constant 0 : i32
    %c0_i32_1 = arith.constant 0 : i32
    return %arg0, %2, %c0_i32, %c0_i32_0 : i32, i32, i32, i32
  }
  func.func @transform_3(%arg0: i32, %arg1: i32) -> (i32, i32, i32, i32) {
    %c0_i32 = arith.constant 0 : i32
    %c0_i32_0 = arith.constant 0 : i32
    %c0_i32_1 = arith.constant 0 : i32
    return %arg0, %arg1, %c0_i32, %c0_i32_0 : i32, i32, i32, i32
  }
  func.func @transform_4(%arg0: i32, %arg1: i32) -> (i32, i32, i32, i32) {
    %c8_i32 = arith.constant 8 : i32
    %0 = arith.muli %arg1, %c8_i32 : i32
    %c1_i32 = arith.constant 1 : i32
    %1 = arith.subi %0, %c1_i32 : i32
    %c0_i32 = arith.constant 0 : i32
    %2 = arith.maxsi %1, %c0_i32 : i32
    %c0_i32_0 = arith.constant 0 : i32
    %c0_i32_1 = arith.constant 0 : i32
    %c0_i32_2 = arith.constant 0 : i32
    return %arg0, %2, %c0_i32_0, %c0_i32_1 : i32, i32, i32, i32
  }
  func.func @transform_5(%arg0: i32, %arg1: i32) -> (i32, i32, i32, i32) {
    %c1_i32 = arith.constant 1 : i32
    %0 = arith.addi %arg1, %c1_i32 : i32
    %c8_i32 = arith.constant 8 : i32
    %1 = arith.muli %0, %c8_i32 : i32
    %c15_i32 = arith.constant 15 : i32
    %2 = arith.minsi %1, %c15_i32 : i32
    %c0_i32 = arith.constant 0 : i32
    %c0_i32_0 = arith.constant 0 : i32
    %c0_i32_1 = arith.constant 0 : i32
    return %arg0, %2, %c0_i32, %c0_i32_0 : i32, i32, i32, i32
  }
  func.func @transform_6(%arg0: i32, %arg1: i32) -> (i32, i32, i32, i32) {
    %c0_i32 = arith.constant 0 : i32
    %c0_i32_0 = arith.constant 0 : i32
    %c0_i32_1 = arith.constant 0 : i32
    %c0_i32_2 = arith.constant 0 : i32
    %c0_i32_3 = arith.constant 0 : i32
    return %c0_i32, %c0_i32_0, %c0_i32_1, %c0_i32_2 : i32, i32, i32, i32
  }
  func.func @transform_7(%arg0: i32, %arg1: i32) -> (i32, i32, i32, i32) {
    %c0_i32 = arith.constant 0 : i32
    %c0_i32_0 = arith.constant 0 : i32
    %c0_i32_1 = arith.constant 0 : i32
    %c0_i32_2 = arith.constant 0 : i32
    %c0_i32_3 = arith.constant 0 : i32
    return %c0_i32, %c0_i32_0, %c0_i32_1, %c0_i32_2 : i32, i32, i32, i32
  }
  func.func @transform_8(%arg0: i32, %arg1: i32) -> (i32, i32, i32, i32) {
    %c0_i32 = arith.constant 0 : i32
    %c0_i32_0 = arith.constant 0 : i32
    %c0_i32_1 = arith.constant 0 : i32
    return %arg0, %arg1, %c0_i32, %c0_i32_0 : i32, i32, i32, i32
  }
  func.func @transform_9(%arg0: i32, %arg1: i32) -> (i32, i32, i32, i32) {
    %c0_i32 = arith.constant 0 : i32
    %c0_i32_0 = arith.constant 0 : i32
    %c0_i32_1 = arith.constant 0 : i32
    return %arg0, %arg1, %c0_i32, %c0_i32_0 : i32, i32, i32, i32
  }
}

</mosaic_0001>

<llo_original>
// kernel: up_forward.5
$region0: #{up_forward.5}
  #allocation0 [shape = 'u32[]', space=smem, size = 0x4, offset = 0x4, fixed_abs, tag = 'smem constant byte address 0x4 - core index']
  #allocation1 [shape = 'u32[144,128]{1,0:T(1,128)}', space=vmem, size = 0x12000, scoped, tag = 'internal scratch']
  %s0 = inlined_call_operand.vmem [shape: f32[2,16,16,4], index: 0, kind: input, shape index: {}]
  %s1 = inlined_call_operand.vmem [shape: f32[1,4], index: 1, kind: input, shape index: {}]
  %s2 = inlined_call_operand.vmem [shape: f32[1,4], index: 2, kind: input, shape index: {}]
  %s3 = inlined_call_operand.vmem [shape: f32[2,16,16,4], index: 3, kind: output, shape index: {}]
  %s4 = sld [smem:[#allocation0]]
  $region45: #{up_forward.5} parent=0
    _
  %s6 = ssub.s32 1, %s4
  %s7 = scalar_select 0, %s6, %s4
  loop: start=0, step=1, limit=6
  $region2: #{up_forward.5} parent=0 // loop_pre_header
    _
  $region3: #{up_forward.5} parent=0 // loop_header
    %s9 = sphi 0, %s13
    %p10 = scmp.ge.s32.totalorder %s9, 6
    %s16 = sphi 0, %s28
    %s17 = sphi 0, %s24
    %s18 = sphi 0, %s16
    %s19 = sphi 0, %s17
    %s20 = sphi 0, %s18
    %s21 = sphi 0, %s19
    %s33 = sphi 0, %s35
    %s36 = sphi 0, %s33
    %s37 = sphi 0, %s36
    %s53 = sphi 0, %s37
    %s57 = sphi 0, %s57
    %s59 = sphi 0, %s57
    %s60 = sphi 0, %s59
    %s74 = sphi 0, %s60
    %s78 = sphi 0, %s78
    %s80 = sphi 0, %s78
    %s81 = sphi 0, %s80
    %s95 = sphi 0, %s81
    %s103 = sphi 0, %s105
    %s106 = sphi 0, %s103
    %s107 = sphi 0, %s106
    %s123 = sphi 0, %s107
  $region4: #{up_forward.5} parent=0 // loop_header_branch
    %12 = sbr.rel (%p10) target = $region8
  $region5: #{up_forward.5} parent=0 // loop_body
    %s14 = ssub.s32 %s9, 1
    %s15 = ssub.s32 %s9, 2
    %s22 = sadd.s32 1, %s17
    %p23 = scmp.ge.s32.totalorder %s22, 2
    %s24 = scalar_select %p23, 0, %s22
    %s25 = sadd.s32 1, %s16
    %s26 = scalar_select %p23, %s25, %s16
    %p27 = scmp.ge.s32.totalorder %s26, 2
    %s28 = scalar_select %p27, 0, %s26
    %s29 = ssub.s32 %s16, %s28
    %s30 = ssub.s32 %s17, %s24
    %s31 = sor.u32 %s29, %s30
    %p32 = scmp.eq.s32.totalorder %s31, 0
    %s34 = sadd.s32 %s33, 1
    %s35 = scalar_select %p32, %s33, %s34
    %p38 = pneg %p32
    %p39 = scmp.eq.s32.totalorder %s9, 3
    %p40 = por %p38, %p39
    %p41 = scmp.ne.s32.totalorder %s33, %s36
    %p42 = scmp.eq.s32.totalorder %s9, 0
    %p43 = por %p41, %p42
    %p44 = scmp.ne.s32.totalorder %s33, %s36
    %p45 = scmp.eq.s32.totalorder %s14, 3
    %p46 = por %p44, %p45
    %p47 = scmp.ne.s32.totalorder %s36, %s37
    %p48 = scmp.eq.s32.totalorder %s14, 0
    %p49 = por %p47, %p48
    %p50 = scmp.ne.s32.totalorder %s36, %s37
    %p51 = scmp.eq.s32.totalorder %s15, 3
    %p52 = por %p50, %p51
    %p54 = scmp.ne.s32.totalorder %s37, %s53
    %p55 = scmp.eq.s32.totalorder %s15, 0
    %p56 = por %p54, %p55
    %s58 = sadd.s32 %s57, 1
    %p61 = scmp.eq.s32.totalorder %s9, 3
    %p62 = scmp.ne.s32.totalorder %s57, %s59
    %p63 = scmp.eq.s32.totalorder %s9, 0
    %p64 = por %p62, %p63
    %p65 = scmp.ne.s32.totalorder %s57, %s59
    %p66 = scmp.eq.s32.totalorder %s14, 3
    %p67 = por %p65, %p66
    %p68 = scmp.ne.s32.totalorder %s59, %s60
    %p69 = scmp.eq.s32.totalorder %s14, 0
    %p70 = por %p68, %p69
    %p71 = scmp.ne.s32.totalorder %s59, %s60
    %p72 = scmp.eq.s32.totalorder %s15, 3
    %p73 = por %p71, %p72
    %p75 = scmp.ne.s32.totalorder %s60, %s74
    %p76 = scmp.eq.s32.totalorder %s15, 0
    %p77 = por %p75, %p76
    %s79 = sadd.s32 %s78, 1
    %p82 = scmp.eq.s32.totalorder %s9, 3
    %p83 = scmp.ne.s32.totalorder %s78, %s80
    %p84 = scmp.eq.s32.totalorder %s9, 0
    %p85 = por %p83, %p84
    %p86 = scmp.ne.s32.totalorder %s78, %s80
    %p87 = scmp.eq.s32.totalorder %s14, 3
    %p88 = por %p86, %p87
    %p89 = scmp.ne.s32.totalorder %s80, %s81
    %p90 = scmp.eq.s32.totalorder %s14, 0
    %p91 = por %p89, %p90
    %p92 = scmp.ne.s32.totalorder %s80, %s81
    %p93 = scmp.eq.s32.totalorder %s15, 3
    %p94 = por %p92, %p93
    %p96 = scmp.ne.s32.totalorder %s81, %s95
    %p97 = scmp.eq.s32.totalorder %s15, 0
    %p98 = por %p96, %p97
    %s99 = ssub.s32 %s16, %s28
    %s100 = ssub.s32 %s17, %s24
    %s101 = sor.u32 %s99, %s100
    %p102 = scmp.eq.s32.totalorder %s101, 0
    %s104 = sadd.s32 %s103, 1
    %s105 = scalar_select %p102, %s103, %s104
    %p108 = pneg %p102
    %p109 = scmp.eq.s32.totalorder %s9, 3
    %p110 = por %p108, %p109
    %p111 = scmp.ne.s32.totalorder %s103, %s106
    %p112 = scmp.eq.s32.totalorder %s9, 0
    %p113 = por %p111, %p112
    %p114 = scmp.ne.s32.totalorder %s103, %s106
    %p115 = scmp.eq.s32.totalorder %s14, 3
    %p116 = por %p114, %p115
    %p117 = scmp.ne.s32.totalorder %s106, %s107
    %p118 = scmp.eq.s32.totalorder %s14, 0
    %p119 = por %p117, %p118
    %p120 = scmp.ne.s32.totalorder %s106, %s107
    %p121 = scmp.eq.s32.totalorder %s15, 3
    %p122 = por %p120, %p121
    %p124 = scmp.ne.s32.totalorder %s107, %s123
    %p125 = scmp.eq.s32.totalorder %s15, 0
    %p126 = por %p124, %p125
    %p127 = scmp.le.s32.totalorder 1, %s9
    %p128 = scmp.lt.s32.totalorder %s9, 5
    %p129 = pnand %p127, %p128
    %p130 = pneg %p129
    // Predicated region
    $region9: #{up_forward.5} parent=5 // pred_check
      _
    $region10: #{up_forward.5} parent=5 // pred_check_branch
      %132 = sbr.rel (%p129) target = $region12
    $region11: #{up_forward.5} parent=5 // pred_region
      %s133 = ssub.s32 %s9, 1
      // Predicated region
      $region13: #{up_forward.5} parent=11 // pred_check
        %p134 = pneg %p70
      $region14: #{up_forward.5} parent=11 // pred_check_branch
        %136 = sbr.rel (%p134) target = $region16
      $region15: #{up_forward.5} parent=11 // pred_region
        _
      $region16: #{up_forward.5} parent=11 // pred_fallthru
        _
      // Predicated region
      $region17: #{up_forward.5} parent=11 // pred_check
        %p137 = pneg %p91
      $region18: #{up_forward.5} parent=11 // pred_check_branch
        %139 = sbr.rel (%p137) target = $region20
      $region19: #{up_forward.5} parent=11 // pred_region
        _
      $region20: #{up_forward.5} parent=11 // pred_fallthru
        _
    $region12: #{up_forward.5} parent=5 // pred_fallthru
      _
    %p140 = scmp.lt.s32.totalorder %s9, 4
    // Predicated region
    $region21: #{up_forward.5} parent=5 // pred_check
      %p141 = pneg %p140
    $region22: #{up_forward.5} parent=5 // pred_check_branch
      %143 = sbr.rel (%p141) target = $region24
    $region23: #{up_forward.5} parent=5 // pred_region
      // Predicated region
      $region25: #{up_forward.5} parent=23 // pred_check
        %p144 = pneg %p43
      $region26: #{up_forward.5} parent=23 // pred_check_branch
        %146 = sbr.rel (%p144) target = $region28
      $region27: #{up_forward.5} parent=23 // pred_region
        %s147 = smul.u32 8, %s17
        %p148 = scmp.lt.s32.totalorder %s16, 1
        %s149 = scalar_select %p148, %s16, 1
        %p150 = scmp.lt.s32.totalorder %s147, 15
        %s151 = scalar_select %p150, %s147, 15
        %s152 = smul.addr %s151, 2
        %s153 = smul.addr %s149, 32
        %s154 = sadd.s32 %s152, %s153
        %s155 = smul.addr %s154, 8
        %s156 = scalar_lea.vmem %s0, %s155
        %s157 = smul.u32 8, %s17
      $region28: #{up_forward.5} parent=23 // pred_fallthru
        _
    $region24: #{up_forward.5} parent=5 // pred_fallthru
      _
    %p158 = scmp.le.s32.totalorder 1, %s9
    %p159 = scmp.lt.s32.totalorder %s9, 5
    %p160 = pnand %p158, %p159
    %p161 = pneg %p160
    // Predicated region
    $region29: #{up_forward.5} parent=5 // pred_check
      _
    $region30: #{up_forward.5} parent=5 // pred_check_branch
      %163 = sbr.rel (%p160) target = $region32
    $region31: #{up_forward.5} parent=5 // pred_region
      %s164 = ssub.s32 %s9, 1
      %s165 = smul.u32 8, %s19
      %p166 = scmp.lt.s32.totalorder %s18, 1
      %s167 = scalar_select %p166, %s18, 1
      %p168 = scmp.lt.s32.totalorder %s165, 15
      %s169 = scalar_select %p168, %s165, 15
      %s170 = smul.addr %s169, 2
      %s171 = smul.addr %s167, 32
      %s172 = sadd.s32 %s170, %s171
      %s173 = smul.addr %s172, 8
      %s174 = scalar_lea.vmem %s0, %s173
      %p175 = pneg %p49
      %p176 = pneg %p46
      %p177 = pneg %p70
      %p178 = pneg %p67
      %p179 = pneg %p91
      %p180 = pneg %p88
      %p181 = pneg %p119
      %p182 = pneg %p116
      %s183 = smul.u32 8, %s19
      %p184 = scmp.lt.s32.totalorder %s18, 1
      %s185 = scalar_select %p184, %s18, 1
      %p186 = scmp.lt.s32.totalorder %s183, 15
      %s187 = scalar_select %p186, %s183, 15
      %s188 = smul.addr %s187, 2
      %s189 = smul.addr %s185, 32
      %s190 = sadd.s32 %s188, %s189
      %s191 = smul.addr %s190, 8
      %s192 = scalar_lea.vmem %s3, %s191
      %s193 = smul.u32 8, %s19
      %p194 = scmp.lt.s32.totalorder %s18, 1
      %s195 = scalar_select %p194, %s18, 1
      %p196 = scmp.lt.s32.totalorder %s193, 15
      %s197 = scalar_select %p196, %s193, 15
      %s198 = smul.addr %s197, 2
      %s199 = smul.addr %s195, 32
      %s200 = sadd.s32 %s198, %s199
      %s201 = smul.addr %s200, 8
      %s202 = scalar_lea.vmem %s0, %s201
      %s203 = smul.u32 8, %s19
      %s204 = smul.u32 8, %s19
      %p205 = scmp.lt.s32.totalorder %s18, 1
      %s206 = scalar_select %p205, %s18, 1
      %p207 = scmp.lt.s32.totalorder %s204, 15
      %s208 = scalar_select %p207, %s204, 15
      %s209 = smul.addr %s208, 2
      %s210 = smul.addr %s206, 32
      %s211 = sadd.s32 %s209, %s210
      %s212 = smul.addr %s211, 8
      %s213 = scalar_lea.vmem %s3, %s212
      %s214 = smul.u32 8, %s19
      %v215 = vld [vmem:[%s202] sm:$0xff]
      %v216 = vld [vmem:[%s202 + $0x8] sm:$0xff]
      %v217 = vld [vmem:[%s202 + $0x10] sm:$0xff]
      %v218 = vld [vmem:[%s202 + $0x18] sm:$0xff]
      %v219 = vld [vmem:[%s202 + $0x20] sm:$0xff]
      %v220 = vld [vmem:[%s202 + $0x28] sm:$0xff]
      %v221 = vld [vmem:[%s202 + $0x30] sm:$0xff]
      %v222 = vld [vmem:[%s202 + $0x38] sm:$0xff]
      %v223 = vld [vmem:[%s202 + $0x40] sm:$0xff]
      %v224 = vld [vmem:[%s202 + $0x48] sm:$0xff]
      %v225 = vld [vmem:[%s202 + $0x50] sm:$0xff]
      %v226 = vld [vmem:[%s202 + $0x58] sm:$0xff]
      %v227 = vld [vmem:[%s202 + $0x60] sm:$0xff]
      %v228 = vld [vmem:[%s202 + $0x68] sm:$0xff]
      %v229 = vld [vmem:[%s202 + $0x70] sm:$0xff]
      %v230 = vld [vmem:[%s202 + $0x78] sm:$0xff]
      %v231 = vld [vmem:[%s1] sm:$0x1]
      %v232 = vld [vmem:[%s2] sm:$0x1]
      %v234 = vlaneseq
      %v235 = vshrl.u32 %v234, 7
      %v236 = vsub.s32 0, %v235
      %v237 = vrot.slane %v231, %v236
      %v239 = vmul.f32 %v215, %v237
      %v240 = vmul.f32 %v216, %v237
      %v241 = vmul.f32 %v217, %v237
      %v242 = vmul.f32 %v218, %v237
      %v243 = vmul.f32 %v219, %v237
      %v244 = vmul.f32 %v220, %v237
      %v245 = vmul.f32 %v221, %v237
      %v246 = vmul.f32 %v222, %v237
      %v247 = vmul.f32 %v223, %v237
      %v248 = vmul.f32 %v224, %v237
      %v249 = vmul.f32 %v225, %v237
      %v250 = vmul.f32 %v226, %v237
      %v251 = vmul.f32 %v227, %v237
      %v252 = vmul.f32 %v228, %v237
      %v253 = vmul.f32 %v229, %v237
      %v254 = vmul.f32 %v230, %v237
      %v256 = vlaneseq
      %v257 = vshrl.u32 %v256, 7
      %v258 = vsub.s32 0, %v257
      %v259 = vrot.slane %v232, %v258
      %v261 = vadd.f32 %v239, %v259
      %v262 = vadd.f32 %v240, %v259
      %v263 = vadd.f32 %v241, %v259
      %v264 = vadd.f32 %v242, %v259
      %v265 = vadd.f32 %v243, %v259
      %v266 = vadd.f32 %v244, %v259
      %v267 = vadd.f32 %v245, %v259
      %v268 = vadd.f32 %v246, %v259
      %v269 = vadd.f32 %v247, %v259
      %v270 = vadd.f32 %v248, %v259
      %v271 = vadd.f32 %v249, %v259
      %v272 = vadd.f32 %v250, %v259
      %v273 = vadd.f32 %v251, %v259
      %v274 = vadd.f32 %v252, %v259
      %v275 = vadd.f32 %v253, %v259
      %v276 = vadd.f32 %v254, %v259
      %v277 = vmax.f32 %v261, 0.0
      %v278 = vmax.f32 %v262, 0.0
      %v279 = vmax.f32 %v263, 0.0
      %v280 = vmax.f32 %v264, 0.0
      %v281 = vmax.f32 %v265, 0.0
      %v282 = vmax.f32 %v266, 0.0
      %v283 = vmax.f32 %v267, 0.0
      %v284 = vmax.f32 %v268, 0.0
      %v285 = vmax.f32 %v269, 0.0
      %v286 = vmax.f32 %v270, 0.0
      %v287 = vmax.f32 %v271, 0.0
      %v288 = vmax.f32 %v272, 0.0
      %v289 = vmax.f32 %v273, 0.0
      %v290 = vmax.f32 %v274, 0.0
      %v291 = vmax.f32 %v275, 0.0
      %v292 = vmax.f32 %v276, 0.0
      %vm293 = vcmask 31744
      %294 = vst.msk [vmem:[%s213] sm:$0xff] %vm293, %v277
      %295 = vst.msk [vmem:[%s213 + $0x8] sm:$0xff] %vm293, %v278
      %296 = vst.msk [vmem:[%s213 + $0x10] sm:$0xff] %vm293, %v279
      %297 = vst.msk [vmem:[%s213 + $0x18] sm:$0xff] %vm293, %v280
      %298 = vst.msk [vmem:[%s213 + $0x20] sm:$0xff] %vm293, %v281
      %299 = vst.msk [vmem:[%s213 + $0x28] sm:$0xff] %vm293, %v282
      %300 = vst.msk [vmem:[%s213 + $0x30] sm:$0xff] %vm293, %v283
      %301 = vst.msk [vmem:[%s213 + $0x38] sm:$0xff] %vm293, %v284
      %302 = vst.msk [vmem:[%s213 + $0x40] sm:$0xff] %vm293, %v285
      %303 = vst.msk [vmem:[%s213 + $0x48] sm:$0xff] %vm293, %v286
      %304 = vst.msk [vmem:[%s213 + $0x50] sm:$0xff] %vm293, %v287
      %305 = vst.msk [vmem:[%s213 + $0x58] sm:$0xff] %vm293, %v288
      %306 = vst.msk [vmem:[%s213 + $0x60] sm:$0xff] %vm293, %v289
      %307 = vst.msk [vmem:[%s213 + $0x68] sm:$0xff] %vm293, %v290
      %308 = vst.msk [vmem:[%s213 + $0x70] sm:$0xff] %vm293, %v291
      %309 = vst.msk [vmem:[%s213 + $0x78] sm:$0xff] %vm293, %v292
      %s310 = smul.u32 8, %s19
      %p311 = scmp.lt.s32.totalorder %s18, 1
      %s312 = scalar_select %p311, %s18, 1
      %p313 = scmp.lt.s32.totalorder %s310, 15
      %s314 = scalar_select %p313, %s310, 15
      %s315 = smul.addr %s314, 2
      %s316 = smul.addr %s312, 32
      %s317 = sadd.s32 %s315, %s316
      %s318 = smul.addr %s317, 8
      %s319 = scalar_lea.vmem %s3, %s318
      // Predicated region
      $region33: #{up_forward.5} parent=31 // pred_check
        %p320 = pneg %p116
      $region34: #{up_forward.5} parent=31 // pred_check_branch
        %322 = sbr.rel (%p320) target = $region36
      $region35: #{up_forward.5} parent=31 // pred_region
        %s323 = smul.u32 8, %s19
      $region36: #{up_forward.5} parent=31 // pred_fallthru
        _
    $region32: #{up_forward.5} parent=5 // pred_fallthru
      _
    %p324 = scmp.le.s32.totalorder 2, %s9
    // Predicated region
    $region37: #{up_forward.5} parent=5 // pred_check
      %p325 = pneg %p324
    $region38: #{up_forward.5} parent=5 // pred_check_branch
      %327 = sbr.rel (%p325) target = $region40
    $region39: #{up_forward.5} parent=5 // pred_region
      %s328 = ssub.s32 %s9, 2
      // Predicated region
      $region41: #{up_forward.5} parent=39 // pred_check
        %p329 = pneg %p122
      $region42: #{up_forward.5} parent=39 // pred_check_branch
        %331 = sbr.rel (%p329) target = $region44
      $region43: #{up_forward.5} parent=39 // pred_region
        %s332 = smul.u32 8, %s21
        %p333 = scmp.lt.s32.totalorder %s20, 1
        %s334 = scalar_select %p333, %s20, 1
        %p335 = scmp.lt.s32.totalorder %s332, 15
        %s336 = scalar_select %p335, %s332, 15
        %s337 = smul.addr %s336, 2
        %s338 = smul.addr %s334, 32
        %s339 = sadd.s32 %s337, %s338
        %s340 = smul.addr %s339, 8
        %s341 = scalar_lea.vmem %s3, %s340
      $region44: #{up_forward.5} parent=39 // pred_fallthru
        _
    $region40: #{up_forward.5} parent=5 // pred_fallthru
      _
  $region6: #{up_forward.5} parent=0 // loop_footer
    %s13 = sadd.s32 1, %s9
  $region7: #{up_forward.5} parent=0 // loop_footer_branch
    %8 = sbr.rel target = $region3
  $region8: #{up_forward.5} parent=0 // loop_exit
    _

// kernel: up_forward.4
$region0: #{up_forward.4}
  #allocation0 [shape = 'u32[]', space=smem, size = 0x4, offset = 0x4, fixed_abs, tag = 'smem constant byte address 0x4 - core index']
  #allocation1 [shape = 'u32[144,128]{1,0:T(1,128)}', space=vmem, size = 0x12000, scoped, tag = 'internal scratch']
  %s0 = inlined_call_operand.vmem [shape: f32[2,16,16,4], index: 0, kind: input, shape index: {}, may-alias: {0,1,2}]
  %s1 = inlined_call_operand.vmem [shape: f32[2,16,16,4], index: 1, kind: input, shape index: {}, may-alias: {0,1,2}]
  %s2 = inlined_call_operand.vmem [shape: f32[2,16,16,4], index: 2, kind: input, shape index: {}, may-alias: {0,1,2}]
  %s3 = inlined_call_operand.vmem [shape: f32[1,4], index: 3, kind: input, shape index: {}]
  %s4 = inlined_call_operand.vmem [shape: f32[1,4], index: 4, kind: input, shape index: {}]
  %s5 = inlined_call_operand.vmem [shape: bf16[3,3,4,4], index: 5, kind: input, shape index: {}]
  %s6 = inlined_call_operand.vmem [shape: f32[2,16,16,4], index: 6, kind: output, shape index: {0}]
  %s7 = inlined_call_operand.vmem [shape: f32[2,2,2,4], index: 7, kind: output, shape index: {1}]
  %8 = xla_tuple %s6, %s7
  %s9 = sld [smem:[#allocation0]]
  $region65: #{up_forward.4} parent=0
    _
  %s11 = ssub.s32 1, %s9
  %s12 = scalar_select 0, %s11, %s9
  loop: start=0, step=1, limit=6
  $region2: #{up_forward.4} parent=0 // loop_pre_header
    _
  $region3: #{up_forward.4} parent=0 // loop_header
    %s14 = sphi 0, %s18
    %p15 = scmp.ge.s32.totalorder %s14, 6
    %s21 = sphi 0, %s33
    %s22 = sphi 0, %s29
    %s23 = sphi 0, %s21
    %s24 = sphi 0, %s22
    %s25 = sphi 0, %s23
    %s26 = sphi 0, %s24
    %s38 = sphi 0, %s40
    %s41 = sphi 0, %s38
    %s42 = sphi 0, %s41
    %s58 = sphi 0, %s42
    %s74 = sphi 0, %s76
    %s77 = sphi 0, %s74
    %s78 = sphi 0, %s77
    %s94 = sphi 0, %s78
    %s110 = sphi 0, %s112
    %s113 = sphi 0, %s110
    %s114 = sphi 0, %s113
    %s130 = sphi 0, %s114
    %s134 = sphi 0, %s134
    %s136 = sphi 0, %s134
    %s137 = sphi 0, %s136
    %s151 = sphi 0, %s137
    %s155 = sphi 0, %s155
    %s157 = sphi 0, %s155
    %s158 = sphi 0, %s157
    %s172 = sphi 0, %s158
    %s176 = sphi 0, %s176
    %s178 = sphi 0, %s176
    %s179 = sphi 0, %s178
    %s193 = sphi 0, %s179
    %s201 = sphi 0, %s203
    %s204 = sphi 0, %s201
    %s205 = sphi 0, %s204
    %s221 = sphi 0, %s205
    %s229 = sphi 0, %s231
    %s232 = sphi 0, %s229
    %s233 = sphi 0, %s232
    %s249 = sphi 0, %s233
  $region4: #{up_forward.4} parent=0 // loop_header_branch
    %17 = sbr.rel (%p15) target = $region8
  $region5: #{up_forward.4} parent=0 // loop_body
    %s19 = ssub.s32 %s14, 1
    %s20 = ssub.s32 %s14, 2
    %s27 = sadd.s32 1, %s22
    %p28 = scmp.ge.s32.totalorder %s27, 2
    %s29 = scalar_select %p28, 0, %s27
    %s30 = sadd.s32 1, %s21
    %s31 = scalar_select %p28, %s30, %s21
    %p32 = scmp.ge.s32.totalorder %s31, 2
    %s33 = scalar_select %p32, 0, %s31
    %s34 = ssub.s32 %s21, %s33
    %s35 = ssub.s32 %s22, %s29
    %s36 = sor.u32 %s34, %s35
    %p37 = scmp.eq.s32.totalorder %s36, 0
    %s39 = sadd.s32 %s38, 1
    %s40 = scalar_select %p37, %s38, %s39
    %p43 = pneg %p37
    %p44 = scmp.eq.s32.totalorder %s14, 3
    %p45 = por %p43, %p44
    %p46 = scmp.ne.s32.totalorder %s38, %s41
    %p47 = scmp.eq.s32.totalorder %s14, 0
    %p48 = por %p46, %p47
    %p49 = scmp.ne.s32.totalorder %s38, %s41
    %p50 = scmp.eq.s32.totalorder %s19, 3
    %p51 = por %p49, %p50
    %p52 = scmp.ne.s32.totalorder %s41, %s42
    %p53 = scmp.eq.s32.totalorder %s19, 0
    %p54 = por %p52, %p53
    %p55 = scmp.ne.s32.totalorder %s41, %s42
    %p56 = scmp.eq.s32.totalorder %s20, 3
    %p57 = por %p55, %p56
    %p59 = scmp.ne.s32.totalorder %s42, %s58
    %p60 = scmp.eq.s32.totalorder %s20, 0
    %p61 = por %p59, %p60
    %s62 = smul.u32 %s22, 8
    %s63 = ssub.s32 %s62, 1
    %p64 = scmp.gt.s32.totalorder %s63, 0
    %s65 = scalar_select %p64, %s63, 0
    %s66 = smul.u32 %s29, 8
    %s67 = ssub.s32 %s66, 1
    %p68 = scmp.gt.s32.totalorder %s67, 0
    %s69 = scalar_select %p68, %s67, 0
    %s70 = ssub.s32 %s21, %s33
    %s71 = ssub.s32 %s65, %s69
    %s72 = sor.u32 %s70, %s71
    %p73 = scmp.eq.s32.totalorder %s72, 0
    %s75 = sadd.s32 %s74, 1
    %s76 = scalar_select %p73, %s74, %s75
    %p79 = pneg %p73
    %p80 = scmp.eq.s32.totalorder %s14, 3
    %p81 = por %p79, %p80
    %p82 = scmp.ne.s32.totalorder %s74, %s77
    %p83 = scmp.eq.s32.totalorder %s14, 0
    %p84 = por %p82, %p83
    %p85 = scmp.ne.s32.totalorder %s74, %s77
    %p86 = scmp.eq.s32.totalorder %s19, 3
    %p87 = por %p85, %p86
    %p88 = scmp.ne.s32.totalorder %s77, %s78
    %p89 = scmp.eq.s32.totalorder %s19, 0
    %p90 = por %p88, %p89
    %p91 = scmp.ne.s32.totalorder %s77, %s78
    %p92 = scmp.eq.s32.totalorder %s20, 3
    %p93 = por %p91, %p92
    %p95 = scmp.ne.s32.totalorder %s78, %s94
    %p96 = scmp.eq.s32.totalorder %s20, 0
    %p97 = por %p95, %p96
    %s98 = sadd.s32 %s22, 1
    %s99 = smul.u32 %s98, 8
    %p100 = scmp.lt.s32.totalorder %s99, 15
    %s101 = scalar_select %p100, %s99, 15
    %s102 = sadd.s32 %s29, 1
    %s103 = smul.u32 %s102, 8
    %p104 = scmp.lt.s32.totalorder %s103, 15
    %s105 = scalar_select %p104, %s103, 15
    %s106 = ssub.s32 %s21, %s33
    %s107 = ssub.s32 %s101, %s105
    %s108 = sor.u32 %s106, %s107
    %p109 = scmp.eq.s32.totalorder %s108, 0
    %s111 = sadd.s32 %s110, 1
    %s112 = scalar_select %p109, %s110, %s111
    %p115 = pneg %p109
    %p116 = scmp.eq.s32.totalorder %s14, 3
    %p117 = por %p115, %p116
    %p118 = scmp.ne.s32.totalorder %s110, %s113
    %p119 = scmp.eq.s32.totalorder %s14, 0
    %p120 = por %p118, %p119
    %p121 = scmp.ne.s32.totalorder %s110, %s113
    %p122 = scmp.eq.s32.totalorder %s19, 3
    %p123 = por %p121, %p122
    %p124 = scmp.ne.s32.totalorder %s113, %s114
    %p125 = scmp.eq.s32.totalorder %s19, 0
    %p126 = por %p124, %p125
    %p127 = scmp.ne.s32.totalorder %s113, %s114
    %p128 = scmp.eq.s32.totalorder %s20, 3
    %p129 = por %p127, %p128
    %p131 = scmp.ne.s32.totalorder %s114, %s130
    %p132 = scmp.eq.s32.totalorder %s20, 0
    %p133 = por %p131, %p132
    %s135 = sadd.s32 %s134, 1
    %p138 = scmp.eq.s32.totalorder %s14, 3
    %p139 = scmp.ne.s32.totalorder %s134, %s136
    %p140 = scmp.eq.s32.totalorder %s14, 0
    %p141 = por %p139, %p140
    %p142 = scmp.ne.s32.totalorder %s134, %s136
    %p143 = scmp.eq.s32.totalorder %s19, 3
    %p144 = por %p142, %p143
    %p145 = scmp.ne.s32.totalorder %s136, %s137
    %p146 = scmp.eq.s32.totalorder %s19, 0
    %p147 = por %p145, %p146
    %p148 = scmp.ne.s32.totalorder %s136, %s137
    %p149 = scmp.eq.s32.totalorder %s20, 3
    %p150 = por %p148, %p149
    %p152 = scmp.ne.s32.totalorder %s137, %s151
    %p153 = scmp.eq.s32.totalorder %s20, 0
    %p154 = por %p152, %p153
    %s156 = sadd.s32 %s155, 1
    %p159 = scmp.eq.s32.totalorder %s14, 3
    %p160 = scmp.ne.s32.totalorder %s155, %s157
    %p161 = scmp.eq.s32.totalorder %s14, 0
    %p162 = por %p160, %p161
    %p163 = scmp.ne.s32.totalorder %s155, %s157
    %p164 = scmp.eq.s32.totalorder %s19, 3
    %p165 = por %p163, %p164
    %p166 = scmp.ne.s32.totalorder %s157, %s158
    %p167 = scmp.eq.s32.totalorder %s19, 0
    %p168 = por %p166, %p167
    %p169 = scmp.ne.s32.totalorder %s157, %s158
    %p170 = scmp.eq.s32.totalorder %s20, 3
    %p171 = por %p169, %p170
    %p173 = scmp.ne.s32.totalorder %s158, %s172
    %p174 = scmp.eq.s32.totalorder %s20, 0
    %p175 = por %p173, %p174
    %s177 = sadd.s32 %s176, 1
    %p180 = scmp.eq.s32.totalorder %s14, 3
    %p181 = scmp.ne.s32.totalorder %s176, %s178
    %p182 = scmp.eq.s32.totalorder %s14, 0
    %p183 = por %p181, %p182
    %p184 = scmp.ne.s32.totalorder %s176, %s178
    %p185 = scmp.eq.s32.totalorder %s19, 3
    %p186 = por %p184, %p185
    %p187 = scmp.ne.s32.totalorder %s178, %s179
    %p188 = scmp.eq.s32.totalorder %s19, 0
    %p189 = por %p187, %p188
    %p190 = scmp.ne.s32.totalorder %s178, %s179
    %p191 = scmp.eq.s32.totalorder %s20, 3
    %p192 = por %p190, %p191
    %p194 = scmp.ne.s32.totalorder %s179, %s193
    %p195 = scmp.eq.s32.totalorder %s20, 0
    %p196 = por %p194, %p195
    %s197 = ssub.s32 %s21, %s33
    %s198 = ssub.s32 %s22, %s29
    %s199 = sor.u32 %s197, %s198
    %p200 = scmp.eq.s32.totalorder %s199, 0
    %s202 = sadd.s32 %s201, 1
    %s203 = scalar_select %p200, %s201, %s202
    %p206 = pneg %p200
    %p207 = scmp.eq.s32.totalorder %s14, 3
    %p208 = por %p206, %p207
    %p209 = scmp.ne.s32.totalorder %s201, %s204
    %p210 = scmp.eq.s32.totalorder %s14, 0
    %p211 = por %p209, %p210
    %p212 = scmp.ne.s32.totalorder %s201, %s204
    %p213 = scmp.eq.s32.totalorder %s19, 3
    %p214 = por %p212, %p213
    %p215 = scmp.ne.s32.totalorder %s204, %s205
    %p216 = scmp.eq.s32.totalorder %s19, 0
    %p217 = por %p215, %p216
    %p218 = scmp.ne.s32.totalorder %s204, %s205
    %p219 = scmp.eq.s32.totalorder %s20, 3
    %p220 = por %p218, %p219
    %p222 = scmp.ne.s32.totalorder %s205, %s221
    %p223 = scmp.eq.s32.totalorder %s20, 0
    %p224 = por %p222, %p223
    %s225 = ssub.s32 %s21, %s33
    %s226 = ssub.s32 %s22, %s29
    %s227 = sor.u32 %s225, %s226
    %p228 = scmp.eq.s32.totalorder %s227, 0
    %s230 = sadd.s32 %s229, 1
    %s231 = scalar_select %p228, %s229, %s230
    %p234 = pneg %p228
    %p235 = scmp.eq.s32.totalorder %s14, 3
    %p236 = por %p234, %p235
    %p237 = scmp.ne.s32.totalorder %s229, %s232
    %p238 = scmp.eq.s32.totalorder %s14, 0
    %p239 = por %p237, %p238
    %p240 = scmp.ne.s32.totalorder %s229, %s232
    %p241 = scmp.eq.s32.totalorder %s19, 3
    %p242 = por %p240, %p241
    %p243 = scmp.ne.s32.totalorder %s232, %s233
    %p244 = scmp.eq.s32.totalorder %s19, 0
    %p245 = por %p243, %p244
    %p246 = scmp.ne.s32.totalorder %s232, %s233
    %p247 = scmp.eq.s32.totalorder %s20, 3
    %p248 = por %p246, %p247
    %p250 = scmp.ne.s32.totalorder %s233, %s249
    %p251 = scmp.eq.s32.totalorder %s20, 0
    %p252 = por %p250, %p251
    %p253 = scmp.le.s32.totalorder 1, %s14
    %p254 = scmp.lt.s32.totalorder %s14, 5
    %p255 = pnand %p253, %p254
    %p256 = pneg %p255
    // Predicated region
    $region9: #{up_forward.4} parent=5 // pred_check
      _
    $region10: #{up_forward.4} parent=5 // pred_check_branch
      %258 = sbr.rel (%p255) target = $region12
    $region11: #{up_forward.4} parent=5 // pred_region
      %s259 = ssub.s32 %s14, 1
      // Predicated region
      $region13: #{up_forward.4} parent=11 // pred_check
        %p260 = pneg %p147
      $region14: #{up_forward.4} parent=11 // pred_check_branch
        %262 = sbr.rel (%p260) target = $region16
      $region15: #{up_forward.4} parent=11 // pred_region
        _
      $region16: #{up_forward.4} parent=11 // pred_fallthru
        _
      // Predicated region
      $region17: #{up_forward.4} parent=11 // pred_check
        %p263 = pneg %p168
      $region18: #{up_forward.4} parent=11 // pred_check_branch
        %265 = sbr.rel (%p263) target = $region20
      $region19: #{up_forward.4} parent=11 // pred_region
        _
      $region20: #{up_forward.4} parent=11 // pred_fallthru
        _
      // Predicated region
      $region21: #{up_forward.4} parent=11 // pred_check
        %p266 = pneg %p189
      $region22: #{up_forward.4} parent=11 // pred_check_branch
        %268 = sbr.rel (%p266) target = $region24
      $region23: #{up_forward.4} parent=11 // pred_region
        _
      $region24: #{up_forward.4} parent=11 // pred_fallthru
        _
    $region12: #{up_forward.4} parent=5 // pred_fallthru
      _
    %p269 = scmp.lt.s32.totalorder %s14, 4
    // Predicated region
    $region25: #{up_forward.4} parent=5 // pred_check
      %p270 = pneg %p269
    $region26: #{up_forward.4} parent=5 // pred_check_branch
      %272 = sbr.rel (%p270) target = $region28
    $region27: #{up_forward.4} parent=5 // pred_region
      // Predicated region
      $region29: #{up_forward.4} parent=27 // pred_check
        %p273 = pneg %p48
      $region30: #{up_forward.4} parent=27 // pred_check_branch
        %275 = sbr.rel (%p273) target = $region32
      $region31: #{up_forward.4} parent=27 // pred_region
        %s276 = smul.u32 8, %s22
        %p277 = scmp.lt.s32.totalorder %s21, 1
        %s278 = scalar_select %p277, %s21, 1
        %p279 = scmp.lt.s32.totalorder %s276, 15
        %s280 = scalar_select %p279, %s276, 15
        %s281 = smul.addr %s280, 2
        %s282 = smul.addr %s278, 32
        %s283 = sadd.s32 %s281, %s282
        %s284 = smul.addr %s283, 8
        %s285 = scalar_lea.vmem %s0, %s284
        %s286 = smul.u32 8, %s22
      $region32: #{up_forward.4} parent=27 // pred_fallthru
        _
      // Predicated region
      $region33: #{up_forward.4} parent=27 // pred_check
        %p287 = pneg %p84
      $region34: #{up_forward.4} parent=27 // pred_check_branch
        %289 = sbr.rel (%p287) target = $region36
      $region35: #{up_forward.4} parent=27 // pred_region
        %s290 = smul.u32 %s22, 8
        %s291 = ssub.s32 %s290, 1
        %p292 = scmp.gt.s32.totalorder %s291, 0
        %s293 = scalar_select %p292, %s291, 0
        %p294 = scmp.lt.s32.totalorder %s21, 1
        %s295 = scalar_select %p294, %s21, 1
        %p296 = scmp.lt.s32.totalorder %s293, 15
        %s297 = scalar_select %p296, %s293, 15
        %s298 = smul.addr %s297, 2
        %s299 = smul.addr %s295, 32
        %s300 = sadd.s32 %s298, %s299
        %s301 = smul.addr %s300, 8
        %s302 = scalar_lea.vmem %s1, %s301
        %s303 = smul.u32 %s22, 8
        %s304 = ssub.s32 %s303, 1
        %p305 = scmp.gt.s32.totalorder %s304, 0
        %s306 = scalar_select %p305, %s304, 0
      $region36: #{up_forward.4} parent=27 // pred_fallthru
        _
      // Predicated region
      $region37: #{up_forward.4} parent=27 // pred_check
        %p307 = pneg %p120
      $region38: #{up_forward.4} parent=27 // pred_check_branch
        %309 = sbr.rel (%p307) target = $region40
      $region39: #{up_forward.4} parent=27 // pred_region
        %s310 = sadd.s32 %s22, 1
        %s311 = smul.u32 %s310, 8
        %p312 = scmp.lt.s32.totalorder %s311, 15
        %s313 = scalar_select %p312, %s311, 15
        %p314 = scmp.lt.s32.totalorder %s21, 1
        %s315 = scalar_select %p314, %s21, 1
        %p316 = scmp.lt.s32.totalorder %s313, 15
        %s317 = scalar_select %p316, %s313, 15
        %s318 = smul.addr %s317, 2
        %s319 = smul.addr %s315, 32
        %s320 = sadd.s32 %s318, %s319
        %s321 = smul.addr %s320, 8
        %s322 = scalar_lea.vmem %s2, %s321
        %s323 = sadd.s32 %s22, 1
        %s324 = smul.u32 %s323, 8
        %p325 = scmp.lt.s32.totalorder %s324, 15
        %s326 = scalar_select %p325, %s324, 15
      $region40: #{up_forward.4} parent=27 // pred_fallthru
        _
    $region28: #{up_forward.4} parent=5 // pred_fallthru
      _
    %p327 = scmp.le.s32.totalorder 1, %s14
    %p328 = scmp.lt.s32.totalorder %s14, 5
    %p329 = pnand %p327, %p328
    %p330 = pneg %p329
    // Predicated region
    $region41: #{up_forward.4} parent=5 // pred_check
      _
    $region42: #{up_forward.4} parent=5 // pred_check_branch
      %332 = sbr.rel (%p329) target = $region44
    $region43: #{up_forward.4} parent=5 // pred_region
      %s333 = ssub.s32 %s14, 1
      %s334 = smul.u32 8, %s24
      %p335 = scmp.lt.s32.totalorder %s23, 1
      %s336 = scalar_select %p335, %s23, 1
      %p337 = scmp.lt.s32.totalorder %s334, 15
      %s338 = scalar_select %p337, %s334, 15
      %s339 = smul.addr %s338, 2
      %s340 = smul.addr %s336, 32
      %s341 = sadd.s32 %s339, %s340
      %s342 = smul.addr %s341, 8
      %s343 = scalar_lea.vmem %s0, %s342
      %p344 = pneg %p54
      %p345 = pneg %p51
      %s346 = smul.u32 %s24, 8
      %s347 = ssub.s32 %s346, 1
      %p348 = scmp.gt.s32.totalorder %s347, 0
      %s349 = scalar_select %p348, %s347, 0
      %p350 = scmp.lt.s32.totalorder %s23, 1
      %s351 = scalar_select %p350, %s23, 1
      %p352 = scmp.lt.s32.totalorder %s349, 15
      %s353 = scalar_select %p352, %s349, 15
      %s354 = smul.addr %s353, 2
      %s355 = smul.addr %s351, 32
      %s356 = sadd.s32 %s354, %s355
      %s357 = smul.addr %s356, 8
      %s358 = scalar_lea.vmem %s1, %s357
      %p359 = pneg %p90
      %p360 = pneg %p87
      %s361 = sadd.s32 %s24, 1
      %s362 = smul.u32 %s361, 8
      %p363 = scmp.lt.s32.totalorder %s362, 15
      %s364 = scalar_select %p363, %s362, 15
      %p365 = scmp.lt.s32.totalorder %s23, 1
      %s366 = scalar_select %p365, %s23, 1
      %p367 = scmp.lt.s32.totalorder %s364, 15
      %s368 = scalar_select %p367, %s364, 15
      %s369 = smul.addr %s368, 2
      %s370 = smul.addr %s366, 32
      %s371 = sadd.s32 %s369, %s370
      %s372 = smul.addr %s371, 8
      %s373 = scalar_lea.vmem %s2, %s372
      %p374 = pneg %p126
      %p375 = pneg %p123
      %p376 = pneg %p147
      %p377 = pneg %p144
      %p378 = pneg %p168
      %p379 = pneg %p165
      %p380 = pneg %p189
      %p381 = pneg %p186
      %p382 = pneg %p217
      %p383 = pneg %p214
      %s384 = smul.u32 8, %s24
      %p385 = scmp.lt.s32.totalorder %s23, 1
      %s386 = scalar_select %p385, %s23, 1
      %p387 = scmp.lt.s32.totalorder %s384, 15
      %s388 = scalar_select %p387, %s384, 15
      %s389 = smul.addr %s388, 2
      %s390 = smul.addr %s386, 32
      %s391 = sadd.s32 %s389, %s390
      %s392 = smul.addr %s391, 8
      %s393 = scalar_lea.vmem %s6, %s392
      %p394 = pneg %p245
      %p395 = pneg %p242
      %p396 = scmp.lt.s32.totalorder %s23, 1
      %s397 = scalar_select %p396, %s23, 1
      %p398 = scmp.lt.s32.totalorder %s24, 1
      %s399 = scalar_select %p398, %s24, 1
      %s400 = smul.addr %s397, 2
      %s401 = sadd.s32 %s399, %s400
      %s402 = smul.addr %s401, 2
      %s403 = scalar_lea.vmem %s7, %s402
      %s404 = smul.u32 8, %s24
      %p405 = scmp.lt.s32.totalorder %s23, 1
      %s406 = scalar_select %p405, %s23, 1
      %p407 = scmp.lt.s32.totalorder %s404, 15
      %s408 = scalar_select %p407, %s404, 15
      %s409 = smul.addr %s408, 2
      %s410 = smul.addr %s406, 32
      %s411 = sadd.s32 %s409, %s410
      %s412 = smul.addr %s411, 8
      %s413 = scalar_lea.vmem %s0, %s412
      %s414 = smul.u32 8, %s24
      %s415 = smul.u32 %s24, 8
      %s416 = ssub.s32 %s415, 1
      %p417 = scmp.gt.s32.totalorder %s416, 0
      %s418 = scalar_select %p417, %s416, 0
      %p419 = scmp.lt.s32.totalorder %s23, 1
      %s420 = scalar_select %p419, %s23, 1
      %p421 = scmp.lt.s32.totalorder %s418, 15
      %s422 = scalar_select %p421, %s418, 15
      %s423 = smul.addr %s422, 2
      %s424 = smul.addr %s420, 32
      %s425 = sadd.s32 %s423, %s424
      %s426 = smul.addr %s425, 8
      %s427 = scalar_lea.vmem %s1, %s426
      %s428 = smul.u32 %s24, 8
      %s429 = ssub.s32 %s428, 1
      %p430 = scmp.gt.s32.totalorder %s429, 0
      %s431 = scalar_select %p430, %s429, 0
      %s432 = sadd.s32 %s24, 1
      %s433 = smul.u32 %s432, 8
      %p434 = scmp.lt.s32.totalorder %s433, 15
      %s435 = scalar_select %p434, %s433, 15
      %p436 = scmp.lt.s32.totalorder %s23, 1
      %s437 = scalar_select %p436, %s23, 1
      %p438 = scmp.lt.s32.totalorder %s435, 15
      %s439 = scalar_select %p438, %s435, 15
      %s440 = smul.addr %s439, 2
      %s441 = smul.addr %s437, 32
      %s442 = sadd.s32 %s440, %s441
      %s443 = smul.addr %s442, 8
      %s444 = scalar_lea.vmem %s2, %s443
      %s445 = sadd.s32 %s24, 1
      %s446 = smul.u32 %s445, 8
      %p447 = scmp.lt.s32.totalorder %s446, 15
      %s448 = scalar_select %p447, %s446, 15
      %s449 = smul.u32 8, %s24
      %p450 = scmp.lt.s32.totalorder %s23, 1
      %s451 = scalar_select %p450, %s23, 1
      %p452 = scmp.lt.s32.totalorder %s449, 15
      %s453 = scalar_select %p452, %s449, 15
      %s454 = smul.addr %s453, 2
      %s455 = smul.addr %s451, 32
      %s456 = sadd.s32 %s454, %s455
      %s457 = smul.addr %s456, 8
      %s458 = scalar_lea.vmem %s6, %s457
      %s459 = smul.u32 8, %s24
      %p460 = scmp.lt.s32.totalorder %s23, 1
      %s461 = scalar_select %p460, %s23, 1
      %p462 = scmp.lt.s32.totalorder %s24, 1
      %s463 = scalar_select %p462, %s24, 1
      %s464 = smul.addr %s461, 2
      %s465 = sadd.s32 %s463, %s464
      %s466 = smul.addr %s465, 2
      %s467 = scalar_lea.vmem %s7, %s466
      %v469 = vld [vmem:[%s3] sm:$0x1]
      %v470 = vld [vmem:[%s4] sm:$0x1]
      %v471 = vld [vmem:[%s413] sm:$0xff]
      %v472 = vld [vmem:[%s413 + $0x8] sm:$0xff]
      %v473 = vld [vmem:[%s413 + $0x10] sm:$0xff]
      %v474 = vld [vmem:[%s413 + $0x18] sm:$0xff]
      %v475 = vld [vmem:[%s413 + $0x20] sm:$0xff]
      %v476 = vld [vmem:[%s413 + $0x28] sm:$0xff]
      %v477 = vld [vmem:[%s413 + $0x30] sm:$0xff]
      %v478 = vld [vmem:[%s413 + $0x38] sm:$0xff]
      %v479 = vld [vmem:[%s413 + $0x40] sm:$0xff]
      %v480 = vld [vmem:[%s413 + $0x48] sm:$0xff]
      %v481 = vld [vmem:[%s413 + $0x50] sm:$0xff]
      %v482 = vld [vmem:[%s413 + $0x58] sm:$0xff]
      %v483 = vld [vmem:[%s413 + $0x60] sm:$0xff]
      %v484 = vld [vmem:[%s413 + $0x68] sm:$0xff]
      %v485 = vld [vmem:[%s413 + $0x70] sm:$0xff]
      %v486 = vld [vmem:[%s413 + $0x78] sm:$0xff]
      %v488 = vlaneseq
      %v489 = vshrl.u32 %v488, 7
      %v490 = vsub.s32 0, %v489
      %v491 = vrot.slane %v469, %v490
      %v493 = vmul.f32 %v471, %v491
      %v494 = vmul.f32 %v472, %v491
      %v495 = vmul.f32 %v473, %v491
      %v496 = vmul.f32 %v474, %v491
      %v497 = vmul.f32 %v475, %v491
      %v498 = vmul.f32 %v476, %v491
      %v499 = vmul.f32 %v477, %v491
      %v500 = vmul.f32 %v478, %v491
      %v501 = vmul.f32 %v479, %v491
      %v502 = vmul.f32 %v480, %v491
      %v503 = vmul.f32 %v481, %v491
      %v504 = vmul.f32 %v482, %v491
      %v505 = vmul.f32 %v483, %v491
      %v506 = vmul.f32 %v484, %v491
      %v507 = vmul.f32 %v485, %v491
      %v508 = vmul.f32 %v486, %v491
      %v510 = vlaneseq
      %v511 = vshrl.u32 %v510, 7
      %v512 = vsub.s32 0, %v511
      %v513 = vrot.slane %v470, %v512
      %v515 = vadd.f32 %v493, %v513
      %v516 = vadd.f32 %v494, %v513
      %v517 = vadd.f32 %v495, %v513
      %v518 = vadd.f32 %v496, %v513
      %v519 = vadd.f32 %v497, %v513
      %v520 = vadd.f32 %v498, %v513
      %v521 = vadd.f32 %v499, %v513
      %v522 = vadd.f32 %v500, %v513
      %v523 = vadd.f32 %v501, %v513
      %v524 = vadd.f32 %v502, %v513
      %v525 = vadd.f32 %v503, %v513
      %v526 = vadd.f32 %v504, %v513
      %v527 = vadd.f32 %v505, %v513
      %v528 = vadd.f32 %v506, %v513
      %v529 = vadd.f32 %v507, %v513
      %v530 = vadd.f32 %v508, %v513
      %v531 = vmax.f32 %v515, 0.0
      %v532 = vmax.f32 %v516, 0.0
      %v533 = vmax.f32 %v517, 0.0
      %v534 = vmax.f32 %v518, 0.0
      %v535 = vmax.f32 %v519, 0.0
      %v536 = vmax.f32 %v520, 0.0
      %v537 = vmax.f32 %v521, 0.0
      %v538 = vmax.f32 %v522, 0.0
      %v539 = vmax.f32 %v523, 0.0
      %v540 = vmax.f32 %v524, 0.0
      %v541 = vmax.f32 %v525, 0.0
      %v542 = vmax.f32 %v526, 0.0
      %v543 = vmax.f32 %v527, 0.0
      %v544 = vmax.f32 %v528, 0.0
      %v545 = vmax.f32 %v529, 0.0
      %v546 = vmax.f32 %v530, 0.0
      %p547 = scmp.gt.s32.totalorder %s24, 0
      %v548 = vld [vmem:[%s427] sm:$0xff]
      %v549 = vld [vmem:[%s427 + $0x8] sm:$0xff]
      %v550 = vmul.f32 %v548, %v491
      %v551 = vmul.f32 %v549, %v491
      %v552 = vadd.f32 %v550, %v513
      %v553 = vadd.f32 %v551, %v513
      %v554 = vmax.f32 %v552, 0.0
      %v555 = vmax.f32 %v553, 0.0
      %s556 = scalar_select %p547, 1, 0
      %v557 = vstv %s556
      %vm558 = vcmp.eq.s32.totalorder %v557, 1
      %v559 = vsel %vm558, %v554, 0.0
      %v560 = vsel %vm558, %v555, 0.0
      %s561 = sadd.s32 %s24, 1
      %p562 = scmp.lt.s32.totalorder %s561, 2
      %v563 = vld [vmem:[%s444] sm:$0xff]
      %v564 = vld [vmem:[%s444 + $0x8] sm:$0xff]
      %v565 = vmul.f32 %v563, %v491
      %v566 = vmul.f32 %v564, %v491
      %v567 = vadd.f32 %v565, %v513
      %v568 = vadd.f32 %v566, %v513
      %v569 = vmax.f32 %v567, 0.0
      %v570 = vmax.f32 %v568, 0.0
      %s571 = scalar_select %p562, 1, 0
      %v572 = vstv %s571
      %vm573 = vcmp.eq.s32.totalorder %v572, 1
      %v574 = vsel %vm573, %v569, 0.0
      %v575 = vsel %vm573, %v570, 0.0
      %vm596 = vcmask 1040384
      %v597 = vrot.slane %v559, 7
      %v598 = vrot.slane %v560, 7
      %v599 = vsel %vm596, %v597, %v598
      %v600 = vrot.slane %v531, 7
      %v601 = vrot.slane %v532, 7
      %v602 = vsel %vm596, %v600, %v601
      %v603 = vrot.slane %v533, 7
      %v604 = vrot.slane %v534, 7
      %v605 = vsel %vm596, %v603, %v604
      %v606 = vrot.slane %v535, 7
      %v607 = vrot.slane %v536, 7
      %v608 = vsel %vm596, %v606, %v607
      %v609 = vrot.slane %v537, 7
      %v610 = vrot.slane %v538, 7
      %v611 = vsel %vm596, %v609, %v610
      %v612 = vrot.slane %v539, 7
      %v613 = vrot.slane %v540, 7
      %v614 = vsel %vm596, %v612, %v613
      %v615 = vrot.slane %v541, 7
      %v616 = vrot.slane %v542, 7
      %v617 = vsel %vm596, %v615, %v616
      %v618 = vrot.slane %v543, 7
      %v619 = vrot.slane %v544, 7
      %v620 = vsel %vm596, %v618, %v619
      %v621 = vrot.slane %v545, 7
      %v622 = vrot.slane %v546, 7
      %v623 = vsel %vm596, %v621, %v622
      %v624 = vrot.slane %v574, 7
      %v625 = vrot.slane %v575, 7
      %v626 = vsel %vm596, %v624, %v625
      %v657 = vsel %vm596, 0.0, %v597
      %v658 = vsel %vm596, 0.0, %v600
      %v659 = vsel %vm596, 0.0, %v603
      %v660 = vsel %vm596, 0.0, %v606
      %v661 = vsel %vm596, 0.0, %v609
      %v662 = vsel %vm596, 0.0, %v612
      %v663 = vsel %vm596, 0.0, %v615
      %v664 = vsel %vm596, 0.0, %v618
      %v665 = vsel %vm596, 0.0, %v621
      %v666 = vsel %vm596, 0.0, %v624
      %v667 = vsel %vm596, %v598, 0.0
      %v668 = vsel %vm596, %v601, 0.0
      %v669 = vsel %vm596, %v604, 0.0
      %v670 = vsel %vm596, %v607, 0.0
      %v671 = vsel %vm596, %v610, 0.0
      %v672 = vsel %vm596, %v613, 0.0
      %v673 = vsel %vm596, %v616, 0.0
      %v674 = vsel %vm596, %v619, 0.0
      %v675 = vsel %vm596, %v622, 0.0
      %v676 = vsel %vm596, %v625, 0.0
      %v677 = vpack.c.bf16 %v599, %v657
      %v678 = vpack.c.bf16 %v667, %v667
      %v679 = vpack.c.bf16 %v602, %v658
      %v680 = vpack.c.bf16 %v668, %v668
      %v681 = vpack.c.bf16 %v605, %v659
      %v682 = vpack.c.bf16 %v669, %v669
      %v683 = vpack.c.bf16 %v608, %v660
      %v684 = vpack.c.bf16 %v670, %v670
      %v685 = vpack.c.bf16 %v611, %v661
      %v686 = vpack.c.bf16 %v671, %v671
      %v687 = vpack.c.bf16 %v614, %v662
      %v688 = vpack.c.bf16 %v672, %v672
      %v689 = vpack.c.bf16 %v617, %v663
      %v690 = vpack.c.bf16 %v673, %v673
      %v691 = vpack.c.bf16 %v620, %v664
      %v692 = vpack.c.bf16 %v674, %v674
      %v693 = vpack.c.bf16 %v623, %v665
      %v694 = vpack.c.bf16 %v675, %v675
      %v695 = vpack.c.bf16 %v626, %v666
      %v696 = vpack.c.bf16 %v676, %v676
      %v697 = vld [vmem:[%s5] sm:$0x3]
      %vm698 = vsmask.f32 7424
      %v700 = vshrl.u32 %v677, 16
      %v702 = vshll.u32 %v677, 16
      %v704 = vrot.slane %v702, 1
      %v705 = vor.u32 %v700, %v704
      %v707 = vshll.u32 %v678, 16
      %v709 = vrot.slane %v707, 1
      %v710 = vsel %vm698, %v705, %v709
      %v712 = vshrl.u32 %v679, 16
      %v714 = vshll.u32 %v679, 16
      %v716 = vrot.slane %v714, 1
      %v717 = vor.u32 %v712, %v716
      %v719 = vshll.u32 %v680, 16
      %v721 = vrot.slane %v719, 1
      %v722 = vsel %vm698, %v717, %v721
      %v724 = vshrl.u32 %v681, 16
      %v726 = vshll.u32 %v681, 16
      %v728 = vrot.slane %v726, 1
      %v729 = vor.u32 %v724, %v728
      %v731 = vshll.u32 %v682, 16
      %v733 = vrot.slane %v731, 1
      %v734 = vsel %vm698, %v729, %v733
      %v736 = vshrl.u32 %v683, 16
      %v738 = vshll.u32 %v683, 16
      %v740 = vrot.slane %v738, 1
      %v741 = vor.u32 %v736, %v740
      %v743 = vshll.u32 %v684, 16
      %v745 = vrot.slane %v743, 1
      %v746 = vsel %vm698, %v741, %v745
      %v748 = vshrl.u32 %v685, 16
      %v750 = vshll.u32 %v685, 16
      %v752 = vrot.slane %v750, 1
      %v753 = vor.u32 %v748, %v752
      %v755 = vshll.u32 %v686, 16
      %v757 = vrot.slane %v755, 1
      %v758 = vsel %vm698, %v753, %v757
      %v760 = vshrl.u32 %v687, 16
      %v762 = vshll.u32 %v687, 16
      %v764 = vrot.slane %v762, 1
      %v765 = vor.u32 %v760, %v764
      %v767 = vshll.u32 %v688, 16
      %v769 = vrot.slane %v767, 1
      %v770 = vsel %vm698, %v765, %v769
      %v772 = vshrl.u32 %v689, 16
      %v774 = vshll.u32 %v689, 16
      %v776 = vrot.slane %v774, 1
      %v777 = vor.u32 %v772, %v776
      %v779 = vshll.u32 %v690, 16
      %v781 = vrot.slane %v779, 1
      %v782 = vsel %vm698, %v777, %v781
      %v784 = vshrl.u32 %v691, 16
      %v786 = vshll.u32 %v691, 16
      %v788 = vrot.slane %v786, 1
      %v789 = vor.u32 %v784, %v788
      %v791 = vshll.u32 %v692, 16
      %v793 = vrot.slane %v791, 1
      %v794 = vsel %vm698, %v789, %v793
      %s795 = scalar_lea.vmem %s5, 2
      %v796 = vld [vmem:[%s795] sm:$0x3]
      %vm797 = vcmask 31744
      %v799 = vsel %vm797, %v710, 0
      %v802 = vsel %vm797, %v722, 0
      %v805 = vsel %vm797, %v734, 0
      %v808 = vsel %vm797, %v746, 0
      %v811 = vsel %vm797, %v758, 0
      %v814 = vsel %vm797, %v770, 0
      %v817 = vsel %vm797, %v782, 0
      %v820 = vsel %vm797, %v794, 0
      %vm822 = vcmask 1041408
      %v824 = vsel %vm822, %v796, 0
      %826 = vmatprep.subr.bf16.mxu0 0
      %827 = vmatpush1.bf16.msra.mxu0 %v824
      %828 = vmatprep.subr.bf16.mxu0 0
      %829 = vmatpush1.bf16.msra.mxu0 0
      %830 = vmatprep.subr.bf16.mxu0 0
      %831 = vmatpush1.bf16.msra.mxu0 0
      %832 = vmatprep.subr.bf16.mxu0 0
      %833 = vmatpush1.bf16.msra.mxu0 0
      %834 = vmatprep.subr.bf16.mxu0 0
      %835 = vmatpush1.bf16.msra.mxu0 0
      %836 = vmatprep.subr.bf16.mxu0 0
      %837 = vmatpush1.bf16.msra.mxu0 0
      %838 = vmatprep.subr.bf16.mxu0 0
      %839 = vmatpush1.bf16.msra.mxu0 0
      %840 = vmatprep.subr.bf16.mxu0 0
      %841 = vmatpush1.bf16.msra.mxu0 0
      %842 = vmatprep.subr.bf16.mxu0 0
      %843 = vmatpush1.bf16.msra.mxu0 0
      %844 = vmatprep.subr.bf16.mxu0 0
      %845 = vmatpush1.bf16.msra.mxu0 0
      %846 = vmatprep.subr.bf16.mxu0 0
      %847 = vmatpush1.bf16.msra.mxu0 0
      %848 = vmatprep.subr.bf16.mxu0 0
      %849 = vmatpush1.bf16.msra.mxu0 0
      %850 = vmatprep.subr.bf16.mxu0 0
      %851 = vmatpush1.bf16.msra.mxu0 0
      %852 = vmatprep.subr.bf16.mxu0 0
      %853 = vmatpush1.bf16.msra.mxu0 0
      %854 = vmatprep.subr.bf16.mxu0 0
      %855 = vmatpush1.bf16.msra.mxu0 0
      %856 = vmatprep.subr.bf16.mxu0 0
      %857 = vmatpush1.bf16.msra.mxu0 0
      %858 = vmatprep.mubr.bf16.mxu0 0
      %859 = vmatmul.mubr.bf16.gmra.mrb[0].mxu0 %v799
      %v860 = vpop.f32.mrb[0].mxu0
      %v861 = vadd.f32 0.0, %v860
      %v862 = vpop.f32.mrb[0].mxu0
      %v863 = vpop.f32.mrb[0].mxu0
      %v864 = vadd.f32 0.0, %v863
      %v865 = vpop.f32.mrb[0].mxu0
      %866 = vmatprep.mubr.bf16.mxu0 0
      %867 = vmatmul.mubr.bf16.gmra.mrb[0].mxu0 %v802
      %v868 = vpop.f32.mrb[0].mxu0
      %v869 = vadd.f32 0.0, %v868
      %v870 = vpop.f32.mrb[0].mxu0
      %v871 = vpop.f32.mrb[0].mxu0
      %v872 = vadd.f32 0.0, %v871
      %v873 = vpop.f32.mrb[0].mxu0
      %874 = vmatprep.mubr.bf16.mxu0 0
      %875 = vmatmul.mubr.bf16.gmra.mrb[0].mxu0 %v805
      %v876 = vpop.f32.mrb[0].mxu0
      %v877 = vadd.f32 0.0, %v876
      %v878 = vpop.f32.mrb[0].mxu0
      %v879 = vpop.f32.mrb[0].mxu0
      %v880 = vadd.f32 0.0, %v879
      %v881 = vpop.f32.mrb[0].mxu0
      %882 = vmatprep.mubr.bf16.mxu0 0
      %883 = vmatmul.mubr.bf16.gmra.mrb[0].mxu0 %v808
      %v884 = vpop.f32.mrb[0].mxu0
      %v885 = vadd.f32 0.0, %v884
      %v886 = vpop.f32.mrb[0].mxu0
      %v887 = vpop.f32.mrb[0].mxu0
      %v888 = vadd.f32 0.0, %v887
      %v889 = vpop.f32.mrb[0].mxu0
      %890 = vmatprep.mubr.bf16.mxu0 0
      %891 = vmatmul.mubr.bf16.gmra.mrb[0].mxu0 %v811
      %v892 = vpop.f32.mrb[0].mxu0
      %v893 = vadd.f32 0.0, %v892
      %v894 = vpop.f32.mrb[0].mxu0
      %v895 = vpop.f32.mrb[0].mxu0
      %v896 = vadd.f32 0.0, %v895
      %v897 = vpop.f32.mrb[0].mxu0
      %898 = vmatprep.mubr.bf16.mxu0 0
      %899 = vmatmul.mubr.bf16.gmra.mrb[0].mxu0 %v814
      %v900 = vpop.f32.mrb[0].mxu0
      %v901 = vadd.f32 0.0, %v900
      %v902 = vpop.f32.mrb[0].mxu0
      %v903 = vpop.f32.mrb[0].mxu0
      %v904 = vadd.f32 0.0, %v903
      %v905 = vpop.f32.mrb[0].mxu0
      %906 = vmatprep.mubr.bf16.mxu0 0
      %907 = vmatmul.mubr.bf16.gmra.mrb[0].mxu0 %v817
      %v908 = vpop.f32.mrb[0].mxu0
      %v909 = vadd.f32 0.0, %v908
      %v910 = vpop.f32.mrb[0].mxu0
      %v911 = vpop.f32.mrb[0].mxu0
      %v912 = vadd.f32 0.0, %v911
      %v913 = vpop.f32.mrb[0].mxu0
      %914 = vmatprep.mubr.bf16.mxu0 0
      %915 = vmatmul.mubr.bf16.gmra.mrb[0].mxu0 %v820
      %v916 = vpop.f32.mrb[0].mxu0
      %v917 = vadd.f32 0.0, %v916
      %v918 = vpop.f32.mrb[0].mxu0
      %v919 = vpop.f32.mrb[0].mxu0
      %v920 = vadd.f32 0.0, %v919
      %v921 = vpop.f32.mrb[0].mxu0
      %922 = vdwg.mxu0
      %v923 = vsel %vm797, %v677, 0
      %v925 = vsel %vm797, %v679, 0
      %v927 = vsel %vm797, %v681, 0
      %v929 = vsel %vm797, %v683, 0
      %v931 = vsel %vm797, %v685, 0
      %v933 = vsel %vm797, %v687, 0
      %v935 = vsel %vm797, %v689, 0
      %v937 = vsel %vm797, %v691, 0
      %v940 = vsel %vm822, %v697, 0
      %942 = vmatprep.subr.bf16.mxu0 0
      %943 = vmatpush1.bf16.msra.mxu0 %v940
      %944 = vmatprep.subr.bf16.mxu0 0
      %945 = vmatpush1.bf16.msra.mxu0 0
      %946 = vmatprep.subr.bf16.mxu0 0
      %947 = vmatpush1.bf16.msra.mxu0 0
      %948 = vmatprep.subr.bf16.mxu0 0
      %949 = vmatpush1.bf16.msra.mxu0 0
      %950 = vmatprep.subr.bf16.mxu0 0
      %951 = vmatpush1.bf16.msra.mxu0 0
      %952 = vmatprep.subr.bf16.mxu0 0
      %953 = vmatpush1.bf16.msra.mxu0 0
      %954 = vmatprep.subr.bf16.mxu0 0
      %955 = vmatpush1.bf16.msra.mxu0 0
      %956 = vmatprep.subr.bf16.mxu0 0
      %957 = vmatpush1.bf16.msra.mxu0 0
      %958 = vmatprep.subr.bf16.mxu0 0
      %959 = vmatpush1.bf16.msra.mxu0 0
      %960 = vmatprep.subr.bf16.mxu0 0
      %961 = vmatpush1.bf16.msra.mxu0 0
      %962 = vmatprep.subr.bf16.mxu0 0
      %963 = vmatpush1.bf16.msra.mxu0 0
      %964 = vmatprep.subr.bf16.mxu0 0
      %965 = vmatpush1.bf16.msra.mxu0 0
      %966 = vmatprep.subr.bf16.mxu0 0
      %967 = vmatpush1.bf16.msra.mxu0 0
      %968 = vmatprep.subr.bf16.mxu0 0
      %969 = vmatpush1.bf16.msra.mxu0 0
      %970 = vmatprep.subr.bf16.mxu0 0
      %971 = vmatpush1.bf16.msra.mxu0 0
      %972 = vmatprep.subr.bf16.mxu0 0
      %973 = vmatpush1.bf16.msra.mxu0 0
      %974 = vmatprep.mubr.bf16.mxu0 0
      %975 = vmatmul.mubr.bf16.gmra.mrb[0].mxu0 %v923
      %v976 = vpop.f32.mrb[0].mxu0
      %v977 = vadd.f32 %v861, %v976
      %v978 = vpop.f32.mrb[0].mxu0
      %v979 = vpop.f32.mrb[0].mxu0
      %v980 = vadd.f32 %v864, %v979
      %v981 = vpop.f32.mrb[0].mxu0
      %982 = vmatprep.mubr.bf16.mxu0 0
      %983 = vmatmul.mubr.bf16.gmra.mrb[0].mxu0 %v925
      %v984 = vpop.f32.mrb[0].mxu0
      %v985 = vadd.f32 %v869, %v984
      %v986 = vpop.f32.mrb[0].mxu0
      %v987 = vpop.f32.mrb[0].mxu0
      %v988 = vadd.f32 %v872, %v987
      %v989 = vpop.f32.mrb[0].mxu0
      %990 = vmatprep.mubr.bf16.mxu0 0
      %991 = vmatmul.mubr.bf16.gmra.mrb[0].mxu0 %v927
      %v992 = vpop.f32.mrb[0].mxu0
      %v993 = vadd.f32 %v877, %v992
      %v994 = vpop.f32.mrb[0].mxu0
      %v995 = vpop.f32.mrb[0].mxu0
      %v996 = vadd.f32 %v880, %v995
      %v997 = vpop.f32.mrb[0].mxu0
      %998 = vmatprep.mubr.bf16.mxu0 0
      %999 = vmatmul.mubr.bf16.gmra.mrb[0].mxu0 %v929
      %v1000 = vpop.f32.mrb[0].mxu0
      %v1001 = vadd.f32 %v885, %v1000
      %v1002 = vpop.f32.mrb[0].mxu0
      %v1003 = vpop.f32.mrb[0].mxu0
      %v1004 = vadd.f32 %v888, %v1003
      %v1005 = vpop.f32.mrb[0].mxu0
      %1006 = vmatprep.mubr.bf16.mxu0 0
      %1007 = vmatmul.mubr.bf16.gmra.mrb[0].mxu0 %v931
      %v1008 = vpop.f32.mrb[0].mxu0
      %v1009 = vadd.f32 %v893, %v1008
      %v1010 = vpop.f32.mrb[0].mxu0
      %v1011 = vpop.f32.mrb[0].mxu0
      %v1012 = vadd.f32 %v896, %v1011
      %v1013 = vpop.f32.mrb[0].mxu0
      %1014 = vmatprep.mubr.bf16.mxu0 0
      %1015 = vmatmul.mubr.bf16.gmra.mrb[0].mxu0 %v933
      %v1016 = vpop.f32.mrb[0].mxu0
      %v1017 = vadd.f32 %v901, %v1016
      %v1018 = vpop.f32.mrb[0].mxu0
      %v1019 = vpop.f32.mrb[0].mxu0
      %v1020 = vadd.f32 %v904, %v1019
      %v1021 = vpop.f32.mrb[0].mxu0
      %1022 = vmatprep.mubr.bf16.mxu0 0
      %1023 = vmatmul.mubr.bf16.gmra.mrb[0].mxu0 %v935
      %v1024 = vpop.f32.mrb[0].mxu0
      %v1025 = vadd.f32 %v909, %v1024
      %v1026 = vpop.f32.mrb[0].mxu0
      %v1027 = vpop.f32.mrb[0].mxu0
      %v1028 = vadd.f32 %v912, %v1027
      %v1029 = vpop.f32.mrb[0].mxu0
      %1030 = vmatprep.mubr.bf16.mxu0 0
      %1031 = vmatmul.mubr.bf16.gmra.mrb[0].mxu0 %v937
      %v1032 = vpop.f32.mrb[0].mxu0
      %v1033 = vadd.f32 %v917, %v1032
      %v1034 = vpop.f32.mrb[0].mxu0
      %v1035 = vpop.f32.mrb[0].mxu0
      %v1036 = vadd.f32 %v920, %v1035
      %v1037 = vpop.f32.mrb[0].mxu0
      %1038 = vdwg.mxu0
      %vm1055 = vcmask 1046528
      %v1056 = vrot.slane %v677, 1
      %v1057 = vrot.slane %v678, 1
      %v1058 = vsel %vm1055, %v1056, %v1057
      %v1059 = vrot.slane %v679, 1
      %v1060 = vrot.slane %v680, 1
      %v1061 = vsel %vm1055, %v1059, %v1060
      %v1062 = vrot.slane %v681, 1
      %v1063 = vrot.slane %v682, 1
      %v1064 = vsel %vm1055, %v1062, %v1063
      %v1065 = vrot.slane %v683, 1
      %v1066 = vrot.slane %v684, 1
      %v1067 = vsel %vm1055, %v1065, %v1066
      %v1068 = vrot.slane %v685, 1
      %v1069 = vrot.slane %v686, 1
      %v1070 = vsel %vm1055, %v1068, %v1069
      %v1071 = vrot.slane %v687, 1
      %v1072 = vrot.slane %v688, 1
      %v1073 = vsel %vm1055, %v1071, %v1072
      %v1074 = vrot.slane %v689, 1
      %v1075 = vrot.slane %v690, 1
      %v1076 = vsel %vm1055, %v1074, %v1075
      %v1077 = vrot.slane %v691, 1
      %v1078 = vrot.slane %v692, 1
      %v1079 = vsel %vm1055, %v1077, %v1078
      %s1080 = scalar_lea.vmem %s5, 4
      %v1081 = vld [vmem:[%s1080] sm:$0x3]
      %v1083 = vsel %vm797, %v1058, 0
      %v1086 = vsel %vm797, %v1061, 0
      %v1089 = vsel %vm797, %v1064, 0
      %v1092 = vsel %vm797, %v1067, 0
      %v1095 = vsel %vm797, %v1070, 0
      %v1098 = vsel %vm797, %v1073, 0
      %v1101 = vsel %vm797, %v1076, 0
      %v1104 = vsel %vm797, %v1079, 0
      %v1107 = vsel %vm822, %v1081, 0
      %1109 = vmatprep.subr.bf16.mxu0 0
      %1110 = vmatpush1.bf16.msra.mxu0 %v1107
      %1111 = vmatprep.subr.bf16.mxu0 0
      %1112 = vmatpush1.bf16.msra.mxu0 0
      %1113 = vmatprep.subr.bf16.mxu0 0
      %1114 = vmatpush1.bf16.msra.mxu0 0
      %1115 = vmatprep.subr.bf16.mxu0 0
      %1116 = vmatpush1.bf16.msra.mxu0 0
      %1117 = vmatprep.subr.bf16.mxu0 0
      %1118 = vmatpush1.bf16.msra.mxu0 0
      %1119 = vmatprep.subr.bf16.mxu0 0
      %1120 = vmatpush1.bf16.msra.mxu0 0
      %1121 = vmatprep.subr.bf16.mxu0 0
      %1122 = vmatpush1.bf16.msra.mxu0 0
      %1123 = vmatprep.subr.bf16.mxu0 0
      %1124 = vmatpush1.bf16.msra.mxu0 0
      %1125 = vmatprep.subr.bf16.mxu0 0
      %1126 = vmatpush1.bf16.msra.mxu0 0
      %1127 = vmatprep.subr.bf16.mxu0 0
      %1128 = vmatpush1.bf16.msra.mxu0 0
      %1129 = vmatprep.subr.bf16.mxu0 0
      %1130 = vmatpush1.bf16.msra.mxu0 0
      %1131 = vmatprep.subr.bf16.mxu0 0
      %1132 = vmatpush1.bf16.msra.mxu0 0
      %1133 = vmatprep.subr.bf16.mxu0 0
      %1134 = vmatpush1.bf16.msra.mxu0 0
      %1135 = vmatprep.subr.bf16.mxu0 0
      %1136 = vmatpush1.bf16.msra.mxu0 0
      %1137 = vmatprep.subr.bf16.mxu0 0
      %1138 = vmatpush1.bf16.msra.mxu0 0
      %1139 = vmatprep.subr.bf16.mxu0 0
      %1140 = vmatpush1.bf16.msra.mxu0 0
      %1141 = vmatprep.mubr.bf16.mxu0 0
      %1142 = vmatmul.mubr.bf16.gmra.mrb[0].mxu0 %v1083
      %v1143 = vpop.f32.mrb[0].mxu0
      %v1144 = vadd.f32 0.0, %v1143
      %v1145 = vpop.f32.mrb[0].mxu0
      %v1146 = vpop.f32.mrb[0].mxu0
      %v1147 = vadd.f32 0.0, %v1146
      %v1148 = vpop.f32.mrb[0].mxu0
      %1149 = vmatprep.mubr.bf16.mxu0 0
      %1150 = vmatmul.mubr.bf16.gmra.mrb[0].mxu0 %v1086
      %v1151 = vpop.f32.mrb[0].mxu0
      %v1152 = vadd.f32 0.0, %v1151
      %v1153 = vpop.f32.mrb[0].mxu0
      %v1154 = vpop.f32.mrb[0].mxu0
      %v1155 = vadd.f32 0.0, %v1154
      %v1156 = vpop.f32.mrb[0].mxu0
      %1157 = vmatprep.mubr.bf16.mxu0 0
      %1158 = vmatmul.mubr.bf16.gmra.mrb[0].mxu0 %v1089
      %v1159 = vpop.f32.mrb[0].mxu0
      %v1160 = vadd.f32 0.0, %v1159
      %v1161 = vpop.f32.mrb[0].mxu0
      %v1162 = vpop.f32.mrb[0].mxu0
      %v1163 = vadd.f32 0.0, %v1162
      %v1164 = vpop.f32.mrb[0].mxu0
      %1165 = vmatprep.mubr.bf16.mxu0 0
      %1166 = vmatmul.mubr.bf16.gmra.mrb[0].mxu0 %v1092
      %v1167 = vpop.f32.mrb[0].mxu0
      %v1168 = vadd.f32 0.0, %v1167
      %v1169 = vpop.f32.mrb[0].mxu0
      %v1170 = vpop.f32.mrb[0].mxu0
      %v1171 = vadd.f32 0.0, %v1170
      %v1172 = vpop.f32.mrb[0].mxu0
      %1173 = vmatprep.mubr.bf16.mxu0 0
      %1174 = vmatmul.mubr.bf16.gmra.mrb[0].mxu0 %v1095
      %v1175 = vpop.f32.mrb[0].mxu0
      %v1176 = vadd.f32 0.0, %v1175
      %v1177 = vpop.f32.mrb[0].mxu0
      %v1178 = vpop.f32.mrb[0].mxu0
      %v1179 = vadd.f32 0.0, %v1178
      %v1180 = vpop.f32.mrb[0].mxu0
      %1181 = vmatprep.mubr.bf16.mxu0 0
      %1182 = vmatmul.mubr.bf16.gmra.mrb[0].mxu0 %v1098
      %v1183 = vpop.f32.mrb[0].mxu0
      %v1184 = vadd.f32 0.0, %v1183
      %v1185 = vpop.f32.mrb[0].mxu0
      %v1186 = vpop.f32.mrb[0].mxu0
      %v1187 = vadd.f32 0.0, %v1186
      %v1188 = vpop.f32.mrb[0].mxu0
      %1189 = vmatprep.mubr.bf16.mxu0 0
      %1190 = vmatmul.mubr.bf16.gmra.mrb[0].mxu0 %v1101
      %v1191 = vpop.f32.mrb[0].mxu0
      %v1192 = vadd.f32 0.0, %v1191
      %v1193 = vpop.f32.mrb[0].mxu0
      %v1194 = vpop.f32.mrb[0].mxu0
      %v1195 = vadd.f32 0.0, %v1194
      %v1196 = vpop.f32.mrb[0].mxu0
      %1197 = vmatprep.mubr.bf16.mxu0 0
      %1198 = vmatmul.mubr.bf16.gmra.mrb[0].mxu0 %v1104
      %v1199 = vpop.f32.mrb[0].mxu0
      %v1200 = vadd.f32 0.0, %v1199
      %v1201 = vpop.f32.mrb[0].mxu0
      %v1202 = vpop.f32.mrb[0].mxu0
      %v1203 = vadd.f32 0.0, %v1202
      %v1204 = vpop.f32.mrb[0].mxu0
      %1205 = vdwg.mxu0
      %v1206 = vadd.f32 %v977, %v1144
      %v1207 = vadd.f32 %v980, %v1147
      %v1208 = vadd.f32 %v985, %v1152
      %v1209 = vadd.f32 %v988, %v1155
      %v1210 = vadd.f32 %v993, %v1160
      %v1211 = vadd.f32 %v996, %v1163
      %v1212 = vadd.f32 %v1001, %v1168
      %v1213 = vadd.f32 %v1004, %v1171
      %v1214 = vadd.f32 %v1009, %v1176
      %v1215 = vadd.f32 %v1012, %v1179
      %v1216 = vadd.f32 %v1017, %v1184
      %v1217 = vadd.f32 %v1020, %v1187
      %v1218 = vadd.f32 %v1025, %v1192
      %v1219 = vadd.f32 %v1028, %v1195
      %v1220 = vadd.f32 %v1033, %v1200
      %v1221 = vadd.f32 %v1036, %v1203
      %s1222 = scalar_lea.vmem %s5, 6
      %v1223 = vld [vmem:[%s1222] sm:$0x3]
      %v1225 = vsel %vm797, %v693, 0
      %v1228 = vsel %vm822, %v1223, 0
      %1230 = vmatprep.subr.bf16.mxu0 0
      %1231 = vmatpush1.bf16.msra.mxu0 %v1228
      %1232 = vmatprep.subr.bf16.mxu0 0
      %1233 = vmatpush1.bf16.msra.mxu0 0
      %1234 = vmatprep.subr.bf16.mxu0 0
      %1235 = vmatpush1.bf16.msra.mxu0 0
      %1236 = vmatprep.subr.bf16.mxu0 0
      %1237 = vmatpush1.bf16.msra.mxu0 0
      %1238 = vmatprep.subr.bf16.mxu0 0
      %1239 = vmatpush1.bf16.msra.mxu0 0
      %1240 = vmatprep.subr.bf16.mxu0 0
      %1241 = vmatpush1.bf16.msra.mxu0 0
      %1242 = vmatprep.subr.bf16.mxu0 0
      %1243 = vmatpush1.bf16.msra.mxu0 0
      %1244 = vmatprep.subr.bf16.mxu0 0
      %1245 = vmatpush1.bf16.msra.mxu0 0
      %1246 = vmatprep.subr.bf16.mxu0 0
      %1247 = vmatpush1.bf16.msra.mxu0 0
      %1248 = vmatprep.subr.bf16.mxu0 0
      %1249 = vmatpush1.bf16.msra.mxu0 0
      %1250 = vmatprep.subr.bf16.mxu0 0
      %1251 = vmatpush1.bf16.msra.mxu0 0
      %1252 = vmatprep.subr.bf16.mxu0 0
      %1253 = vmatpush1.bf16.msra.mxu0 0
      %1254 = vmatprep.subr.bf16.mxu0 0
      %1255 = vmatpush1.bf16.msra.mxu0 0
      %1256 = vmatprep.subr.bf16.mxu0 0
      %1257 = vmatpush1.bf16.msra.mxu0 0
      %1258 = vmatprep.subr.bf16.mxu0 0
      %1259 = vmatpush1.bf16.msra.mxu0 0
      %1260 = vmatprep.subr.bf16.mxu0 0
      %1261 = vmatpush1.bf16.msra.mxu0 0
      %1262 = vmatprep.mubr.bf16.mxu0 0
      %1263 = vmatmul.mubr.bf16.gmra.mrb[0].mxu0 %v925
      %v1264 = vpop.f32.mrb[0].mxu0
      %v1265 = vadd.f32 0.0, %v1264
      %v1266 = vpop.f32.mrb[0].mxu0
      %v1267 = vpop.f32.mrb[0].mxu0
      %v1268 = vadd.f32 0.0, %v1267
      %v1269 = vpop.f32.mrb[0].mxu0
      %1270 = vmatprep.mubr.bf16.mxu0 0
      %1271 = vmatmul.mubr.bf16.gmra.mrb[0].mxu0 %v927
      %v1272 = vpop.f32.mrb[0].mxu0
      %v1273 = vadd.f32 0.0, %v1272
      %v1274 = vpop.f32.mrb[0].mxu0
      %v1275 = vpop.f32.mrb[0].mxu0
      %v1276 = vadd.f32 0.0, %v1275
      %v1277 = vpop.f32.mrb[0].mxu0
      %1278 = vmatprep.mubr.bf16.mxu0 0
      %1279 = vmatmul.mubr.bf16.gmra.mrb[0].mxu0 %v929
      %v1280 = vpop.f32.mrb[0].mxu0
      %v1281 = vadd.f32 0.0, %v1280
      %v1282 = vpop.f32.mrb[0].mxu0
      %v1283 = vpop.f32.mrb[0].mxu0
      %v1284 = vadd.f32 0.0, %v1283
      %v1285 = vpop.f32.mrb[0].mxu0
      %1286 = vmatprep.mubr.bf16.mxu0 0
      %1287 = vmatmul.mubr.bf16.gmra.mrb[0].mxu0 %v931
      %v1288 = vpop.f32.mrb[0].mxu0
      %v1289 = vadd.f32 0.0, %v1288
      %v1290 = vpop.f32.mrb[0].mxu0
      %v1291 = vpop.f32.mrb[0].mxu0
      %v1292 = vadd.f32 0.0, %v1291
      %v1293 = vpop.f32.mrb[0].mxu0
      %1294 = vmatprep.mubr.bf16.mxu0 0
      %1295 = vmatmul.mubr.bf16.gmra.mrb[0].mxu0 %v933
      %v1296 = vpop.f32.mrb[0].mxu0
      %v1297 = vadd.f32 0.0, %v1296
      %v1298 = vpop.f32.mrb[0].mxu0
      %v1299 = vpop.f32.mrb[0].mxu0
      %v1300 = vadd.f32 0.0, %v1299
      %v1301 = vpop.f32.mrb[0].mxu0
      %1302 = vmatprep.mubr.bf16.mxu0 0
      %1303 = vmatmul.mubr.bf16.gmra.mrb[0].mxu0 %v935
      %v1304 = vpop.f32.mrb[0].mxu0
      %v1305 = vadd.f32 0.0, %v1304
      %v1306 = vpop.f32.mrb[0].mxu0
      %v1307 = vpop.f32.mrb[0].mxu0
      %v1308 = vadd.f32 0.0, %v1307
      %v1309 = vpop.f32.mrb[0].mxu0
      %1310 = vmatprep.mubr.bf16.mxu0 0
      %1311 = vmatmul.mubr.bf16.gmra.mrb[0].mxu0 %v937
      %v1312 = vpop.f32.mrb[0].mxu0
      %v1313 = vadd.f32 0.0, %v1312
      %v1314 = vpop.f32.mrb[0].mxu0
      %v1315 = vpop.f32.mrb[0].mxu0
      %v1316 = vadd.f32 0.0, %v1315
      %v1317 = vpop.f32.mrb[0].mxu0
      %1318 = vmatprep.mubr.bf16.mxu0 0
      %1319 = vmatmul.mubr.bf16.gmra.mrb[0].mxu0 %v1225
      %v1320 = vpop.f32.mrb[0].mxu0
      %v1321 = vadd.f32 0.0, %v1320
      %v1322 = vpop.f32.mrb[0].mxu0
      %v1323 = vpop.f32.mrb[0].mxu0
      %v1324 = vadd.f32 0.0, %v1323
      %v1325 = vpop.f32.mrb[0].mxu0
      %1326 = vdwg.mxu0
      %v1327 = vadd.f32 %v1206, %v1265
      %v1328 = vadd.f32 %v1207, %v1268
      %v1329 = vadd.f32 %v1208, %v1273
      %v1330 = vadd.f32 %v1209, %v1276
      %v1331 = vadd.f32 %v1210, %v1281
      %v1332 = vadd.f32 %v1211, %v1284
      %v1333 = vadd.f32 %v1212, %v1289
      %v1334 = vadd.f32 %v1213, %v1292
      %v1335 = vadd.f32 %v1214, %v1297
      %v1336 = vadd.f32 %v1215, %v1300
      %v1337 = vadd.f32 %v1216, %v1305
      %v1338 = vadd.f32 %v1217, %v1308
      %v1339 = vadd.f32 %v1218, %v1313
      %v1340 = vadd.f32 %v1219, %v1316
      %v1341 = vadd.f32 %v1220, %v1321
      %v1342 = vadd.f32 %v1221, %v1324
      %v1343 = vshrl.u32 %v693, 16
      %v1345 = vshll.u32 %v693, 16
      %v1347 = vrot.slane %v1345, 1
      %v1348 = vor.u32 %v1343, %v1347
      %v1350 = vshll.u32 %v694, 16
      %v1352 = vrot.slane %v1350, 1
      %v1353 = vsel %vm698, %v1348, %v1352
      %s1354 = scalar_lea.vmem %s5, 8
      %v1355 = vld [vmem:[%s1354] sm:$0x3]
      %v1357 = vsel %vm797, %v1353, 0
      %v1360 = vsel %vm822, %v1355, 0
      %1362 = vmatprep.subr.bf16.mxu0 0
      %1363 = vmatpush1.bf16.msra.mxu0 %v1360
      %1364 = vmatprep.subr.bf16.mxu0 0
      %1365 = vmatpush1.bf16.msra.mxu0 0
      %1366 = vmatprep.subr.bf16.mxu0 0
      %1367 = vmatpush1.bf16.msra.mxu0 0
      %1368 = vmatprep.subr.bf16.mxu0 0
      %1369 = vmatpush1.bf16.msra.mxu0 0
      %1370 = vmatprep.subr.bf16.mxu0 0
      %1371 = vmatpush1.bf16.msra.mxu0 0
      %1372 = vmatprep.subr.bf16.mxu0 0
      %1373 = vmatpush1.bf16.msra.mxu0 0
      %1374 = vmatprep.subr.bf16.mxu0 0
      %1375 = vmatpush1.bf16.msra.mxu0 0
      %1376 = vmatprep.subr.bf16.mxu0 0
      %1377 = vmatpush1.bf16.msra.mxu0 0
      %1378 = vmatprep.subr.bf16.mxu0 0
      %1379 = vmatpush1.bf16.msra.mxu0 0
      %1380 = vmatprep.subr.bf16.mxu0 0
      %1381 = vmatpush1.bf16.msra.mxu0 0
      %1382 = vmatprep.subr.bf16.mxu0 0
      %1383 = vmatpush1.bf16.msra.mxu0 0
      %1384 = vmatprep.subr.bf16.mxu0 0
      %1385 = vmatpush1.bf16.msra.mxu0 0
      %1386 = vmatprep.subr.bf16.mxu0 0
      %1387 = vmatpush1.bf16.msra.mxu0 0
      %1388 = vmatprep.subr.bf16.mxu0 0
      %1389 = vmatpush1.bf16.msra.mxu0 0
      %1390 = vmatprep.subr.bf16.mxu0 0
      %1391 = vmatpush1.bf16.msra.mxu0 0
      %1392 = vmatprep.subr.bf16.mxu0 0
      %1393 = vmatpush1.bf16.msra.mxu0 0
      %1394 = vmatprep.mubr.bf16.mxu0 0
      %1395 = vmatmul.mubr.bf16.gmra.mrb[0].mxu0 %v802
      %v1396 = vpop.f32.mrb[0].mxu0
      %v1397 = vadd.f32 0.0, %v1396
      %v1398 = vpop.f32.mrb[0].mxu0
      %v1399 = vpop.f32.mrb[0].mxu0
      %v1400 = vadd.f32 0.0, %v1399
      %v1401 = vpop.f32.mrb[0].mxu0
      %1402 = vmatprep.mubr.bf16.mxu0 0
      %1403 = vmatmul.mubr.bf16.gmra.mrb[0].mxu0 %v805
      %v1404 = vpop.f32.mrb[0].mxu0
      %v1405 = vadd.f32 0.0, %v1404
      %v1406 = vpop.f32.mrb[0].mxu0
      %v1407 = vpop.f32.mrb[0].mxu0
      %v1408 = vadd.f32 0.0, %v1407
      %v1409 = vpop.f32.mrb[0].mxu0
      %1410 = vmatprep.mubr.bf16.mxu0 0
      %1411 = vmatmul.mubr.bf16.gmra.mrb[0].mxu0 %v808
      %v1412 = vpop.f32.mrb[0].mxu0
      %v1413 = vadd.f32 0.0, %v1412
      %v1414 = vpop.f32.mrb[0].mxu0
      %v1415 = vpop.f32.mrb[0].mxu0
      %v1416 = vadd.f32 0.0, %v1415
      %v1417 = vpop.f32.mrb[0].mxu0
      %1418 = vmatprep.mubr.bf16.mxu0 0
      %1419 = vmatmul.mubr.bf16.gmra.mrb[0].mxu0 %v811
      %v1420 = vpop.f32.mrb[0].mxu0
      %v1421 = vadd.f32 0.0, %v1420
      %v1422 = vpop.f32.mrb[0].mxu0
      %v1423 = vpop.f32.mrb[0].mxu0
      %v1424 = vadd.f32 0.0, %v1423
      %v1425 = vpop.f32.mrb[0].mxu0
      %1426 = vmatprep.mubr.bf16.mxu0 0
      %1427 = vmatmul.mubr.bf16.gmra.mrb[0].mxu0 %v814
      %v1428 = vpop.f32.mrb[0].mxu0
      %v1429 = vadd.f32 0.0, %v1428
      %v1430 = vpop.f32.mrb[0].mxu0
      %v1431 = vpop.f32.mrb[0].mxu0
      %v1432 = vadd.f32 0.0, %v1431
      %v1433 = vpop.f32.mrb[0].mxu0
      %1434 = vmatprep.mubr.bf16.mxu0 0
      %1435 = vmatmul.mubr.bf16.gmra.mrb[0].mxu0 %v817
      %v1436 = vpop.f32.mrb[0].mxu0
      %v1437 = vadd.f32 0.0, %v1436
      %v1438 = vpop.f32.mrb[0].mxu0
      %v1439 = vpop.f32.mrb[0].mxu0
      %v1440 = vadd.f32 0.0, %v1439
      %v1441 = vpop.f32.mrb[0].mxu0
      %1442 = vmatprep.mubr.bf16.mxu0 0
      %1443 = vmatmul.mubr.bf16.gmra.mrb[0].mxu0 %v820
      %v1444 = vpop.f32.mrb[0].mxu0
      %v1445 = vadd.f32 0.0, %v1444
      %v1446 = vpop.f32.mrb[0].mxu0
      %v1447 = vpop.f32.mrb[0].mxu0
      %v1448 = vadd.f32 0.0, %v1447
      %v1449 = vpop.f32.mrb[0].mxu0
      %1450 = vmatprep.mubr.bf16.mxu0 0
      %1451 = vmatmul.mubr.bf16.gmra.mrb[0].mxu0 %v1357
      %v1452 = vpop.f32.mrb[0].mxu0
      %v1453 = vadd.f32 0.0, %v1452
      %v1454 = vpop.f32.mrb[0].mxu0
      %v1455 = vpop.f32.mrb[0].mxu0
      %v1456 = vadd.f32 0.0, %v1455
      %v1457 = vpop.f32.mrb[0].mxu0
      %1458 = vdwg.mxu0
      %v1459 = vadd.f32 %v1327, %v1397
      %v1460 = vadd.f32 %v1328, %v1400
      %v1461 = vadd.f32 %v1329, %v1405
      %v1462 = vadd.f32 %v1330, %v1408
      %v1463 = vadd.f32 %v1331, %v1413
      %v1464 = vadd.f32 %v1332, %v1416
      %v1465 = vadd.f32 %v1333, %v1421
      %v1466 = vadd.f32 %v1334, %v1424
      %v1467 = vadd.f32 %v1335, %v1429
      %v1468 = vadd.f32 %v1336, %v1432
      %v1469 = vadd.f32 %v1337, %v1437
      %v1470 = vadd.f32 %v1338, %v1440
      %v1471 = vadd.f32 %v1339, %v1445
      %v1472 = vadd.f32 %v1340, %v1448
      %v1473 = vadd.f32 %v1341, %v1453
      %v1474 = vadd.f32 %v1342, %v1456
      %v1477 = vrot.slane %v693, 1
      %v1478 = vrot.slane %v694, 1
      %v1479 = vsel %vm1055, %v1477, %v1478
      %s1480 = scalar_lea.vmem %s5, 10
      %v1481 = vld [vmem:[%s1480] sm:$0x3]
      %v1483 = vsel %vm797, %v1479, 0
      %v1486 = vsel %vm822, %v1481, 0
      %1488 = vmatprep.subr.bf16.mxu0 0
      %1489 = vmatpush1.bf16.msra.mxu0 %v1486
      %1490 = vmatprep.subr.bf16.mxu0 0
      %1491 = vmatpush1.bf16.msra.mxu0 0
      %1492 = vmatprep.subr.bf16.mxu0 0
      %1493 = vmatpush1.bf16.msra.mxu0 0
      %1494 = vmatprep.subr.bf16.mxu0 0
      %1495 = vmatpush1.bf16.msra.mxu0 0
      %1496 = vmatprep.subr.bf16.mxu0 0
      %1497 = vmatpush1.bf16.msra.mxu0 0
      %1498 = vmatprep.subr.bf16.mxu0 0
      %1499 = vmatpush1.bf16.msra.mxu0 0
      %1500 = vmatprep.subr.bf16.mxu0 0
      %1501 = vmatpush1.bf16.msra.mxu0 0
      %1502 = vmatprep.subr.bf16.mxu0 0
      %1503 = vmatpush1.bf16.msra.mxu0 0
      %1504 = vmatprep.subr.bf16.mxu0 0
      %1505 = vmatpush1.bf16.msra.mxu0 0
      %1506 = vmatprep.subr.bf16.mxu0 0
      %1507 = vmatpush1.bf16.msra.mxu0 0
      %1508 = vmatprep.subr.bf16.mxu0 0
      %1509 = vmatpush1.bf16.msra.mxu0 0
      %1510 = vmatprep.subr.bf16.mxu0 0
      %1511 = vmatpush1.bf16.msra.mxu0 0
      %1512 = vmatprep.subr.bf16.mxu0 0
      %1513 = vmatpush1.bf16.msra.mxu0 0
      %1514 = vmatprep.subr.bf16.mxu0 0
      %1515 = vmatpush1.bf16.msra.mxu0 0
      %1516 = vmatprep.subr.bf16.mxu0 0
      %1517 = vmatpush1.bf16.msra.mxu0 0
      %1518 = vmatprep.subr.bf16.mxu0 0
      %1519 = vmatpush1.bf16.msra.mxu0 0
      %1520 = vmatprep.mubr.bf16.mxu0 0
      %1521 = vmatmul.mubr.bf16.gmra.mrb[0].mxu0 %v1086
      %v1522 = vpop.f32.mrb[0].mxu0
      %v1523 = vadd.f32 0.0, %v1522
      %v1524 = vpop.f32.mrb[0].mxu0
      %v1525 = vpop.f32.mrb[0].mxu0
      %v1526 = vadd.f32 0.0, %v1525
      %v1527 = vpop.f32.mrb[0].mxu0
      %1528 = vmatprep.mubr.bf16.mxu0 0
      %1529 = vmatmul.mubr.bf16.gmra.mrb[0].mxu0 %v1089
      %v1530 = vpop.f32.mrb[0].mxu0
      %v1531 = vadd.f32 0.0, %v1530
      %v1532 = vpop.f32.mrb[0].mxu0
      %v1533 = vpop.f32.mrb[0].mxu0
      %v1534 = vadd.f32 0.0, %v1533
      %v1535 = vpop.f32.mrb[0].mxu0
      %1536 = vmatprep.mubr.bf16.mxu0 0
      %1537 = vmatmul.mubr.bf16.gmra.mrb[0].mxu0 %v1092
      %v1538 = vpop.f32.mrb[0].mxu0
      %v1539 = vadd.f32 0.0, %v1538
      %v1540 = vpop.f32.mrb[0].mxu0
      %v1541 = vpop.f32.mrb[0].mxu0
      %v1542 = vadd.f32 0.0, %v1541
      %v1543 = vpop.f32.mrb[0].mxu0
      %1544 = vmatprep.mubr.bf16.mxu0 0
      %1545 = vmatmul.mubr.bf16.gmra.mrb[0].mxu0 %v1095
      %v1546 = vpop.f32.mrb[0].mxu0
      %v1547 = vadd.f32 0.0, %v1546
      %v1548 = vpop.f32.mrb[0].mxu0
      %v1549 = vpop.f32.mrb[0].mxu0
      %v1550 = vadd.f32 0.0, %v1549
      %v1551 = vpop.f32.mrb[0].mxu0
      %1552 = vmatprep.mubr.bf16.mxu0 0
      %1553 = vmatmul.mubr.bf16.gmra.mrb[0].mxu0 %v1098
      %v1554 = vpop.f32.mrb[0].mxu0
      %v1555 = vadd.f32 0.0, %v1554
      %v1556 = vpop.f32.mrb[0].mxu0
      %v1557 = vpop.f32.mrb[0].mxu0
      %v1558 = vadd.f32 0.0, %v1557
      %v1559 = vpop.f32.mrb[0].mxu0
      %1560 = vmatprep.mubr.bf16.mxu0 0
      %1561 = vmatmul.mubr.bf16.gmra.mrb[0].mxu0 %v1101
      %v1562 = vpop.f32.mrb[0].mxu0
      %v1563 = vadd.f32 0.0, %v1562
      %v1564 = vpop.f32.mrb[0].mxu0
      %v1565 = vpop.f32.mrb[0].mxu0
      %v1566 = vadd.f32 0.0, %v1565
      %v1567 = vpop.f32.mrb[0].mxu0
      %1568 = vmatprep.mubr.bf16.mxu0 0
      %1569 = vmatmul.mubr.bf16.gmra.mrb[0].mxu0 %v1104
      %v1570 = vpop.f32.mrb[0].mxu0
      %v1571 = vadd.f32 0.0, %v1570
      %v1572 = vpop.f32.mrb[0].mxu0
      %v1573 = vpop.f32.mrb[0].mxu0
      %v1574 = vadd.f32 0.0, %v1573
      %v1575 = vpop.f32.mrb[0].mxu0
      %1576 = vmatprep.mubr.bf16.mxu0 0
      %1577 = vmatmul.mubr.bf16.gmra.mrb[0].mxu0 %v1483
      %v1578 = vpop.f32.mrb[0].mxu0
      %v1579 = vadd.f32 0.0, %v1578
      %v1580 = vpop.f32.mrb[0].mxu0
      %v1581 = vpop.f32.mrb[0].mxu0
      %v1582 = vadd.f32 0.0, %v1581
      %v1583 = vpop.f32.mrb[0].mxu0
      %1584 = vdwg.mxu0
      %v1585 = vadd.f32 %v1459, %v1523
      %v1586 = vadd.f32 %v1460, %v1526
      %v1587 = vadd.f32 %v1461, %v1531
      %v1588 = vadd.f32 %v1462, %v1534
      %v1589 = vadd.f32 %v1463, %v1539
      %v1590 = vadd.f32 %v1464, %v1542
      %v1591 = vadd.f32 %v1465, %v1547
      %v1592 = vadd.f32 %v1466, %v1550
      %v1593 = vadd.f32 %v1467, %v1555
      %v1594 = vadd.f32 %v1468, %v1558
      %v1595 = vadd.f32 %v1469, %v1563
      %v1596 = vadd.f32 %v1470, %v1566
      %v1597 = vadd.f32 %v1471, %v1571
      %v1598 = vadd.f32 %v1472, %v1574
      %v1599 = vadd.f32 %v1473, %v1579
      %v1600 = vadd.f32 %v1474, %v1582
      %s1601 = scalar_lea.vmem %s5, 12
      %v1602 = vld [vmem:[%s1601] sm:$0x3]
      %v1604 = vsel %vm797, %v695, 0
      %v1607 = vsel %vm822, %v1602, 0
      %1609 = vmatprep.subr.bf16.mxu0 0
      %1610 = vmatpush1.bf16.msra.mxu0 %v1607
      %1611 = vmatprep.subr.bf16.mxu0 0
      %1612 = vmatpush1.bf16.msra.mxu0 0
      %1613 = vmatprep.subr.bf16.mxu0 0
      %1614 = vmatpush1.bf16.msra.mxu0 0
      %1615 = vmatprep.subr.bf16.mxu0 0
      %1616 = vmatpush1.bf16.msra.mxu0 0
      %1617 = vmatprep.subr.bf16.mxu0 0
      %1618 = vmatpush1.bf16.msra.mxu0 0
      %1619 = vmatprep.subr.bf16.mxu0 0
      %1620 = vmatpush1.bf16.msra.mxu0 0
      %1621 = vmatprep.subr.bf16.mxu0 0
      %1622 = vmatpush1.bf16.msra.mxu0 0
      %1623 = vmatprep.subr.bf16.mxu0 0
      %1624 = vmatpush1.bf16.msra.mxu0 0
      %1625 = vmatprep.subr.bf16.mxu0 0
      %1626 = vmatpush1.bf16.msra.mxu0 0
      %1627 = vmatprep.subr.bf16.mxu0 0
      %1628 = vmatpush1.bf16.msra.mxu0 0
      %1629 = vmatprep.subr.bf16.mxu0 0
      %1630 = vmatpush1.bf16.msra.mxu0 0
      %1631 = vmatprep.subr.bf16.mxu0 0
      %1632 = vmatpush1.bf16.msra.mxu0 0
      %1633 = vmatprep.subr.bf16.mxu0 0
      %1634 = vmatpush1.bf16.msra.mxu0 0
      %1635 = vmatprep.subr.bf16.mxu0 0
      %1636 = vmatpush1.bf16.msra.mxu0 0
      %1637 = vmatprep.subr.bf16.mxu0 0
      %1638 = vmatpush1.bf16.msra.mxu0 0
      %1639 = vmatprep.subr.bf16.mxu0 0
      %1640 = vmatpush1.bf16.msra.mxu0 0
      %1641 = vmatprep.mubr.bf16.mxu0 0
      %1642 = vmatmul.mubr.bf16.gmra.mrb[0].mxu0 %v927
      %v1643 = vpop.f32.mrb[0].mxu0
      %v1644 = vadd.f32 0.0, %v1643
      %v1645 = vpop.f32.mrb[0].mxu0
      %v1646 = vpop.f32.mrb[0].mxu0
      %v1647 = vadd.f32 0.0, %v1646
      %v1648 = vpop.f32.mrb[0].mxu0
      %1649 = vmatprep.mubr.bf16.mxu0 0
      %1650 = vmatmul.mubr.bf16.gmra.mrb[0].mxu0 %v929
      %v1651 = vpop.f32.mrb[0].mxu0
      %v1652 = vadd.f32 0.0, %v1651
      %v1653 = vpop.f32.mrb[0].mxu0
      %v1654 = vpop.f32.mrb[0].mxu0
      %v1655 = vadd.f32 0.0, %v1654
      %v1656 = vpop.f32.mrb[0].mxu0
      %1657 = vmatprep.mubr.bf16.mxu0 0
      %1658 = vmatmul.mubr.bf16.gmra.mrb[0].mxu0 %v931
      %v1659 = vpop.f32.mrb[0].mxu0
      %v1660 = vadd.f32 0.0, %v1659
      %v1661 = vpop.f32.mrb[0].mxu0
      %v1662 = vpop.f32.mrb[0].mxu0
      %v1663 = vadd.f32 0.0, %v1662
      %v1664 = vpop.f32.mrb[0].mxu0
      %1665 = vmatprep.mubr.bf16.mxu0 0
      %1666 = vmatmul.mubr.bf16.gmra.mrb[0].mxu0 %v933
      %v1667 = vpop.f32.mrb[0].mxu0
      %v1668 = vadd.f32 0.0, %v1667
      %v1669 = vpop.f32.mrb[0].mxu0
      %v1670 = vpop.f32.mrb[0].mxu0
      %v1671 = vadd.f32 0.0, %v1670
      %v1672 = vpop.f32.mrb[0].mxu0
      %1673 = vmatprep.mubr.bf16.mxu0 0
      %1674 = vmatmul.mubr.bf16.gmra.mrb[0].mxu0 %v935
      %v1675 = vpop.f32.mrb[0].mxu0
      %v1676 = vadd.f32 0.0, %v1675
      %v1677 = vpop.f32.mrb[0].mxu0
      %v1678 = vpop.f32.mrb[0].mxu0
      %v1679 = vadd.f32 0.0, %v1678
      %v1680 = vpop.f32.mrb[0].mxu0
      %1681 = vmatprep.mubr.bf16.mxu0 0
      %1682 = vmatmul.mubr.bf16.gmra.mrb[0].mxu0 %v937
      %v1683 = vpop.f32.mrb[0].mxu0
      %v1684 = vadd.f32 0.0, %v1683
      %v1685 = vpop.f32.mrb[0].mxu0
      %v1686 = vpop.f32.mrb[0].mxu0
      %v1687 = vadd.f32 0.0, %v1686
      %v1688 = vpop.f32.mrb[0].mxu0
      %1689 = vmatprep.mubr.bf16.mxu0 0
      %1690 = vmatmul.mubr.bf16.gmra.mrb[0].mxu0 %v1225
      %v1691 = vpop.f32.mrb[0].mxu0
      %v1692 = vadd.f32 0.0, %v1691
      %v1693 = vpop.f32.mrb[0].mxu0
      %v1694 = vpop.f32.mrb[0].mxu0
      %v1695 = vadd.f32 0.0, %v1694
      %v1696 = vpop.f32.mrb[0].mxu0
      %1697 = vmatprep.mubr.bf16.mxu0 0
      %1698 = vmatmul.mubr.bf16.gmra.mrb[0].mxu0 %v1604
      %v1699 = vpop.f32.mrb[0].mxu0
      %v1700 = vadd.f32 0.0, %v1699
      %v1701 = vpop.f32.mrb[0].mxu0
      %v1702 = vpop.f32.mrb[0].mxu0
      %v1703 = vadd.f32 0.0, %v1702
      %v1704 = vpop.f32.mrb[0].mxu0
      %1705 = vdwg.mxu0
      %v1706 = vadd.f32 %v1585, %v1644
      %v1707 = vadd.f32 %v1586, %v1647
      %v1708 = vadd.f32 %v1587, %v1652
      %v1709 = vadd.f32 %v1588, %v1655
      %v1710 = vadd.f32 %v1589, %v1660
      %v1711 = vadd.f32 %v1590, %v1663
      %v1712 = vadd.f32 %v1591, %v1668
      %v1713 = vadd.f32 %v1592, %v1671
      %v1714 = vadd.f32 %v1593, %v1676
      %v1715 = vadd.f32 %v1594, %v1679
      %v1716 = vadd.f32 %v1595, %v1684
      %v1717 = vadd.f32 %v1596, %v1687
      %v1718 = vadd.f32 %v1597, %v1692
      %v1719 = vadd.f32 %v1598, %v1695
      %v1720 = vadd.f32 %v1599, %v1700
      %v1721 = vadd.f32 %v1600, %v1703
      %v1722 = vshrl.u32 %v695, 16
      %v1724 = vshll.u32 %v695, 16
      %v1726 = vrot.slane %v1724, 1
      %v1727 = vor.u32 %v1722, %v1726
      %v1729 = vshll.u32 %v696, 16
      %v1731 = vrot.slane %v1729, 1
      %v1732 = vsel %vm698, %v1727, %v1731
      %s1733 = scalar_lea.vmem %s5, 14
      %v1734 = vld [vmem:[%s1733] sm:$0x3]
      %v1736 = vsel %vm797, %v1732, 0
      %v1739 = vsel %vm822, %v1734, 0
      %1741 = vmatprep.subr.bf16.mxu0 0
      %1742 = vmatpush1.bf16.msra.mxu0 %v1739
      %1743 = vmatprep.subr.bf16.mxu0 0
      %1744 = vmatpush1.bf16.msra.mxu0 0
      %1745 = vmatprep.subr.bf16.mxu0 0
      %1746 = vmatpush1.bf16.msra.mxu0 0
      %1747 = vmatprep.subr.bf16.mxu0 0
      %1748 = vmatpush1.bf16.msra.mxu0 0
      %1749 = vmatprep.subr.bf16.mxu0 0
      %1750 = vmatpush1.bf16.msra.mxu0 0
      %1751 = vmatprep.subr.bf16.mxu0 0
      %1752 = vmatpush1.bf16.msra.mxu0 0
      %1753 = vmatprep.subr.bf16.mxu0 0
      %1754 = vmatpush1.bf16.msra.mxu0 0
      %1755 = vmatprep.subr.bf16.mxu0 0
      %1756 = vmatpush1.bf16.msra.mxu0 0
      %1757 = vmatprep.subr.bf16.mxu0 0
      %1758 = vmatpush1.bf16.msra.mxu0 0
      %1759 = vmatprep.subr.bf16.mxu0 0
      %1760 = vmatpush1.bf16.msra.mxu0 0
      %1761 = vmatprep.subr.bf16.mxu0 0
      %1762 = vmatpush1.bf16.msra.mxu0 0
      %1763 = vmatprep.subr.bf16.mxu0 0
      %1764 = vmatpush1.bf16.msra.mxu0 0
      %1765 = vmatprep.subr.bf16.mxu0 0
      %1766 = vmatpush1.bf16.msra.mxu0 0
      %1767 = vmatprep.subr.bf16.mxu0 0
      %1768 = vmatpush1.bf16.msra.mxu0 0
      %1769 = vmatprep.subr.bf16.mxu0 0
      %1770 = vmatpush1.bf16.msra.mxu0 0
      %1771 = vmatprep.subr.bf16.mxu0 0
      %1772 = vmatpush1.bf16.msra.mxu0 0
      %1773 = vmatprep.mubr.bf16.mxu0 0
      %1774 = vmatmul.mubr.bf16.gmra.mrb[0].mxu0 %v805
      %v1775 = vpop.f32.mrb[0].mxu0
      %v1776 = vadd.f32 0.0, %v1775
      %v1777 = vpop.f32.mrb[0].mxu0
      %v1778 = vpop.f32.mrb[0].mxu0
      %v1779 = vadd.f32 0.0, %v1778
      %v1780 = vpop.f32.mrb[0].mxu0
      %1781 = vmatprep.mubr.bf16.mxu0 0
      %1782 = vmatmul.mubr.bf16.gmra.mrb[0].mxu0 %v808
      %v1783 = vpop.f32.mrb[0].mxu0
      %v1784 = vadd.f32 0.0, %v1783
      %v1785 = vpop.f32.mrb[0].mxu0
      %v1786 = vpop.f32.mrb[0].mxu0
      %v1787 = vadd.f32 0.0, %v1786
      %v1788 = vpop.f32.mrb[0].mxu0
      %1789 = vmatprep.mubr.bf16.mxu0 0
      %1790 = vmatmul.mubr.bf16.gmra.mrb[0].mxu0 %v811
      %v1791 = vpop.f32.mrb[0].mxu0
      %v1792 = vadd.f32 0.0, %v1791
      %v1793 = vpop.f32.mrb[0].mxu0
      %v1794 = vpop.f32.mrb[0].mxu0
      %v1795 = vadd.f32 0.0, %v1794
      %v1796 = vpop.f32.mrb[0].mxu0
      %1797 = vmatprep.mubr.bf16.mxu0 0
      %1798 = vmatmul.mubr.bf16.gmra.mrb[0].mxu0 %v814
      %v1799 = vpop.f32.mrb[0].mxu0
      %v1800 = vadd.f32 0.0, %v1799
      %v1801 = vpop.f32.mrb[0].mxu0
      %v1802 = vpop.f32.mrb[0].mxu0
      %v1803 = vadd.f32 0.0, %v1802
      %v1804 = vpop.f32.mrb[0].mxu0
      %1805 = vmatprep.mubr.bf16.mxu0 0
      %1806 = vmatmul.mubr.bf16.gmra.mrb[0].mxu0 %v817
      %v1807 = vpop.f32.mrb[0].mxu0
      %v1808 = vadd.f32 0.0, %v1807
      %v1809 = vpop.f32.mrb[0].mxu0
      %v1810 = vpop.f32.mrb[0].mxu0
      %v1811 = vadd.f32 0.0, %v1810
      %v1812 = vpop.f32.mrb[0].mxu0
      %1813 = vmatprep.mubr.bf16.mxu0 0
      %1814 = vmatmul.mubr.bf16.gmra.mrb[0].mxu0 %v820
      %v1815 = vpop.f32.mrb[0].mxu0
      %v1816 = vadd.f32 0.0, %v1815
      %v1817 = vpop.f32.mrb[0].mxu0
      %v1818 = vpop.f32.mrb[0].mxu0
      %v1819 = vadd.f32 0.0, %v1818
      %v1820 = vpop.f32.mrb[0].mxu0
      %1821 = vmatprep.mubr.bf16.mxu0 0
      %1822 = vmatmul.mubr.bf16.gmra.mrb[0].mxu0 %v1357
      %v1823 = vpop.f32.mrb[0].mxu0
      %v1824 = vadd.f32 0.0, %v1823
      %v1825 = vpop.f32.mrb[0].mxu0
      %v1826 = vpop.f32.mrb[0].mxu0
      %v1827 = vadd.f32 0.0, %v1826
      %v1828 = vpop.f32.mrb[0].mxu0
      %1829 = vmatprep.mubr.bf16.mxu0 0
      %1830 = vmatmul.mubr.bf16.gmra.mrb[0].mxu0 %v1736
      %v1831 = vpop.f32.mrb[0].mxu0
      %v1832 = vadd.f32 0.0, %v1831
      %v1833 = vpop.f32.mrb[0].mxu0
      %v1834 = vpop.f32.mrb[0].mxu0
      %v1835 = vadd.f32 0.0, %v1834
      %v1836 = vpop.f32.mrb[0].mxu0
      %1837 = vdwg.mxu0
      %v1838 = vadd.f32 %v1706, %v1776
      %v1839 = vadd.f32 %v1707, %v1779
      %v1840 = vadd.f32 %v1708, %v1784
      %v1841 = vadd.f32 %v1709, %v1787
      %v1842 = vadd.f32 %v1710, %v1792
      %v1843 = vadd.f32 %v1711, %v1795
      %v1844 = vadd.f32 %v1712, %v1800
      %v1845 = vadd.f32 %v1713, %v1803
      %v1846 = vadd.f32 %v1714, %v1808
      %v1847 = vadd.f32 %v1715, %v1811
      %v1848 = vadd.f32 %v1716, %v1816
      %v1849 = vadd.f32 %v1717, %v1819
      %v1850 = vadd.f32 %v1718, %v1824
      %v1851 = vadd.f32 %v1719, %v1827
      %v1852 = vadd.f32 %v1720, %v1832
      %v1853 = vadd.f32 %v1721, %v1835
      %v1856 = vrot.slane %v695, 1
      %v1857 = vrot.slane %v696, 1
      %v1858 = vsel %vm1055, %v1856, %v1857
      %s1859 = scalar_lea.vmem %s5, 16
      %v1860 = vld [vmem:[%s1859] sm:$0x3]
      %v1862 = vsel %vm797, %v1858, 0
      %v1865 = vsel %vm822, %v1860, 0
      %1867 = vmatprep.subr.bf16.mxu0 0
      %1868 = vmatpush1.bf16.msra.mxu0 %v1865
      %1869 = vmatprep.subr.bf16.mxu0 0
      %1870 = vmatpush1.bf16.msra.mxu0 0
      %1871 = vmatprep.subr.bf16.mxu0 0
      %1872 = vmatpush1.bf16.msra.mxu0 0
      %1873 = vmatprep.subr.bf16.mxu0 0
      %1874 = vmatpush1.bf16.msra.mxu0 0
      %1875 = vmatprep.subr.bf16.mxu0 0
      %1876 = vmatpush1.bf16.msra.mxu0 0
      %1877 = vmatprep.subr.bf16.mxu0 0
      %1878 = vmatpush1.bf16.msra.mxu0 0
      %1879 = vmatprep.subr.bf16.mxu0 0
      %1880 = vmatpush1.bf16.msra.mxu0 0
      %1881 = vmatprep.subr.bf16.mxu0 0
      %1882 = vmatpush1.bf16.msra.mxu0 0
      %1883 = vmatprep.subr.bf16.mxu0 0
      %1884 = vmatpush1.bf16.msra.mxu0 0
      %1885 = vmatprep.subr.bf16.mxu0 0
      %1886 = vmatpush1.bf16.msra.mxu0 0
      %1887 = vmatprep.subr.bf16.mxu0 0
      %1888 = vmatpush1.bf16.msra.mxu0 0
      %1889 = vmatprep.subr.bf16.mxu0 0
      %1890 = vmatpush1.bf16.msra.mxu0 0
      %1891 = vmatprep.subr.bf16.mxu0 0
      %1892 = vmatpush1.bf16.msra.mxu0 0
      %1893 = vmatprep.subr.bf16.mxu0 0
      %1894 = vmatpush1.bf16.msra.mxu0 0
      %1895 = vmatprep.subr.bf16.mxu0 0
      %1896 = vmatpush1.bf16.msra.mxu0 0
      %1897 = vmatprep.subr.bf16.mxu0 0
      %1898 = vmatpush1.bf16.msra.mxu0 0
      %1899 = vmatprep.mubr.bf16.mxu0 0
      %1900 = vmatmul.mubr.bf16.gmra.mrb[0].mxu0 %v1089
      %v1901 = vpop.f32.mrb[0].mxu0
      %v1902 = vadd.f32 0.0, %v1901
      %v1903 = vpop.f32.mrb[0].mxu0
      %v1904 = vpop.f32.mrb[0].mxu0
      %v1905 = vadd.f32 0.0, %v1904
      %v1906 = vpop.f32.mrb[0].mxu0
      %1907 = vmatprep.mubr.bf16.mxu0 0
      %1908 = vmatmul.mubr.bf16.gmra.mrb[0].mxu0 %v1092
      %v1909 = vpop.f32.mrb[0].mxu0
      %v1910 = vadd.f32 0.0, %v1909
      %v1911 = vpop.f32.mrb[0].mxu0
      %v1912 = vpop.f32.mrb[0].mxu0
      %v1913 = vadd.f32 0.0, %v1912
      %v1914 = vpop.f32.mrb[0].mxu0
      %1915 = vmatprep.mubr.bf16.mxu0 0
      %1916 = vmatmul.mubr.bf16.gmra.mrb[0].mxu0 %v1095
      %v1917 = vpop.f32.mrb[0].mxu0
      %v1918 = vadd.f32 0.0, %v1917
      %v1919 = vpop.f32.mrb[0].mxu0
      %v1920 = vpop.f32.mrb[0].mxu0
      %v1921 = vadd.f32 0.0, %v1920
      %v1922 = vpop.f32.mrb[0].mxu0
      %1923 = vmatprep.mubr.bf16.mxu0 0
      %1924 = vmatmul.mubr.bf16.gmra.mrb[0].mxu0 %v1098
      %v1925 = vpop.f32.mrb[0].mxu0
      %v1926 = vadd.f32 0.0, %v1925
      %v1927 = vpop.f32.mrb[0].mxu0
      %v1928 = vpop.f32.mrb[0].mxu0
      %v1929 = vadd.f32 0.0, %v1928
      %v1930 = vpop.f32.mrb[0].mxu0
      %1931 = vmatprep.mubr.bf16.mxu0 0
      %1932 = vmatmul.mubr.bf16.gmra.mrb[0].mxu0 %v1101
      %v1933 = vpop.f32.mrb[0].mxu0
      %v1934 = vadd.f32 0.0, %v1933
      %v1935 = vpop.f32.mrb[0].mxu0
      %v1936 = vpop.f32.mrb[0].mxu0
      %v1937 = vadd.f32 0.0, %v1936
      %v1938 = vpop.f32.mrb[0].mxu0
      %1939 = vmatprep.mubr.bf16.mxu0 0
      %1940 = vmatmul.mubr.bf16.gmra.mrb[0].mxu0 %v1104
      %v1941 = vpop.f32.mrb[0].mxu0
      %v1942 = vadd.f32 0.0, %v1941
      %v1943 = vpop.f32.mrb[0].mxu0
      %v1944 = vpop.f32.mrb[0].mxu0
      %v1945 = vadd.f32 0.0, %v1944
      %v1946 = vpop.f32.mrb[0].mxu0
      %1947 = vmatprep.mubr.bf16.mxu0 0
      %1948 = vmatmul.mubr.bf16.gmra.mrb[0].mxu0 %v1483
      %v1949 = vpop.f32.mrb[0].mxu0
      %v1950 = vadd.f32 0.0, %v1949
      %v1951 = vpop.f32.mrb[0].mxu0
      %v1952 = vpop.f32.mrb[0].mxu0
      %v1953 = vadd.f32 0.0, %v1952
      %v1954 = vpop.f32.mrb[0].mxu0
      %1955 = vmatprep.mubr.bf16.mxu0 0
      %1956 = vmatmul.mubr.bf16.gmra.mrb[0].mxu0 %v1862
      %v1957 = vpop.f32.mrb[0].mxu0
      %v1958 = vadd.f32 0.0, %v1957
      %v1959 = vpop.f32.mrb[0].mxu0
      %v1960 = vpop.f32.mrb[0].mxu0
      %v1961 = vadd.f32 0.0, %v1960
      %v1962 = vpop.f32.mrb[0].mxu0
      %1963 = vdwg.mxu0
      %v1964 = vadd.f32 %v1838, %v1902
      %v1965 = vadd.f32 %v1839, %v1905
      %v1966 = vadd.f32 %v1840, %v1910
      %v1967 = vadd.f32 %v1841, %v1913
      %v1968 = vadd.f32 %v1842, %v1918
      %v1969 = vadd.f32 %v1843, %v1921
      %v1970 = vadd.f32 %v1844, %v1926
      %v1971 = vadd.f32 %v1845, %v1929
      %v1972 = vadd.f32 %v1846, %v1934
      %v1973 = vadd.f32 %v1847, %v1937
      %v1974 = vadd.f32 %v1848, %v1942
      %v1975 = vadd.f32 %v1849, %v1945
      %v1976 = vadd.f32 %v1850, %v1950
      %v1977 = vadd.f32 %v1851, %v1953
      %v1978 = vadd.f32 %v1852, %v1958
      %v1979 = vadd.f32 %v1853, %v1961
      %1980 = vst.msk [vmem:[%s458] sm:$0xff] %vm797, %v1964
      %1981 = vst.msk [vmem:[%s458 + $0x8] sm:$0xff] %vm797, %v1965
      %1982 = vst.msk [vmem:[%s458 + $0x10] sm:$0xff] %vm797, %v1966
      %1983 = vst.msk [vmem:[%s458 + $0x18] sm:$0xff] %vm797, %v1967
      %1984 = vst.msk [vmem:[%s458 + $0x20] sm:$0xff] %vm797, %v1968
      %1985 = vst.msk [vmem:[%s458 + $0x28] sm:$0xff] %vm797, %v1969
      %1986 = vst.msk [vmem:[%s458 + $0x30] sm:$0xff] %vm797, %v1970
      %1987 = vst.msk [vmem:[%s458 + $0x38] sm:$0xff] %vm797, %v1971
      %1988 = vst.msk [vmem:[%s458 + $0x40] sm:$0xff] %vm797, %v1972
      %1989 = vst.msk [vmem:[%s458 + $0x48] sm:$0xff] %vm797, %v1973
      %1990 = vst.msk [vmem:[%s458 + $0x50] sm:$0xff] %vm797, %v1974
      %1991 = vst.msk [vmem:[%s458 + $0x58] sm:$0xff] %vm797, %v1975
      %1992 = vst.msk [vmem:[%s458 + $0x60] sm:$0xff] %vm797, %v1976
      %1993 = vst.msk [vmem:[%s458 + $0x68] sm:$0xff] %vm797, %v1977
      %1994 = vst.msk [vmem:[%s458 + $0x70] sm:$0xff] %vm797, %v1978
      %1995 = vst.msk [vmem:[%s458 + $0x78] sm:$0xff] %vm797, %v1979
      %v1996 = vsel %vm797, %v1964, 0.0
      %v1997 = vsel %vm797, %v1965, 0.0
      %v1998 = vadd.f32 %v1996, %v1997
      %v1999 = vsel %vm797, %v1966, 0.0
      %v2000 = vadd.f32 %v1998, %v1999
      %v2001 = vsel %vm797, %v1967, 0.0
      %v2002 = vadd.f32 %v2000, %v2001
      %v2003 = vsel %vm797, %v1968, 0.0
      %v2004 = vadd.f32 %v2002, %v2003
      %v2005 = vsel %vm797, %v1969, 0.0
      %v2006 = vadd.f32 %v2004, %v2005
      %v2007 = vsel %vm797, %v1970, 0.0
      %v2008 = vadd.f32 %v2006, %v2007
      %v2009 = vsel %vm797, %v1971, 0.0
      %v2010 = vadd.f32 %v2008, %v2009
      %v2011 = vsel %vm797, %v1972, 0.0
      %v2012 = vadd.f32 %v2010, %v2011
      %v2013 = vsel %vm797, %v1973, 0.0
      %v2014 = vadd.f32 %v2012, %v2013
      %v2015 = vsel %vm797, %v1974, 0.0
      %v2016 = vadd.f32 %v2014, %v2015
      %v2017 = vsel %vm797, %v1975, 0.0
      %v2018 = vadd.f32 %v2016, %v2017
      %v2019 = vsel %vm797, %v1976, 0.0
      %v2020 = vadd.f32 %v2018, %v2019
      %v2021 = vsel %vm797, %v1977, 0.0
      %v2022 = vadd.f32 %v2020, %v2021
      %v2023 = vsel %vm797, %v1978, 0.0
      %v2024 = vadd.f32 %v2022, %v2023
      %v2025 = vsel %vm797, %v1979, 0.0
      %v2026 = vadd.f32 %v2024, %v2025
      %v2027 = vrot.slane %v2026, 4
      %v2028 = vadd.f32 %v2026, %v2027
      %v2029 = vrot.slane %v2028, 2
      %v2030 = vadd.f32 %v2028, %v2029
      %v2031 = vrot.slane %v2030, 1
      %v2032 = vadd.f32 %v2030, %v2031
      %v2033 = vmul.f32 %v1964, %v1964
      %v2034 = vmul.f32 %v1965, %v1965
      %v2035 = vmul.f32 %v1966, %v1966
      %v2036 = vmul.f32 %v1967, %v1967
      %v2037 = vmul.f32 %v1968, %v1968
      %v2038 = vmul.f32 %v1969, %v1969
      %v2039 = vmul.f32 %v1970, %v1970
      %v2040 = vmul.f32 %v1971, %v1971
      %v2041 = vmul.f32 %v1972, %v1972
      %v2042 = vmul.f32 %v1973, %v1973
      %v2043 = vmul.f32 %v1974, %v1974
      %v2044 = vmul.f32 %v1975, %v1975
      %v2045 = vmul.f32 %v1976, %v1976
      %v2046 = vmul.f32 %v1977, %v1977
      %v2047 = vmul.f32 %v1978, %v1978
      %v2048 = vmul.f32 %v1979, %v1979
      %v2049 = vsel %vm797, %v2033, 0.0
      %v2050 = vsel %vm797, %v2034, 0.0
      %v2051 = vadd.f32 %v2049, %v2050
      %v2052 = vsel %vm797, %v2035, 0.0
      %v2053 = vadd.f32 %v2051, %v2052
      %v2054 = vsel %vm797, %v2036, 0.0
      %v2055 = vadd.f32 %v2053, %v2054
      %v2056 = vsel %vm797, %v2037, 0.0
      %v2057 = vadd.f32 %v2055, %v2056
      %v2058 = vsel %vm797, %v2038, 0.0
      %v2059 = vadd.f32 %v2057, %v2058
      %v2060 = vsel %vm797, %v2039, 0.0
      %v2061 = vadd.f32 %v2059, %v2060
      %v2062 = vsel %vm797, %v2040, 0.0
      %v2063 = vadd.f32 %v2061, %v2062
      %v2064 = vsel %vm797, %v2041, 0.0
      %v2065 = vadd.f32 %v2063, %v2064
      %v2066 = vsel %vm797, %v2042, 0.0
      %v2067 = vadd.f32 %v2065, %v2066
      %v2068 = vsel %vm797, %v2043, 0.0
      %v2069 = vadd.f32 %v2067, %v2068
      %v2070 = vsel %vm797, %v2044, 0.0
      %v2071 = vadd.f32 %v2069, %v2070
      %v2072 = vsel %vm797, %v2045, 0.0
      %v2073 = vadd.f32 %v2071, %v2072
      %v2074 = vsel %vm797, %v2046, 0.0
      %v2075 = vadd.f32 %v2073, %v2074
      %v2076 = vsel %vm797, %v2047, 0.0
      %v2077 = vadd.f32 %v2075, %v2076
      %v2078 = vsel %vm797, %v2048, 0.0
      %v2079 = vadd.f32 %v2077, %v2078
      %v2080 = vrot.slane %v2079, 4
      %v2081 = vadd.f32 %v2079, %v2080
      %v2082 = vrot.slane %v2081, 2
      %v2083 = vadd.f32 %v2081, %v2082
      %v2084 = vrot.slane %v2083, 1
      %v2085 = vadd.f32 %v2083, %v2084
      %v2086 = vsel %vm596, %v2032, %v2085
      %vm2087 = vcmask 25600
      %2088 = vst.msk [vmem:[%s467] sm:$0x3] %vm2087, %v2086
      %s2089 = smul.u32 8, %s24
      %p2090 = scmp.lt.s32.totalorder %s23, 1
      %s2091 = scalar_select %p2090, %s23, 1
      %p2092 = scmp.lt.s32.totalorder %s2089, 15
      %s2093 = scalar_select %p2092, %s2089, 15
      %s2094 = smul.addr %s2093, 2
      %s2095 = smul.addr %s2091, 32
      %s2096 = sadd.s32 %s2094, %s2095
      %s2097 = smul.addr %s2096, 8
      %s2098 = scalar_lea.vmem %s6, %s2097
      %p2099 = scmp.lt.s32.totalorder %s23, 1
      %s2100 = scalar_select %p2099, %s23, 1
      %p2101 = scmp.lt.s32.totalorder %s24, 1
      %s2102 = scalar_select %p2101, %s24, 1
      %s2103 = smul.addr %s2100, 2
      %s2104 = sadd.s32 %s2102, %s2103
      %s2105 = smul.addr %s2104, 2
      %s2106 = scalar_lea.vmem %s7, %s2105
      // Predicated region
      $region45: #{up_forward.4} parent=43 // pred_check
        %p2107 = pneg %p214
      $region46: #{up_forward.4} parent=43 // pred_check_branch
        %2109 = sbr.rel (%p2107) target = $region48
      $region47: #{up_forward.4} parent=43 // pred_region
        %s2110 = smul.u32 8, %s24
      $region48: #{up_forward.4} parent=43 // pred_fallthru
        _
      // Predicated region
      $region49: #{up_forward.4} parent=43 // pred_check
        %p2111 = pneg %p242
      $region50: #{up_forward.4} parent=43 // pred_check_branch
        %2113 = sbr.rel (%p2111) target = $region52
      $region51: #{up_forward.4} parent=43 // pred_region
        _
      $region52: #{up_forward.4} parent=43 // pred_fallthru
        _
    $region44: #{up_forward.4} parent=5 // pred_fallthru
      _
    %p2114 = scmp.le.s32.totalorder 2, %s14
    // Predicated region
    $region53: #{up_forward.4} parent=5 // pred_check
      %p2115 = pneg %p2114
    $region54: #{up_forward.4} parent=5 // pred_check_branch
      %2117 = sbr.rel (%p2115) target = $region56
    $region55: #{up_forward.4} parent=5 // pred_region
      %s2118 = ssub.s32 %s14, 2
      // Predicated region
      $region57: #{up_forward.4} parent=55 // pred_check
        %p2119 = pneg %p220
      $region58: #{up_forward.4} parent=55 // pred_check_branch
        %2121 = sbr.rel (%p2119) target = $region60
      $region59: #{up_forward.4} parent=55 // pred_region
        %s2122 = smul.u32 8, %s26
        %p2123 = scmp.lt.s32.totalorder %s25, 1
        %s2124 = scalar_select %p2123, %s25, 1
        %p2125 = scmp.lt.s32.totalorder %s2122, 15
        %s2126 = scalar_select %p2125, %s2122, 15
        %s2127 = smul.addr %s2126, 2
        %s2128 = smul.addr %s2124, 32
        %s2129 = sadd.s32 %s2127, %s2128
        %s2130 = smul.addr %s2129, 8
        %s2131 = scalar_lea.vmem %s6, %s2130
      $region60: #{up_forward.4} parent=55 // pred_fallthru
        _
      // Predicated region
      $region61: #{up_forward.4} parent=55 // pred_check
        %p2132 = pneg %p248
      $region62: #{up_forward.4} parent=55 // pred_check_branch
        %2134 = sbr.rel (%p2132) target = $region64
      $region63: #{up_forward.4} parent=55 // pred_region
        %p2135 = scmp.lt.s32.totalorder %s25, 1
        %s2136 = scalar_select %p2135, %s25, 1
        %p2137 = scmp.lt.s32.totalorder %s26, 1
        %s2138 = scalar_select %p2137, %s26, 1
        %s2139 = smul.addr %s2136, 2
        %s2140 = sadd.s32 %s2138, %s2139
        %s2141 = smul.addr %s2140, 2
        %s2142 = scalar_lea.vmem %s7, %s2141
      $region64: #{up_forward.4} parent=55 // pred_fallthru
        _
    $region56: #{up_forward.4} parent=5 // pred_fallthru
      _
  $region6: #{up_forward.4} parent=0 // loop_footer
    %s18 = sadd.s32 1, %s14
  $region7: #{up_forward.4} parent=0 // loop_footer_branch
    %13 = sbr.rel target = $region3
  $region8: #{up_forward.4} parent=0 // loop_exit
    _

// kernel: up_forward.3
$region0: #{up_forward.3}
  #allocation0 [shape = 'u32[]', space=smem, size = 0x4, offset = 0x4, fixed_abs, tag = 'smem constant byte address 0x4 - core index']
  #allocation1 [shape = 'u32[144,128]{1,0:T(1,128)}', space=vmem, size = 0x12000, scoped, tag = 'internal scratch']
  %s0 = inlined_call_operand.vmem [shape: f32[2,16,16,4], index: 0, kind: input, shape index: {}, may-alias: {0,1,2}]
  %s1 = inlined_call_operand.vmem [shape: f32[2,16,16,4], index: 1, kind: input, shape index: {}, may-alias: {0,1,2}]
  %s2 = inlined_call_operand.vmem [shape: f32[2,16,16,4], index: 2, kind: input, shape index: {}, may-alias: {0,1,2}]
  %s3 = inlined_call_operand.vmem [shape: f32[2,16,16,4], index: 3, kind: input, shape index: {}, may-alias: {3,4,5}]
  %s4 = inlined_call_operand.vmem [shape: f32[2,16,16,4], index: 4, kind: input, shape index: {}, may-alias: {3,4,5}]
  %s5 = inlined_call_operand.vmem [shape: f32[2,16,16,4], index: 5, kind: input, shape index: {}, may-alias: {3,4,5}]
  %s6 = inlined_call_operand.vmem [shape: bf16[3,3,4,4], index: 6, kind: input, shape index: {}]
  %s7 = inlined_call_operand.vmem [shape: bf16[3,3,4,4], index: 7, kind: input, shape index: {}]
  %s8 = inlined_call_operand.vmem [shape: f32[2,16,16,4], index: 8, kind: output, shape index: {0}]
  %s9 = inlined_call_operand.vmem [shape: f32[2,2,2,4], index: 9, kind: output, shape index: {1}]
  %10 = xla_tuple %s8, %s9
  %s11 = sld [smem:[#allocation0]]
  $region73: #{up_forward.3} parent=0
    _
  %s13 = ssub.s32 1, %s11
  %s14 = scalar_select 0, %s13, %s11
  loop: start=0, step=1, limit=6
  $region2: #{up_forward.3} parent=0 // loop_pre_header
    _
  $region3: #{up_forward.3} parent=0 // loop_header
    %s16 = sphi 0, %s20
    %p17 = scmp.ge.s32.totalorder %s16, 6
    %s23 = sphi 0, %s35
    %s24 = sphi 0, %s31
    %s25 = sphi 0, %s23
    %s26 = sphi 0, %s24
    %s27 = sphi 0, %s25
    %s28 = sphi 0, %s26
    %s40 = sphi 0, %s42
    %s43 = sphi 0, %s40
    %s44 = sphi 0, %s43
    %s60 = sphi 0, %s44
    %s76 = sphi 0, %s78
    %s79 = sphi 0, %s76
    %s80 = sphi 0, %s79
    %s96 = sphi 0, %s80
    %s112 = sphi 0, %s114
    %s115 = sphi 0, %s112
    %s116 = sphi 0, %s115
    %s132 = sphi 0, %s116
    %s140 = sphi 0, %s142
    %s143 = sphi 0, %s140
    %s144 = sphi 0, %s143
    %s160 = sphi 0, %s144
    %s176 = sphi 0, %s178
    %s179 = sphi 0, %s176
    %s180 = sphi 0, %s179
    %s196 = sphi 0, %s180
    %s212 = sphi 0, %s214
    %s215 = sphi 0, %s212
    %s216 = sphi 0, %s215
    %s232 = sphi 0, %s216
    %s236 = sphi 0, %s236
    %s238 = sphi 0, %s236
    %s239 = sphi 0, %s238
    %s253 = sphi 0, %s239
    %s257 = sphi 0, %s257
    %s259 = sphi 0, %s257
    %s260 = sphi 0, %s259
    %s274 = sphi 0, %s260
    %s282 = sphi 0, %s284
    %s285 = sphi 0, %s282
    %s286 = sphi 0, %s285
    %s302 = sphi 0, %s286
    %s310 = sphi 0, %s312
    %s313 = sphi 0, %s310
    %s314 = sphi 0, %s313
    %s330 = sphi 0, %s314
  $region4: #{up_forward.3} parent=0 // loop_header_branch
    %19 = sbr.rel (%p17) target = $region8
  $region5: #{up_forward.3} parent=0 // loop_body
    %s21 = ssub.s32 %s16, 1
    %s22 = ssub.s32 %s16, 2
    %s29 = sadd.s32 1, %s24
    %p30 = scmp.ge.s32.totalorder %s29, 2
    %s31 = scalar_select %p30, 0, %s29
    %s32 = sadd.s32 1, %s23
    %s33 = scalar_select %p30, %s32, %s23
    %p34 = scmp.ge.s32.totalorder %s33, 2
    %s35 = scalar_select %p34, 0, %s33
    %s36 = ssub.s32 %s23, %s35
    %s37 = ssub.s32 %s24, %s31
    %s38 = sor.u32 %s36, %s37
    %p39 = scmp.eq.s32.totalorder %s38, 0
    %s41 = sadd.s32 %s40, 1
    %s42 = scalar_select %p39, %s40, %s41
    %p45 = pneg %p39
    %p46 = scmp.eq.s32.totalorder %s16, 3
    %p47 = por %p45, %p46
    %p48 = scmp.ne.s32.totalorder %s40, %s43
    %p49 = scmp.eq.s32.totalorder %s16, 0
    %p50 = por %p48, %p49
    %p51 = scmp.ne.s32.totalorder %s40, %s43
    %p52 = scmp.eq.s32.totalorder %s21, 3
    %p53 = por %p51, %p52
    %p54 = scmp.ne.s32.totalorder %s43, %s44
    %p55 = scmp.eq.s32.totalorder %s21, 0
    %p56 = por %p54, %p55
    %p57 = scmp.ne.s32.totalorder %s43, %s44
    %p58 = scmp.eq.s32.totalorder %s22, 3
    %p59 = por %p57, %p58
    %p61 = scmp.ne.s32.totalorder %s44, %s60
    %p62 = scmp.eq.s32.totalorder %s22, 0
    %p63 = por %p61, %p62
    %s64 = smul.u32 %s24, 8
    %s65 = ssub.s32 %s64, 1
    %p66 = scmp.gt.s32.totalorder %s65, 0
    %s67 = scalar_select %p66, %s65, 0
    %s68 = smul.u32 %s31, 8
    %s69 = ssub.s32 %s68, 1
    %p70 = scmp.gt.s32.totalorder %s69, 0
    %s71 = scalar_select %p70, %s69, 0
    %s72 = ssub.s32 %s23, %s35
    %s73 = ssub.s32 %s67, %s71
    %s74 = sor.u32 %s72, %s73
    %p75 = scmp.eq.s32.totalorder %s74, 0
    %s77 = sadd.s32 %s76, 1
    %s78 = scalar_select %p75, %s76, %s77
    %p81 = pneg %p75
    %p82 = scmp.eq.s32.totalorder %s16, 3
    %p83 = por %p81, %p82
    %p84 = scmp.ne.s32.totalorder %s76, %s79
    %p85 = scmp.eq.s32.totalorder %s16, 0
    %p86 = por %p84, %p85
    %p87 = scmp.ne.s32.totalorder %s76, %s79
    %p88 = scmp.eq.s32.totalorder %s21, 3
    %p89 = por %p87, %p88
    %p90 = scmp.ne.s32.totalorder %s79, %s80
    %p91 = scmp.eq.s32.totalorder %s21, 0
    %p92 = por %p90, %p91
    %p93 = scmp.ne.s32.totalorder %s79, %s80
    %p94 = scmp.eq.s32.totalorder %s22, 3
    %p95 = por %p93, %p94
    %p97 = scmp.ne.s32.totalorder %s80, %s96
    %p98 = scmp.eq.s32.totalorder %s22, 0
    %p99 = por %p97, %p98
    %s100 = sadd.s32 %s24, 1
    %s101 = smul.u32 %s100, 8
    %p102 = scmp.lt.s32.totalorder %s101, 15
    %s103 = scalar_select %p102, %s101, 15
    %s104 = sadd.s32 %s31, 1
    %s105 = smul.u32 %s104, 8
    %p106 = scmp.lt.s32.totalorder %s105, 15
    %s107 = scalar_select %p106, %s105, 15
    %s108 = ssub.s32 %s23, %s35
    %s109 = ssub.s32 %s103, %s107
    %s110 = sor.u32 %s108, %s109
    %p111 = scmp.eq.s32.totalorder %s110, 0
    %s113 = sadd.s32 %s112, 1
    %s114 = scalar_select %p111, %s112, %s113
    %p117 = pneg %p111
    %p118 = scmp.eq.s32.totalorder %s16, 3
    %p119 = por %p117, %p118
    %p120 = scmp.ne.s32.totalorder %s112, %s115
    %p121 = scmp.eq.s32.totalorder %s16, 0
    %p122 = por %p120, %p121
    %p123 = scmp.ne.s32.totalorder %s112, %s115
    %p124 = scmp.eq.s32.totalorder %s21, 3
    %p125 = por %p123, %p124
    %p126 = scmp.ne.s32.totalorder %s115, %s116
    %p127 = scmp.eq.s32.totalorder %s21, 0
    %p128 = por %p126, %p127
    %p129 = scmp.ne.s32.totalorder %s115, %s116
    %p130 = scmp.eq.s32.totalorder %s22, 3
    %p131 = por %p129, %p130
    %p133 = scmp.ne.s32.totalorder %s116, %s132
    %p134 = scmp.eq.s32.totalorder %s22, 0
    %p135 = por %p133, %p134
    %s136 = ssub.s32 %s23, %s35
    %s137 = ssub.s32 %s24, %s31
    %s138 = sor.u32 %s136, %s137
    %p139 = scmp.eq.s32.totalorder %s138, 0
    %s141 = sadd.s32 %s140, 1
    %s142 = scalar_select %p139, %s140, %s141
    %p145 = pneg %p139
    %p146 = scmp.eq.s32.totalorder %s16, 3
    %p147 = por %p145, %p146
    %p148 = scmp.ne.s32.totalorder %s140, %s143
    %p149 = scmp.eq.s32.totalorder %s16, 0
    %p150 = por %p148, %p149
    %p151 = scmp.ne.s32.totalorder %s140, %s143
    %p152 = scmp.eq.s32.totalorder %s21, 3
    %p153 = por %p151, %p152
    %p154 = scmp.ne.s32.totalorder %s143, %s144
    %p155 = scmp.eq.s32.totalorder %s21, 0
    %p156 = por %p154, %p155
    %p157 = scmp.ne.s32.totalorder %s143, %s144
    %p158 = scmp.eq.s32.totalorder %s22, 3
    %p159 = por %p157, %p158
    %p161 = scmp.ne.s32.totalorder %s144, %s160
    %p162 = scmp.eq.s32.totalorder %s22, 0
    %p163 = por %p161, %p162
    %s164 = smul.u32 %s24, 8
    %s165 = ssub.s32 %s164, 1
    %p166 = scmp.gt.s32.totalorder %s165, 0
    %s167 = scalar_select %p166, %s165, 0
    %s168 = smul.u32 %s31, 8
    %s169 = ssub.s32 %s168, 1
    %p170 = scmp.gt.s32.totalorder %s169, 0
    %s171 = scalar_select %p170, %s169, 0
    %s172 = ssub.s32 %s23, %s35
    %s173 = ssub.s32 %s167, %s171
    %s174 = sor.u32 %s172, %s173
    %p175 = scmp.eq.s32.totalorder %s174, 0
    %s177 = sadd.s32 %s176, 1
    %s178 = scalar_select %p175, %s176, %s177
    %p181 = pneg %p175
    %p182 = scmp.eq.s32.totalorder %s16, 3
    %p183 = por %p181, %p182
    %p184 = scmp.ne.s32.totalorder %s176, %s179
    %p185 = scmp.eq.s32.totalorder %s16, 0
    %p186 = por %p184, %p185
    %p187 = scmp.ne.s32.totalorder %s176, %s179
    %p188 = scmp.eq.s32.totalorder %s21, 3
    %p189 = por %p187, %p188
    %p190 = scmp.ne.s32.totalorder %s179, %s180
    %p191 = scmp.eq.s32.totalorder %s21, 0
    %p192 = por %p190, %p191
    %p193 = scmp.ne.s32.totalorder %s179, %s180
    %p194 = scmp.eq.s32.totalorder %s22, 3
    %p195 = por %p193, %p194
    %p197 = scmp.ne.s32.totalorder %s180, %s196
    %p198 = scmp.eq.s32.totalorder %s22, 0
    %p199 = por %p197, %p198
    %s200 = sadd.s32 %s24, 1
    %s201 = smul.u32 %s200, 8
    %p202 = scmp.lt.s32.totalorder %s201, 15
    %s203 = scalar_select %p202, %s201, 15
    %s204 = sadd.s32 %s31, 1
    %s205 = smul.u32 %s204, 8
    %p206 = scmp.lt.s32.totalorder %s205, 15
    %s207 = scalar_select %p206, %s205, 15
    %s208 = ssub.s32 %s23, %s35
    %s209 = ssub.s32 %s203, %s207
    %s210 = sor.u32 %s208, %s209
    %p211 = scmp.eq.s32.totalorder %s210, 0
    %s213 = sadd.s32 %s212, 1
    %s214 = scalar_select %p211, %s212, %s213
    %p217 = pneg %p211
    %p218 = scmp.eq.s32.totalorder %s16, 3
    %p219 = por %p217, %p218
    %p220 = scmp.ne.s32.totalorder %s212, %s215
    %p221 = scmp.eq.s32.totalorder %s16, 0
    %p222 = por %p220, %p221
    %p223 = scmp.ne.s32.totalorder %s212, %s215
    %p224 = scmp.eq.s32.totalorder %s21, 3
    %p225 = por %p223, %p224
    %p226 = scmp.ne.s32.totalorder %s215, %s216
    %p227 = scmp.eq.s32.totalorder %s21, 0
    %p228 = por %p226, %p227
    %p229 = scmp.ne.s32.totalorder %s215, %s216
    %p230 = scmp.eq.s32.totalorder %s22, 3
    %p231 = por %p229, %p230
    %p233 = scmp.ne.s32.totalorder %s216, %s232
    %p234 = scmp.eq.s32.totalorder %s22, 0
    %p235 = por %p233, %p234
    %s237 = sadd.s32 %s236, 1
    %p240 = scmp.eq.s32.totalorder %s16, 3
    %p241 = scmp.ne.s32.totalorder %s236, %s238
    %p242 = scmp.eq.s32.totalorder %s16, 0
    %p243 = por %p241, %p242
    %p244 = scmp.ne.s32.totalorder %s236, %s238
    %p245 = scmp.eq.s32.totalorder %s21, 3
    %p246 = por %p244, %p245
    %p247 = scmp.ne.s32.totalorder %s238, %s239
    %p248 = scmp.eq.s32.totalorder %s21, 0
    %p249 = por %p247, %p248
    %p250 = scmp.ne.s32.totalorder %s238, %s239
    %p251 = scmp.eq.s32.totalorder %s22, 3
    %p252 = por %p250, %p251
    %p254 = scmp.ne.s32.totalorder %s239, %s253
    %p255 = scmp.eq.s32.totalorder %s22, 0
    %p256 = por %p254, %p255
    %s258 = sadd.s32 %s257, 1
    %p261 = scmp.eq.s32.totalorder %s16, 3
    %p262 = scmp.ne.s32.totalorder %s257, %s259
    %p263 = scmp.eq.s32.totalorder %s16, 0
    %p264 = por %p262, %p263
    %p265 = scmp.ne.s32.totalorder %s257, %s259
    %p266 = scmp.eq.s32.totalorder %s21, 3
    %p267 = por %p265, %p266
    %p268 = scmp.ne.s32.totalorder %s259, %s260
    %p269 = scmp.eq.s32.totalorder %s21, 0
    %p270 = por %p268, %p269
    %p271 = scmp.ne.s32.totalorder %s259, %s260
    %p272 = scmp.eq.s32.totalorder %s22, 3
    %p273 = por %p271, %p272
    %p275 = scmp.ne.s32.totalorder %s260, %s274
    %p276 = scmp.eq.s32.totalorder %s22, 0
    %p277 = por %p275, %p276
    %s278 = ssub.s32 %s23, %s35
    %s279 = ssub.s32 %s24, %s31
    %s280 = sor.u32 %s278, %s279
    %p281 = scmp.eq.s32.totalorder %s280, 0
    %s283 = sadd.s32 %s282, 1
    %s284 = scalar_select %p281, %s282, %s283
    %p287 = pneg %p281
    %p288 = scmp.eq.s32.totalorder %s16, 3
    %p289 = por %p287, %p288
    %p290 = scmp.ne.s32.totalorder %s282, %s285
    %p291 = scmp.eq.s32.totalorder %s16, 0
    %p292 = por %p290, %p291
    %p293 = scmp.ne.s32.totalorder %s282, %s285
    %p294 = scmp.eq.s32.totalorder %s21, 3
    %p295 = por %p293, %p294
    %p296 = scmp.ne.s32.totalorder %s285, %s286
    %p297 = scmp.eq.s32.totalorder %s21, 0
    %p298 = por %p296, %p297
    %p299 = scmp.ne.s32.totalorder %s285, %s286
    %p300 = scmp.eq.s32.totalorder %s22, 3
    %p301 = por %p299, %p300
    %p303 = scmp.ne.s32.totalorder %s286, %s302
    %p304 = scmp.eq.s32.totalorder %s22, 0
    %p305 = por %p303, %p304
    %s306 = ssub.s32 %s23, %s35
    %s307 = ssub.s32 %s24, %s31
    %s308 = sor.u32 %s306, %s307
    %p309 = scmp.eq.s32.totalorder %s308, 0
    %s311 = sadd.s32 %s310, 1
    %s312 = scalar_select %p309, %s310, %s311
    %p315 = pneg %p309
    %p316 = scmp.eq.s32.totalorder %s16, 3
    %p317 = por %p315, %p316
    %p318 = scmp.ne.s32.totalorder %s310, %s313
    %p319 = scmp.eq.s32.totalorder %s16, 0
    %p320 = por %p318, %p319
    %p321 = scmp.ne.s32.totalorder %s310, %s313
    %p322 = scmp.eq.s32.totalorder %s21, 3
    %p323 = por %p321, %p322
    %p324 = scmp.ne.s32.totalorder %s313, %s314
    %p325 = scmp.eq.s32.totalorder %s21, 0
    %p326 = por %p324, %p325
    %p327 = scmp.ne.s32.totalorder %s313, %s314
    %p328 = scmp.eq.s32.totalorder %s22, 3
    %p329 = por %p327, %p328
    %p331 = scmp.ne.s32.totalorder %s314, %s330
    %p332 = scmp.eq.s32.totalorder %s22, 0
    %p333 = por %p331, %p332
    %p334 = scmp.le.s32.totalorder 1, %s16
    %p335 = scmp.lt.s32.totalorder %s16, 5
    %p336 = pnand %p334, %p335
    %p337 = pneg %p336
    // Predicated region
    $region9: #{up_forward.3} parent=5 // pred_check
      _
    $region10: #{up_forward.3} parent=5 // pred_check_branch
      %339 = sbr.rel (%p336) target = $region12
    $region11: #{up_forward.3} parent=5 // pred_region
      %s340 = ssub.s32 %s16, 1
      // Predicated region
      $region13: #{up_forward.3} parent=11 // pred_check
        %p341 = pneg %p249
      $region14: #{up_forward.3} parent=11 // pred_check_branch
        %343 = sbr.rel (%p341) target = $region16
      $region15: #{up_forward.3} parent=11 // pred_region
        _
      $region16: #{up_forward.3} parent=11 // pred_fallthru
        _
      // Predicated region
      $region17: #{up_forward.3} parent=11 // pred_check
        %p344 = pneg %p270
      $region18: #{up_forward.3} parent=11 // pred_check_branch
        %346 = sbr.rel (%p344) target = $region20
      $region19: #{up_forward.3} parent=11 // pred_region
        _
      $region20: #{up_forward.3} parent=11 // pred_fallthru
        _
    $region12: #{up_forward.3} parent=5 // pred_fallthru
      _
    %p347 = scmp.lt.s32.totalorder %s16, 4
    // Predicated region
    $region21: #{up_forward.3} parent=5 // pred_check
      %p348 = pneg %p347
    $region22: #{up_forward.3} parent=5 // pred_check_branch
      %350 = sbr.rel (%p348) target = $region24
    $region23: #{up_forward.3} parent=5 // pred_region
      // Predicated region
      $region25: #{up_forward.3} parent=23 // pred_check
        %p351 = pneg %p50
      $region26: #{up_forward.3} parent=23 // pred_check_branch
        %353 = sbr.rel (%p351) target = $region28
      $region27: #{up_forward.3} parent=23 // pred_region
        %s354 = smul.u32 8, %s24
        %p355 = scmp.lt.s32.totalorder %s23, 1
        %s356 = scalar_select %p355, %s23, 1
        %p357 = scmp.lt.s32.totalorder %s354, 15
        %s358 = scalar_select %p357, %s354, 15
        %s359 = smul.addr %s358, 2
        %s360 = smul.addr %s356, 32
        %s361 = sadd.s32 %s359, %s360
        %s362 = smul.addr %s361, 8
        %s363 = scalar_lea.vmem %s0, %s362
        %s364 = smul.u32 8, %s24
      $region28: #{up_forward.3} parent=23 // pred_fallthru
        _
      // Predicated region
      $region29: #{up_forward.3} parent=23 // pred_check
        %p365 = pneg %p86
      $region30: #{up_forward.3} parent=23 // pred_check_branch
        %367 = sbr.rel (%p365) target = $region32
      $region31: #{up_forward.3} parent=23 // pred_region
        %s368 = smul.u32 %s24, 8
        %s369 = ssub.s32 %s368, 1
        %p370 = scmp.gt.s32.totalorder %s369, 0
        %s371 = scalar_select %p370, %s369, 0
        %p372 = scmp.lt.s32.totalorder %s23, 1
        %s373 = scalar_select %p372, %s23, 1
        %p374 = scmp.lt.s32.totalorder %s371, 15
        %s375 = scalar_select %p374, %s371, 15
        %s376 = smul.addr %s375, 2
        %s377 = smul.addr %s373, 32
        %s378 = sadd.s32 %s376, %s377
        %s379 = smul.addr %s378, 8
        %s380 = scalar_lea.vmem %s1, %s379
        %s381 = smul.u32 %s24, 8
        %s382 = ssub.s32 %s381, 1
        %p383 = scmp.gt.s32.totalorder %s382, 0
        %s384 = scalar_select %p383, %s382, 0
      $region32: #{up_forward.3} parent=23 // pred_fallthru
        _
      // Predicated region
      $region33: #{up_forward.3} parent=23 // pred_check
        %p385 = pneg %p122
      $region34: #{up_forward.3} parent=23 // pred_check_branch
        %387 = sbr.rel (%p385) target = $region36
      $region35: #{up_forward.3} parent=23 // pred_region
        %s388 = sadd.s32 %s24, 1
        %s389 = smul.u32 %s388, 8
        %p390 = scmp.lt.s32.totalorder %s389, 15
        %s391 = scalar_select %p390, %s389, 15
        %p392 = scmp.lt.s32.totalorder %s23, 1
        %s393 = scalar_select %p392, %s23, 1
        %p394 = scmp.lt.s32.totalorder %s391, 15
        %s395 = scalar_select %p394, %s391, 15
        %s396 = smul.addr %s395, 2
        %s397 = smul.addr %s393, 32
        %s398 = sadd.s32 %s396, %s397
        %s399 = smul.addr %s398, 8
        %s400 = scalar_lea.vmem %s2, %s399
        %s401 = sadd.s32 %s24, 1
        %s402 = smul.u32 %s401, 8
        %p403 = scmp.lt.s32.totalorder %s402, 15
        %s404 = scalar_select %p403, %s402, 15
      $region36: #{up_forward.3} parent=23 // pred_fallthru
        _
      // Predicated region
      $region37: #{up_forward.3} parent=23 // pred_check
        %p405 = pneg %p150
      $region38: #{up_forward.3} parent=23 // pred_check_branch
        %407 = sbr.rel (%p405) target = $region40
      $region39: #{up_forward.3} parent=23 // pred_region
        %s408 = smul.u32 8, %s24
        %p409 = scmp.lt.s32.totalorder %s23, 1
        %s410 = scalar_select %p409, %s23, 1
        %p411 = scmp.lt.s32.totalorder %s408, 15
        %s412 = scalar_select %p411, %s408, 15
        %s413 = smul.addr %s412, 2
        %s414 = smul.addr %s410, 32
        %s415 = sadd.s32 %s413, %s414
        %s416 = smul.addr %s415, 8
        %s417 = scalar_lea.vmem %s3, %s416
        %s418 = smul.u32 8, %s24
      $region40: #{up_forward.3} parent=23 // pred_fallthru
        _
      // Predicated region
      $region41: #{up_forward.3} parent=23 // pred_check
        %p419 = pneg %p186
      $region42: #{up_forward.3} parent=23 // pred_check_branch
        %421 = sbr.rel (%p419) target = $region44
      $region43: #{up_forward.3} parent=23 // pred_region
        %s422 = smul.u32 %s24, 8
        %s423 = ssub.s32 %s422, 1
        %p424 = scmp.gt.s32.totalorder %s423, 0
        %s425 = scalar_select %p424, %s423, 0
        %p426 = scmp.lt.s32.totalorder %s23, 1
        %s427 = scalar_select %p426, %s23, 1
        %p428 = scmp.lt.s32.totalorder %s425, 15
        %s429 = scalar_select %p428, %s425, 15
        %s430 = smul.addr %s429, 2
        %s431 = smul.addr %s427, 32
        %s432 = sadd.s32 %s430, %s431
        %s433 = smul.addr %s432, 8
        %s434 = scalar_lea.vmem %s4, %s433
        %s435 = smul.u32 %s24, 8
        %s436 = ssub.s32 %s435, 1
        %p437 = scmp.gt.s32.totalorder %s436, 0
        %s438 = scalar_select %p437, %s436, 0
      $region44: #{up_forward.3} parent=23 // pred_fallthru
        _
      // Predicated region
      $region45: #{up_forward.3} parent=23 // pred_check
        %p439 = pneg %p222
      $region46: #{up_forward.3} parent=23 // pred_check_branch
        %441 = sbr.rel (%p439) target = $region48
      $region47: #{up_forward.3} parent=23 // pred_region
        %s442 = sadd.s32 %s24, 1
        %s443 = smul.u32 %s442, 8
        %p444 = scmp.lt.s32.totalorder %s443, 15
        %s445 = scalar_select %p444, %s443, 15
        %p446 = scmp.lt.s32.totalorder %s23, 1
        %s447 = scalar_select %p446, %s23, 1
        %p448 = scmp.lt.s32.totalorder %s445, 15
        %s449 = scalar_select %p448, %s445, 15
        %s450 = smul.addr %s449, 2
        %s451 = smul.addr %s447, 32
        %s452 = sadd.s32 %s450, %s451
        %s453 = smul.addr %s452, 8
        %s454 = scalar_lea.vmem %s5, %s453
        %s455 = sadd.s32 %s24, 1
        %s456 = smul.u32 %s455, 8
        %p457 = scmp.lt.s32.totalorder %s456, 15
        %s458 = scalar_select %p457, %s456, 15
      $region48: #{up_forward.3} parent=23 // pred_fallthru
        _
    $region24: #{up_forward.3} parent=5 // pred_fallthru
      _
    %p459 = scmp.le.s32.totalorder 1, %s16
    %p460 = scmp.lt.s32.totalorder %s16, 5
    %p461 = pnand %p459, %p460
    %p462 = pneg %p461
    // Predicated region
    $region49: #{up_forward.3} parent=5 // pred_check
      _
    $region50: #{up_forward.3} parent=5 // pred_check_branch
      %464 = sbr.rel (%p461) target = $region52
    $region51: #{up_forward.3} parent=5 // pred_region
      %s465 = ssub.s32 %s16, 1
      %s466 = smul.u32 8, %s26
      %p467 = scmp.lt.s32.totalorder %s25, 1
      %s468 = scalar_select %p467, %s25, 1
      %p469 = scmp.lt.s32.totalorder %s466, 15
      %s470 = scalar_select %p469, %s466, 15
      %s471 = smul.addr %s470, 2
      %s472 = smul.addr %s468, 32
      %s473 = sadd.s32 %s471, %s472
      %s474 = smul.addr %s473, 8
      %s475 = scalar_lea.vmem %s0, %s474
      %p476 = pneg %p56
      %p477 = pneg %p53
      %s478 = smul.u32 %s26, 8
      %s479 = ssub.s32 %s478, 1
      %p480 = scmp.gt.s32.totalorder %s479, 0
      %s481 = scalar_select %p480, %s479, 0
      %p482 = scmp.lt.s32.totalorder %s25, 1
      %s483 = scalar_select %p482, %s25, 1
      %p484 = scmp.lt.s32.totalorder %s481, 15
      %s485 = scalar_select %p484, %s481, 15
      %s486 = smul.addr %s485, 2
      %s487 = smul.addr %s483, 32
      %s488 = sadd.s32 %s486, %s487
      %s489 = smul.addr %s488, 8
      %s490 = scalar_lea.vmem %s1, %s489
      %p491 = pneg %p92
      %p492 = pneg %p89
      %s493 = sadd.s32 %s26, 1
      %s494 = smul.u32 %s493, 8
      %p495 = scmp.lt.s32.totalorder %s494, 15
      %s496 = scalar_select %p495, %s494, 15
      %p497 = scmp.lt.s32.totalorder %s25, 1
      %s498 = scalar_select %p497, %s25, 1
      %p499 = scmp.lt.s32.totalorder %s496, 15
      %s500 = scalar_select %p499, %s496, 15
      %s501 = smul.addr %s500, 2
      %s502 = smul.addr %s498, 32
      %s503 = sadd.s32 %s501, %s502
      %s504 = smul.addr %s503, 8
      %s505 = scalar_lea.vmem %s2, %s504
      %p506 = pneg %p128
      %p507 = pneg %p125
      %s508 = smul.u32 8, %s26
      %p509 = scmp.lt.s32.totalorder %s25, 1
      %s510 = scalar_select %p509, %s25, 1
      %p511 = scmp.lt.s32.totalorder %s508, 15
      %s512 = scalar_select %p511, %s508, 15
      %s513 = smul.addr %s512, 2
      %s514 = smul.addr %s510, 32
      %s515 = sadd.s32 %s513, %s514
      %s516 = smul.addr %s515, 8
      %s517 = scalar_lea.vmem %s3, %s516
      %p518 = pneg %p156
      %p519 = pneg %p153
      %s520 = smul.u32 %s26, 8
      %s521 = ssub.s32 %s520, 1
      %p522 = scmp.gt.s32.totalorder %s521, 0
      %s523 = scalar_select %p522, %s521, 0
      %p524 = scmp.lt.s32.totalorder %s25, 1
      %s525 = scalar_select %p524, %s25, 1
      %p526 = scmp.lt.s32.totalorder %s523, 15
      %s527 = scalar_select %p526, %s523, 15
      %s528 = smul.addr %s527, 2
      %s529 = smul.addr %s525, 32
      %s530 = sadd.s32 %s528, %s529
      %s531 = smul.addr %s530, 8
      %s532 = scalar_lea.vmem %s4, %s531
      %p533 = pneg %p192
      %p534 = pneg %p189
      %s535 = sadd.s32 %s26, 1
      %s536 = smul.u32 %s535, 8
      %p537 = scmp.lt.s32.totalorder %s536, 15
      %s538 = scalar_select %p537, %s536, 15
      %p539 = scmp.lt.s32.totalorder %s25, 1
      %s540 = scalar_select %p539, %s25, 1
      %p541 = scmp.lt.s32.totalorder %s538, 15
      %s542 = scalar_select %p541, %s538, 15
      %s543 = smul.addr %s542, 2
      %s544 = smul.addr %s540, 32
      %s545 = sadd.s32 %s543, %s544
      %s546 = smul.addr %s545, 8
      %s547 = scalar_lea.vmem %s5, %s546
      %p548 = pneg %p228
      %p549 = pneg %p225
      %p550 = pneg %p249
      %p551 = pneg %p246
      %p552 = pneg %p270
      %p553 = pneg %p267
      %p554 = pneg %p298
      %p555 = pneg %p295
      %s556 = smul.u32 8, %s26
      %p557 = scmp.lt.s32.totalorder %s25, 1
      %s558 = scalar_select %p557, %s25, 1
      %p559 = scmp.lt.s32.totalorder %s556, 15
      %s560 = scalar_select %p559, %s556, 15
      %s561 = smul.addr %s560, 2
      %s562 = smul.addr %s558, 32
      %s563 = sadd.s32 %s561, %s562
      %s564 = smul.addr %s563, 8
      %s565 = scalar_lea.vmem %s8, %s564
      %p566 = pneg %p326
      %p567 = pneg %p323
      %p568 = scmp.lt.s32.totalorder %s25, 1
      %s569 = scalar_select %p568, %s25, 1
      %p570 = scmp.lt.s32.totalorder %s26, 1
      %s571 = scalar_select %p570, %s26, 1
      %s572 = smul.addr %s569, 2
      %s573 = sadd.s32 %s571, %s572
      %s574 = smul.addr %s573, 2
      %s575 = scalar_lea.vmem %s9, %s574
      %s576 = smul.u32 8, %s26
      %p577 = scmp.lt.s32.totalorder %s25, 1
      %s578 = scalar_select %p577, %s25, 1
      %p579 = scmp.lt.s32.totalorder %s576, 15
      %s580 = scalar_select %p579, %s576, 15
      %s581 = smul.addr %s580, 2
      %s582 = smul.addr %s578, 32
      %s583 = sadd.s32 %s581, %s582
      %s584 = smul.addr %s583, 8
      %s585 = scalar_lea.vmem %s0, %s584
      %s586 = smul.u32 8, %s26
      %s587 = smul.u32 %s26, 8
      %s588 = ssub.s32 %s587, 1
      %p589 = scmp.gt.s32.totalorder %s588, 0
      %s590 = scalar_select %p589, %s588, 0
      %p591 = scmp.lt.s32.totalorder %s25, 1
      %s592 = scalar_select %p591, %s25, 1
      %p593 = scmp.lt.s32.totalorder %s590, 15
      %s594 = scalar_select %p593, %s590, 15
      %s595 = smul.addr %s594, 2
      %s596 = smul.addr %s592, 32
      %s597 = sadd.s32 %s595, %s596
      %s598 = smul.addr %s597, 8
      %s599 = scalar_lea.vmem %s1, %s598
      %s600 = smul.u32 %s26, 8
      %s601 = ssub.s32 %s600, 1
      %p602 = scmp.gt.s32.totalorder %s601, 0
      %s603 = scalar_select %p602, %s601, 0
      %s604 = sadd.s32 %s26, 1
      %s605 = smul.u32 %s604, 8
      %p606 = scmp.lt.s32.totalorder %s605, 15
      %s607 = scalar_select %p606, %s605, 15
      %p608 = scmp.lt.s32.totalorder %s25, 1
      %s609 = scalar_select %p608, %s25, 1
      %p610 = scmp.lt.s32.totalorder %s607, 15
      %s611 = scalar_select %p610, %s607, 15
      %s612 = smul.addr %s611, 2
      %s613 = smul.addr %s609, 32
      %s614 = sadd.s32 %s612, %s613
      %s615 = smul.addr %s614, 8
      %s616 = scalar_lea.vmem %s2, %s615
      %s617 = sadd.s32 %s26, 1
      %s618 = smul.u32 %s617, 8
      %p619 = scmp.lt.s32.totalorder %s618, 15
      %s620 = scalar_select %p619, %s618, 15
      %s621 = smul.u32 8, %s26
      %p622 = scmp.lt.s32.totalorder %s25, 1
      %s623 = scalar_select %p622, %s25, 1
      %p624 = scmp.lt.s32.totalorder %s621, 15
      %s625 = scalar_select %p624, %s621, 15
      %s626 = smul.addr %s625, 2
      %s627 = smul.addr %s623, 32
      %s628 = sadd.s32 %s626, %s627
      %s629 = smul.addr %s628, 8
      %s630 = scalar_lea.vmem %s3, %s629
      %s631 = smul.u32 8, %s26
      %s632 = smul.u32 %s26, 8
      %s633 = ssub.s32 %s632, 1
      %p634 = scmp.gt.s32.totalorder %s633, 0
      %s635 = scalar_select %p634, %s633, 0
      %p636 = scmp.lt.s32.totalorder %s25, 1
      %s637 = scalar_select %p636, %s25, 1
      %p638 = scmp.lt.s32.totalorder %s635, 15
      %s639 = scalar_select %p638, %s635, 15
      %s640 = smul.addr %s639, 2
      %s641 = smul.addr %s637, 32
      %s642 = sadd.s32 %s640, %s641
      %s643 = smul.addr %s642, 8
      %s644 = scalar_lea.vmem %s4, %s643
      %s645 = smul.u32 %s26, 8
      %s646 = ssub.s32 %s645, 1
      %p647 = scmp.gt.s32.totalorder %s646, 0
      %s648 = scalar_select %p647, %s646, 0
      %s649 = sadd.s32 %s26, 1
      %s650 = smul.u32 %s649, 8
      %p651 = scmp.lt.s32.totalorder %s650, 15
      %s652 = scalar_select %p651, %s650, 15
      %p653 = scmp.lt.s32.totalorder %s25, 1
      %s654 = scalar_select %p653, %s25, 1
      %p655 = scmp.lt.s32.totalorder %s652, 15
      %s656 = scalar_select %p655, %s652, 15
      %s657 = smul.addr %s656, 2
      %s658 = smul.addr %s654, 32
      %s659 = sadd.s32 %s657, %s658
      %s660 = smul.addr %s659, 8
      %s661 = scalar_lea.vmem %s5, %s660
      %s662 = sadd.s32 %s26, 1
      %s663 = smul.u32 %s662, 8
      %p664 = scmp.lt.s32.totalorder %s663, 15
      %s665 = scalar_select %p664, %s663, 15
      %s666 = smul.u32 8, %s26
      %p667 = scmp.lt.s32.totalorder %s25, 1
      %s668 = scalar_select %p667, %s25, 1
      %p669 = scmp.lt.s32.totalorder %s666, 15
      %s670 = scalar_select %p669, %s666, 15
      %s671 = smul.addr %s670, 2
      %s672 = smul.addr %s668, 32
      %s673 = sadd.s32 %s671, %s672
      %s674 = smul.addr %s673, 8
      %s675 = scalar_lea.vmem %s8, %s674
      %s676 = smul.u32 8, %s26
      %p677 = scmp.lt.s32.totalorder %s25, 1
      %s678 = scalar_select %p677, %s25, 1
      %p679 = scmp.lt.s32.totalorder %s26, 1
      %s680 = scalar_select %p679, %s26, 1
      %s681 = smul.addr %s678, 2
      %s682 = sadd.s32 %s680, %s681
      %s683 = smul.addr %s682, 2
      %s684 = scalar_lea.vmem %s9, %s683
      %v686 = vld [vmem:[%s585] sm:$0xff]
      %v687 = vld [vmem:[%s585 + $0x8] sm:$0xff]
      %v688 = vld [vmem:[%s585 + $0x10] sm:$0xff]
      %v689 = vld [vmem:[%s585 + $0x18] sm:$0xff]
      %v690 = vld [vmem:[%s585 + $0x20] sm:$0xff]
      %v691 = vld [vmem:[%s585 + $0x28] sm:$0xff]
      %v692 = vld [vmem:[%s585 + $0x30] sm:$0xff]
      %v693 = vld [vmem:[%s585 + $0x38] sm:$0xff]
      %v694 = vld [vmem:[%s585 + $0x40] sm:$0xff]
      %v695 = vld [vmem:[%s585 + $0x48] sm:$0xff]
      %v696 = vld [vmem:[%s585 + $0x50] sm:$0xff]
      %v697 = vld [vmem:[%s585 + $0x58] sm:$0xff]
      %v698 = vld [vmem:[%s585 + $0x60] sm:$0xff]
      %v699 = vld [vmem:[%s585 + $0x68] sm:$0xff]
      %v700 = vld [vmem:[%s585 + $0x70] sm:$0xff]
      %v701 = vld [vmem:[%s585 + $0x78] sm:$0xff]
      %p702 = scmp.gt.s32.totalorder %s26, 0
      %v703 = vld [vmem:[%s599] sm:$0xff]
      %v704 = vld [vmem:[%s599 + $0x8] sm:$0xff]
      %s705 = scalar_select %p702, 1, 0
      %v706 = vstv %s705
      %vm707 = vcmp.eq.s32.totalorder %v706, 1
      %v708 = vsel %vm707, %v703, 0.0
      %v709 = vsel %vm707, %v704, 0.0
      %s710 = sadd.s32 %s26, 1
      %p711 = scmp.lt.s32.totalorder %s710, 2
      %v712 = vld [vmem:[%s616] sm:$0xff]
      %v713 = vld [vmem:[%s616 + $0x8] sm:$0xff]
      %s714 = scalar_select %p711, 1, 0
      %v715 = vstv %s714
      %vm716 = vcmp.eq.s32.totalorder %v715, 1
      %v717 = vsel %vm716, %v712, 0.0
      %v718 = vsel %vm716, %v713, 0.0
      %vm739 = vcmask 1040384
      %v740 = vrot.slane %v708, 7
      %v741 = vrot.slane %v709, 7
      %v742 = vsel %vm739, %v740, %v741
      %v743 = vrot.slane %v686, 7
      %v744 = vrot.slane %v687, 7
      %v745 = vsel %vm739, %v743, %v744
      %v746 = vrot.slane %v688, 7
      %v747 = vrot.slane %v689, 7
      %v748 = vsel %vm739, %v746, %v747
      %v749 = vrot.slane %v690, 7
      %v750 = vrot.slane %v691, 7
      %v751 = vsel %vm739, %v749, %v750
      %v752 = vrot.slane %v692, 7
      %v753 = vrot.slane %v693, 7
      %v754 = vsel %vm739, %v752, %v753
      %v755 = vrot.slane %v694, 7
      %v756 = vrot.slane %v695, 7
      %v757 = vsel %vm739, %v755, %v756
      %v758 = vrot.slane %v696, 7
      %v759 = vrot.slane %v697, 7
      %v760 = vsel %vm739, %v758, %v759
      %v761 = vrot.slane %v698, 7
      %v762 = vrot.slane %v699, 7
      %v763 = vsel %vm739, %v761, %v762
      %v764 = vrot.slane %v700, 7
      %v765 = vrot.slane %v701, 7
      %v766 = vsel %vm739, %v764, %v765
      %v767 = vrot.slane %v717, 7
      %v768 = vrot.slane %v718, 7
      %v769 = vsel %vm739, %v767, %v768
      %v800 = vsel %vm739, 0.0, %v740
      %v801 = vsel %vm739, 0.0, %v743
      %v802 = vsel %vm739, 0.0, %v746
      %v803 = vsel %vm739, 0.0, %v749
      %v804 = vsel %vm739, 0.0, %v752
      %v805 = vsel %vm739, 0.0, %v755
      %v806 = vsel %vm739, 0.0, %v758
      %v807 = vsel %vm739, 0.0, %v761
      %v808 = vsel %vm739, 0.0, %v764
      %v809 = vsel %vm739, 0.0, %v767
      %v810 = vsel %vm739, %v741, 0.0
      %v811 = vsel %vm739, %v744, 0.0
      %v812 = vsel %vm739, %v747, 0.0
      %v813 = vsel %vm739, %v750, 0.0
      %v814 = vsel %vm739, %v753, 0.0
      %v815 = vsel %vm739, %v756, 0.0
      %v816 = vsel %vm739, %v759, 0.0
      %v817 = vsel %vm739, %v762, 0.0
      %v818 = vsel %vm739, %v765, 0.0
      %v819 = vsel %vm739, %v768, 0.0
      %v820 = vpack.c.bf16 %v742, %v800
      %v821 = vpack.c.bf16 %v810, %v810
      %v822 = vpack.c.bf16 %v745, %v801
      %v823 = vpack.c.bf16 %v811, %v811
      %v824 = vpack.c.bf16 %v748, %v802
      %v825 = vpack.c.bf16 %v812, %v812
      %v826 = vpack.c.bf16 %v751, %v803
      %v827 = vpack.c.bf16 %v813, %v813
      %v828 = vpack.c.bf16 %v754, %v804
      %v829 = vpack.c.bf16 %v814, %v814
      %v830 = vpack.c.bf16 %v757, %v805
      %v831 = vpack.c.bf16 %v815, %v815
      %v832 = vpack.c.bf16 %v760, %v806
      %v833 = vpack.c.bf16 %v816, %v816
      %v834 = vpack.c.bf16 %v763, %v807
      %v835 = vpack.c.bf16 %v817, %v817
      %v836 = vpack.c.bf16 %v766, %v808
      %v837 = vpack.c.bf16 %v818, %v818
      %v838 = vpack.c.bf16 %v769, %v809
      %v839 = vpack.c.bf16 %v819, %v819
      %v840 = vld [vmem:[%s6] sm:$0x3]
      %vm841 = vsmask.f32 7424
      %v843 = vshrl.u32 %v820, 16
      %v845 = vshll.u32 %v820, 16
      %v847 = vrot.slane %v845, 1
      %v848 = vor.u32 %v843, %v847
      %v850 = vshll.u32 %v821, 16
      %v852 = vrot.slane %v850, 1
      %v853 = vsel %vm841, %v848, %v852
      %v855 = vshrl.u32 %v822, 16
      %v857 = vshll.u32 %v822, 16
      %v859 = vrot.slane %v857, 1
      %v860 = vor.u32 %v855, %v859
      %v862 = vshll.u32 %v823, 16
      %v864 = vrot.slane %v862, 1
      %v865 = vsel %vm841, %v860, %v864
      %v867 = vshrl.u32 %v824, 16
      %v869 = vshll.u32 %v824, 16
      %v871 = vrot.slane %v869, 1
      %v872 = vor.u32 %v867, %v871
      %v874 = vshll.u32 %v825, 16
      %v876 = vrot.slane %v874, 1
      %v877 = vsel %vm841, %v872, %v876
      %v879 = vshrl.u32 %v826, 16
      %v881 = vshll.u32 %v826, 16
      %v883 = vrot.slane %v881, 1
      %v884 = vor.u32 %v879, %v883
      %v886 = vshll.u32 %v827, 16
      %v888 = vrot.slane %v886, 1
      %v889 = vsel %vm841, %v884, %v888
      %v891 = vshrl.u32 %v828, 16
      %v893 = vshll.u32 %v828, 16
      %v895 = vrot.slane %v893, 1
      %v896 = vor.u32 %v891, %v895
      %v898 = vshll.u32 %v829, 16
      %v900 = vrot.slane %v898, 1
      %v901 = vsel %vm841, %v896, %v900
      %v903 = vshrl.u32 %v830, 16
      %v905 = vshll.u32 %v830, 16
      %v907 = vrot.slane %v905, 1
      %v908 = vor.u32 %v903, %v907
      %v910 = vshll.u32 %v831, 16
      %v912 = vrot.slane %v910, 1
      %v913 = vsel %vm841, %v908, %v912
      %v915 = vshrl.u32 %v832, 16
      %v917 = vshll.u32 %v832, 16
      %v919 = vrot.slane %v917, 1
      %v920 = vor.u32 %v915, %v919
      %v922 = vshll.u32 %v833, 16
      %v924 = vrot.slane %v922, 1
      %v925 = vsel %vm841, %v920, %v924
      %v927 = vshrl.u32 %v834, 16
      %v929 = vshll.u32 %v834, 16
      %v931 = vrot.slane %v929, 1
      %v932 = vor.u32 %v927, %v931
      %v934 = vshll.u32 %v835, 16
      %v936 = vrot.slane %v934, 1
      %v937 = vsel %vm841, %v932, %v936
      %s938 = scalar_lea.vmem %s6, 2
      %v939 = vld [vmem:[%s938] sm:$0x3]
      %vm940 = vcmask 31744
      %v942 = vsel %vm940, %v853, 0
      %v945 = vsel %vm940, %v865, 0
      %v948 = vsel %vm940, %v877, 0
      %v951 = vsel %vm940, %v889, 0
      %v954 = vsel %vm940, %v901, 0
      %v957 = vsel %vm940, %v913, 0
      %v960 = vsel %vm940, %v925, 0
      %v963 = vsel %vm940, %v937, 0
      %vm965 = vcmask 1041408
      %v967 = vsel %vm965, %v939, 0
      %969 = vmatprep.subr.bf16.mxu0 0
      %970 = vmatpush1.bf16.msra.mxu0 %v967
      %971 = vmatprep.subr.bf16.mxu0 0
      %972 = vmatpush1.bf16.msra.mxu0 0
      %973 = vmatprep.subr.bf16.mxu0 0
      %974 = vmatpush1.bf16.msra.mxu0 0
      %975 = vmatprep.subr.bf16.mxu0 0
      %976 = vmatpush1.bf16.msra.mxu0 0
      %977 = vmatprep.subr.bf16.mxu0 0
      %978 = vmatpush1.bf16.msra.mxu0 0
      %979 = vmatprep.subr.bf16.mxu0 0
      %980 = vmatpush1.bf16.msra.mxu0 0
      %981 = vmatprep.subr.bf16.mxu0 0
      %982 = vmatpush1.bf16.msra.mxu0 0
      %983 = vmatprep.subr.bf16.mxu0 0
      %984 = vmatpush1.bf16.msra.mxu0 0
      %985 = vmatprep.subr.bf16.mxu0 0
      %986 = vmatpush1.bf16.msra.mxu0 0
      %987 = vmatprep.subr.bf16.mxu0 0
      %988 = vmatpush1.bf16.msra.mxu0 0
      %989 = vmatprep.subr.bf16.mxu0 0
      %990 = vmatpush1.bf16.msra.mxu0 0
      %991 = vmatprep.subr.bf16.mxu0 0
      %992 = vmatpush1.bf16.msra.mxu0 0
      %993 = vmatprep.subr.bf16.mxu0 0
      %994 = vmatpush1.bf16.msra.mxu0 0
      %995 = vmatprep.subr.bf16.mxu0 0
      %996 = vmatpush1.bf16.msra.mxu0 0
      %997 = vmatprep.subr.bf16.mxu0 0
      %998 = vmatpush1.bf16.msra.mxu0 0
      %999 = vmatprep.subr.bf16.mxu0 0
      %1000 = vmatpush1.bf16.msra.mxu0 0
      %1001 = vmatprep.mubr.bf16.mxu0 0
      %1002 = vmatmul.mubr.bf16.gmra.mrb[0].mxu0 %v942
      %v1003 = vpop.f32.mrb[0].mxu0
      %v1004 = vadd.f32 0.0, %v1003
      %v1005 = vpop.f32.mrb[0].mxu0
      %v1006 = vpop.f32.mrb[0].mxu0
      %v1007 = vadd.f32 0.0, %v1006
      %v1008 = vpop.f32.mrb[0].mxu0
      %1009 = vmatprep.mubr.bf16.mxu0 0
      %1010 = vmatmul.mubr.bf16.gmra.mrb[0].mxu0 %v945
      %v1011 = vpop.f32.mrb[0].mxu0
      %v1012 = vadd.f32 0.0, %v1011
      %v1013 = vpop.f32.mrb[0].mxu0
      %v1014 = vpop.f32.mrb[0].mxu0
      %v1015 = vadd.f32 0.0, %v1014
      %v1016 = vpop.f32.mrb[0].mxu0
      %1017 = vmatprep.mubr.bf16.mxu0 0
      %1018 = vmatmul.mubr.bf16.gmra.mrb[0].mxu0 %v948
      %v1019 = vpop.f32.mrb[0].mxu0
      %v1020 = vadd.f32 0.0, %v1019
      %v1021 = vpop.f32.mrb[0].mxu0
      %v1022 = vpop.f32.mrb[0].mxu0
      %v1023 = vadd.f32 0.0, %v1022
      %v1024 = vpop.f32.mrb[0].mxu0
      %1025 = vmatprep.mubr.bf16.mxu0 0
      %1026 = vmatmul.mubr.bf16.gmra.mrb[0].mxu0 %v951
      %v1027 = vpop.f32.mrb[0].mxu0
      %v1028 = vadd.f32 0.0, %v1027
      %v1029 = vpop.f32.mrb[0].mxu0
      %v1030 = vpop.f32.mrb[0].mxu0
      %v1031 = vadd.f32 0.0, %v1030
      %v1032 = vpop.f32.mrb[0].mxu0
      %1033 = vmatprep.mubr.bf16.mxu0 0
      %1034 = vmatmul.mubr.bf16.gmra.mrb[0].mxu0 %v954
      %v1035 = vpop.f32.mrb[0].mxu0
      %v1036 = vadd.f32 0.0, %v1035
      %v1037 = vpop.f32.mrb[0].mxu0
      %v1038 = vpop.f32.mrb[0].mxu0
      %v1039 = vadd.f32 0.0, %v1038
      %v1040 = vpop.f32.mrb[0].mxu0
      %1041 = vmatprep.mubr.bf16.mxu0 0
      %1042 = vmatmul.mubr.bf16.gmra.mrb[0].mxu0 %v957
      %v1043 = vpop.f32.mrb[0].mxu0
      %v1044 = vadd.f32 0.0, %v1043
      %v1045 = vpop.f32.mrb[0].mxu0
      %v1046 = vpop.f32.mrb[0].mxu0
      %v1047 = vadd.f32 0.0, %v1046
      %v1048 = vpop.f32.mrb[0].mxu0
      %1049 = vmatprep.mubr.bf16.mxu0 0
      %1050 = vmatmul.mubr.bf16.gmra.mrb[0].mxu0 %v960
      %v1051 = vpop.f32.mrb[0].mxu0
      %v1052 = vadd.f32 0.0, %v1051
      %v1053 = vpop.f32.mrb[0].mxu0
      %v1054 = vpop.f32.mrb[0].mxu0
      %v1055 = vadd.f32 0.0, %v1054
      %v1056 = vpop.f32.mrb[0].mxu0
      %1057 = vmatprep.mubr.bf16.mxu0 0
      %1058 = vmatmul.mubr.bf16.gmra.mrb[0].mxu0 %v963
      %v1059 = vpop.f32.mrb[0].mxu0
      %v1060 = vadd.f32 0.0, %v1059
      %v1061 = vpop.f32.mrb[0].mxu0
      %v1062 = vpop.f32.mrb[0].mxu0
      %v1063 = vadd.f32 0.0, %v1062
      %v1064 = vpop.f32.mrb[0].mxu0
      %1065 = vdwg.mxu0
      %v1066 = vsel %vm940, %v820, 0
      %v1068 = vsel %vm940, %v822, 0
      %v1070 = vsel %vm940, %v824, 0
      %v1072 = vsel %vm940, %v826, 0
      %v1074 = vsel %vm940, %v828, 0
      %v1076 = vsel %vm940, %v830, 0
      %v1078 = vsel %vm940, %v832, 0
      %v1080 = vsel %vm940, %v834, 0
      %v1083 = vsel %vm965, %v840, 0
      %1085 = vmatprep.subr.bf16.mxu0 0
      %1086 = vmatpush1.bf16.msra.mxu0 %v1083
      %1087 = vmatprep.subr.bf16.mxu0 0
      %1088 = vmatpush1.bf16.msra.mxu0 0
      %1089 = vmatprep.subr.bf16.mxu0 0
      %1090 = vmatpush1.bf16.msra.mxu0 0
      %1091 = vmatprep.subr.bf16.mxu0 0
      %1092 = vmatpush1.bf16.msra.mxu0 0
      %1093 = vmatprep.subr.bf16.mxu0 0
      %1094 = vmatpush1.bf16.msra.mxu0 0
      %1095 = vmatprep.subr.bf16.mxu0 0
      %1096 = vmatpush1.bf16.msra.mxu0 0
      %1097 = vmatprep.subr.bf16.mxu0 0
      %1098 = vmatpush1.bf16.msra.mxu0 0
      %1099 = vmatprep.subr.bf16.mxu0 0
      %1100 = vmatpush1.bf16.msra.mxu0 0
      %1101 = vmatprep.subr.bf16.mxu0 0
      %1102 = vmatpush1.bf16.msra.mxu0 0
      %1103 = vmatprep.subr.bf16.mxu0 0
      %1104 = vmatpush1.bf16.msra.mxu0 0
      %1105 = vmatprep.subr.bf16.mxu0 0
      %1106 = vmatpush1.bf16.msra.mxu0 0
      %1107 = vmatprep.subr.bf16.mxu0 0
      %1108 = vmatpush1.bf16.msra.mxu0 0
      %1109 = vmatprep.subr.bf16.mxu0 0
      %1110 = vmatpush1.bf16.msra.mxu0 0
      %1111 = vmatprep.subr.bf16.mxu0 0
      %1112 = vmatpush1.bf16.msra.mxu0 0
      %1113 = vmatprep.subr.bf16.mxu0 0
      %1114 = vmatpush1.bf16.msra.mxu0 0
      %1115 = vmatprep.subr.bf16.mxu0 0
      %1116 = vmatpush1.bf16.msra.mxu0 0
      %1117 = vmatprep.mubr.bf16.mxu0 0
      %1118 = vmatmul.mubr.bf16.gmra.mrb[0].mxu0 %v1066
      %v1119 = vpop.f32.mrb[0].mxu0
      %v1120 = vadd.f32 %v1004, %v1119
      %v1121 = vpop.f32.mrb[0].mxu0
      %v1122 = vpop.f32.mrb[0].mxu0
      %v1123 = vadd.f32 %v1007, %v1122
      %v1124 = vpop.f32.mrb[0].mxu0
      %1125 = vmatprep.mubr.bf16.mxu0 0
      %1126 = vmatmul.mubr.bf16.gmra.mrb[0].mxu0 %v1068
      %v1127 = vpop.f32.mrb[0].mxu0
      %v1128 = vadd.f32 %v1012, %v1127
      %v1129 = vpop.f32.mrb[0].mxu0
      %v1130 = vpop.f32.mrb[0].mxu0
      %v1131 = vadd.f32 %v1015, %v1130
      %v1132 = vpop.f32.mrb[0].mxu0
      %1133 = vmatprep.mubr.bf16.mxu0 0
      %1134 = vmatmul.mubr.bf16.gmra.mrb[0].mxu0 %v1070
      %v1135 = vpop.f32.mrb[0].mxu0
      %v1136 = vadd.f32 %v1020, %v1135
      %v1137 = vpop.f32.mrb[0].mxu0
      %v1138 = vpop.f32.mrb[0].mxu0
      %v1139 = vadd.f32 %v1023, %v1138
      %v1140 = vpop.f32.mrb[0].mxu0
      %1141 = vmatprep.mubr.bf16.mxu0 0
      %1142 = vmatmul.mubr.bf16.gmra.mrb[0].mxu0 %v1072
      %v1143 = vpop.f32.mrb[0].mxu0
      %v1144 = vadd.f32 %v1028, %v1143
      %v1145 = vpop.f32.mrb[0].mxu0
      %v1146 = vpop.f32.mrb[0].mxu0
      %v1147 = vadd.f32 %v1031, %v1146
      %v1148 = vpop.f32.mrb[0].mxu0
      %1149 = vmatprep.mubr.bf16.mxu0 0
      %1150 = vmatmul.mubr.bf16.gmra.mrb[0].mxu0 %v1074
      %v1151 = vpop.f32.mrb[0].mxu0
      %v1152 = vadd.f32 %v1036, %v1151
      %v1153 = vpop.f32.mrb[0].mxu0
      %v1154 = vpop.f32.mrb[0].mxu0
      %v1155 = vadd.f32 %v1039, %v1154
      %v1156 = vpop.f32.mrb[0].mxu0
      %1157 = vmatprep.mubr.bf16.mxu0 0
      %1158 = vmatmul.mubr.bf16.gmra.mrb[0].mxu0 %v1076
      %v1159 = vpop.f32.mrb[0].mxu0
      %v1160 = vadd.f32 %v1044, %v1159
      %v1161 = vpop.f32.mrb[0].mxu0
      %v1162 = vpop.f32.mrb[0].mxu0
      %v1163 = vadd.f32 %v1047, %v1162
      %v1164 = vpop.f32.mrb[0].mxu0
      %1165 = vmatprep.mubr.bf16.mxu0 0
      %1166 = vmatmul.mubr.bf16.gmra.mrb[0].mxu0 %v1078
      %v1167 = vpop.f32.mrb[0].mxu0
      %v1168 = vadd.f32 %v1052, %v1167
      %v1169 = vpop.f32.mrb[0].mxu0
      %v1170 = vpop.f32.mrb[0].mxu0
      %v1171 = vadd.f32 %v1055, %v1170
      %v1172 = vpop.f32.mrb[0].mxu0
      %1173 = vmatprep.mubr.bf16.mxu0 0
      %1174 = vmatmul.mubr.bf16.gmra.mrb[0].mxu0 %v1080
      %v1175 = vpop.f32.mrb[0].mxu0
      %v1176 = vadd.f32 %v1060, %v1175
      %v1177 = vpop.f32.mrb[0].mxu0
      %v1178 = vpop.f32.mrb[0].mxu0
      %v1179 = vadd.f32 %v1063, %v1178
      %v1180 = vpop.f32.mrb[0].mxu0
      %1181 = vdwg.mxu0
      %vm1198 = vcmask 1046528
      %v1199 = vrot.slane %v820, 1
      %v1200 = vrot.slane %v821, 1
      %v1201 = vsel %vm1198, %v1199, %v1200
      %v1202 = vrot.slane %v822, 1
      %v1203 = vrot.slane %v823, 1
      %v1204 = vsel %vm1198, %v1202, %v1203
      %v1205 = vrot.slane %v824, 1
      %v1206 = vrot.slane %v825, 1
      %v1207 = vsel %vm1198, %v1205, %v1206
      %v1208 = vrot.slane %v826, 1
      %v1209 = vrot.slane %v827, 1
      %v1210 = vsel %vm1198, %v1208, %v1209
      %v1211 = vrot.slane %v828, 1
      %v1212 = vrot.slane %v829, 1
      %v1213 = vsel %vm1198, %v1211, %v1212
      %v1214 = vrot.slane %v830, 1
      %v1215 = vrot.slane %v831, 1
      %v1216 = vsel %vm1198, %v1214, %v1215
      %v1217 = vrot.slane %v832, 1
      %v1218 = vrot.slane %v833, 1
      %v1219 = vsel %vm1198, %v1217, %v1218
      %v1220 = vrot.slane %v834, 1
      %v1221 = vrot.slane %v835, 1
      %v1222 = vsel %vm1198, %v1220, %v1221
      %s1223 = scalar_lea.vmem %s6, 4
      %v1224 = vld [vmem:[%s1223] sm:$0x3]
      %v1226 = vsel %vm940, %v1201, 0
      %v1229 = vsel %vm940, %v1204, 0
      %v1232 = vsel %vm940, %v1207, 0
      %v1235 = vsel %vm940, %v1210, 0
      %v1238 = vsel %vm940, %v1213, 0
      %v1241 = vsel %vm940, %v1216, 0
      %v1244 = vsel %vm940, %v1219, 0
      %v1247 = vsel %vm940, %v1222, 0
      %v1250 = vsel %vm965, %v1224, 0
      %1252 = vmatprep.subr.bf16.mxu0 0
      %1253 = vmatpush1.bf16.msra.mxu0 %v1250
      %1254 = vmatprep.subr.bf16.mxu0 0
      %1255 = vmatpush1.bf16.msra.mxu0 0
      %1256 = vmatprep.subr.bf16.mxu0 0
      %1257 = vmatpush1.bf16.msra.mxu0 0
      %1258 = vmatprep.subr.bf16.mxu0 0
      %1259 = vmatpush1.bf16.msra.mxu0 0
      %1260 = vmatprep.subr.bf16.mxu0 0
      %1261 = vmatpush1.bf16.msra.mxu0 0
      %1262 = vmatprep.subr.bf16.mxu0 0
      %1263 = vmatpush1.bf16.msra.mxu0 0
      %1264 = vmatprep.subr.bf16.mxu0 0
      %1265 = vmatpush1.bf16.msra.mxu0 0
      %1266 = vmatprep.subr.bf16.mxu0 0
      %1267 = vmatpush1.bf16.msra.mxu0 0
      %1268 = vmatprep.subr.bf16.mxu0 0
      %1269 = vmatpush1.bf16.msra.mxu0 0
      %1270 = vmatprep.subr.bf16.mxu0 0
      %1271 = vmatpush1.bf16.msra.mxu0 0
      %1272 = vmatprep.subr.bf16.mxu0 0
      %1273 = vmatpush1.bf16.msra.mxu0 0
      %1274 = vmatprep.subr.bf16.mxu0 0
      %1275 = vmatpush1.bf16.msra.mxu0 0
      %1276 = vmatprep.subr.bf16.mxu0 0
      %1277 = vmatpush1.bf16.msra.mxu0 0
      %1278 = vmatprep.subr.bf16.mxu0 0
      %1279 = vmatpush1.bf16.msra.mxu0 0
      %1280 = vmatprep.subr.bf16.mxu0 0
      %1281 = vmatpush1.bf16.msra.mxu0 0
      %1282 = vmatprep.subr.bf16.mxu0 0
      %1283 = vmatpush1.bf16.msra.mxu0 0
      %1284 = vmatprep.mubr.bf16.mxu0 0
      %1285 = vmatmul.mubr.bf16.gmra.mrb[0].mxu0 %v1226
      %v1286 = vpop.f32.mrb[0].mxu0
      %v1287 = vadd.f32 0.0, %v1286
      %v1288 = vpop.f32.mrb[0].mxu0
      %v1289 = vpop.f32.mrb[0].mxu0
      %v1290 = vadd.f32 0.0, %v1289
      %v1291 = vpop.f32.mrb[0].mxu0
      %1292 = vmatprep.mubr.bf16.mxu0 0
      %1293 = vmatmul.mubr.bf16.gmra.mrb[0].mxu0 %v1229
      %v1294 = vpop.f32.mrb[0].mxu0
      %v1295 = vadd.f32 0.0, %v1294
      %v1296 = vpop.f32.mrb[0].mxu0
      %v1297 = vpop.f32.mrb[0].mxu0
      %v1298 = vadd.f32 0.0, %v1297
      %v1299 = vpop.f32.mrb[0].mxu0
      %1300 = vmatprep.mubr.bf16.mxu0 0
      %1301 = vmatmul.mubr.bf16.gmra.mrb[0].mxu0 %v1232
      %v1302 = vpop.f32.mrb[0].mxu0
      %v1303 = vadd.f32 0.0, %v1302
      %v1304 = vpop.f32.mrb[0].mxu0
      %v1305 = vpop.f32.mrb[0].mxu0
      %v1306 = vadd.f32 0.0, %v1305
      %v1307 = vpop.f32.mrb[0].mxu0
      %1308 = vmatprep.mubr.bf16.mxu0 0
      %1309 = vmatmul.mubr.bf16.gmra.mrb[0].mxu0 %v1235
      %v1310 = vpop.f32.mrb[0].mxu0
      %v1311 = vadd.f32 0.0, %v1310
      %v1312 = vpop.f32.mrb[0].mxu0
      %v1313 = vpop.f32.mrb[0].mxu0
      %v1314 = vadd.f32 0.0, %v1313
      %v1315 = vpop.f32.mrb[0].mxu0
      %1316 = vmatprep.mubr.bf16.mxu0 0
      %1317 = vmatmul.mubr.bf16.gmra.mrb[0].mxu0 %v1238
      %v1318 = vpop.f32.mrb[0].mxu0
      %v1319 = vadd.f32 0.0, %v1318
      %v1320 = vpop.f32.mrb[0].mxu0
      %v1321 = vpop.f32.mrb[0].mxu0
      %v1322 = vadd.f32 0.0, %v1321
      %v1323 = vpop.f32.mrb[0].mxu0
      %1324 = vmatprep.mubr.bf16.mxu0 0
      %1325 = vmatmul.mubr.bf16.gmra.mrb[0].mxu0 %v1241
      %v1326 = vpop.f32.mrb[0].mxu0
      %v1327 = vadd.f32 0.0, %v1326
      %v1328 = vpop.f32.mrb[0].mxu0
      %v1329 = vpop.f32.mrb[0].mxu0
      %v1330 = vadd.f32 0.0, %v1329
      %v1331 = vpop.f32.mrb[0].mxu0
      %1332 = vmatprep.mubr.bf16.mxu0 0
      %1333 = vmatmul.mubr.bf16.gmra.mrb[0].mxu0 %v1244
      %v1334 = vpop.f32.mrb[0].mxu0
      %v1335 = vadd.f32 0.0, %v1334
      %v1336 = vpop.f32.mrb[0].mxu0
      %v1337 = vpop.f32.mrb[0].mxu0
      %v1338 = vadd.f32 0.0, %v1337
      %v1339 = vpop.f32.mrb[0].mxu0
      %1340 = vmatprep.mubr.bf16.mxu0 0
      %1341 = vmatmul.mubr.bf16.gmra.mrb[0].mxu0 %v1247
      %v1342 = vpop.f32.mrb[0].mxu0
      %v1343 = vadd.f32 0.0, %v1342
      %v1344 = vpop.f32.mrb[0].mxu0
      %v1345 = vpop.f32.mrb[0].mxu0
      %v1346 = vadd.f32 0.0, %v1345
      %v1347 = vpop.f32.mrb[0].mxu0
      %1348 = vdwg.mxu0
      %v1349 = vadd.f32 %v1120, %v1287
      %v1350 = vadd.f32 %v1123, %v1290
      %v1351 = vadd.f32 %v1128, %v1295
      %v1352 = vadd.f32 %v1131, %v1298
      %v1353 = vadd.f32 %v1136, %v1303
      %v1354 = vadd.f32 %v1139, %v1306
      %v1355 = vadd.f32 %v1144, %v1311
      %v1356 = vadd.f32 %v1147, %v1314
      %v1357 = vadd.f32 %v1152, %v1319
      %v1358 = vadd.f32 %v1155, %v1322
      %v1359 = vadd.f32 %v1160, %v1327
      %v1360 = vadd.f32 %v1163, %v1330
      %v1361 = vadd.f32 %v1168, %v1335
      %v1362 = vadd.f32 %v1171, %v1338
      %v1363 = vadd.f32 %v1176, %v1343
      %v1364 = vadd.f32 %v1179, %v1346
      %s1365 = scalar_lea.vmem %s6, 6
      %v1366 = vld [vmem:[%s1365] sm:$0x3]
      %v1368 = vsel %vm940, %v836, 0
      %v1371 = vsel %vm965, %v1366, 0
      %1373 = vmatprep.subr.bf16.mxu0 0
      %1374 = vmatpush1.bf16.msra.mxu0 %v1371
      %1375 = vmatprep.subr.bf16.mxu0 0
      %1376 = vmatpush1.bf16.msra.mxu0 0
      %1377 = vmatprep.subr.bf16.mxu0 0
      %1378 = vmatpush1.bf16.msra.mxu0 0
      %1379 = vmatprep.subr.bf16.mxu0 0
      %1380 = vmatpush1.bf16.msra.mxu0 0
      %1381 = vmatprep.subr.bf16.mxu0 0
      %1382 = vmatpush1.bf16.msra.mxu0 0
      %1383 = vmatprep.subr.bf16.mxu0 0
      %1384 = vmatpush1.bf16.msra.mxu0 0
      %1385 = vmatprep.subr.bf16.mxu0 0
      %1386 = vmatpush1.bf16.msra.mxu0 0
      %1387 = vmatprep.subr.bf16.mxu0 0
      %1388 = vmatpush1.bf16.msra.mxu0 0
      %1389 = vmatprep.subr.bf16.mxu0 0
      %1390 = vmatpush1.bf16.msra.mxu0 0
      %1391 = vmatprep.subr.bf16.mxu0 0
      %1392 = vmatpush1.bf16.msra.mxu0 0
      %1393 = vmatprep.subr.bf16.mxu0 0
      %1394 = vmatpush1.bf16.msra.mxu0 0
      %1395 = vmatprep.subr.bf16.mxu0 0
      %1396 = vmatpush1.bf16.msra.mxu0 0
      %1397 = vmatprep.subr.bf16.mxu0 0
      %1398 = vmatpush1.bf16.msra.mxu0 0
      %1399 = vmatprep.subr.bf16.mxu0 0
      %1400 = vmatpush1.bf16.msra.mxu0 0
      %1401 = vmatprep.subr.bf16.mxu0 0
      %1402 = vmatpush1.bf16.msra.mxu0 0
      %1403 = vmatprep.subr.bf16.mxu0 0
      %1404 = vmatpush1.bf16.msra.mxu0 0
      %1405 = vmatprep.mubr.bf16.mxu0 0
      %1406 = vmatmul.mubr.bf16.gmra.mrb[0].mxu0 %v1068
      %v1407 = vpop.f32.mrb[0].mxu0
      %v1408 = vadd.f32 0.0, %v1407
      %v1409 = vpop.f32.mrb[0].mxu0
      %v1410 = vpop.f32.mrb[0].mxu0
      %v1411 = vadd.f32 0.0, %v1410
      %v1412 = vpop.f32.mrb[0].mxu0
      %1413 = vmatprep.mubr.bf16.mxu0 0
      %1414 = vmatmul.mubr.bf16.gmra.mrb[0].mxu0 %v1070
      %v1415 = vpop.f32.mrb[0].mxu0
      %v1416 = vadd.f32 0.0, %v1415
      %v1417 = vpop.f32.mrb[0].mxu0
      %v1418 = vpop.f32.mrb[0].mxu0
      %v1419 = vadd.f32 0.0, %v1418
      %v1420 = vpop.f32.mrb[0].mxu0
      %1421 = vmatprep.mubr.bf16.mxu0 0
      %1422 = vmatmul.mubr.bf16.gmra.mrb[0].mxu0 %v1072
      %v1423 = vpop.f32.mrb[0].mxu0
      %v1424 = vadd.f32 0.0, %v1423
      %v1425 = vpop.f32.mrb[0].mxu0
      %v1426 = vpop.f32.mrb[0].mxu0
      %v1427 = vadd.f32 0.0, %v1426
      %v1428 = vpop.f32.mrb[0].mxu0
      %1429 = vmatprep.mubr.bf16.mxu0 0
      %1430 = vmatmul.mubr.bf16.gmra.mrb[0].mxu0 %v1074
      %v1431 = vpop.f32.mrb[0].mxu0
      %v1432 = vadd.f32 0.0, %v1431
      %v1433 = vpop.f32.mrb[0].mxu0
      %v1434 = vpop.f32.mrb[0].mxu0
      %v1435 = vadd.f32 0.0, %v1434
      %v1436 = vpop.f32.mrb[0].mxu0
      %1437 = vmatprep.mubr.bf16.mxu0 0
      %1438 = vmatmul.mubr.bf16.gmra.mrb[0].mxu0 %v1076
      %v1439 = vpop.f32.mrb[0].mxu0
      %v1440 = vadd.f32 0.0, %v1439
      %v1441 = vpop.f32.mrb[0].mxu0
      %v1442 = vpop.f32.mrb[0].mxu0
      %v1443 = vadd.f32 0.0, %v1442
      %v1444 = vpop.f32.mrb[0].mxu0
      %1445 = vmatprep.mubr.bf16.mxu0 0
      %1446 = vmatmul.mubr.bf16.gmra.mrb[0].mxu0 %v1078
      %v1447 = vpop.f32.mrb[0].mxu0
      %v1448 = vadd.f32 0.0, %v1447
      %v1449 = vpop.f32.mrb[0].mxu0
      %v1450 = vpop.f32.mrb[0].mxu0
      %v1451 = vadd.f32 0.0, %v1450
      %v1452 = vpop.f32.mrb[0].mxu0
      %1453 = vmatprep.mubr.bf16.mxu0 0
      %1454 = vmatmul.mubr.bf16.gmra.mrb[0].mxu0 %v1080
      %v1455 = vpop.f32.mrb[0].mxu0
      %v1456 = vadd.f32 0.0, %v1455
      %v1457 = vpop.f32.mrb[0].mxu0
      %v1458 = vpop.f32.mrb[0].mxu0
      %v1459 = vadd.f32 0.0, %v1458
      %v1460 = vpop.f32.mrb[0].mxu0
      %1461 = vmatprep.mubr.bf16.mxu0 0
      %1462 = vmatmul.mubr.bf16.gmra.mrb[0].mxu0 %v1368
      %v1463 = vpop.f32.mrb[0].mxu0
      %v1464 = vadd.f32 0.0, %v1463
      %v1465 = vpop.f32.mrb[0].mxu0
      %v1466 = vpop.f32.mrb[0].mxu0
      %v1467 = vadd.f32 0.0, %v1466
      %v1468 = vpop.f32.mrb[0].mxu0
      %1469 = vdwg.mxu0
      %v1470 = vadd.f32 %v1349, %v1408
      %v1471 = vadd.f32 %v1350, %v1411
      %v1472 = vadd.f32 %v1351, %v1416
      %v1473 = vadd.f32 %v1352, %v1419
      %v1474 = vadd.f32 %v1353, %v1424
      %v1475 = vadd.f32 %v1354, %v1427
      %v1476 = vadd.f32 %v1355, %v1432
      %v1477 = vadd.f32 %v1356, %v1435
      %v1478 = vadd.f32 %v1357, %v1440
      %v1479 = vadd.f32 %v1358, %v1443
      %v1480 = vadd.f32 %v1359, %v1448
      %v1481 = vadd.f32 %v1360, %v1451
      %v1482 = vadd.f32 %v1361, %v1456
      %v1483 = vadd.f32 %v1362, %v1459
      %v1484 = vadd.f32 %v1363, %v1464
      %v1485 = vadd.f32 %v1364, %v1467
      %v1486 = vshrl.u32 %v836, 16
      %v1488 = vshll.u32 %v836, 16
      %v1490 = vrot.slane %v1488, 1
      %v1491 = vor.u32 %v1486, %v1490
      %v1493 = vshll.u32 %v837, 16
      %v1495 = vrot.slane %v1493, 1
      %v1496 = vsel %vm841, %v1491, %v1495
      %s1497 = scalar_lea.vmem %s6, 8
      %v1498 = vld [vmem:[%s1497] sm:$0x3]
      %v1500 = vsel %vm940, %v1496, 0
      %v1503 = vsel %vm965, %v1498, 0
      %1505 = vmatprep.subr.bf16.mxu0 0
      %1506 = vmatpush1.bf16.msra.mxu0 %v1503
      %1507 = vmatprep.subr.bf16.mxu0 0
      %1508 = vmatpush1.bf16.msra.mxu0 0
      %1509 = vmatprep.subr.bf16.mxu0 0
      %1510 = vmatpush1.bf16.msra.mxu0 0
      %1511 = vmatprep.subr.bf16.mxu0 0
      %1512 = vmatpush1.bf16.msra.mxu0 0
      %1513 = vmatprep.subr.bf16.mxu0 0
      %1514 = vmatpush1.bf16.msra.mxu0 0
      %1515 = vmatprep.subr.bf16.mxu0 0
      %1516 = vmatpush1.bf16.msra.mxu0 0
      %1517 = vmatprep.subr.bf16.mxu0 0
      %1518 = vmatpush1.bf16.msra.mxu0 0
      %1519 = vmatprep.subr.bf16.mxu0 0
      %1520 = vmatpush1.bf16.msra.mxu0 0
      %1521 = vmatprep.subr.bf16.mxu0 0
      %1522 = vmatpush1.bf16.msra.mxu0 0
      %1523 = vmatprep.subr.bf16.mxu0 0
      %1524 = vmatpush1.bf16.msra.mxu0 0
      %1525 = vmatprep.subr.bf16.mxu0 0
      %1526 = vmatpush1.bf16.msra.mxu0 0
      %1527 = vmatprep.subr.bf16.mxu0 0
      %1528 = vmatpush1.bf16.msra.mxu0 0
      %1529 = vmatprep.subr.bf16.mxu0 0
      %1530 = vmatpush1.bf16.msra.mxu0 0
      %1531 = vmatprep.subr.bf16.mxu0 0
      %1532 = vmatpush1.bf16.msra.mxu0 0
      %1533 = vmatprep.subr.bf16.mxu0 0
      %1534 = vmatpush1.bf16.msra.mxu0 0
      %1535 = vmatprep.subr.bf16.mxu0 0
      %1536 = vmatpush1.bf16.msra.mxu0 0
      %1537 = vmatprep.mubr.bf16.mxu0 0
      %1538 = vmatmul.mubr.bf16.gmra.mrb[0].mxu0 %v945
      %v1539 = vpop.f32.mrb[0].mxu0
      %v1540 = vadd.f32 0.0, %v1539
      %v1541 = vpop.f32.mrb[0].mxu0
      %v1542 = vpop.f32.mrb[0].mxu0
      %v1543 = vadd.f32 0.0, %v1542
      %v1544 = vpop.f32.mrb[0].mxu0
      %1545 = vmatprep.mubr.bf16.mxu0 0
      %1546 = vmatmul.mubr.bf16.gmra.mrb[0].mxu0 %v948
      %v1547 = vpop.f32.mrb[0].mxu0
      %v1548 = vadd.f32 0.0, %v1547
      %v1549 = vpop.f32.mrb[0].mxu0
      %v1550 = vpop.f32.mrb[0].mxu0
      %v1551 = vadd.f32 0.0, %v1550
      %v1552 = vpop.f32.mrb[0].mxu0
      %1553 = vmatprep.mubr.bf16.mxu0 0
      %1554 = vmatmul.mubr.bf16.gmra.mrb[0].mxu0 %v951
      %v1555 = vpop.f32.mrb[0].mxu0
      %v1556 = vadd.f32 0.0, %v1555
      %v1557 = vpop.f32.mrb[0].mxu0
      %v1558 = vpop.f32.mrb[0].mxu0
      %v1559 = vadd.f32 0.0, %v1558
      %v1560 = vpop.f32.mrb[0].mxu0
      %1561 = vmatprep.mubr.bf16.mxu0 0
      %1562 = vmatmul.mubr.bf16.gmra.mrb[0].mxu0 %v954
      %v1563 = vpop.f32.mrb[0].mxu0
      %v1564 = vadd.f32 0.0, %v1563
      %v1565 = vpop.f32.mrb[0].mxu0
      %v1566 = vpop.f32.mrb[0].mxu0
      %v1567 = vadd.f32 0.0, %v1566
      %v1568 = vpop.f32.mrb[0].mxu0
      %1569 = vmatprep.mubr.bf16.mxu0 0
      %1570 = vmatmul.mubr.bf16.gmra.mrb[0].mxu0 %v957
      %v1571 = vpop.f32.mrb[0].mxu0
      %v1572 = vadd.f32 0.0, %v1571
      %v1573 = vpop.f32.mrb[0].mxu0
      %v1574 = vpop.f32.mrb[0].mxu0
      %v1575 = vadd.f32 0.0, %v1574
      %v1576 = vpop.f32.mrb[0].mxu0
      %1577 = vmatprep.mubr.bf16.mxu0 0
      %1578 = vmatmul.mubr.bf16.gmra.mrb[0].mxu0 %v960
      %v1579 = vpop.f32.mrb[0].mxu0
      %v1580 = vadd.f32 0.0, %v1579
      %v1581 = vpop.f32.mrb[0].mxu0
      %v1582 = vpop.f32.mrb[0].mxu0
      %v1583 = vadd.f32 0.0, %v1582
      %v1584 = vpop.f32.mrb[0].mxu0
      %1585 = vmatprep.mubr.bf16.mxu0 0
      %1586 = vmatmul.mubr.bf16.gmra.mrb[0].mxu0 %v963
      %v1587 = vpop.f32.mrb[0].mxu0
      %v1588 = vadd.f32 0.0, %v1587
      %v1589 = vpop.f32.mrb[0].mxu0
      %v1590 = vpop.f32.mrb[0].mxu0
      %v1591 = vadd.f32 0.0, %v1590
      %v1592 = vpop.f32.mrb[0].mxu0
      %1593 = vmatprep.mubr.bf16.mxu0 0
      %1594 = vmatmul.mubr.bf16.gmra.mrb[0].mxu0 %v1500
      %v1595 = vpop.f32.mrb[0].mxu0
      %v1596 = vadd.f32 0.0, %v1595
      %v1597 = vpop.f32.mrb[0].mxu0
      %v1598 = vpop.f32.mrb[0].mxu0
      %v1599 = vadd.f32 0.0, %v1598
      %v1600 = vpop.f32.mrb[0].mxu0
      %1601 = vdwg.mxu0
      %v1602 = vadd.f32 %v1470, %v1540
      %v1603 = vadd.f32 %v1471, %v1543
      %v1604 = vadd.f32 %v1472, %v1548
      %v1605 = vadd.f32 %v1473, %v1551
      %v1606 = vadd.f32 %v1474, %v1556
      %v1607 = vadd.f32 %v1475, %v1559
      %v1608 = vadd.f32 %v1476, %v1564
      %v1609 = vadd.f32 %v1477, %v1567
      %v1610 = vadd.f32 %v1478, %v1572
      %v1611 = vadd.f32 %v1479, %v1575
      %v1612 = vadd.f32 %v1480, %v1580
      %v1613 = vadd.f32 %v1481, %v1583
      %v1614 = vadd.f32 %v1482, %v1588
      %v1615 = vadd.f32 %v1483, %v1591
      %v1616 = vadd.f32 %v1484, %v1596
      %v1617 = vadd.f32 %v1485, %v1599
      %v1620 = vrot.slane %v836, 1
      %v1621 = vrot.slane %v837, 1
      %v1622 = vsel %vm1198, %v1620, %v1621
      %s1623 = scalar_lea.vmem %s6, 10
      %v1624 = vld [vmem:[%s1623] sm:$0x3]
      %v1626 = vsel %vm940, %v1622, 0
      %v1629 = vsel %vm965, %v1624, 0
      %1631 = vmatprep.subr.bf16.mxu0 0
      %1632 = vmatpush1.bf16.msra.mxu0 %v1629
      %1633 = vmatprep.subr.bf16.mxu0 0
      %1634 = vmatpush1.bf16.msra.mxu0 0
      %1635 = vmatprep.subr.bf16.mxu0 0
      %1636 = vmatpush1.bf16.msra.mxu0 0
      %1637 = vmatprep.subr.bf16.mxu0 0
      %1638 = vmatpush1.bf16.msra.mxu0 0
      %1639 = vmatprep.subr.bf16.mxu0 0
      %1640 = vmatpush1.bf16.msra.mxu0 0
      %1641 = vmatprep.subr.bf16.mxu0 0
      %1642 = vmatpush1.bf16.msra.mxu0 0
      %1643 = vmatprep.subr.bf16.mxu0 0
      %1644 = vmatpush1.bf16.msra.mxu0 0
      %1645 = vmatprep.subr.bf16.mxu0 0
      %1646 = vmatpush1.bf16.msra.mxu0 0
      %1647 = vmatprep.subr.bf16.mxu0 0
      %1648 = vmatpush1.bf16.msra.mxu0 0
      %1649 = vmatprep.subr.bf16.mxu0 0
      %1650 = vmatpush1.bf16.msra.mxu0 0
      %1651 = vmatprep.subr.bf16.mxu0 0
      %1652 = vmatpush1.bf16.msra.mxu0 0
      %1653 = vmatprep.subr.bf16.mxu0 0
      %1654 = vmatpush1.bf16.msra.mxu0 0
      %1655 = vmatprep.subr.bf16.mxu0 0
      %1656 = vmatpush1.bf16.msra.mxu0 0
      %1657 = vmatprep.subr.bf16.mxu0 0
      %1658 = vmatpush1.bf16.msra.mxu0 0
      %1659 = vmatprep.subr.bf16.mxu0 0
      %1660 = vmatpush1.bf16.msra.mxu0 0
      %1661 = vmatprep.subr.bf16.mxu0 0
      %1662 = vmatpush1.bf16.msra.mxu0 0
      %1663 = vmatprep.mubr.bf16.mxu0 0
      %1664 = vmatmul.mubr.bf16.gmra.mrb[0].mxu0 %v1229
      %v1665 = vpop.f32.mrb[0].mxu0
      %v1666 = vadd.f32 0.0, %v1665
      %v1667 = vpop.f32.mrb[0].mxu0
      %v1668 = vpop.f32.mrb[0].mxu0
      %v1669 = vadd.f32 0.0, %v1668
      %v1670 = vpop.f32.mrb[0].mxu0
      %1671 = vmatprep.mubr.bf16.mxu0 0
      %1672 = vmatmul.mubr.bf16.gmra.mrb[0].mxu0 %v1232
      %v1673 = vpop.f32.mrb[0].mxu0
      %v1674 = vadd.f32 0.0, %v1673
      %v1675 = vpop.f32.mrb[0].mxu0
      %v1676 = vpop.f32.mrb[0].mxu0
      %v1677 = vadd.f32 0.0, %v1676
      %v1678 = vpop.f32.mrb[0].mxu0
      %1679 = vmatprep.mubr.bf16.mxu0 0
      %1680 = vmatmul.mubr.bf16.gmra.mrb[0].mxu0 %v1235
      %v1681 = vpop.f32.mrb[0].mxu0
      %v1682 = vadd.f32 0.0, %v1681
      %v1683 = vpop.f32.mrb[0].mxu0
      %v1684 = vpop.f32.mrb[0].mxu0
      %v1685 = vadd.f32 0.0, %v1684
      %v1686 = vpop.f32.mrb[0].mxu0
      %1687 = vmatprep.mubr.bf16.mxu0 0
      %1688 = vmatmul.mubr.bf16.gmra.mrb[0].mxu0 %v1238
      %v1689 = vpop.f32.mrb[0].mxu0
      %v1690 = vadd.f32 0.0, %v1689
      %v1691 = vpop.f32.mrb[0].mxu0
      %v1692 = vpop.f32.mrb[0].mxu0
      %v1693 = vadd.f32 0.0, %v1692
      %v1694 = vpop.f32.mrb[0].mxu0
      %1695 = vmatprep.mubr.bf16.mxu0 0
      %1696 = vmatmul.mubr.bf16.gmra.mrb[0].mxu0 %v1241
      %v1697 = vpop.f32.mrb[0].mxu0
      %v1698 = vadd.f32 0.0, %v1697
      %v1699 = vpop.f32.mrb[0].mxu0
      %v1700 = vpop.f32.mrb[0].mxu0
      %v1701 = vadd.f32 0.0, %v1700
      %v1702 = vpop.f32.mrb[0].mxu0
      %1703 = vmatprep.mubr.bf16.mxu0 0
      %1704 = vmatmul.mubr.bf16.gmra.mrb[0].mxu0 %v1244
      %v1705 = vpop.f32.mrb[0].mxu0
      %v1706 = vadd.f32 0.0, %v1705
      %v1707 = vpop.f32.mrb[0].mxu0
      %v1708 = vpop.f32.mrb[0].mxu0
      %v1709 = vadd.f32 0.0, %v1708
      %v1710 = vpop.f32.mrb[0].mxu0
      %1711 = vmatprep.mubr.bf16.mxu0 0
      %1712 = vmatmul.mubr.bf16.gmra.mrb[0].mxu0 %v1247
      %v1713 = vpop.f32.mrb[0].mxu0
      %v1714 = vadd.f32 0.0, %v1713
      %v1715 = vpop.f32.mrb[0].mxu0
      %v1716 = vpop.f32.mrb[0].mxu0
      %v1717 = vadd.f32 0.0, %v1716
      %v1718 = vpop.f32.mrb[0].mxu0
      %1719 = vmatprep.mubr.bf16.mxu0 0
      %1720 = vmatmul.mubr.bf16.gmra.mrb[0].mxu0 %v1626
      %v1721 = vpop.f32.mrb[0].mxu0
      %v1722 = vadd.f32 0.0, %v1721
      %v1723 = vpop.f32.mrb[0].mxu0
      %v1724 = vpop.f32.mrb[0].mxu0
      %v1725 = vadd.f32 0.0, %v1724
      %v1726 = vpop.f32.mrb[0].mxu0
      %1727 = vdwg.mxu0
      %v1728 = vadd.f32 %v1602, %v1666
      %v1729 = vadd.f32 %v1603, %v1669
      %v1730 = vadd.f32 %v1604, %v1674
      %v1731 = vadd.f32 %v1605, %v1677
      %v1732 = vadd.f32 %v1606, %v1682
      %v1733 = vadd.f32 %v1607, %v1685
      %v1734 = vadd.f32 %v1608, %v1690
      %v1735 = vadd.f32 %v1609, %v1693
      %v1736 = vadd.f32 %v1610, %v1698
      %v1737 = vadd.f32 %v1611, %v1701
      %v1738 = vadd.f32 %v1612, %v1706
      %v1739 = vadd.f32 %v1613, %v1709
      %v1740 = vadd.f32 %v1614, %v1714
      %v1741 = vadd.f32 %v1615, %v1717
      %v1742 = vadd.f32 %v1616, %v1722
      %v1743 = vadd.f32 %v1617, %v1725
      %s1744 = scalar_lea.vmem %s6, 12
      %v1745 = vld [vmem:[%s1744] sm:$0x3]
      %v1747 = vsel %vm940, %v838, 0
      %v1750 = vsel %vm965, %v1745, 0
      %1752 = vmatprep.subr.bf16.mxu0 0
      %1753 = vmatpush1.bf16.msra.mxu0 %v1750
      %1754 = vmatprep.subr.bf16.mxu0 0
      %1755 = vmatpush1.bf16.msra.mxu0 0
      %1756 = vmatprep.subr.bf16.mxu0 0
      %1757 = vmatpush1.bf16.msra.mxu0 0
      %1758 = vmatprep.subr.bf16.mxu0 0
      %1759 = vmatpush1.bf16.msra.mxu0 0
      %1760 = vmatprep.subr.bf16.mxu0 0
      %1761 = vmatpush1.bf16.msra.mxu0 0
      %1762 = vmatprep.subr.bf16.mxu0 0
      %1763 = vmatpush1.bf16.msra.mxu0 0
      %1764 = vmatprep.subr.bf16.mxu0 0
      %1765 = vmatpush1.bf16.msra.mxu0 0
      %1766 = vmatprep.subr.bf16.mxu0 0
      %1767 = vmatpush1.bf16.msra.mxu0 0
      %1768 = vmatprep.subr.bf16.mxu0 0
      %1769 = vmatpush1.bf16.msra.mxu0 0
      %1770 = vmatprep.subr.bf16.mxu0 0
      %1771 = vmatpush1.bf16.msra.mxu0 0
      %1772 = vmatprep.subr.bf16.mxu0 0
      %1773 = vmatpush1.bf16.msra.mxu0 0
      %1774 = vmatprep.subr.bf16.mxu0 0
      %1775 = vmatpush1.bf16.msra.mxu0 0
      %1776 = vmatprep.subr.bf16.mxu0 0
      %1777 = vmatpush1.bf16.msra.mxu0 0
      %1778 = vmatprep.subr.bf16.mxu0 0
      %1779 = vmatpush1.bf16.msra.mxu0 0
      %1780 = vmatprep.subr.bf16.mxu0 0
      %1781 = vmatpush1.bf16.msra.mxu0 0
      %1782 = vmatprep.subr.bf16.mxu0 0
      %1783 = vmatpush1.bf16.msra.mxu0 0
      %1784 = vmatprep.mubr.bf16.mxu0 0
      %1785 = vmatmul.mubr.bf16.gmra.mrb[0].mxu0 %v1070
      %v1786 = vpop.f32.mrb[0].mxu0
      %v1787 = vadd.f32 0.0, %v1786
      %v1788 = vpop.f32.mrb[0].mxu0
      %v1789 = vpop.f32.mrb[0].mxu0
      %v1790 = vadd.f32 0.0, %v1789
      %v1791 = vpop.f32.mrb[0].mxu0
      %1792 = vmatprep.mubr.bf16.mxu0 0
      %1793 = vmatmul.mubr.bf16.gmra.mrb[0].mxu0 %v1072
      %v1794 = vpop.f32.mrb[0].mxu0
      %v1795 = vadd.f32 0.0, %v1794
      %v1796 = vpop.f32.mrb[0].mxu0
      %v1797 = vpop.f32.mrb[0].mxu0
      %v1798 = vadd.f32 0.0, %v1797
      %v1799 = vpop.f32.mrb[0].mxu0
      %1800 = vmatprep.mubr.bf16.mxu0 0
      %1801 = vmatmul.mubr.bf16.gmra.mrb[0].mxu0 %v1074
      %v1802 = vpop.f32.mrb[0].mxu0
      %v1803 = vadd.f32 0.0, %v1802
      %v1804 = vpop.f32.mrb[0].mxu0
      %v1805 = vpop.f32.mrb[0].mxu0
      %v1806 = vadd.f32 0.0, %v1805
      %v1807 = vpop.f32.mrb[0].mxu0
      %1808 = vmatprep.mubr.bf16.mxu0 0
      %1809 = vmatmul.mubr.bf16.gmra.mrb[0].mxu0 %v1076
      %v1810 = vpop.f32.mrb[0].mxu0
      %v1811 = vadd.f32 0.0, %v1810
      %v1812 = vpop.f32.mrb[0].mxu0
      %v1813 = vpop.f32.mrb[0].mxu0
      %v1814 = vadd.f32 0.0, %v1813
      %v1815 = vpop.f32.mrb[0].mxu0
      %1816 = vmatprep.mubr.bf16.mxu0 0
      %1817 = vmatmul.mubr.bf16.gmra.mrb[0].mxu0 %v1078
      %v1818 = vpop.f32.mrb[0].mxu0
      %v1819 = vadd.f32 0.0, %v1818
      %v1820 = vpop.f32.mrb[0].mxu0
      %v1821 = vpop.f32.mrb[0].mxu0
      %v1822 = vadd.f32 0.0, %v1821
      %v1823 = vpop.f32.mrb[0].mxu0
      %1824 = vmatprep.mubr.bf16.mxu0 0
      %1825 = vmatmul.mubr.bf16.gmra.mrb[0].mxu0 %v1080
      %v1826 = vpop.f32.mrb[0].mxu0
      %v1827 = vadd.f32 0.0, %v1826
      %v1828 = vpop.f32.mrb[0].mxu0
      %v1829 = vpop.f32.mrb[0].mxu0
      %v1830 = vadd.f32 0.0, %v1829
      %v1831 = vpop.f32.mrb[0].mxu0
      %1832 = vmatprep.mubr.bf16.mxu0 0
      %1833 = vmatmul.mubr.bf16.gmra.mrb[0].mxu0 %v1368
      %v1834 = vpop.f32.mrb[0].mxu0
      %v1835 = vadd.f32 0.0, %v1834
      %v1836 = vpop.f32.mrb[0].mxu0
      %v1837 = vpop.f32.mrb[0].mxu0
      %v1838 = vadd.f32 0.0, %v1837
      %v1839 = vpop.f32.mrb[0].mxu0
      %1840 = vmatprep.mubr.bf16.mxu0 0
      %1841 = vmatmul.mubr.bf16.gmra.mrb[0].mxu0 %v1747
      %v1842 = vpop.f32.mrb[0].mxu0
      %v1843 = vadd.f32 0.0, %v1842
      %v1844 = vpop.f32.mrb[0].mxu0
      %v1845 = vpop.f32.mrb[0].mxu0
      %v1846 = vadd.f32 0.0, %v1845
      %v1847 = vpop.f32.mrb[0].mxu0
      %1848 = vdwg.mxu0
      %v1849 = vadd.f32 %v1728, %v1787
      %v1850 = vadd.f32 %v1729, %v1790
      %v1851 = vadd.f32 %v1730, %v1795
      %v1852 = vadd.f32 %v1731, %v1798
      %v1853 = vadd.f32 %v1732, %v1803
      %v1854 = vadd.f32 %v1733, %v1806
      %v1855 = vadd.f32 %v1734, %v1811
      %v1856 = vadd.f32 %v1735, %v1814
      %v1857 = vadd.f32 %v1736, %v1819
      %v1858 = vadd.f32 %v1737, %v1822
      %v1859 = vadd.f32 %v1738, %v1827
      %v1860 = vadd.f32 %v1739, %v1830
      %v1861 = vadd.f32 %v1740, %v1835
      %v1862 = vadd.f32 %v1741, %v1838
      %v1863 = vadd.f32 %v1742, %v1843
      %v1864 = vadd.f32 %v1743, %v1846
      %v1865 = vshrl.u32 %v838, 16
      %v1867 = vshll.u32 %v838, 16
      %v1869 = vrot.slane %v1867, 1
      %v1870 = vor.u32 %v1865, %v1869
      %v1872 = vshll.u32 %v839, 16
      %v1874 = vrot.slane %v1872, 1
      %v1875 = vsel %vm841, %v1870, %v1874
      %s1876 = scalar_lea.vmem %s6, 14
      %v1877 = vld [vmem:[%s1876] sm:$0x3]
      %v1879 = vsel %vm940, %v1875, 0
      %v1882 = vsel %vm965, %v1877, 0
      %1884 = vmatprep.subr.bf16.mxu0 0
      %1885 = vmatpush1.bf16.msra.mxu0 %v1882
      %1886 = vmatprep.subr.bf16.mxu0 0
      %1887 = vmatpush1.bf16.msra.mxu0 0
      %1888 = vmatprep.subr.bf16.mxu0 0
      %1889 = vmatpush1.bf16.msra.mxu0 0
      %1890 = vmatprep.subr.bf16.mxu0 0
      %1891 = vmatpush1.bf16.msra.mxu0 0
      %1892 = vmatprep.subr.bf16.mxu0 0
      %1893 = vmatpush1.bf16.msra.mxu0 0
      %1894 = vmatprep.subr.bf16.mxu0 0
      %1895 = vmatpush1.bf16.msra.mxu0 0
      %1896 = vmatprep.subr.bf16.mxu0 0
      %1897 = vmatpush1.bf16.msra.mxu0 0
      %1898 = vmatprep.subr.bf16.mxu0 0
      %1899 = vmatpush1.bf16.msra.mxu0 0
      %1900 = vmatprep.subr.bf16.mxu0 0
      %1901 = vmatpush1.bf16.msra.mxu0 0
      %1902 = vmatprep.subr.bf16.mxu0 0
      %1903 = vmatpush1.bf16.msra.mxu0 0
      %1904 = vmatprep.subr.bf16.mxu0 0
      %1905 = vmatpush1.bf16.msra.mxu0 0
      %1906 = vmatprep.subr.bf16.mxu0 0
      %1907 = vmatpush1.bf16.msra.mxu0 0
      %1908 = vmatprep.subr.bf16.mxu0 0
      %1909 = vmatpush1.bf16.msra.mxu0 0
      %1910 = vmatprep.subr.bf16.mxu0 0
      %1911 = vmatpush1.bf16.msra.mxu0 0
      %1912 = vmatprep.subr.bf16.mxu0 0
      %1913 = vmatpush1.bf16.msra.mxu0 0
      %1914 = vmatprep.subr.bf16.mxu0 0
      %1915 = vmatpush1.bf16.msra.mxu0 0
      %1916 = vmatprep.mubr.bf16.mxu0 0
      %1917 = vmatmul.mubr.bf16.gmra.mrb[0].mxu0 %v948
      %v1918 = vpop.f32.mrb[0].mxu0
      %v1919 = vadd.f32 0.0, %v1918
      %v1920 = vpop.f32.mrb[0].mxu0
      %v1921 = vpop.f32.mrb[0].mxu0
      %v1922 = vadd.f32 0.0, %v1921
      %v1923 = vpop.f32.mrb[0].mxu0
      %1924 = vmatprep.mubr.bf16.mxu0 0
      %1925 = vmatmul.mubr.bf16.gmra.mrb[0].mxu0 %v951
      %v1926 = vpop.f32.mrb[0].mxu0
      %v1927 = vadd.f32 0.0, %v1926
      %v1928 = vpop.f32.mrb[0].mxu0
      %v1929 = vpop.f32.mrb[0].mxu0
      %v1930 = vadd.f32 0.0, %v1929
      %v1931 = vpop.f32.mrb[0].mxu0
      %1932 = vmatprep.mubr.bf16.mxu0 0
      %1933 = vmatmul.mubr.bf16.gmra.mrb[0].mxu0 %v954
      %v1934 = vpop.f32.mrb[0].mxu0
      %v1935 = vadd.f32 0.0, %v1934
      %v1936 = vpop.f32.mrb[0].mxu0
      %v1937 = vpop.f32.mrb[0].mxu0
      %v1938 = vadd.f32 0.0, %v1937
      %v1939 = vpop.f32.mrb[0].mxu0
      %1940 = vmatprep.mubr.bf16.mxu0 0
      %1941 = vmatmul.mubr.bf16.gmra.mrb[0].mxu0 %v957
      %v1942 = vpop.f32.mrb[0].mxu0
      %v1943 = vadd.f32 0.0, %v1942
      %v1944 = vpop.f32.mrb[0].mxu0
      %v1945 = vpop.f32.mrb[0].mxu0
      %v1946 = vadd.f32 0.0, %v1945
      %v1947 = vpop.f32.mrb[0].mxu0
      %1948 = vmatprep.mubr.bf16.mxu0 0
      %1949 = vmatmul.mubr.bf16.gmra.mrb[0].mxu0 %v960
      %v1950 = vpop.f32.mrb[0].mxu0
      %v1951 = vadd.f32 0.0, %v1950
      %v1952 = vpop.f32.mrb[0].mxu0
      %v1953 = vpop.f32.mrb[0].mxu0
      %v1954 = vadd.f32 0.0, %v1953
      %v1955 = vpop.f32.mrb[0].mxu0
      %1956 = vmatprep.mubr.bf16.mxu0 0
      %1957 = vmatmul.mubr.bf16.gmra.mrb[0].mxu0 %v963
      %v1958 = vpop.f32.mrb[0].mxu0
      %v1959 = vadd.f32 0.0, %v1958
      %v1960 = vpop.f32.mrb[0].mxu0
      %v1961 = vpop.f32.mrb[0].mxu0
      %v1962 = vadd.f32 0.0, %v1961
      %v1963 = vpop.f32.mrb[0].mxu0
      %1964 = vmatprep.mubr.bf16.mxu0 0
      %1965 = vmatmul.mubr.bf16.gmra.mrb[0].mxu0 %v1500
      %v1966 = vpop.f32.mrb[0].mxu0
      %v1967 = vadd.f32 0.0, %v1966
      %v1968 = vpop.f32.mrb[0].mxu0
      %v1969 = vpop.f32.mrb[0].mxu0
      %v1970 = vadd.f32 0.0, %v1969
      %v1971 = vpop.f32.mrb[0].mxu0
      %1972 = vmatprep.mubr.bf16.mxu0 0
      %1973 = vmatmul.mubr.bf16.gmra.mrb[0].mxu0 %v1879
      %v1974 = vpop.f32.mrb[0].mxu0
      %v1975 = vadd.f32 0.0, %v1974
      %v1976 = vpop.f32.mrb[0].mxu0
      %v1977 = vpop.f32.mrb[0].mxu0
      %v1978 = vadd.f32 0.0, %v1977
      %v1979 = vpop.f32.mrb[0].mxu0
      %1980 = vdwg.mxu0
      %v1981 = vadd.f32 %v1849, %v1919
      %v1982 = vadd.f32 %v1850, %v1922
      %v1983 = vadd.f32 %v1851, %v1927
      %v1984 = vadd.f32 %v1852, %v1930
      %v1985 = vadd.f32 %v1853, %v1935
      %v1986 = vadd.f32 %v1854, %v1938
      %v1987 = vadd.f32 %v1855, %v1943
      %v1988 = vadd.f32 %v1856, %v1946
      %v1989 = vadd.f32 %v1857, %v1951
      %v1990 = vadd.f32 %v1858, %v1954
      %v1991 = vadd.f32 %v1859, %v1959
      %v1992 = vadd.f32 %v1860, %v1962
      %v1993 = vadd.f32 %v1861, %v1967
      %v1994 = vadd.f32 %v1862, %v1970
      %v1995 = vadd.f32 %v1863, %v1975
      %v1996 = vadd.f32 %v1864, %v1978
      %v1999 = vrot.slane %v838, 1
      %v2000 = vrot.slane %v839, 1
      %v2001 = vsel %vm1198, %v1999, %v2000
      %s2002 = scalar_lea.vmem %s6, 16
      %v2003 = vld [vmem:[%s2002] sm:$0x3]
      %v2005 = vsel %vm940, %v2001, 0
      %v2008 = vsel %vm965, %v2003, 0
      %2010 = vmatprep.subr.bf16.mxu0 0
      %2011 = vmatpush1.bf16.msra.mxu0 %v2008
      %2012 = vmatprep.subr.bf16.mxu0 0
      %2013 = vmatpush1.bf16.msra.mxu0 0
      %2014 = vmatprep.subr.bf16.mxu0 0
      %2015 = vmatpush1.bf16.msra.mxu0 0
      %2016 = vmatprep.subr.bf16.mxu0 0
      %2017 = vmatpush1.bf16.msra.mxu0 0
      %2018 = vmatprep.subr.bf16.mxu0 0
      %2019 = vmatpush1.bf16.msra.mxu0 0
      %2020 = vmatprep.subr.bf16.mxu0 0
      %2021 = vmatpush1.bf16.msra.mxu0 0
      %2022 = vmatprep.subr.bf16.mxu0 0
      %2023 = vmatpush1.bf16.msra.mxu0 0
      %2024 = vmatprep.subr.bf16.mxu0 0
      %2025 = vmatpush1.bf16.msra.mxu0 0
      %2026 = vmatprep.subr.bf16.mxu0 0
      %2027 = vmatpush1.bf16.msra.mxu0 0
      %2028 = vmatprep.subr.bf16.mxu0 0
      %2029 = vmatpush1.bf16.msra.mxu0 0
      %2030 = vmatprep.subr.bf16.mxu0 0
      %2031 = vmatpush1.bf16.msra.mxu0 0
      %2032 = vmatprep.subr.bf16.mxu0 0
      %2033 = vmatpush1.bf16.msra.mxu0 0
      %2034 = vmatprep.subr.bf16.mxu0 0
      %2035 = vmatpush1.bf16.msra.mxu0 0
      %2036 = vmatprep.subr.bf16.mxu0 0
      %2037 = vmatpush1.bf16.msra.mxu0 0
      %2038 = vmatprep.subr.bf16.mxu0 0
      %2039 = vmatpush1.bf16.msra.mxu0 0
      %2040 = vmatprep.subr.bf16.mxu0 0
      %2041 = vmatpush1.bf16.msra.mxu0 0
      %2042 = vmatprep.mubr.bf16.mxu0 0
      %2043 = vmatmul.mubr.bf16.gmra.mrb[0].mxu0 %v1232
      %v2044 = vpop.f32.mrb[0].mxu0
      %v2045 = vadd.f32 0.0, %v2044
      %v2046 = vpop.f32.mrb[0].mxu0
      %v2047 = vpop.f32.mrb[0].mxu0
      %v2048 = vadd.f32 0.0, %v2047
      %v2049 = vpop.f32.mrb[0].mxu0
      %2050 = vmatprep.mubr.bf16.mxu0 0
      %2051 = vmatmul.mubr.bf16.gmra.mrb[0].mxu0 %v1235
      %v2052 = vpop.f32.mrb[0].mxu0
      %v2053 = vadd.f32 0.0, %v2052
      %v2054 = vpop.f32.mrb[0].mxu0
      %v2055 = vpop.f32.mrb[0].mxu0
      %v2056 = vadd.f32 0.0, %v2055
      %v2057 = vpop.f32.mrb[0].mxu0
      %2058 = vmatprep.mubr.bf16.mxu0 0
      %2059 = vmatmul.mubr.bf16.gmra.mrb[0].mxu0 %v1238
      %v2060 = vpop.f32.mrb[0].mxu0
      %v2061 = vadd.f32 0.0, %v2060
      %v2062 = vpop.f32.mrb[0].mxu0
      %v2063 = vpop.f32.mrb[0].mxu0
      %v2064 = vadd.f32 0.0, %v2063
      %v2065 = vpop.f32.mrb[0].mxu0
      %2066 = vmatprep.mubr.bf16.mxu0 0
      %2067 = vmatmul.mubr.bf16.gmra.mrb[0].mxu0 %v1241
      %v2068 = vpop.f32.mrb[0].mxu0
      %v2069 = vadd.f32 0.0, %v2068
      %v2070 = vpop.f32.mrb[0].mxu0
      %v2071 = vpop.f32.mrb[0].mxu0
      %v2072 = vadd.f32 0.0, %v2071
      %v2073 = vpop.f32.mrb[0].mxu0
      %2074 = vmatprep.mubr.bf16.mxu0 0
      %2075 = vmatmul.mubr.bf16.gmra.mrb[0].mxu0 %v1244
      %v2076 = vpop.f32.mrb[0].mxu0
      %v2077 = vadd.f32 0.0, %v2076
      %v2078 = vpop.f32.mrb[0].mxu0
      %v2079 = vpop.f32.mrb[0].mxu0
      %v2080 = vadd.f32 0.0, %v2079
      %v2081 = vpop.f32.mrb[0].mxu0
      %2082 = vmatprep.mubr.bf16.mxu0 0
      %2083 = vmatmul.mubr.bf16.gmra.mrb[0].mxu0 %v1247
      %v2084 = vpop.f32.mrb[0].mxu0
      %v2085 = vadd.f32 0.0, %v2084
      %v2086 = vpop.f32.mrb[0].mxu0
      %v2087 = vpop.f32.mrb[0].mxu0
      %v2088 = vadd.f32 0.0, %v2087
      %v2089 = vpop.f32.mrb[0].mxu0
      %2090 = vmatprep.mubr.bf16.mxu0 0
      %2091 = vmatmul.mubr.bf16.gmra.mrb[0].mxu0 %v1626
      %v2092 = vpop.f32.mrb[0].mxu0
      %v2093 = vadd.f32 0.0, %v2092
      %v2094 = vpop.f32.mrb[0].mxu0
      %v2095 = vpop.f32.mrb[0].mxu0
      %v2096 = vadd.f32 0.0, %v2095
      %v2097 = vpop.f32.mrb[0].mxu0
      %2098 = vmatprep.mubr.bf16.mxu0 0
      %2099 = vmatmul.mubr.bf16.gmra.mrb[0].mxu0 %v2005
      %v2100 = vpop.f32.mrb[0].mxu0
      %v2101 = vadd.f32 0.0, %v2100
      %v2102 = vpop.f32.mrb[0].mxu0
      %v2103 = vpop.f32.mrb[0].mxu0
      %v2104 = vadd.f32 0.0, %v2103
      %v2105 = vpop.f32.mrb[0].mxu0
      %2106 = vdwg.mxu0
      %v2107 = vadd.f32 %v1981, %v2045
      %v2108 = vadd.f32 %v1982, %v2048
      %v2109 = vadd.f32 %v1983, %v2053
      %v2110 = vadd.f32 %v1984, %v2056
      %v2111 = vadd.f32 %v1985, %v2061
      %v2112 = vadd.f32 %v1986, %v2064
      %v2113 = vadd.f32 %v1987, %v2069
      %v2114 = vadd.f32 %v1988, %v2072
      %v2115 = vadd.f32 %v1989, %v2077
      %v2116 = vadd.f32 %v1990, %v2080
      %v2117 = vadd.f32 %v1991, %v2085
      %v2118 = vadd.f32 %v1992, %v2088
      %v2119 = vadd.f32 %v1993, %v2093
      %v2120 = vadd.f32 %v1994, %v2096
      %v2121 = vadd.f32 %v1995, %v2101
      %v2122 = vadd.f32 %v1996, %v2104
      %v2123 = vld [vmem:[%s630] sm:$0xff]
      %v2124 = vld [vmem:[%s630 + $0x8] sm:$0xff]
      %v2125 = vld [vmem:[%s630 + $0x10] sm:$0xff]
      %v2126 = vld [vmem:[%s630 + $0x18] sm:$0xff]
      %v2127 = vld [vmem:[%s630 + $0x20] sm:$0xff]
      %v2128 = vld [vmem:[%s630 + $0x28] sm:$0xff]
      %v2129 = vld [vmem:[%s630 + $0x30] sm:$0xff]
      %v2130 = vld [vmem:[%s630 + $0x38] sm:$0xff]
      %v2131 = vld [vmem:[%s630 + $0x40] sm:$0xff]
      %v2132 = vld [vmem:[%s630 + $0x48] sm:$0xff]
      %v2133 = vld [vmem:[%s630 + $0x50] sm:$0xff]
      %v2134 = vld [vmem:[%s630 + $0x58] sm:$0xff]
      %v2135 = vld [vmem:[%s630 + $0x60] sm:$0xff]
      %v2136 = vld [vmem:[%s630 + $0x68] sm:$0xff]
      %v2137 = vld [vmem:[%s630 + $0x70] sm:$0xff]
      %v2138 = vld [vmem:[%s630 + $0x78] sm:$0xff]
      %v2139 = vld [vmem:[%s644] sm:$0xff]
      %v2140 = vld [vmem:[%s644 + $0x8] sm:$0xff]
      %v2141 = vsel %vm707, %v2139, 0.0
      %v2142 = vsel %vm707, %v2140, 0.0
      %v2143 = vld [vmem:[%s661] sm:$0xff]
      %v2144 = vld [vmem:[%s661 + $0x8] sm:$0xff]
      %v2145 = vsel %vm716, %v2143, 0.0
      %v2146 = vsel %vm716, %v2144, 0.0
      %v2167 = vrot.slane %v2141, 7
      %v2168 = vrot.slane %v2142, 7
      %v2169 = vsel %vm739, %v2167, %v2168
      %v2170 = vrot.slane %v2123, 7
      %v2171 = vrot.slane %v2124, 7
      %v2172 = vsel %vm739, %v2170, %v2171
      %v2173 = vrot.slane %v2125, 7
      %v2174 = vrot.slane %v2126, 7
      %v2175 = vsel %vm739, %v2173, %v2174
      %v2176 = vrot.slane %v2127, 7
      %v2177 = vrot.slane %v2128, 7
      %v2178 = vsel %vm739, %v2176, %v2177
      %v2179 = vrot.slane %v2129, 7
      %v2180 = vrot.slane %v2130, 7
      %v2181 = vsel %vm739, %v2179, %v2180
      %v2182 = vrot.slane %v2131, 7
      %v2183 = vrot.slane %v2132, 7
      %v2184 = vsel %vm739, %v2182, %v2183
      %v2185 = vrot.slane %v2133, 7
      %v2186 = vrot.slane %v2134, 7
      %v2187 = vsel %vm739, %v2185, %v2186
      %v2188 = vrot.slane %v2135, 7
      %v2189 = vrot.slane %v2136, 7
      %v2190 = vsel %vm739, %v2188, %v2189
      %v2191 = vrot.slane %v2137, 7
      %v2192 = vrot.slane %v2138, 7
      %v2193 = vsel %vm739, %v2191, %v2192
      %v2194 = vrot.slane %v2145, 7
      %v2195 = vrot.slane %v2146, 7
      %v2196 = vsel %vm739, %v2194, %v2195
      %v2227 = vsel %vm739, 0.0, %v2167
      %v2228 = vsel %vm739, 0.0, %v2170
      %v2229 = vsel %vm739, 0.0, %v2173
      %v2230 = vsel %vm739, 0.0, %v2176
      %v2231 = vsel %vm739, 0.0, %v2179
      %v2232 = vsel %vm739, 0.0, %v2182
      %v2233 = vsel %vm739, 0.0, %v2185
      %v2234 = vsel %vm739, 0.0, %v2188
      %v2235 = vsel %vm739, 0.0, %v2191
      %v2236 = vsel %vm739, 0.0, %v2194
      %v2237 = vsel %vm739, %v2168, 0.0
      %v2238 = vsel %vm739, %v2171, 0.0
      %v2239 = vsel %vm739, %v2174, 0.0
      %v2240 = vsel %vm739, %v2177, 0.0
      %v2241 = vsel %vm739, %v2180, 0.0
      %v2242 = vsel %vm739, %v2183, 0.0
      %v2243 = vsel %vm739, %v2186, 0.0
      %v2244 = vsel %vm739, %v2189, 0.0
      %v2245 = vsel %vm739, %v2192, 0.0
      %v2246 = vsel %vm739, %v2195, 0.0
      %v2247 = vpack.c.bf16 %v2169, %v2227
      %v2248 = vpack.c.bf16 %v2237, %v2237
      %v2249 = vpack.c.bf16 %v2172, %v2228
      %v2250 = vpack.c.bf16 %v2238, %v2238
      %v2251 = vpack.c.bf16 %v2175, %v2229
      %v2252 = vpack.c.bf16 %v2239, %v2239
      %v2253 = vpack.c.bf16 %v2178, %v2230
      %v2254 = vpack.c.bf16 %v2240, %v2240
      %v2255 = vpack.c.bf16 %v2181, %v2231
      %v2256 = vpack.c.bf16 %v2241, %v2241
      %v2257 = vpack.c.bf16 %v2184, %v2232
      %v2258 = vpack.c.bf16 %v2242, %v2242
      %v2259 = vpack.c.bf16 %v2187, %v2233
      %v2260 = vpack.c.bf16 %v2243, %v2243
      %v2261 = vpack.c.bf16 %v2190, %v2234
      %v2262 = vpack.c.bf16 %v2244, %v2244
      %v2263 = vpack.c.bf16 %v2193, %v2235
      %v2264 = vpack.c.bf16 %v2245, %v2245
      %v2265 = vpack.c.bf16 %v2196, %v2236
      %v2266 = vpack.c.bf16 %v2246, %v2246
      %v2267 = vld [vmem:[%s7] sm:$0x3]
      %v2269 = vsel %vm940, %v2247, 0
      %v2272 = vsel %vm940, %v2249, 0
      %v2275 = vsel %vm940, %v2251, 0
      %v2278 = vsel %vm940, %v2253, 0
      %v2281 = vsel %vm940, %v2255, 0
      %v2284 = vsel %vm940, %v2257, 0
      %v2287 = vsel %vm940, %v2259, 0
      %v2290 = vsel %vm940, %v2261, 0
      %v2293 = vsel %vm965, %v2267, 0
      %2295 = vmatprep.subr.bf16.mxu0 0
      %2296 = vmatpush1.bf16.msra.mxu0 %v2293
      %2297 = vmatprep.subr.bf16.mxu0 0
      %2298 = vmatpush1.bf16.msra.mxu0 0
      %2299 = vmatprep.subr.bf16.mxu0 0
      %2300 = vmatpush1.bf16.msra.mxu0 0
      %2301 = vmatprep.subr.bf16.mxu0 0
      %2302 = vmatpush1.bf16.msra.mxu0 0
      %2303 = vmatprep.subr.bf16.mxu0 0
      %2304 = vmatpush1.bf16.msra.mxu0 0
      %2305 = vmatprep.subr.bf16.mxu0 0
      %2306 = vmatpush1.bf16.msra.mxu0 0
      %2307 = vmatprep.subr.bf16.mxu0 0
      %2308 = vmatpush1.bf16.msra.mxu0 0
      %2309 = vmatprep.subr.bf16.mxu0 0
      %2310 = vmatpush1.bf16.msra.mxu0 0
      %2311 = vmatprep.subr.bf16.mxu0 0
      %2312 = vmatpush1.bf16.msra.mxu0 0
      %2313 = vmatprep.subr.bf16.mxu0 0
      %2314 = vmatpush1.bf16.msra.mxu0 0
      %2315 = vmatprep.subr.bf16.mxu0 0
      %2316 = vmatpush1.bf16.msra.mxu0 0
      %2317 = vmatprep.subr.bf16.mxu0 0
      %2318 = vmatpush1.bf16.msra.mxu0 0
      %2319 = vmatprep.subr.bf16.mxu0 0
      %2320 = vmatpush1.bf16.msra.mxu0 0
      %2321 = vmatprep.subr.bf16.mxu0 0
      %2322 = vmatpush1.bf16.msra.mxu0 0
      %2323 = vmatprep.subr.bf16.mxu0 0
      %2324 = vmatpush1.bf16.msra.mxu0 0
      %2325 = vmatprep.subr.bf16.mxu0 0
      %2326 = vmatpush1.bf16.msra.mxu0 0
      %2327 = vmatprep.mubr.bf16.mxu0 0
      %2328 = vmatmul.mubr.bf16.gmra.mrb[0].mxu0 %v2269
      %v2329 = vpop.f32.mrb[0].mxu0
      %v2330 = vadd.f32 0.0, %v2329
      %v2331 = vpop.f32.mrb[0].mxu0
      %v2332 = vpop.f32.mrb[0].mxu0
      %v2333 = vadd.f32 0.0, %v2332
      %v2334 = vpop.f32.mrb[0].mxu0
      %2335 = vmatprep.mubr.bf16.mxu0 0
      %2336 = vmatmul.mubr.bf16.gmra.mrb[0].mxu0 %v2272
      %v2337 = vpop.f32.mrb[0].mxu0
      %v2338 = vadd.f32 0.0, %v2337
      %v2339 = vpop.f32.mrb[0].mxu0
      %v2340 = vpop.f32.mrb[0].mxu0
      %v2341 = vadd.f32 0.0, %v2340
      %v2342 = vpop.f32.mrb[0].mxu0
      %2343 = vmatprep.mubr.bf16.mxu0 0
      %2344 = vmatmul.mubr.bf16.gmra.mrb[0].mxu0 %v2275
      %v2345 = vpop.f32.mrb[0].mxu0
      %v2346 = vadd.f32 0.0, %v2345
      %v2347 = vpop.f32.mrb[0].mxu0
      %v2348 = vpop.f32.mrb[0].mxu0
      %v2349 = vadd.f32 0.0, %v2348
      %v2350 = vpop.f32.mrb[0].mxu0
      %2351 = vmatprep.mubr.bf16.mxu0 0
      %2352 = vmatmul.mubr.bf16.gmra.mrb[0].mxu0 %v2278
      %v2353 = vpop.f32.mrb[0].mxu0
      %v2354 = vadd.f32 0.0, %v2353
      %v2355 = vpop.f32.mrb[0].mxu0
      %v2356 = vpop.f32.mrb[0].mxu0
      %v2357 = vadd.f32 0.0, %v2356
      %v2358 = vpop.f32.mrb[0].mxu0
      %2359 = vmatprep.mubr.bf16.mxu0 0
      %2360 = vmatmul.mubr.bf16.gmra.mrb[0].mxu0 %v2281
      %v2361 = vpop.f32.mrb[0].mxu0
      %v2362 = vadd.f32 0.0, %v2361
      %v2363 = vpop.f32.mrb[0].mxu0
      %v2364 = vpop.f32.mrb[0].mxu0
      %v2365 = vadd.f32 0.0, %v2364
      %v2366 = vpop.f32.mrb[0].mxu0
      %2367 = vmatprep.mubr.bf16.mxu0 0
      %2368 = vmatmul.mubr.bf16.gmra.mrb[0].mxu0 %v2284
      %v2369 = vpop.f32.mrb[0].mxu0
      %v2370 = vadd.f32 0.0, %v2369
      %v2371 = vpop.f32.mrb[0].mxu0
      %v2372 = vpop.f32.mrb[0].mxu0
      %v2373 = vadd.f32 0.0, %v2372
      %v2374 = vpop.f32.mrb[0].mxu0
      %2375 = vmatprep.mubr.bf16.mxu0 0
      %2376 = vmatmul.mubr.bf16.gmra.mrb[0].mxu0 %v2287
      %v2377 = vpop.f32.mrb[0].mxu0
      %v2378 = vadd.f32 0.0, %v2377
      %v2379 = vpop.f32.mrb[0].mxu0
      %v2380 = vpop.f32.mrb[0].mxu0
      %v2381 = vadd.f32 0.0, %v2380
      %v2382 = vpop.f32.mrb[0].mxu0
      %2383 = vmatprep.mubr.bf16.mxu0 0
      %2384 = vmatmul.mubr.bf16.gmra.mrb[0].mxu0 %v2290
      %v2385 = vpop.f32.mrb[0].mxu0
      %v2386 = vadd.f32 0.0, %v2385
      %v2387 = vpop.f32.mrb[0].mxu0
      %v2388 = vpop.f32.mrb[0].mxu0
      %v2389 = vadd.f32 0.0, %v2388
      %v2390 = vpop.f32.mrb[0].mxu0
      %2391 = vdwg.mxu0
      %v2392 = vadd.f32 %v2107, %v2330
      %v2393 = vadd.f32 %v2108, %v2333
      %v2394 = vadd.f32 %v2109, %v2338
      %v2395 = vadd.f32 %v2110, %v2341
      %v2396 = vadd.f32 %v2111, %v2346
      %v2397 = vadd.f32 %v2112, %v2349
      %v2398 = vadd.f32 %v2113, %v2354
      %v2399 = vadd.f32 %v2114, %v2357
      %v2400 = vadd.f32 %v2115, %v2362
      %v2401 = vadd.f32 %v2116, %v2365
      %v2402 = vadd.f32 %v2117, %v2370
      %v2403 = vadd.f32 %v2118, %v2373
      %v2404 = vadd.f32 %v2119, %v2378
      %v2405 = vadd.f32 %v2120, %v2381
      %v2406 = vadd.f32 %v2121, %v2386
      %v2407 = vadd.f32 %v2122, %v2389
      %v2408 = vshrl.u32 %v2247, 16
      %v2410 = vshll.u32 %v2247, 16
      %v2412 = vrot.slane %v2410, 1
      %v2413 = vor.u32 %v2408, %v2412
      %v2415 = vshll.u32 %v2248, 16
      %v2417 = vrot.slane %v2415, 1
      %v2418 = vsel %vm841, %v2413, %v2417
      %v2419 = vshrl.u32 %v2249, 16
      %v2421 = vshll.u32 %v2249, 16
      %v2423 = vrot.slane %v2421, 1
      %v2424 = vor.u32 %v2419, %v2423
      %v2426 = vshll.u32 %v2250, 16
      %v2428 = vrot.slane %v2426, 1
      %v2429 = vsel %vm841, %v2424, %v2428
      %v2430 = vshrl.u32 %v2251, 16
      %v2432 = vshll.u32 %v2251, 16
      %v2434 = vrot.slane %v2432, 1
      %v2435 = vor.u32 %v2430, %v2434
      %v2437 = vshll.u32 %v2252, 16
      %v2439 = vrot.slane %v2437, 1
      %v2440 = vsel %vm841, %v2435, %v2439
      %v2441 = vshrl.u32 %v2253, 16
      %v2443 = vshll.u32 %v2253, 16
      %v2445 = vrot.slane %v2443, 1
      %v2446 = vor.u32 %v2441, %v2445
      %v2448 = vshll.u32 %v2254, 16
      %v2450 = vrot.slane %v2448, 1
      %v2451 = vsel %vm841, %v2446, %v2450
      %v2452 = vshrl.u32 %v2255, 16
      %v2454 = vshll.u32 %v2255, 16
      %v2456 = vrot.slane %v2454, 1
      %v2457 = vor.u32 %v2452, %v2456
      %v2459 = vshll.u32 %v2256, 16
      %v2461 = vrot.slane %v2459, 1
      %v2462 = vsel %vm841, %v2457, %v2461
      %v2463 = vshrl.u32 %v2257, 16
      %v2465 = vshll.u32 %v2257, 16
      %v2467 = vrot.slane %v2465, 1
      %v2468 = vor.u32 %v2463, %v2467
      %v2470 = vshll.u32 %v2258, 16
      %v2472 = vrot.slane %v2470, 1
      %v2473 = vsel %vm841, %v2468, %v2472
      %v2474 = vshrl.u32 %v2259, 16
      %v2476 = vshll.u32 %v2259, 16
      %v2478 = vrot.slane %v2476, 1
      %v2479 = vor.u32 %v2474, %v2478
      %v2481 = vshll.u32 %v2260, 16
      %v2483 = vrot.slane %v2481, 1
      %v2484 = vsel %vm841, %v2479, %v2483
      %v2485 = vshrl.u32 %v2261, 16
      %v2487 = vshll.u32 %v2261, 16
      %v2489 = vrot.slane %v2487, 1
      %v2490 = vor.u32 %v2485, %v2489
      %v2492 = vshll.u32 %v2262, 16
      %v2494 = vrot.slane %v2492, 1
      %v2495 = vsel %vm841, %v2490, %v2494
      %s2496 = scalar_lea.vmem %s7, 2
      %v2497 = vld [vmem:[%s2496] sm:$0x3]
      %v2499 = vsel %vm940, %v2418, 0
      %v2502 = vsel %vm940, %v2429, 0
      %v2505 = vsel %vm940, %v2440, 0
      %v2508 = vsel %vm940, %v2451, 0
      %v2511 = vsel %vm940, %v2462, 0
      %v2514 = vsel %vm940, %v2473, 0
      %v2517 = vsel %vm940, %v2484, 0
      %v2520 = vsel %vm940, %v2495, 0
      %v2523 = vsel %vm965, %v2497, 0
      %2525 = vmatprep.subr.bf16.mxu0 0
      %2526 = vmatpush1.bf16.msra.mxu0 %v2523
      %2527 = vmatprep.subr.bf16.mxu0 0
      %2528 = vmatpush1.bf16.msra.mxu0 0
      %2529 = vmatprep.subr.bf16.mxu0 0
      %2530 = vmatpush1.bf16.msra.mxu0 0
      %2531 = vmatprep.subr.bf16.mxu0 0
      %2532 = vmatpush1.bf16.msra.mxu0 0
      %2533 = vmatprep.subr.bf16.mxu0 0
      %2534 = vmatpush1.bf16.msra.mxu0 0
      %2535 = vmatprep.subr.bf16.mxu0 0
      %2536 = vmatpush1.bf16.msra.mxu0 0
      %2537 = vmatprep.subr.bf16.mxu0 0
      %2538 = vmatpush1.bf16.msra.mxu0 0
      %2539 = vmatprep.subr.bf16.mxu0 0
      %2540 = vmatpush1.bf16.msra.mxu0 0
      %2541 = vmatprep.subr.bf16.mxu0 0
      %2542 = vmatpush1.bf16.msra.mxu0 0
      %2543 = vmatprep.subr.bf16.mxu0 0
      %2544 = vmatpush1.bf16.msra.mxu0 0
      %2545 = vmatprep.subr.bf16.mxu0 0
      %2546 = vmatpush1.bf16.msra.mxu0 0
      %2547 = vmatprep.subr.bf16.mxu0 0
      %2548 = vmatpush1.bf16.msra.mxu0 0
      %2549 = vmatprep.subr.bf16.mxu0 0
      %2550 = vmatpush1.bf16.msra.mxu0 0
      %2551 = vmatprep.subr.bf16.mxu0 0
      %2552 = vmatpush1.bf16.msra.mxu0 0
      %2553 = vmatprep.subr.bf16.mxu0 0
      %2554 = vmatpush1.bf16.msra.mxu0 0
      %2555 = vmatprep.subr.bf16.mxu0 0
      %2556 = vmatpush1.bf16.msra.mxu0 0
      %2557 = vmatprep.mubr.bf16.mxu0 0
      %2558 = vmatmul.mubr.bf16.gmra.mrb[0].mxu0 %v2499
      %v2559 = vpop.f32.mrb[0].mxu0
      %v2560 = vadd.f32 0.0, %v2559
      %v2561 = vpop.f32.mrb[0].mxu0
      %v2562 = vpop.f32.mrb[0].mxu0
      %v2563 = vadd.f32 0.0, %v2562
      %v2564 = vpop.f32.mrb[0].mxu0
      %2565 = vmatprep.mubr.bf16.mxu0 0
      %2566 = vmatmul.mubr.bf16.gmra.mrb[0].mxu0 %v2502
      %v2567 = vpop.f32.mrb[0].mxu0
      %v2568 = vadd.f32 0.0, %v2567
      %v2569 = vpop.f32.mrb[0].mxu0
      %v2570 = vpop.f32.mrb[0].mxu0
      %v2571 = vadd.f32 0.0, %v2570
      %v2572 = vpop.f32.mrb[0].mxu0
      %2573 = vmatprep.mubr.bf16.mxu0 0
      %2574 = vmatmul.mubr.bf16.gmra.mrb[0].mxu0 %v2505
      %v2575 = vpop.f32.mrb[0].mxu0
      %v2576 = vadd.f32 0.0, %v2575
      %v2577 = vpop.f32.mrb[0].mxu0
      %v2578 = vpop.f32.mrb[0].mxu0
      %v2579 = vadd.f32 0.0, %v2578
      %v2580 = vpop.f32.mrb[0].mxu0
      %2581 = vmatprep.mubr.bf16.mxu0 0
      %2582 = vmatmul.mubr.bf16.gmra.mrb[0].mxu0 %v2508
      %v2583 = vpop.f32.mrb[0].mxu0
      %v2584 = vadd.f32 0.0, %v2583
      %v2585 = vpop.f32.mrb[0].mxu0
      %v2586 = vpop.f32.mrb[0].mxu0
      %v2587 = vadd.f32 0.0, %v2586
      %v2588 = vpop.f32.mrb[0].mxu0
      %2589 = vmatprep.mubr.bf16.mxu0 0
      %2590 = vmatmul.mubr.bf16.gmra.mrb[0].mxu0 %v2511
      %v2591 = vpop.f32.mrb[0].mxu0
      %v2592 = vadd.f32 0.0, %v2591
      %v2593 = vpop.f32.mrb[0].mxu0
      %v2594 = vpop.f32.mrb[0].mxu0
      %v2595 = vadd.f32 0.0, %v2594
      %v2596 = vpop.f32.mrb[0].mxu0
      %2597 = vmatprep.mubr.bf16.mxu0 0
      %2598 = vmatmul.mubr.bf16.gmra.mrb[0].mxu0 %v2514
      %v2599 = vpop.f32.mrb[0].mxu0
      %v2600 = vadd.f32 0.0, %v2599
      %v2601 = vpop.f32.mrb[0].mxu0
      %v2602 = vpop.f32.mrb[0].mxu0
      %v2603 = vadd.f32 0.0, %v2602
      %v2604 = vpop.f32.mrb[0].mxu0
      %2605 = vmatprep.mubr.bf16.mxu0 0
      %2606 = vmatmul.mubr.bf16.gmra.mrb[0].mxu0 %v2517
      %v2607 = vpop.f32.mrb[0].mxu0
      %v2608 = vadd.f32 0.0, %v2607
      %v2609 = vpop.f32.mrb[0].mxu0
      %v2610 = vpop.f32.mrb[0].mxu0
      %v2611 = vadd.f32 0.0, %v2610
      %v2612 = vpop.f32.mrb[0].mxu0
      %2613 = vmatprep.mubr.bf16.mxu0 0
      %2614 = vmatmul.mubr.bf16.gmra.mrb[0].mxu0 %v2520
      %v2615 = vpop.f32.mrb[0].mxu0
      %v2616 = vadd.f32 0.0, %v2615
      %v2617 = vpop.f32.mrb[0].mxu0
      %v2618 = vpop.f32.mrb[0].mxu0
      %v2619 = vadd.f32 0.0, %v2618
      %v2620 = vpop.f32.mrb[0].mxu0
      %2621 = vdwg.mxu0
      %v2622 = vadd.f32 %v2392, %v2560
      %v2623 = vadd.f32 %v2393, %v2563
      %v2624 = vadd.f32 %v2394, %v2568
      %v2625 = vadd.f32 %v2395, %v2571
      %v2626 = vadd.f32 %v2396, %v2576
      %v2627 = vadd.f32 %v2397, %v2579
      %v2628 = vadd.f32 %v2398, %v2584
      %v2629 = vadd.f32 %v2399, %v2587
      %v2630 = vadd.f32 %v2400, %v2592
      %v2631 = vadd.f32 %v2401, %v2595
      %v2632 = vadd.f32 %v2402, %v2600
      %v2633 = vadd.f32 %v2403, %v2603
      %v2634 = vadd.f32 %v2404, %v2608
      %v2635 = vadd.f32 %v2405, %v2611
      %v2636 = vadd.f32 %v2406, %v2616
      %v2637 = vadd.f32 %v2407, %v2619
      %v2654 = vrot.slane %v2247, 1
      %v2655 = vrot.slane %v2248, 1
      %v2656 = vsel %vm1198, %v2654, %v2655
      %v2657 = vrot.slane %v2249, 1
      %v2658 = vrot.slane %v2250, 1
      %v2659 = vsel %vm1198, %v2657, %v2658
      %v2660 = vrot.slane %v2251, 1
      %v2661 = vrot.slane %v2252, 1
      %v2662 = vsel %vm1198, %v2660, %v2661
      %v2663 = vrot.slane %v2253, 1
      %v2664 = vrot.slane %v2254, 1
      %v2665 = vsel %vm1198, %v2663, %v2664
      %v2666 = vrot.slane %v2255, 1
      %v2667 = vrot.slane %v2256, 1
      %v2668 = vsel %vm1198, %v2666, %v2667
      %v2669 = vrot.slane %v2257, 1
      %v2670 = vrot.slane %v2258, 1
      %v2671 = vsel %vm1198, %v2669, %v2670
      %v2672 = vrot.slane %v2259, 1
      %v2673 = vrot.slane %v2260, 1
      %v2674 = vsel %vm1198, %v2672, %v2673
      %v2675 = vrot.slane %v2261, 1
      %v2676 = vrot.slane %v2262, 1
      %v2677 = vsel %vm1198, %v2675, %v2676
      %s2678 = scalar_lea.vmem %s7, 4
      %v2679 = vld [vmem:[%s2678] sm:$0x3]
      %v2681 = vsel %vm940, %v2656, 0
      %v2684 = vsel %vm940, %v2659, 0
      %v2687 = vsel %vm940, %v2662, 0
      %v2690 = vsel %vm940, %v2665, 0
      %v2693 = vsel %vm940, %v2668, 0
      %v2696 = vsel %vm940, %v2671, 0
      %v2699 = vsel %vm940, %v2674, 0
      %v2702 = vsel %vm940, %v2677, 0
      %v2705 = vsel %vm965, %v2679, 0
      %2707 = vmatprep.subr.bf16.mxu0 0
      %2708 = vmatpush1.bf16.msra.mxu0 %v2705
      %2709 = vmatprep.subr.bf16.mxu0 0
      %2710 = vmatpush1.bf16.msra.mxu0 0
      %2711 = vmatprep.subr.bf16.mxu0 0
      %2712 = vmatpush1.bf16.msra.mxu0 0
      %2713 = vmatprep.subr.bf16.mxu0 0
      %2714 = vmatpush1.bf16.msra.mxu0 0
      %2715 = vmatprep.subr.bf16.mxu0 0
      %2716 = vmatpush1.bf16.msra.mxu0 0
      %2717 = vmatprep.subr.bf16.mxu0 0
      %2718 = vmatpush1.bf16.msra.mxu0 0
      %2719 = vmatprep.subr.bf16.mxu0 0
      %2720 = vmatpush1.bf16.msra.mxu0 0
      %2721 = vmatprep.subr.bf16.mxu0 0
      %2722 = vmatpush1.bf16.msra.mxu0 0
      %2723 = vmatprep.subr.bf16.mxu0 0
      %2724 = vmatpush1.bf16.msra.mxu0 0
      %2725 = vmatprep.subr.bf16.mxu0 0
      %2726 = vmatpush1.bf16.msra.mxu0 0
      %2727 = vmatprep.subr.bf16.mxu0 0
      %2728 = vmatpush1.bf16.msra.mxu0 0
      %2729 = vmatprep.subr.bf16.mxu0 0
      %2730 = vmatpush1.bf16.msra.mxu0 0
      %2731 = vmatprep.subr.bf16.mxu0 0
      %2732 = vmatpush1.bf16.msra.mxu0 0
      %2733 = vmatprep.subr.bf16.mxu0 0
      %2734 = vmatpush1.bf16.msra.mxu0 0
      %2735 = vmatprep.subr.bf16.mxu0 0
      %2736 = vmatpush1.bf16.msra.mxu0 0
      %2737 = vmatprep.subr.bf16.mxu0 0
      %2738 = vmatpush1.bf16.msra.mxu0 0
      %2739 = vmatprep.mubr.bf16.mxu0 0
      %2740 = vmatmul.mubr.bf16.gmra.mrb[0].mxu0 %v2681
      %v2741 = vpop.f32.mrb[0].mxu0
      %v2742 = vadd.f32 0.0, %v2741
      %v2743 = vpop.f32.mrb[0].mxu0
      %v2744 = vpop.f32.mrb[0].mxu0
      %v2745 = vadd.f32 0.0, %v2744
      %v2746 = vpop.f32.mrb[0].mxu0
      %2747 = vmatprep.mubr.bf16.mxu0 0
      %2748 = vmatmul.mubr.bf16.gmra.mrb[0].mxu0 %v2684
      %v2749 = vpop.f32.mrb[0].mxu0
      %v2750 = vadd.f32 0.0, %v2749
      %v2751 = vpop.f32.mrb[0].mxu0
      %v2752 = vpop.f32.mrb[0].mxu0
      %v2753 = vadd.f32 0.0, %v2752
      %v2754 = vpop.f32.mrb[0].mxu0
      %2755 = vmatprep.mubr.bf16.mxu0 0
      %2756 = vmatmul.mubr.bf16.gmra.mrb[0].mxu0 %v2687
      %v2757 = vpop.f32.mrb[0].mxu0
      %v2758 = vadd.f32 0.0, %v2757
      %v2759 = vpop.f32.mrb[0].mxu0
      %v2760 = vpop.f32.mrb[0].mxu0
      %v2761 = vadd.f32 0.0, %v2760
      %v2762 = vpop.f32.mrb[0].mxu0
      %2763 = vmatprep.mubr.bf16.mxu0 0
      %2764 = vmatmul.mubr.bf16.gmra.mrb[0].mxu0 %v2690
      %v2765 = vpop.f32.mrb[0].mxu0
      %v2766 = vadd.f32 0.0, %v2765
      %v2767 = vpop.f32.mrb[0].mxu0
      %v2768 = vpop.f32.mrb[0].mxu0
      %v2769 = vadd.f32 0.0, %v2768
      %v2770 = vpop.f32.mrb[0].mxu0
      %2771 = vmatprep.mubr.bf16.mxu0 0
      %2772 = vmatmul.mubr.bf16.gmra.mrb[0].mxu0 %v2693
      %v2773 = vpop.f32.mrb[0].mxu0
      %v2774 = vadd.f32 0.0, %v2773
      %v2775 = vpop.f32.mrb[0].mxu0
      %v2776 = vpop.f32.mrb[0].mxu0
      %v2777 = vadd.f32 0.0, %v2776
      %v2778 = vpop.f32.mrb[0].mxu0
      %2779 = vmatprep.mubr.bf16.mxu0 0
      %2780 = vmatmul.mubr.bf16.gmra.mrb[0].mxu0 %v2696
      %v2781 = vpop.f32.mrb[0].mxu0
      %v2782 = vadd.f32 0.0, %v2781
      %v2783 = vpop.f32.mrb[0].mxu0
      %v2784 = vpop.f32.mrb[0].mxu0
      %v2785 = vadd.f32 0.0, %v2784
      %v2786 = vpop.f32.mrb[0].mxu0
      %2787 = vmatprep.mubr.bf16.mxu0 0
      %2788 = vmatmul.mubr.bf16.gmra.mrb[0].mxu0 %v2699
      %v2789 = vpop.f32.mrb[0].mxu0
      %v2790 = vadd.f32 0.0, %v2789
      %v2791 = vpop.f32.mrb[0].mxu0
      %v2792 = vpop.f32.mrb[0].mxu0
      %v2793 = vadd.f32 0.0, %v2792
      %v2794 = vpop.f32.mrb[0].mxu0
      %2795 = vmatprep.mubr.bf16.mxu0 0
      %2796 = vmatmul.mubr.bf16.gmra.mrb[0].mxu0 %v2702
      %v2797 = vpop.f32.mrb[0].mxu0
      %v2798 = vadd.f32 0.0, %v2797
      %v2799 = vpop.f32.mrb[0].mxu0
      %v2800 = vpop.f32.mrb[0].mxu0
      %v2801 = vadd.f32 0.0, %v2800
      %v2802 = vpop.f32.mrb[0].mxu0
      %2803 = vdwg.mxu0
      %v2804 = vadd.f32 %v2622, %v2742
      %v2805 = vadd.f32 %v2623, %v2745
      %v2806 = vadd.f32 %v2624, %v2750
      %v2807 = vadd.f32 %v2625, %v2753
      %v2808 = vadd.f32 %v2626, %v2758
      %v2809 = vadd.f32 %v2627, %v2761
      %v2810 = vadd.f32 %v2628, %v2766
      %v2811 = vadd.f32 %v2629, %v2769
      %v2812 = vadd.f32 %v2630, %v2774
      %v2813 = vadd.f32 %v2631, %v2777
      %v2814 = vadd.f32 %v2632, %v2782
      %v2815 = vadd.f32 %v2633, %v2785
      %v2816 = vadd.f32 %v2634, %v2790
      %v2817 = vadd.f32 %v2635, %v2793
      %v2818 = vadd.f32 %v2636, %v2798
      %v2819 = vadd.f32 %v2637, %v2801
      %s2820 = scalar_lea.vmem %s7, 6
      %v2821 = vld [vmem:[%s2820] sm:$0x3]
      %v2823 = vsel %vm940, %v2263, 0
      %v2826 = vsel %vm965, %v2821, 0
      %2828 = vmatprep.subr.bf16.mxu0 0
      %2829 = vmatpush1.bf16.msra.mxu0 %v2826
      %2830 = vmatprep.subr.bf16.mxu0 0
      %2831 = vmatpush1.bf16.msra.mxu0 0
      %2832 = vmatprep.subr.bf16.mxu0 0
      %2833 = vmatpush1.bf16.msra.mxu0 0
      %2834 = vmatprep.subr.bf16.mxu0 0
      %2835 = vmatpush1.bf16.msra.mxu0 0
      %2836 = vmatprep.subr.bf16.mxu0 0
      %2837 = vmatpush1.bf16.msra.mxu0 0
      %2838 = vmatprep.subr.bf16.mxu0 0
      %2839 = vmatpush1.bf16.msra.mxu0 0
      %2840 = vmatprep.subr.bf16.mxu0 0
      %2841 = vmatpush1.bf16.msra.mxu0 0
      %2842 = vmatprep.subr.bf16.mxu0 0
      %2843 = vmatpush1.bf16.msra.mxu0 0
      %2844 = vmatprep.subr.bf16.mxu0 0
      %2845 = vmatpush1.bf16.msra.mxu0 0
      %2846 = vmatprep.subr.bf16.mxu0 0
      %2847 = vmatpush1.bf16.msra.mxu0 0
      %2848 = vmatprep.subr.bf16.mxu0 0
      %2849 = vmatpush1.bf16.msra.mxu0 0
      %2850 = vmatprep.subr.bf16.mxu0 0
      %2851 = vmatpush1.bf16.msra.mxu0 0
      %2852 = vmatprep.subr.bf16.mxu0 0
      %2853 = vmatpush1.bf16.msra.mxu0 0
      %2854 = vmatprep.subr.bf16.mxu0 0
      %2855 = vmatpush1.bf16.msra.mxu0 0
      %2856 = vmatprep.subr.bf16.mxu0 0
      %2857 = vmatpush1.bf16.msra.mxu0 0
      %2858 = vmatprep.subr.bf16.mxu0 0
      %2859 = vmatpush1.bf16.msra.mxu0 0
      %2860 = vmatprep.mubr.bf16.mxu0 0
      %2861 = vmatmul.mubr.bf16.gmra.mrb[0].mxu0 %v2272
      %v2862 = vpop.f32.mrb[0].mxu0
      %v2863 = vadd.f32 0.0, %v2862
      %v2864 = vpop.f32.mrb[0].mxu0
      %v2865 = vpop.f32.mrb[0].mxu0
      %v2866 = vadd.f32 0.0, %v2865
      %v2867 = vpop.f32.mrb[0].mxu0
      %2868 = vmatprep.mubr.bf16.mxu0 0
      %2869 = vmatmul.mubr.bf16.gmra.mrb[0].mxu0 %v2275
      %v2870 = vpop.f32.mrb[0].mxu0
      %v2871 = vadd.f32 0.0, %v2870
      %v2872 = vpop.f32.mrb[0].mxu0
      %v2873 = vpop.f32.mrb[0].mxu0
      %v2874 = vadd.f32 0.0, %v2873
      %v2875 = vpop.f32.mrb[0].mxu0
      %2876 = vmatprep.mubr.bf16.mxu0 0
      %2877 = vmatmul.mubr.bf16.gmra.mrb[0].mxu0 %v2278
      %v2878 = vpop.f32.mrb[0].mxu0
      %v2879 = vadd.f32 0.0, %v2878
      %v2880 = vpop.f32.mrb[0].mxu0
      %v2881 = vpop.f32.mrb[0].mxu0
      %v2882 = vadd.f32 0.0, %v2881
      %v2883 = vpop.f32.mrb[0].mxu0
      %2884 = vmatprep.mubr.bf16.mxu0 0
      %2885 = vmatmul.mubr.bf16.gmra.mrb[0].mxu0 %v2281
      %v2886 = vpop.f32.mrb[0].mxu0
      %v2887 = vadd.f32 0.0, %v2886
      %v2888 = vpop.f32.mrb[0].mxu0
      %v2889 = vpop.f32.mrb[0].mxu0
      %v2890 = vadd.f32 0.0, %v2889
      %v2891 = vpop.f32.mrb[0].mxu0
      %2892 = vmatprep.mubr.bf16.mxu0 0
      %2893 = vmatmul.mubr.bf16.gmra.mrb[0].mxu0 %v2284
      %v2894 = vpop.f32.mrb[0].mxu0
      %v2895 = vadd.f32 0.0, %v2894
      %v2896 = vpop.f32.mrb[0].mxu0
      %v2897 = vpop.f32.mrb[0].mxu0
      %v2898 = vadd.f32 0.0, %v2897
      %v2899 = vpop.f32.mrb[0].mxu0
      %2900 = vmatprep.mubr.bf16.mxu0 0
      %2901 = vmatmul.mubr.bf16.gmra.mrb[0].mxu0 %v2287
      %v2902 = vpop.f32.mrb[0].mxu0
      %v2903 = vadd.f32 0.0, %v2902
      %v2904 = vpop.f32.mrb[0].mxu0
      %v2905 = vpop.f32.mrb[0].mxu0
      %v2906 = vadd.f32 0.0, %v2905
      %v2907 = vpop.f32.mrb[0].mxu0
      %2908 = vmatprep.mubr.bf16.mxu0 0
      %2909 = vmatmul.mubr.bf16.gmra.mrb[0].mxu0 %v2290
      %v2910 = vpop.f32.mrb[0].mxu0
      %v2911 = vadd.f32 0.0, %v2910
      %v2912 = vpop.f32.mrb[0].mxu0
      %v2913 = vpop.f32.mrb[0].mxu0
      %v2914 = vadd.f32 0.0, %v2913
      %v2915 = vpop.f32.mrb[0].mxu0
      %2916 = vmatprep.mubr.bf16.mxu0 0
      %2917 = vmatmul.mubr.bf16.gmra.mrb[0].mxu0 %v2823
      %v2918 = vpop.f32.mrb[0].mxu0
      %v2919 = vadd.f32 0.0, %v2918
      %v2920 = vpop.f32.mrb[0].mxu0
      %v2921 = vpop.f32.mrb[0].mxu0
      %v2922 = vadd.f32 0.0, %v2921
      %v2923 = vpop.f32.mrb[0].mxu0
      %2924 = vdwg.mxu0
      %v2925 = vadd.f32 %v2804, %v2863
      %v2926 = vadd.f32 %v2805, %v2866
      %v2927 = vadd.f32 %v2806, %v2871
      %v2928 = vadd.f32 %v2807, %v2874
      %v2929 = vadd.f32 %v2808, %v2879
      %v2930 = vadd.f32 %v2809, %v2882
      %v2931 = vadd.f32 %v2810, %v2887
      %v2932 = vadd.f32 %v2811, %v2890
      %v2933 = vadd.f32 %v2812, %v2895
      %v2934 = vadd.f32 %v2813, %v2898
      %v2935 = vadd.f32 %v2814, %v2903
      %v2936 = vadd.f32 %v2815, %v2906
      %v2937 = vadd.f32 %v2816, %v2911
      %v2938 = vadd.f32 %v2817, %v2914
      %v2939 = vadd.f32 %v2818, %v2919
      %v2940 = vadd.f32 %v2819, %v2922
      %v2941 = vshrl.u32 %v2263, 16
      %v2943 = vshll.u32 %v2263, 16
      %v2945 = vrot.slane %v2943, 1
      %v2946 = vor.u32 %v2941, %v2945
      %v2948 = vshll.u32 %v2264, 16
      %v2950 = vrot.slane %v2948, 1
      %v2951 = vsel %vm841, %v2946, %v2950
      %s2952 = scalar_lea.vmem %s7, 8
      %v2953 = vld [vmem:[%s2952] sm:$0x3]
      %v2955 = vsel %vm940, %v2951, 0
      %v2958 = vsel %vm965, %v2953, 0
      %2960 = vmatprep.subr.bf16.mxu0 0
      %2961 = vmatpush1.bf16.msra.mxu0 %v2958
      %2962 = vmatprep.subr.bf16.mxu0 0
      %2963 = vmatpush1.bf16.msra.mxu0 0
      %2964 = vmatprep.subr.bf16.mxu0 0
      %2965 = vmatpush1.bf16.msra.mxu0 0
      %2966 = vmatprep.subr.bf16.mxu0 0
      %2967 = vmatpush1.bf16.msra.mxu0 0
      %2968 = vmatprep.subr.bf16.mxu0 0
      %2969 = vmatpush1.bf16.msra.mxu0 0
      %2970 = vmatprep.subr.bf16.mxu0 0
      %2971 = vmatpush1.bf16.msra.mxu0 0
      %2972 = vmatprep.subr.bf16.mxu0 0
      %2973 = vmatpush1.bf16.msra.mxu0 0
      %2974 = vmatprep.subr.bf16.mxu0 0
      %2975 = vmatpush1.bf16.msra.mxu0 0
      %2976 = vmatprep.subr.bf16.mxu0 0
      %2977 = vmatpush1.bf16.msra.mxu0 0
      %2978 = vmatprep.subr.bf16.mxu0 0
      %2979 = vmatpush1.bf16.msra.mxu0 0
      %2980 = vmatprep.subr.bf16.mxu0 0
      %2981 = vmatpush1.bf16.msra.mxu0 0
      %2982 = vmatprep.subr.bf16.mxu0 0
      %2983 = vmatpush1.bf16.msra.mxu0 0
      %2984 = vmatprep.subr.bf16.mxu0 0
      %2985 = vmatpush1.bf16.msra.mxu0 0
      %2986 = vmatprep.subr.bf16.mxu0 0
      %2987 = vmatpush1.bf16.msra.mxu0 0
      %2988 = vmatprep.subr.bf16.mxu0 0
      %2989 = vmatpush1.bf16.msra.mxu0 0
      %2990 = vmatprep.subr.bf16.mxu0 0
      %2991 = vmatpush1.bf16.msra.mxu0 0
      %2992 = vmatprep.mubr.bf16.mxu0 0
      %2993 = vmatmul.mubr.bf16.gmra.mrb[0].mxu0 %v2502
      %v2994 = vpop.f32.mrb[0].mxu0
      %v2995 = vadd.f32 0.0, %v2994
      %v2996 = vpop.f32.mrb[0].mxu0
      %v2997 = vpop.f32.mrb[0].mxu0
      %v2998 = vadd.f32 0.0, %v2997
      %v2999 = vpop.f32.mrb[0].mxu0
      %3000 = vmatprep.mubr.bf16.mxu0 0
      %3001 = vmatmul.mubr.bf16.gmra.mrb[0].mxu0 %v2505
      %v3002 = vpop.f32.mrb[0].mxu0
      %v3003 = vadd.f32 0.0, %v3002
      %v3004 = vpop.f32.mrb[0].mxu0
      %v3005 = vpop.f32.mrb[0].mxu0
      %v3006 = vadd.f32 0.0, %v3005
      %v3007 = vpop.f32.mrb[0].mxu0
      %3008 = vmatprep.mubr.bf16.mxu0 0
      %3009 = vmatmul.mubr.bf16.gmra.mrb[0].mxu0 %v2508
      %v3010 = vpop.f32.mrb[0].mxu0
      %v3011 = vadd.f32 0.0, %v3010
      %v3012 = vpop.f32.mrb[0].mxu0
      %v3013 = vpop.f32.mrb[0].mxu0
      %v3014 = vadd.f32 0.0, %v3013
      %v3015 = vpop.f32.mrb[0].mxu0
      %3016 = vmatprep.mubr.bf16.mxu0 0
      %3017 = vmatmul.mubr.bf16.gmra.mrb[0].mxu0 %v2511
      %v3018 = vpop.f32.mrb[0].mxu0
      %v3019 = vadd.f32 0.0, %v3018
      %v3020 = vpop.f32.mrb[0].mxu0
      %v3021 = vpop.f32.mrb[0].mxu0
      %v3022 = vadd.f32 0.0, %v3021
      %v3023 = vpop.f32.mrb[0].mxu0
      %3024 = vmatprep.mubr.bf16.mxu0 0
      %3025 = vmatmul.mubr.bf16.gmra.mrb[0].mxu0 %v2514
      %v3026 = vpop.f32.mrb[0].mxu0
      %v3027 = vadd.f32 0.0, %v3026
      %v3028 = vpop.f32.mrb[0].mxu0
      %v3029 = vpop.f32.mrb[0].mxu0
      %v3030 = vadd.f32 0.0, %v3029
      %v3031 = vpop.f32.mrb[0].mxu0
      %3032 = vmatprep.mubr.bf16.mxu0 0
      %3033 = vmatmul.mubr.bf16.gmra.mrb[0].mxu0 %v2517
      %v3034 = vpop.f32.mrb[0].mxu0
      %v3035 = vadd.f32 0.0, %v3034
      %v3036 = vpop.f32.mrb[0].mxu0
      %v3037 = vpop.f32.mrb[0].mxu0
      %v3038 = vadd.f32 0.0, %v3037
      %v3039 = vpop.f32.mrb[0].mxu0
      %3040 = vmatprep.mubr.bf16.mxu0 0
      %3041 = vmatmul.mubr.bf16.gmra.mrb[0].mxu0 %v2520
      %v3042 = vpop.f32.mrb[0].mxu0
      %v3043 = vadd.f32 0.0, %v3042
      %v3044 = vpop.f32.mrb[0].mxu0
      %v3045 = vpop.f32.mrb[0].mxu0
      %v3046 = vadd.f32 0.0, %v3045
      %v3047 = vpop.f32.mrb[0].mxu0
      %3048 = vmatprep.mubr.bf16.mxu0 0
      %3049 = vmatmul.mubr.bf16.gmra.mrb[0].mxu0 %v2955
      %v3050 = vpop.f32.mrb[0].mxu0
      %v3051 = vadd.f32 0.0, %v3050
      %v3052 = vpop.f32.mrb[0].mxu0
      %v3053 = vpop.f32.mrb[0].mxu0
      %v3054 = vadd.f32 0.0, %v3053
      %v3055 = vpop.f32.mrb[0].mxu0
      %3056 = vdwg.mxu0
      %v3057 = vadd.f32 %v2925, %v2995
      %v3058 = vadd.f32 %v2926, %v2998
      %v3059 = vadd.f32 %v2927, %v3003
      %v3060 = vadd.f32 %v2928, %v3006
      %v3061 = vadd.f32 %v2929, %v3011
      %v3062 = vadd.f32 %v2930, %v3014
      %v3063 = vadd.f32 %v2931, %v3019
      %v3064 = vadd.f32 %v2932, %v3022
      %v3065 = vadd.f32 %v2933, %v3027
      %v3066 = vadd.f32 %v2934, %v3030
      %v3067 = vadd.f32 %v2935, %v3035
      %v3068 = vadd.f32 %v2936, %v3038
      %v3069 = vadd.f32 %v2937, %v3043
      %v3070 = vadd.f32 %v2938, %v3046
      %v3071 = vadd.f32 %v2939, %v3051
      %v3072 = vadd.f32 %v2940, %v3054
      %v3075 = vrot.slane %v2263, 1
      %v3076 = vrot.slane %v2264, 1
      %v3077 = vsel %vm1198, %v3075, %v3076
      %s3078 = scalar_lea.vmem %s7, 10
      %v3079 = vld [vmem:[%s3078] sm:$0x3]
      %v3081 = vsel %vm940, %v3077, 0
      %v3084 = vsel %vm965, %v3079, 0
      %3086 = vmatprep.subr.bf16.mxu0 0
      %3087 = vmatpush1.bf16.msra.mxu0 %v3084
      %3088 = vmatprep.subr.bf16.mxu0 0
      %3089 = vmatpush1.bf16.msra.mxu0 0
      %3090 = vmatprep.subr.bf16.mxu0 0
      %3091 = vmatpush1.bf16.msra.mxu0 0
      %3092 = vmatprep.subr.bf16.mxu0 0
      %3093 = vmatpush1.bf16.msra.mxu0 0
      %3094 = vmatprep.subr.bf16.mxu0 0
      %3095 = vmatpush1.bf16.msra.mxu0 0
      %3096 = vmatprep.subr.bf16.mxu0 0
      %3097 = vmatpush1.bf16.msra.mxu0 0
      %3098 = vmatprep.subr.bf16.mxu0 0
      %3099 = vmatpush1.bf16.msra.mxu0 0
      %3100 = vmatprep.subr.bf16.mxu0 0
      %3101 = vmatpush1.bf16.msra.mxu0 0
      %3102 = vmatprep.subr.bf16.mxu0 0
      %3103 = vmatpush1.bf16.msra.mxu0 0
      %3104 = vmatprep.subr.bf16.mxu0 0
      %3105 = vmatpush1.bf16.msra.mxu0 0
      %3106 = vmatprep.subr.bf16.mxu0 0
      %3107 = vmatpush1.bf16.msra.mxu0 0
      %3108 = vmatprep.subr.bf16.mxu0 0
      %3109 = vmatpush1.bf16.msra.mxu0 0
      %3110 = vmatprep.subr.bf16.mxu0 0
      %3111 = vmatpush1.bf16.msra.mxu0 0
      %3112 = vmatprep.subr.bf16.mxu0 0
      %3113 = vmatpush1.bf16.msra.mxu0 0
      %3114 = vmatprep.subr.bf16.mxu0 0
      %3115 = vmatpush1.bf16.msra.mxu0 0
      %3116 = vmatprep.subr.bf16.mxu0 0
      %3117 = vmatpush1.bf16.msra.mxu0 0
      %3118 = vmatprep.mubr.bf16.mxu0 0
      %3119 = vmatmul.mubr.bf16.gmra.mrb[0].mxu0 %v2684
      %v3120 = vpop.f32.mrb[0].mxu0
      %v3121 = vadd.f32 0.0, %v3120
      %v3122 = vpop.f32.mrb[0].mxu0
      %v3123 = vpop.f32.mrb[0].mxu0
      %v3124 = vadd.f32 0.0, %v3123
      %v3125 = vpop.f32.mrb[0].mxu0
      %3126 = vmatprep.mubr.bf16.mxu0 0
      %3127 = vmatmul.mubr.bf16.gmra.mrb[0].mxu0 %v2687
      %v3128 = vpop.f32.mrb[0].mxu0
      %v3129 = vadd.f32 0.0, %v3128
      %v3130 = vpop.f32.mrb[0].mxu0
      %v3131 = vpop.f32.mrb[0].mxu0
      %v3132 = vadd.f32 0.0, %v3131
      %v3133 = vpop.f32.mrb[0].mxu0
      %3134 = vmatprep.mubr.bf16.mxu0 0
      %3135 = vmatmul.mubr.bf16.gmra.mrb[0].mxu0 %v2690
      %v3136 = vpop.f32.mrb[0].mxu0
      %v3137 = vadd.f32 0.0, %v3136
      %v3138 = vpop.f32.mrb[0].mxu0
      %v3139 = vpop.f32.mrb[0].mxu0
      %v3140 = vadd.f32 0.0, %v3139
      %v3141 = vpop.f32.mrb[0].mxu0
      %3142 = vmatprep.mubr.bf16.mxu0 0
      %3143 = vmatmul.mubr.bf16.gmra.mrb[0].mxu0 %v2693
      %v3144 = vpop.f32.mrb[0].mxu0
      %v3145 = vadd.f32 0.0, %v3144
      %v3146 = vpop.f32.mrb[0].mxu0
      %v3147 = vpop.f32.mrb[0].mxu0
      %v3148 = vadd.f32 0.0, %v3147
      %v3149 = vpop.f32.mrb[0].mxu0
      %3150 = vmatprep.mubr.bf16.mxu0 0
      %3151 = vmatmul.mubr.bf16.gmra.mrb[0].mxu0 %v2696
      %v3152 = vpop.f32.mrb[0].mxu0
      %v3153 = vadd.f32 0.0, %v3152
      %v3154 = vpop.f32.mrb[0].mxu0
      %v3155 = vpop.f32.mrb[0].mxu0
      %v3156 = vadd.f32 0.0, %v3155
      %v3157 = vpop.f32.mrb[0].mxu0
      %3158 = vmatprep.mubr.bf16.mxu0 0
      %3159 = vmatmul.mubr.bf16.gmra.mrb[0].mxu0 %v2699
      %v3160 = vpop.f32.mrb[0].mxu0
      %v3161 = vadd.f32 0.0, %v3160
      %v3162 = vpop.f32.mrb[0].mxu0
      %v3163 = vpop.f32.mrb[0].mxu0
      %v3164 = vadd.f32 0.0, %v3163
      %v3165 = vpop.f32.mrb[0].mxu0
      %3166 = vmatprep.mubr.bf16.mxu0 0
      %3167 = vmatmul.mubr.bf16.gmra.mrb[0].mxu0 %v2702
      %v3168 = vpop.f32.mrb[0].mxu0
      %v3169 = vadd.f32 0.0, %v3168
      %v3170 = vpop.f32.mrb[0].mxu0
      %v3171 = vpop.f32.mrb[0].mxu0
      %v3172 = vadd.f32 0.0, %v3171
      %v3173 = vpop.f32.mrb[0].mxu0
      %3174 = vmatprep.mubr.bf16.mxu0 0
      %3175 = vmatmul.mubr.bf16.gmra.mrb[0].mxu0 %v3081
      %v3176 = vpop.f32.mrb[0].mxu0
      %v3177 = vadd.f32 0.0, %v3176
      %v3178 = vpop.f32.mrb[0].mxu0
      %v3179 = vpop.f32.mrb[0].mxu0
      %v3180 = vadd.f32 0.0, %v3179
      %v3181 = vpop.f32.mrb[0].mxu0
      %3182 = vdwg.mxu0
      %v3183 = vadd.f32 %v3057, %v3121
      %v3184 = vadd.f32 %v3058, %v3124
      %v3185 = vadd.f32 %v3059, %v3129
      %v3186 = vadd.f32 %v3060, %v3132
      %v3187 = vadd.f32 %v3061, %v3137
      %v3188 = vadd.f32 %v3062, %v3140
      %v3189 = vadd.f32 %v3063, %v3145
      %v3190 = vadd.f32 %v3064, %v3148
      %v3191 = vadd.f32 %v3065, %v3153
      %v3192 = vadd.f32 %v3066, %v3156
      %v3193 = vadd.f32 %v3067, %v3161
      %v3194 = vadd.f32 %v3068, %v3164
      %v3195 = vadd.f32 %v3069, %v3169
      %v3196 = vadd.f32 %v3070, %v3172
      %v3197 = vadd.f32 %v3071, %v3177
      %v3198 = vadd.f32 %v3072, %v3180
      %s3199 = scalar_lea.vmem %s7, 12
      %v3200 = vld [vmem:[%s3199] sm:$0x3]
      %v3202 = vsel %vm940, %v2265, 0
      %v3205 = vsel %vm965, %v3200, 0
      %3207 = vmatprep.subr.bf16.mxu0 0
      %3208 = vmatpush1.bf16.msra.mxu0 %v3205
      %3209 = vmatprep.subr.bf16.mxu0 0
      %3210 = vmatpush1.bf16.msra.mxu0 0
      %3211 = vmatprep.subr.bf16.mxu0 0
      %3212 = vmatpush1.bf16.msra.mxu0 0
      %3213 = vmatprep.subr.bf16.mxu0 0
      %3214 = vmatpush1.bf16.msra.mxu0 0
      %3215 = vmatprep.subr.bf16.mxu0 0
      %3216 = vmatpush1.bf16.msra.mxu0 0
      %3217 = vmatprep.subr.bf16.mxu0 0
      %3218 = vmatpush1.bf16.msra.mxu0 0
      %3219 = vmatprep.subr.bf16.mxu0 0
      %3220 = vmatpush1.bf16.msra.mxu0 0
      %3221 = vmatprep.subr.bf16.mxu0 0
      %3222 = vmatpush1.bf16.msra.mxu0 0
      %3223 = vmatprep.subr.bf16.mxu0 0
      %3224 = vmatpush1.bf16.msra.mxu0 0
      %3225 = vmatprep.subr.bf16.mxu0 0
      %3226 = vmatpush1.bf16.msra.mxu0 0
      %3227 = vmatprep.subr.bf16.mxu0 0
      %3228 = vmatpush1.bf16.msra.mxu0 0
      %3229 = vmatprep.subr.bf16.mxu0 0
      %3230 = vmatpush1.bf16.msra.mxu0 0
      %3231 = vmatprep.subr.bf16.mxu0 0
      %3232 = vmatpush1.bf16.msra.mxu0 0
      %3233 = vmatprep.subr.bf16.mxu0 0
      %3234 = vmatpush1.bf16.msra.mxu0 0
      %3235 = vmatprep.subr.bf16.mxu0 0
      %3236 = vmatpush1.bf16.msra.mxu0 0
      %3237 = vmatprep.subr.bf16.mxu0 0
      %3238 = vmatpush1.bf16.msra.mxu0 0
      %3239 = vmatprep.mubr.bf16.mxu0 0
      %3240 = vmatmul.mubr.bf16.gmra.mrb[0].mxu0 %v2275
      %v3241 = vpop.f32.mrb[0].mxu0
      %v3242 = vadd.f32 0.0, %v3241
      %v3243 = vpop.f32.mrb[0].mxu0
      %v3244 = vpop.f32.mrb[0].mxu0
      %v3245 = vadd.f32 0.0, %v3244
      %v3246 = vpop.f32.mrb[0].mxu0
      %3247 = vmatprep.mubr.bf16.mxu0 0
      %3248 = vmatmul.mubr.bf16.gmra.mrb[0].mxu0 %v2278
      %v3249 = vpop.f32.mrb[0].mxu0
      %v3250 = vadd.f32 0.0, %v3249
      %v3251 = vpop.f32.mrb[0].mxu0
      %v3252 = vpop.f32.mrb[0].mxu0
      %v3253 = vadd.f32 0.0, %v3252
      %v3254 = vpop.f32.mrb[0].mxu0
      %3255 = vmatprep.mubr.bf16.mxu0 0
      %3256 = vmatmul.mubr.bf16.gmra.mrb[0].mxu0 %v2281
      %v3257 = vpop.f32.mrb[0].mxu0
      %v3258 = vadd.f32 0.0, %v3257
      %v3259 = vpop.f32.mrb[0].mxu0
      %v3260 = vpop.f32.mrb[0].mxu0
      %v3261 = vadd.f32 0.0, %v3260
      %v3262 = vpop.f32.mrb[0].mxu0
      %3263 = vmatprep.mubr.bf16.mxu0 0
      %3264 = vmatmul.mubr.bf16.gmra.mrb[0].mxu0 %v2284
      %v3265 = vpop.f32.mrb[0].mxu0
      %v3266 = vadd.f32 0.0, %v3265
      %v3267 = vpop.f32.mrb[0].mxu0
      %v3268 = vpop.f32.mrb[0].mxu0
      %v3269 = vadd.f32 0.0, %v3268
      %v3270 = vpop.f32.mrb[0].mxu0
      %3271 = vmatprep.mubr.bf16.mxu0 0
      %3272 = vmatmul.mubr.bf16.gmra.mrb[0].mxu0 %v2287
      %v3273 = vpop.f32.mrb[0].mxu0
      %v3274 = vadd.f32 0.0, %v3273
      %v3275 = vpop.f32.mrb[0].mxu0
      %v3276 = vpop.f32.mrb[0].mxu0
      %v3277 = vadd.f32 0.0, %v3276
      %v3278 = vpop.f32.mrb[0].mxu0
      %3279 = vmatprep.mubr.bf16.mxu0 0
      %3280 = vmatmul.mubr.bf16.gmra.mrb[0].mxu0 %v2290
      %v3281 = vpop.f32.mrb[0].mxu0
      %v3282 = vadd.f32 0.0, %v3281
      %v3283 = vpop.f32.mrb[0].mxu0
      %v3284 = vpop.f32.mrb[0].mxu0
      %v3285 = vadd.f32 0.0, %v3284
      %v3286 = vpop.f32.mrb[0].mxu0
      %3287 = vmatprep.mubr.bf16.mxu0 0
      %3288 = vmatmul.mubr.bf16.gmra.mrb[0].mxu0 %v2823
      %v3289 = vpop.f32.mrb[0].mxu0
      %v3290 = vadd.f32 0.0, %v3289
      %v3291 = vpop.f32.mrb[0].mxu0
      %v3292 = vpop.f32.mrb[0].mxu0
      %v3293 = vadd.f32 0.0, %v3292
      %v3294 = vpop.f32.mrb[0].mxu0
      %3295 = vmatprep.mubr.bf16.mxu0 0
      %3296 = vmatmul.mubr.bf16.gmra.mrb[0].mxu0 %v3202
      %v3297 = vpop.f32.mrb[0].mxu0
      %v3298 = vadd.f32 0.0, %v3297
      %v3299 = vpop.f32.mrb[0].mxu0
      %v3300 = vpop.f32.mrb[0].mxu0
      %v3301 = vadd.f32 0.0, %v3300
      %v3302 = vpop.f32.mrb[0].mxu0
      %3303 = vdwg.mxu0
      %v3304 = vadd.f32 %v3183, %v3242
      %v3305 = vadd.f32 %v3184, %v3245
      %v3306 = vadd.f32 %v3185, %v3250
      %v3307 = vadd.f32 %v3186, %v3253
      %v3308 = vadd.f32 %v3187, %v3258
      %v3309 = vadd.f32 %v3188, %v3261
      %v3310 = vadd.f32 %v3189, %v3266
      %v3311 = vadd.f32 %v3190, %v3269
      %v3312 = vadd.f32 %v3191, %v3274
      %v3313 = vadd.f32 %v3192, %v3277
      %v3314 = vadd.f32 %v3193, %v3282
      %v3315 = vadd.f32 %v3194, %v3285
      %v3316 = vadd.f32 %v3195, %v3290
      %v3317 = vadd.f32 %v3196, %v3293
      %v3318 = vadd.f32 %v3197, %v3298
      %v3319 = vadd.f32 %v3198, %v3301
      %v3320 = vshrl.u32 %v2265, 16
      %v3322 = vshll.u32 %v2265, 16
      %v3324 = vrot.slane %v3322, 1
      %v3325 = vor.u32 %v3320, %v3324
      %v3327 = vshll.u32 %v2266, 16
      %v3329 = vrot.slane %v3327, 1
      %v3330 = vsel %vm841, %v3325, %v3329
      %s3331 = scalar_lea.vmem %s7, 14
      %v3332 = vld [vmem:[%s3331] sm:$0x3]
      %v3334 = vsel %vm940, %v3330, 0
      %v3337 = vsel %vm965, %v3332, 0
      %3339 = vmatprep.subr.bf16.mxu0 0
      %3340 = vmatpush1.bf16.msra.mxu0 %v3337
      %3341 = vmatprep.subr.bf16.mxu0 0
      %3342 = vmatpush1.bf16.msra.mxu0 0
      %3343 = vmatprep.subr.bf16.mxu0 0
      %3344 = vmatpush1.bf16.msra.mxu0 0
      %3345 = vmatprep.subr.bf16.mxu0 0
      %3346 = vmatpush1.bf16.msra.mxu0 0
      %3347 = vmatprep.subr.bf16.mxu0 0
      %3348 = vmatpush1.bf16.msra.mxu0 0
      %3349 = vmatprep.subr.bf16.mxu0 0
      %3350 = vmatpush1.bf16.msra.mxu0 0
      %3351 = vmatprep.subr.bf16.mxu0 0
      %3352 = vmatpush1.bf16.msra.mxu0 0
      %3353 = vmatprep.subr.bf16.mxu0 0
      %3354 = vmatpush1.bf16.msra.mxu0 0
      %3355 = vmatprep.subr.bf16.mxu0 0
      %3356 = vmatpush1.bf16.msra.mxu0 0
      %3357 = vmatprep.subr.bf16.mxu0 0
      %3358 = vmatpush1.bf16.msra.mxu0 0
      %3359 = vmatprep.subr.bf16.mxu0 0
      %3360 = vmatpush1.bf16.msra.mxu0 0
      %3361 = vmatprep.subr.bf16.mxu0 0
      %3362 = vmatpush1.bf16.msra.mxu0 0
      %3363 = vmatprep.subr.bf16.mxu0 0
      %3364 = vmatpush1.bf16.msra.mxu0 0
      %3365 = vmatprep.subr.bf16.mxu0 0
      %3366 = vmatpush1.bf16.msra.mxu0 0
      %3367 = vmatprep.subr.bf16.mxu0 0
      %3368 = vmatpush1.bf16.msra.mxu0 0
      %3369 = vmatprep.subr.bf16.mxu0 0
      %3370 = vmatpush1.bf16.msra.mxu0 0
      %3371 = vmatprep.mubr.bf16.mxu0 0
      %3372 = vmatmul.mubr.bf16.gmra.mrb[0].mxu0 %v2505
      %v3373 = vpop.f32.mrb[0].mxu0
      %v3374 = vadd.f32 0.0, %v3373
      %v3375 = vpop.f32.mrb[0].mxu0
      %v3376 = vpop.f32.mrb[0].mxu0
      %v3377 = vadd.f32 0.0, %v3376
      %v3378 = vpop.f32.mrb[0].mxu0
      %3379 = vmatprep.mubr.bf16.mxu0 0
      %3380 = vmatmul.mubr.bf16.gmra.mrb[0].mxu0 %v2508
      %v3381 = vpop.f32.mrb[0].mxu0
      %v3382 = vadd.f32 0.0, %v3381
      %v3383 = vpop.f32.mrb[0].mxu0
      %v3384 = vpop.f32.mrb[0].mxu0
      %v3385 = vadd.f32 0.0, %v3384
      %v3386 = vpop.f32.mrb[0].mxu0
      %3387 = vmatprep.mubr.bf16.mxu0 0
      %3388 = vmatmul.mubr.bf16.gmra.mrb[0].mxu0 %v2511
      %v3389 = vpop.f32.mrb[0].mxu0
      %v3390 = vadd.f32 0.0, %v3389
      %v3391 = vpop.f32.mrb[0].mxu0
      %v3392 = vpop.f32.mrb[0].mxu0
      %v3393 = vadd.f32 0.0, %v3392
      %v3394 = vpop.f32.mrb[0].mxu0
      %3395 = vmatprep.mubr.bf16.mxu0 0
      %3396 = vmatmul.mubr.bf16.gmra.mrb[0].mxu0 %v2514
      %v3397 = vpop.f32.mrb[0].mxu0
      %v3398 = vadd.f32 0.0, %v3397
      %v3399 = vpop.f32.mrb[0].mxu0
      %v3400 = vpop.f32.mrb[0].mxu0
      %v3401 = vadd.f32 0.0, %v3400
      %v3402 = vpop.f32.mrb[0].mxu0
      %3403 = vmatprep.mubr.bf16.mxu0 0
      %3404 = vmatmul.mubr.bf16.gmra.mrb[0].mxu0 %v2517
      %v3405 = vpop.f32.mrb[0].mxu0
      %v3406 = vadd.f32 0.0, %v3405
      %v3407 = vpop.f32.mrb[0].mxu0
      %v3408 = vpop.f32.mrb[0].mxu0
      %v3409 = vadd.f32 0.0, %v3408
      %v3410 = vpop.f32.mrb[0].mxu0
      %3411 = vmatprep.mubr.bf16.mxu0 0
      %3412 = vmatmul.mubr.bf16.gmra.mrb[0].mxu0 %v2520
      %v3413 = vpop.f32.mrb[0].mxu0
      %v3414 = vadd.f32 0.0, %v3413
      %v3415 = vpop.f32.mrb[0].mxu0
      %v3416 = vpop.f32.mrb[0].mxu0
      %v3417 = vadd.f32 0.0, %v3416
      %v3418 = vpop.f32.mrb[0].mxu0
      %3419 = vmatprep.mubr.bf16.mxu0 0
      %3420 = vmatmul.mubr.bf16.gmra.mrb[0].mxu0 %v2955
      %v3421 = vpop.f32.mrb[0].mxu0
      %v3422 = vadd.f32 0.0, %v3421
      %v3423 = vpop.f32.mrb[0].mxu0
      %v3424 = vpop.f32.mrb[0].mxu0
      %v3425 = vadd.f32 0.0, %v3424
      %v3426 = vpop.f32.mrb[0].mxu0
      %3427 = vmatprep.mubr.bf16.mxu0 0
      %3428 = vmatmul.mubr.bf16.gmra.mrb[0].mxu0 %v3334
      %v3429 = vpop.f32.mrb[0].mxu0
      %v3430 = vadd.f32 0.0, %v3429
      %v3431 = vpop.f32.mrb[0].mxu0
      %v3432 = vpop.f32.mrb[0].mxu0
      %v3433 = vadd.f32 0.0, %v3432
      %v3434 = vpop.f32.mrb[0].mxu0
      %3435 = vdwg.mxu0
      %v3436 = vadd.f32 %v3304, %v3374
      %v3437 = vadd.f32 %v3305, %v3377
      %v3438 = vadd.f32 %v3306, %v3382
      %v3439 = vadd.f32 %v3307, %v3385
      %v3440 = vadd.f32 %v3308, %v3390
      %v3441 = vadd.f32 %v3309, %v3393
      %v3442 = vadd.f32 %v3310, %v3398
      %v3443 = vadd.f32 %v3311, %v3401
      %v3444 = vadd.f32 %v3312, %v3406
      %v3445 = vadd.f32 %v3313, %v3409
      %v3446 = vadd.f32 %v3314, %v3414
      %v3447 = vadd.f32 %v3315, %v3417
      %v3448 = vadd.f32 %v3316, %v3422
      %v3449 = vadd.f32 %v3317, %v3425
      %v3450 = vadd.f32 %v3318, %v3430
      %v3451 = vadd.f32 %v3319, %v3433
      %v3454 = vrot.slane %v2265, 1
      %v3455 = vrot.slane %v2266, 1
      %v3456 = vsel %vm1198, %v3454, %v3455
      %s3457 = scalar_lea.vmem %s7, 16
      %v3458 = vld [vmem:[%s3457] sm:$0x3]
      %v3460 = vsel %vm940, %v3456, 0
      %v3463 = vsel %vm965, %v3458, 0
      %3465 = vmatprep.subr.bf16.mxu0 0
      %3466 = vmatpush1.bf16.msra.mxu0 %v3463
      %3467 = vmatprep.subr.bf16.mxu0 0
      %3468 = vmatpush1.bf16.msra.mxu0 0
      %3469 = vmatprep.subr.bf16.mxu0 0
      %3470 = vmatpush1.bf16.msra.mxu0 0
      %3471 = vmatprep.subr.bf16.mxu0 0
      %3472 = vmatpush1.bf16.msra.mxu0 0
      %3473 = vmatprep.subr.bf16.mxu0 0
      %3474 = vmatpush1.bf16.msra.mxu0 0
      %3475 = vmatprep.subr.bf16.mxu0 0
      %3476 = vmatpush1.bf16.msra.mxu0 0
      %3477 = vmatprep.subr.bf16.mxu0 0
      %3478 = vmatpush1.bf16.msra.mxu0 0
      %3479 = vmatprep.subr.bf16.mxu0 0
      %3480 = vmatpush1.bf16.msra.mxu0 0
      %3481 = vmatprep.subr.bf16.mxu0 0
      %3482 = vmatpush1.bf16.msra.mxu0 0
      %3483 = vmatprep.subr.bf16.mxu0 0
      %3484 = vmatpush1.bf16.msra.mxu0 0
      %3485 = vmatprep.subr.bf16.mxu0 0
      %3486 = vmatpush1.bf16.msra.mxu0 0
      %3487 = vmatprep.subr.bf16.mxu0 0
      %3488 = vmatpush1.bf16.msra.mxu0 0
      %3489 = vmatprep.subr.bf16.mxu0 0
      %3490 = vmatpush1.bf16.msra.mxu0 0
      %3491 = vmatprep.subr.bf16.mxu0 0
      %3492 = vmatpush1.bf16.msra.mxu0 0
      %3493 = vmatprep.subr.bf16.mxu0 0
      %3494 = vmatpush1.bf16.msra.mxu0 0
      %3495 = vmatprep.subr.bf16.mxu0 0
      %3496 = vmatpush1.bf16.msra.mxu0 0
      %3497 = vmatprep.mubr.bf16.mxu0 0
      %3498 = vmatmul.mubr.bf16.gmra.mrb[0].mxu0 %v2687
      %v3499 = vpop.f32.mrb[0].mxu0
      %v3500 = vadd.f32 0.0, %v3499
      %v3501 = vpop.f32.mrb[0].mxu0
      %v3502 = vpop.f32.mrb[0].mxu0
      %v3503 = vadd.f32 0.0, %v3502
      %v3504 = vpop.f32.mrb[0].mxu0
      %3505 = vmatprep.mubr.bf16.mxu0 0
      %3506 = vmatmul.mubr.bf16.gmra.mrb[0].mxu0 %v2690
      %v3507 = vpop.f32.mrb[0].mxu0
      %v3508 = vadd.f32 0.0, %v3507
      %v3509 = vpop.f32.mrb[0].mxu0
      %v3510 = vpop.f32.mrb[0].mxu0
      %v3511 = vadd.f32 0.0, %v3510
      %v3512 = vpop.f32.mrb[0].mxu0
      %3513 = vmatprep.mubr.bf16.mxu0 0
      %3514 = vmatmul.mubr.bf16.gmra.mrb[0].mxu0 %v2693
      %v3515 = vpop.f32.mrb[0].mxu0
      %v3516 = vadd.f32 0.0, %v3515
      %v3517 = vpop.f32.mrb[0].mxu0
      %v3518 = vpop.f32.mrb[0].mxu0
      %v3519 = vadd.f32 0.0, %v3518
      %v3520 = vpop.f32.mrb[0].mxu0
      %3521 = vmatprep.mubr.bf16.mxu0 0
      %3522 = vmatmul.mubr.bf16.gmra.mrb[0].mxu0 %v2696
      %v3523 = vpop.f32.mrb[0].mxu0
      %v3524 = vadd.f32 0.0, %v3523
      %v3525 = vpop.f32.mrb[0].mxu0
      %v3526 = vpop.f32.mrb[0].mxu0
      %v3527 = vadd.f32 0.0, %v3526
      %v3528 = vpop.f32.mrb[0].mxu0
      %3529 = vmatprep.mubr.bf16.mxu0 0
      %3530 = vmatmul.mubr.bf16.gmra.mrb[0].mxu0 %v2699
      %v3531 = vpop.f32.mrb[0].mxu0
      %v3532 = vadd.f32 0.0, %v3531
      %v3533 = vpop.f32.mrb[0].mxu0
      %v3534 = vpop.f32.mrb[0].mxu0
      %v3535 = vadd.f32 0.0, %v3534
      %v3536 = vpop.f32.mrb[0].mxu0
      %3537 = vmatprep.mubr.bf16.mxu0 0
      %3538 = vmatmul.mubr.bf16.gmra.mrb[0].mxu0 %v2702
      %v3539 = vpop.f32.mrb[0].mxu0
      %v3540 = vadd.f32 0.0, %v3539
      %v3541 = vpop.f32.mrb[0].mxu0
      %v3542 = vpop.f32.mrb[0].mxu0
      %v3543 = vadd.f32 0.0, %v3542
      %v3544 = vpop.f32.mrb[0].mxu0
      %3545 = vmatprep.mubr.bf16.mxu0 0
      %3546 = vmatmul.mubr.bf16.gmra.mrb[0].mxu0 %v3081
      %v3547 = vpop.f32.mrb[0].mxu0
      %v3548 = vadd.f32 0.0, %v3547
      %v3549 = vpop.f32.mrb[0].mxu0
      %v3550 = vpop.f32.mrb[0].mxu0
      %v3551 = vadd.f32 0.0, %v3550
      %v3552 = vpop.f32.mrb[0].mxu0
      %3553 = vmatprep.mubr.bf16.mxu0 0
      %3554 = vmatmul.mubr.bf16.gmra.mrb[0].mxu0 %v3460
      %v3555 = vpop.f32.mrb[0].mxu0
      %v3556 = vadd.f32 0.0, %v3555
      %v3557 = vpop.f32.mrb[0].mxu0
      %v3558 = vpop.f32.mrb[0].mxu0
      %v3559 = vadd.f32 0.0, %v3558
      %v3560 = vpop.f32.mrb[0].mxu0
      %3561 = vdwg.mxu0
      %v3562 = vadd.f32 %v3436, %v3500
      %v3563 = vadd.f32 %v3437, %v3503
      %v3564 = vadd.f32 %v3438, %v3508
      %v3565 = vadd.f32 %v3439, %v3511
      %v3566 = vadd.f32 %v3440, %v3516
      %v3567 = vadd.f32 %v3441, %v3519
      %v3568 = vadd.f32 %v3442, %v3524
      %v3569 = vadd.f32 %v3443, %v3527
      %v3570 = vadd.f32 %v3444, %v3532
      %v3571 = vadd.f32 %v3445, %v3535
      %v3572 = vadd.f32 %v3446, %v3540
      %v3573 = vadd.f32 %v3447, %v3543
      %v3574 = vadd.f32 %v3448, %v3548
      %v3575 = vadd.f32 %v3449, %v3551
      %v3576 = vadd.f32 %v3450, %v3556
      %v3577 = vadd.f32 %v3451, %v3559
      %3578 = vst.msk [vmem:[%s675] sm:$0xff] %vm940, %v3562
      %3579 = vst.msk [vmem:[%s675 + $0x8] sm:$0xff] %vm940, %v3563
      %3580 = vst.msk [vmem:[%s675 + $0x10] sm:$0xff] %vm940, %v3564
      %3581 = vst.msk [vmem:[%s675 + $0x18] sm:$0xff] %vm940, %v3565
      %3582 = vst.msk [vmem:[%s675 + $0x20] sm:$0xff] %vm940, %v3566
      %3583 = vst.msk [vmem:[%s675 + $0x28] sm:$0xff] %vm940, %v3567
      %3584 = vst.msk [vmem:[%s675 + $0x30] sm:$0xff] %vm940, %v3568
      %3585 = vst.msk [vmem:[%s675 + $0x38] sm:$0xff] %vm940, %v3569
      %3586 = vst.msk [vmem:[%s675 + $0x40] sm:$0xff] %vm940, %v3570
      %3587 = vst.msk [vmem:[%s675 + $0x48] sm:$0xff] %vm940, %v3571
      %3588 = vst.msk [vmem:[%s675 + $0x50] sm:$0xff] %vm940, %v3572
      %3589 = vst.msk [vmem:[%s675 + $0x58] sm:$0xff] %vm940, %v3573
      %3590 = vst.msk [vmem:[%s675 + $0x60] sm:$0xff] %vm940, %v3574
      %3591 = vst.msk [vmem:[%s675 + $0x68] sm:$0xff] %vm940, %v3575
      %3592 = vst.msk [vmem:[%s675 + $0x70] sm:$0xff] %vm940, %v3576
      %3593 = vst.msk [vmem:[%s675 + $0x78] sm:$0xff] %vm940, %v3577
      %v3594 = vsel %vm940, %v3562, 0.0
      %v3595 = vsel %vm940, %v3563, 0.0
      %v3596 = vadd.f32 %v3594, %v3595
      %v3597 = vsel %vm940, %v3564, 0.0
      %v3598 = vadd.f32 %v3596, %v3597
      %v3599 = vsel %vm940, %v3565, 0.0
      %v3600 = vadd.f32 %v3598, %v3599
      %v3601 = vsel %vm940, %v3566, 0.0
      %v3602 = vadd.f32 %v3600, %v3601
      %v3603 = vsel %vm940, %v3567, 0.0
      %v3604 = vadd.f32 %v3602, %v3603
      %v3605 = vsel %vm940, %v3568, 0.0
      %v3606 = vadd.f32 %v3604, %v3605
      %v3607 = vsel %vm940, %v3569, 0.0
      %v3608 = vadd.f32 %v3606, %v3607
      %v3609 = vsel %vm940, %v3570, 0.0
      %v3610 = vadd.f32 %v3608, %v3609
      %v3611 = vsel %vm940, %v3571, 0.0
      %v3612 = vadd.f32 %v3610, %v3611
      %v3613 = vsel %vm940, %v3572, 0.0
      %v3614 = vadd.f32 %v3612, %v3613
      %v3615 = vsel %vm940, %v3573, 0.0
      %v3616 = vadd.f32 %v3614, %v3615
      %v3617 = vsel %vm940, %v3574, 0.0
      %v3618 = vadd.f32 %v3616, %v3617
      %v3619 = vsel %vm940, %v3575, 0.0
      %v3620 = vadd.f32 %v3618, %v3619
      %v3621 = vsel %vm940, %v3576, 0.0
      %v3622 = vadd.f32 %v3620, %v3621
      %v3623 = vsel %vm940, %v3577, 0.0
      %v3624 = vadd.f32 %v3622, %v3623
      %v3625 = vrot.slane %v3624, 4
      %v3626 = vadd.f32 %v3624, %v3625
      %v3627 = vrot.slane %v3626, 2
      %v3628 = vadd.f32 %v3626, %v3627
      %v3629 = vrot.slane %v3628, 1
      %v3630 = vadd.f32 %v3628, %v3629
      %v3631 = vmul.f32 %v3562, %v3562
      %v3632 = vmul.f32 %v3563, %v3563
      %v3633 = vmul.f32 %v3564, %v3564
      %v3634 = vmul.f32 %v3565, %v3565
      %v3635 = vmul.f32 %v3566, %v3566
      %v3636 = vmul.f32 %v3567, %v3567
      %v3637 = vmul.f32 %v3568, %v3568
      %v3638 = vmul.f32 %v3569, %v3569
      %v3639 = vmul.f32 %v3570, %v3570
      %v3640 = vmul.f32 %v3571, %v3571
      %v3641 = vmul.f32 %v3572, %v3572
      %v3642 = vmul.f32 %v3573, %v3573
      %v3643 = vmul.f32 %v3574, %v3574
      %v3644 = vmul.f32 %v3575, %v3575
      %v3645 = vmul.f32 %v3576, %v3576
      %v3646 = vmul.f32 %v3577, %v3577
      %v3647 = vsel %vm940, %v3631, 0.0
      %v3648 = vsel %vm940, %v3632, 0.0
      %v3649 = vadd.f32 %v3647, %v3648
      %v3650 = vsel %vm940, %v3633, 0.0
      %v3651 = vadd.f32 %v3649, %v3650
      %v3652 = vsel %vm940, %v3634, 0.0
      %v3653 = vadd.f32 %v3651, %v3652
      %v3654 = vsel %vm940, %v3635, 0.0
      %v3655 = vadd.f32 %v3653, %v3654
      %v3656 = vsel %vm940, %v3636, 0.0
      %v3657 = vadd.f32 %v3655, %v3656
      %v3658 = vsel %vm940, %v3637, 0.0
      %v3659 = vadd.f32 %v3657, %v3658
      %v3660 = vsel %vm940, %v3638, 0.0
      %v3661 = vadd.f32 %v3659, %v3660
      %v3662 = vsel %vm940, %v3639, 0.0
      %v3663 = vadd.f32 %v3661, %v3662
      %v3664 = vsel %vm940, %v3640, 0.0
      %v3665 = vadd.f32 %v3663, %v3664
      %v3666 = vsel %vm940, %v3641, 0.0
      %v3667 = vadd.f32 %v3665, %v3666
      %v3668 = vsel %vm940, %v3642, 0.0
      %v3669 = vadd.f32 %v3667, %v3668
      %v3670 = vsel %vm940, %v3643, 0.0
      %v3671 = vadd.f32 %v3669, %v3670
      %v3672 = vsel %vm940, %v3644, 0.0
      %v3673 = vadd.f32 %v3671, %v3672
      %v3674 = vsel %vm940, %v3645, 0.0
      %v3675 = vadd.f32 %v3673, %v3674
      %v3676 = vsel %vm940, %v3646, 0.0
      %v3677 = vadd.f32 %v3675, %v3676
      %v3678 = vrot.slane %v3677, 4
      %v3679 = vadd.f32 %v3677, %v3678
      %v3680 = vrot.slane %v3679, 2
      %v3681 = vadd.f32 %v3679, %v3680
      %v3682 = vrot.slane %v3681, 1
      %v3683 = vadd.f32 %v3681, %v3682
      %v3684 = vsel %vm739, %v3630, %v3683
      %vm3685 = vcmask 25600
      %3686 = vst.msk [vmem:[%s684] sm:$0x3] %vm3685, %v3684
      %s3687 = smul.u32 8, %s26
      %p3688 = scmp.lt.s32.totalorder %s25, 1
      %s3689 = scalar_select %p3688, %s25, 1
      %p3690 = scmp.lt.s32.totalorder %s3687, 15
      %s3691 = scalar_select %p3690, %s3687, 15
      %s3692 = smul.addr %s3691, 2
      %s3693 = smul.addr %s3689, 32
      %s3694 = sadd.s32 %s3692, %s3693
      %s3695 = smul.addr %s3694, 8
      %s3696 = scalar_lea.vmem %s8, %s3695
      %p3697 = scmp.lt.s32.totalorder %s25, 1
      %s3698 = scalar_select %p3697, %s25, 1
      %p3699 = scmp.lt.s32.totalorder %s26, 1
      %s3700 = scalar_select %p3699, %s26, 1
      %s3701 = smul.addr %s3698, 2
      %s3702 = sadd.s32 %s3700, %s3701
      %s3703 = smul.addr %s3702, 2
      %s3704 = scalar_lea.vmem %s9, %s3703
      // Predicated region
      $region53: #{up_forward.3} parent=51 // pred_check
        %p3705 = pneg %p295
      $region54: #{up_forward.3} parent=51 // pred_check_branch
        %3707 = sbr.rel (%p3705) target = $region56
      $region55: #{up_forward.3} parent=51 // pred_region
        %s3708 = smul.u32 8, %s26
      $region56: #{up_forward.3} parent=51 // pred_fallthru
        _
      // Predicated region
      $region57: #{up_forward.3} parent=51 // pred_check
        %p3709 = pneg %p323
      $region58: #{up_forward.3} parent=51 // pred_check_branch
        %3711 = sbr.rel (%p3709) target = $region60
      $region59: #{up_forward.3} parent=51 // pred_region
        _
      $region60: #{up_forward.3} parent=51 // pred_fallthru
        _
    $region52: #{up_forward.3} parent=5 // pred_fallthru
      _
    %p3712 = scmp.le.s32.totalorder 2, %s16
    // Predicated region
    $region61: #{up_forward.3} parent=5 // pred_check
      %p3713 = pneg %p3712
    $region62: #{up_forward.3} parent=5 // pred_check_branch
      %3715 = sbr.rel (%p3713) target = $region64
    $region63: #{up_forward.3} parent=5 // pred_region
      %s3716 = ssub.s32 %s16, 2
      // Predicated region
      $region65: #{up_forward.3} parent=63 // pred_check
        %p3717 = pneg %p301
      $region66: #{up_forward.3} parent=63 // pred_check_branch
        %3719 = sbr.rel (%p3717) target = $region68
      $region67: #{up_forward.3} parent=63 // pred_region
        %s3720 = smul.u32 8, %s28
        %p3721 = scmp.lt.s32.totalorder %s27, 1
        %s3722 = scalar_select %p3721, %s27, 1
        %p3723 = scmp.lt.s32.totalorder %s3720, 15
        %s3724 = scalar_select %p3723, %s3720, 15
        %s3725 = smul.addr %s3724, 2
        %s3726 = smul.addr %s3722, 32
        %s3727 = sadd.s32 %s3725, %s3726
        %s3728 = smul.addr %s3727, 8
        %s3729 = scalar_lea.vmem %s8, %s3728
      $region68: #{up_forward.3} parent=63 // pred_fallthru
        _
      // Predicated region
      $region69: #{up_forward.3} parent=63 // pred_check
        %p3730 = pneg %p329
      $region70: #{up_forward.3} parent=63 // pred_check_branch
        %3732 = sbr.rel (%p3730) target = $region72
      $region71: #{up_forward.3} parent=63 // pred_region
        %p3733 = scmp.lt.s32.totalorder %s27, 1
        %s3734 = scalar_select %p3733, %s27, 1
        %p3735 = scmp.lt.s32.totalorder %s28, 1
        %s3736 = scalar_select %p3735, %s28, 1
        %s3737 = smul.addr %s3734, 2
        %s3738 = sadd.s32 %s3736, %s3737
        %s3739 = smul.addr %s3738, 2
        %s3740 = scalar_lea.vmem %s9, %s3739
      $region72: #{up_forward.3} parent=63 // pred_fallthru
        _
    $region64: #{up_forward.3} parent=5 // pred_fallthru
      _
  $region6: #{up_forward.3} parent=0 // loop_footer
    %s20 = sadd.s32 1, %s16
  $region7: #{up_forward.3} parent=0 // loop_footer_branch
    %15 = sbr.rel target = $region3
  $region8: #{up_forward.3} parent=0 // loop_exit
    _

</llo_original>
